<compile_context>
chip_gen: v7x
topology: tpu7x:2x2x1
jax: 0.10.0
libtpu: 0.0.40
codegen_flags: <defaults>
</compile_context>

<pallas_src>
import functools

import jax
import jax.numpy as jnp
from jax import lax
from jax.experimental import pallas as pl
from jax.experimental.pallas import tpu as pltpu

block_size = 256
n_embd = 384
num_heads = 6
head_size = n_embd // num_heads  # 64


def mha_kernel(x_ref, wqkv_ref, wp_ref, bp_ref, o_ref, qkv_ref, attn_ref,
               *, num_heads, head_dim, tq):
    """Grid = (batch, query_tile). QKV is computed once per batch row (q-tile 0)
    into a persistent VMEM scratch; each step handles one (TQ, T) query slab."""
    H, D, TQ = num_heads, head_dim, tq
    HD = H * D
    T = x_ref.shape[1]
    qi = pl.program_id(1)

    # ---- Phase 1 (once per batch row): fused QKV projection, bf16 in / f32 acc.
    @pl.when(qi == 0)
    def _():
        xb = x_ref[0].astype(jnp.bfloat16)                      # (T, C)
        for i in range(3):                                       # Q | K | V chunks
            blk = jnp.dot(xb, wqkv_ref[:, i * HD:(i + 1) * HD],
                          preferred_element_type=jnp.float32)    # (T, HD)
            qkv_ref[:, i * HD:(i + 1) * HD] = blk.astype(jnp.bfloat16)

    # ---- Phase 2: causal attention for this query slab.
    q0 = pl.multiple_of(qi * TQ, TQ)
    row = lax.broadcasted_iota(jnp.int32, (TQ, T), 0) + q0       # global query index
    col = lax.broadcasted_iota(jnp.int32, (TQ, T), 1)
    # Additive causal mask (finite, no -inf arithmetic), hoisted out of the head loop.
    bias = jnp.where(col <= row, 0.0, -1e30).astype(jnp.float32)

    for h in range(H):                                           # H=6, static unroll
        q_h = qkv_ref[pl.ds(q0, TQ), h * D:(h + 1) * D]          # (TQ, D) bf16 (pre-scaled)
        k_h = qkv_ref[:, HD + h * D:HD + (h + 1) * D]            # (T, D)  bf16
        v_h = qkv_ref[:, 2 * HD + h * D:2 * HD + (h + 1) * D]    # (T, D)  bf16

        # q @ k^T without materializing a transpose: contract on the last dims.
        s = lax.dot_general(q_h, k_h, (((1,), (1,)), ((), ())),
                            preferred_element_type=jnp.float32)  # (TQ, T) f32
        s = s + bias

        m = jnp.max(s, axis=-1, keepdims=True)
        e = jnp.exp(s - m)
        r = pl.reciprocal(jnp.sum(e, axis=-1, keepdims=True), approx=True)
        p = (e * r).astype(jnp.bfloat16)

        o_h = jnp.dot(p, v_h, preferred_element_type=jnp.float32)      # (TQ, D)
        attn_ref[:, h * D:(h + 1) * D] = o_h.astype(jnp.bfloat16)      # "concat" via VMEM

    # ---- Output projection (one fused matmul) + bias.
    proj = jnp.dot(attn_ref[...], wp_ref[...],
                   preferred_element_type=jnp.float32) + bp_ref[...]   # (TQ, C)
    o_ref[0] = proj.astype(o_ref.dtype)


def multi_head_attention(x, wq, wk, wv, wp, bp, *, tq=128):
    """x: (B, T, C) f32. wq/wk/wv: (H, C, D) f32. wp: (C, C). bp: (C,).
    Returns (B, T, C) f32. Eval-mode (dropout = identity)."""
    B, T, C = x.shape
    H, _, D = wq.shape
    HD = H * D
    scale = C ** (-0.5)  # NOTE: reference scales by n_embd**-0.5, not head_size**-0.5.

    # Fused QKV weight (C, 3*H*D), head-major columns; score scale folded into Q.
    wq_f = (wq * scale).transpose(1, 0, 2).reshape(C, HD)
    wk_f = wk.transpose(1, 0, 2).reshape(C, HD)
    wv_f = wv.transpose(1, 0, 2).reshape(C, HD)
    w_qkv = jnp.concatenate([wq_f, wk_f, wv_f], axis=-1).astype(jnp.bfloat16)
    wp_b = wp.astype(jnp.bfloat16)
    bp2 = bp.reshape(1, C).astype(jnp.float32)   # lane-dense (1, C) bias row

    TQ = min(tq, T)
    assert T % TQ == 0 and TQ % 8 == 0 and C % 128 == 0, "shape/tiling mismatch"
    NQ = T // TQ

    cost = pl.CostEstimate(
        flops=int(B * (2 * T * C * 3 * HD + 4 * H * T * T * D + 2 * T * HD * C)),
        transcendentals=int(B * H * T * T),
        bytes_accessed=int(2 * B * T * C * 4 + w_qkv.size * 2 + wp_b.size * 2 + bp2.size * 4),
    )

    kernel = functools.partial(mha_kernel, num_heads=H, head_dim=D, tq=TQ)

    return pl.pallas_call(
        kernel,
        out_shape=jax.ShapeDtypeStruct((B, T, C), jnp.float32),
        grid=(B, NQ),
        in_specs=[
            pl.BlockSpec((1, T, C), lambda b, q: (b, 0, 0)),       # x: full sequence per batch
            pl.BlockSpec((C, 3 * HD), lambda b, q: (0, 0)),        # fused QKV weight (resident)
            pl.BlockSpec((HD, C), lambda b, q: (0, 0)),            # output-projection weight
            pl.BlockSpec((1, C), lambda b, q: (0, 0)),             # output-projection bias
        ],
        out_specs=pl.BlockSpec((1, TQ, C), lambda b, q: (b, q, 0)),
        scratch_shapes=[
            pltpu.VMEM((T, 3 * HD), jnp.bfloat16),   # fused Q|K|V activations (persist over q-tiles)
            pltpu.VMEM((TQ, HD), jnp.bfloat16),      # per-slab concatenated head outputs
        ],
        compiler_params=pltpu.CompilerParams(
            dimension_semantics=("parallel", "arbitrary")),
        cost_estimate=cost,
    )(x, w_qkv, wp_b, bp2)


def reference(x, wq, wk, wv, wp, bp):
    """Pure-JAX f32 reference mirroring the PyTorch forward (eval mode)."""
    B, T, C = x.shape
    scale = C ** (-0.5)
    causal = jnp.tril(jnp.ones((T, T), dtype=bool))
    outs = []
    for h in range(wq.shape[0]):
        q = x @ wq[h]
        k = x @ wk[h]
        v = x @ wv[h]
        wei = (q @ jnp.swapaxes(k, -2, -1)) * scale
        wei = jnp.where(causal, wei, -jnp.inf)
        wei = jax.nn.softmax(wei, axis=-1)
        outs.append(wei @ v)
    cat = jnp.concatenate(outs, axis=-1)
    return cat @ wp + bp


if __name__ == "__main__":
    key = jax.random.PRNGKey(0)
    kx, kq, kk, kv, kp, kb = jax.random.split(key, 6)

    B, T = 2, block_size  # full 256-token causal window, exercises the query-tile grid
    x = jax.random.normal(kx, (B, T, n_embd), dtype=jnp.float32)

    # Deterministic synthetic parameters (shapes match nn.Linear weights, pre-transposed).
    wq = 0.02 * jax.random.normal(kq, (num_heads, n_embd, head_size), dtype=jnp.float32)
    wk = 0.02 * jax.random.normal(kk, (num_heads, n_embd, head_size), dtype=jnp.float32)
    wv = 0.02 * jax.random.normal(kv, (num_heads, n_embd, head_size), dtype=jnp.float32)
    wp = 0.02 * jax.random.normal(kp, (n_embd, n_embd), dtype=jnp.float32)
    bp = 0.01 * jax.random.normal(kb, (n_embd,), dtype=jnp.float32)

    out = multi_head_attention(x, wq, wk, wv, wp, bp)
    out = jax.block_until_ready(out)

    ref = reference(x, wq, wk, wv, wp, bp)
    assert out.shape == (B, T, n_embd)
    # bf16 matmul operands with f32 accumulation: tolerance loosened per review.
    assert jnp.allclose(out, ref, atol=1e-2, rtol=1e-2), "mismatch vs reference"

    print("KERNEL_OK")
</pallas_src>

<mosaic_0001>
module attributes {stable_mosaic.version = 11 : i64} {
  func.func @mha_kernel(%arg0: i32, %arg1: i32, %arg2: memref<1x256x384xf32, #tpu.memory_space<vmem>>, %arg3: memref<384x1152xbf16, #tpu.memory_space<vmem>>, %arg4: memref<384x384xbf16, #tpu.memory_space<vmem>>, %arg5: memref<1x384xf32, #tpu.memory_space<vmem>>, %arg6: memref<1x128x384xf32, #tpu.memory_space<vmem>>, %arg7: memref<256x1152xbf16, #tpu.memory_space<vmem>>, %arg8: memref<128x384xbf16, #tpu.memory_space<vmem>>) attributes {dimension_semantics = [#tpu.dimension_semantics<parallel>, #tpu.dimension_semantics<arbitrary>], iteration_bounds = array<i64: 2, 2>, scalar_prefetch = 0 : i64, scratch_operands = 2 : i64, tpu.core_type = #tpu.core_type<tc>, window_params = [{transform_indices = @transform_0, window_bounds = array<i64: 1, 256, 384>}, {pipeline_mode = #tpu.pipeline_mode<synchronous>, transform_indices = @transform_1, window_bounds = array<i64: 384, 1152>}, {pipeline_mode = #tpu.pipeline_mode<synchronous>, transform_indices = @transform_2, window_bounds = array<i64: 384, 384>}, {pipeline_mode = #tpu.pipeline_mode<synchronous>, transform_indices = @transform_3, window_bounds = array<i64: 1, 384>}, {transform_indices = @transform_4, window_bounds = array<i64: 1, 128, 384>}]} {
    %c0_i32 = arith.constant 0 : i32
    %0 = arith.cmpi eq, %arg1, %c0_i32 : i32
    %1 = arith.extui %0 : i1 to i32
    %c0_i32_0 = arith.constant 0 : i32
    %2 = arith.cmpi ne, %1, %c0_i32_0 : i32
    scf.if %2 {
      %c0_60 = arith.constant 0 : index
      %c0_61 = arith.constant 0 : index
      %c0_62 = arith.constant 0 : index
      %142 = vector.load %arg2[%c0_60, %c0_61, %c0_62] : memref<1x256x384xf32, #tpu.memory_space<vmem>>, vector<1x256x384xf32>
      %143 = vector.shape_cast %142 : vector<1x256x384xf32> to vector<256x384xf32>
      %144 = arith.truncf %143 : vector<256x384xf32> to vector<256x384xbf16>
      %c0_63 = arith.constant 0 : index
      %c0_64 = arith.constant 0 : index
      %145 = vector.load %arg3[%c0_63, %c0_64] : memref<384x1152xbf16, #tpu.memory_space<vmem>>, vector<384x384xbf16>
      %cst_65 = arith.constant dense<0.000000e+00> : vector<256x384xf32>
      %146 = tpu.matmul %144, %145, %cst_65 {dimension_numbers = #tpu.dot_dimension_numbers<[1], [0], [0], [1], [0, 0, 1, 1], [], []>} : vector<256x384xbf16>, vector<384x384xbf16>, vector<256x384xf32> -> vector<256x384xf32>
      %147 = arith.truncf %146 : vector<256x384xf32> to vector<256x384xbf16>
      %c0_66 = arith.constant 0 : index
      %c0_67 = arith.constant 0 : index
      %148 = vector.load %arg7[%c0_66, %c0_67] : memref<256x1152xbf16, #tpu.memory_space<vmem>>, vector<256x384xbf16>
      tpu.vector_store %arg7[%c0_66, %c0_67], %147 {strides = array<i32>} : memref<256x1152xbf16, #tpu.memory_space<vmem>>, vector<256x384xbf16>,
      %c0_68 = arith.constant 0 : index
      %c384_69 = arith.constant 384 : index
      %149 = vector.load %arg3[%c0_68, %c384_69] : memref<384x1152xbf16, #tpu.memory_space<vmem>>, vector<384x384xbf16>
      %cst_70 = arith.constant dense<0.000000e+00> : vector<256x384xf32>
      %150 = tpu.matmul %144, %149, %cst_70 {dimension_numbers = #tpu.dot_dimension_numbers<[1], [0], [0], [1], [0, 0, 1, 1], [], []>} : vector<256x384xbf16>, vector<384x384xbf16>, vector<256x384xf32> -> vector<256x384xf32>
      %151 = arith.truncf %150 : vector<256x384xf32> to vector<256x384xbf16>
      %c0_71 = arith.constant 0 : index
      %c384_72 = arith.constant 384 : index
      %152 = vector.load %arg7[%c0_71, %c384_72] : memref<256x1152xbf16, #tpu.memory_space<vmem>>, vector<256x384xbf16>
      tpu.vector_store %arg7[%c0_71, %c384_72], %151 {strides = array<i32>} : memref<256x1152xbf16, #tpu.memory_space<vmem>>, vector<256x384xbf16>,
      %c0_73 = arith.constant 0 : index
      %c768_74 = arith.constant 768 : index
      %153 = vector.load %arg3[%c0_73, %c768_74] : memref<384x1152xbf16, #tpu.memory_space<vmem>>, vector<384x384xbf16>
      %cst_75 = arith.constant dense<0.000000e+00> : vector<256x384xf32>
      %154 = tpu.matmul %144, %153, %cst_75 {dimension_numbers = #tpu.dot_dimension_numbers<[1], [0], [0], [1], [0, 0, 1, 1], [], []>} : vector<256x384xbf16>, vector<384x384xbf16>, vector<256x384xf32> -> vector<256x384xf32>
      %155 = arith.truncf %154 : vector<256x384xf32> to vector<256x384xbf16>
      %c0_76 = arith.constant 0 : index
      %c768_77 = arith.constant 768 : index
      %156 = vector.load %arg7[%c0_76, %c768_77] : memref<256x1152xbf16, #tpu.memory_space<vmem>>, vector<256x384xbf16>
      tpu.vector_store %arg7[%c0_76, %c768_77], %155 {strides = array<i32>} : memref<256x1152xbf16, #tpu.memory_space<vmem>>, vector<256x384xbf16>,
    } else {
    }
    %c128_i32 = arith.constant 128 : i32
    %3 = arith.muli %arg1, %c128_i32 : i32
    %4 = tpu.assume_multiple %3, 128 : i32
    %5 = tpu.iota {dimensions = array<i32: 0>} : vector<128x256xi32>
    %6 = vector.broadcast %4 : i32 to vector<128x256xi32>
    %7 = arith.addi %5, %6 : vector<128x256xi32>
    %8 = tpu.iota {dimensions = array<i32: 1>} : vector<128x256xi32>
    %9 = arith.cmpi sle, %8, %7 : vector<128x256xi32>
    %cst = arith.constant 0.000000e+00 : f32
    %cst_1 = arith.constant -1.000000e+30 : f32
    %10 = vector.broadcast %cst : f32 to vector<128x256xf32>
    %11 = vector.broadcast %cst_1 : f32 to vector<128x256xf32>
    %12 = arith.select %9, %10, %11 : vector<128x256xi1>, vector<128x256xf32>
    %13 = arith.index_cast %4 : i32 to index
    %c0 = arith.constant 0 : index
    %14 = vector.load %arg7[%13, %c0] : memref<256x1152xbf16, #tpu.memory_space<vmem>>, vector<128x64xbf16>
    %c0_2 = arith.constant 0 : index
    %c384 = arith.constant 384 : index
    %15 = vector.load %arg7[%c0_2, %c384] : memref<256x1152xbf16, #tpu.memory_space<vmem>>, vector<256x64xbf16>
    %c0_3 = arith.constant 0 : index
    %c768 = arith.constant 768 : index
    %16 = vector.load %arg7[%c0_3, %c768] : memref<256x1152xbf16, #tpu.memory_space<vmem>>, vector<256x64xbf16>
    %cst_4 = arith.constant dense<0.000000e+00> : vector<128x256xf32>
    %17 = tpu.matmul %14, %15, %cst_4 {dimension_numbers = #tpu.dot_dimension_numbers<[1], [1], [0], [0], [0, 0, 1, 0], [], []>} : vector<128x64xbf16>, vector<256x64xbf16>, vector<128x256xf32> -> vector<128x256xf32>
    %18 = arith.addf %17, %12 : vector<128x256xf32>
    %cst_5 = arith.constant dense<0xFF800000> : vector<128xf32>
    %19 = vector.multi_reduction <maximumf>, %18, %cst_5 [1] : vector<128x256xf32> to vector<128xf32>
    %20 = vector.shape_cast %19 : vector<128xf32> to vector<128x1xf32>
    %21 = vector.broadcast %20 : vector<128x1xf32> to vector<128x256xf32>
    %22 = arith.subf %18, %21 : vector<128x256xf32>
    %23 = math.exp %22 : vector<128x256xf32>
    %cst_6 = arith.constant dense<0.000000e+00> : vector<128xf32>
    %24 = vector.multi_reduction <add>, %23, %cst_6 [1] : vector<128x256xf32> to vector<128xf32>
    %25 = vector.shape_cast %24 : vector<128xf32> to vector<128x1xf32>
    %26 = tpu.reciprocal %25 {approx = true} : vector<128x1xf32> -> vector<128x1xf32>
    %27 = vector.broadcast %26 : vector<128x1xf32> to vector<128x256xf32>
    %28 = arith.mulf %23, %27 : vector<128x256xf32>
    %29 = arith.truncf %28 : vector<128x256xf32> to vector<128x256xbf16>
    %cst_7 = arith.constant dense<0.000000e+00> : vector<128x64xf32>
    %30 = tpu.matmul %29, %16, %cst_7 {dimension_numbers = #tpu.dot_dimension_numbers<[1], [0], [0], [1], [0, 0, 1, 1], [], []>} : vector<128x256xbf16>, vector<256x64xbf16>, vector<128x64xf32> -> vector<128x64xf32>
    %31 = arith.truncf %30 : vector<128x64xf32> to vector<128x64xbf16>
    %c0_8 = arith.constant 0 : index
    %c0_9 = arith.constant 0 : index
    %32 = vector.load %arg8[%c0_8, %c0_9] : memref<128x384xbf16, #tpu.memory_space<vmem>>, vector<128x64xbf16>
    tpu.vector_store %arg8[%c0_8, %c0_9], %31 {strides = array<i32>} : memref<128x384xbf16, #tpu.memory_space<vmem>>, vector<128x64xbf16>,
    %33 = arith.index_cast %4 : i32 to index
    %c64 = arith.constant 64 : index
    %34 = vector.load %arg7[%33, %c64] : memref<256x1152xbf16, #tpu.memory_space<vmem>>, vector<128x64xbf16>
    %c0_10 = arith.constant 0 : index
    %c448 = arith.constant 448 : index
    %35 = vector.load %arg7[%c0_10, %c448] : memref<256x1152xbf16, #tpu.memory_space<vmem>>, vector<256x64xbf16>
    %c0_11 = arith.constant 0 : index
    %c832 = arith.constant 832 : index
    %36 = vector.load %arg7[%c0_11, %c832] : memref<256x1152xbf16, #tpu.memory_space<vmem>>, vector<256x64xbf16>
    %cst_12 = arith.constant dense<0.000000e+00> : vector<128x256xf32>
    %37 = tpu.matmul %34, %35, %cst_12 {dimension_numbers = #tpu.dot_dimension_numbers<[1], [1], [0], [0], [0, 0, 1, 0], [], []>} : vector<128x64xbf16>, vector<256x64xbf16>, vector<128x256xf32> -> vector<128x256xf32>
    %38 = arith.addf %37, %12 : vector<128x256xf32>
    %cst_13 = arith.constant dense<0xFF800000> : vector<128xf32>
    %39 = vector.multi_reduction <maximumf>, %38, %cst_13 [1] : vector<128x256xf32> to vector<128xf32>
    %40 = vector.shape_cast %39 : vector<128xf32> to vector<128x1xf32>
    %41 = vector.broadcast %40 : vector<128x1xf32> to vector<128x256xf32>
    %42 = arith.subf %38, %41 : vector<128x256xf32>
    %43 = math.exp %42 : vector<128x256xf32>
    %cst_14 = arith.constant dense<0.000000e+00> : vector<128xf32>
    %44 = vector.multi_reduction <add>, %43, %cst_14 [1] : vector<128x256xf32> to vector<128xf32>
    %45 = vector.shape_cast %44 : vector<128xf32> to vector<128x1xf32>
    %46 = tpu.reciprocal %45 {approx = true} : vector<128x1xf32> -> vector<128x1xf32>
    %47 = vector.broadcast %46 : vector<128x1xf32> to vector<128x256xf32>
    %48 = arith.mulf %43, %47 : vector<128x256xf32>
    %49 = arith.truncf %48 : vector<128x256xf32> to vector<128x256xbf16>
    %cst_15 = arith.constant dense<0.000000e+00> : vector<128x64xf32>
    %50 = tpu.matmul %49, %36, %cst_15 {dimension_numbers = #tpu.dot_dimension_numbers<[1], [0], [0], [1], [0, 0, 1, 1], [], []>} : vector<128x256xbf16>, vector<256x64xbf16>, vector<128x64xf32> -> vector<128x64xf32>
    %51 = arith.truncf %50 : vector<128x64xf32> to vector<128x64xbf16>
    %c0_16 = arith.constant 0 : index
    %c64_17 = arith.constant 64 : index
    %52 = vector.load %arg8[%c0_16, %c64_17] : memref<128x384xbf16, #tpu.memory_space<vmem>>, vector<128x64xbf16>
    tpu.vector_store %arg8[%c0_16, %c64_17], %51 {strides = array<i32>} : memref<128x384xbf16, #tpu.memory_space<vmem>>, vector<128x64xbf16>,
    %53 = arith.index_cast %4 : i32 to index
    %c128 = arith.constant 128 : index
    %54 = vector.load %arg7[%53, %c128] : memref<256x1152xbf16, #tpu.memory_space<vmem>>, vector<128x64xbf16>
    %c0_18 = arith.constant 0 : index
    %c512 = arith.constant 512 : index
    %55 = vector.load %arg7[%c0_18, %c512] : memref<256x1152xbf16, #tpu.memory_space<vmem>>, vector<256x64xbf16>
    %c0_19 = arith.constant 0 : index
    %c896 = arith.constant 896 : index
    %56 = vector.load %arg7[%c0_19, %c896] : memref<256x1152xbf16, #tpu.memory_space<vmem>>, vector<256x64xbf16>
    %cst_20 = arith.constant dense<0.000000e+00> : vector<128x256xf32>
    %57 = tpu.matmul %54, %55, %cst_20 {dimension_numbers = #tpu.dot_dimension_numbers<[1], [1], [0], [0], [0, 0, 1, 0], [], []>} : vector<128x64xbf16>, vector<256x64xbf16>, vector<128x256xf32> -> vector<128x256xf32>
    %58 = arith.addf %57, %12 : vector<128x256xf32>
    %cst_21 = arith.constant dense<0xFF800000> : vector<128xf32>
    %59 = vector.multi_reduction <maximumf>, %58, %cst_21 [1] : vector<128x256xf32> to vector<128xf32>
    %60 = vector.shape_cast %59 : vector<128xf32> to vector<128x1xf32>
    %61 = vector.broadcast %60 : vector<128x1xf32> to vector<128x256xf32>
    %62 = arith.subf %58, %61 : vector<128x256xf32>
    %63 = math.exp %62 : vector<128x256xf32>
    %cst_22 = arith.constant dense<0.000000e+00> : vector<128xf32>
    %64 = vector.multi_reduction <add>, %63, %cst_22 [1] : vector<128x256xf32> to vector<128xf32>
    %65 = vector.shape_cast %64 : vector<128xf32> to vector<128x1xf32>
    %66 = tpu.reciprocal %65 {approx = true} : vector<128x1xf32> -> vector<128x1xf32>
    %67 = vector.broadcast %66 : vector<128x1xf32> to vector<128x256xf32>
    %68 = arith.mulf %63, %67 : vector<128x256xf32>
    %69 = arith.truncf %68 : vector<128x256xf32> to vector<128x256xbf16>
    %cst_23 = arith.constant dense<0.000000e+00> : vector<128x64xf32>
    %70 = tpu.matmul %69, %56, %cst_23 {dimension_numbers = #tpu.dot_dimension_numbers<[1], [0], [0], [1], [0, 0, 1, 1], [], []>} : vector<128x256xbf16>, vector<256x64xbf16>, vector<128x64xf32> -> vector<128x64xf32>
    %71 = arith.truncf %70 : vector<128x64xf32> to vector<128x64xbf16>
    %c0_24 = arith.constant 0 : index
    %c128_25 = arith.constant 128 : index
    %72 = vector.load %arg8[%c0_24, %c128_25] : memref<128x384xbf16, #tpu.memory_space<vmem>>, vector<128x64xbf16>
    tpu.vector_store %arg8[%c0_24, %c128_25], %71 {strides = array<i32>} : memref<128x384xbf16, #tpu.memory_space<vmem>>, vector<128x64xbf16>,
    %73 = arith.index_cast %4 : i32 to index
    %c192 = arith.constant 192 : index
    %74 = vector.load %arg7[%73, %c192] : memref<256x1152xbf16, #tpu.memory_space<vmem>>, vector<128x64xbf16>
    %c0_26 = arith.constant 0 : index
    %c576 = arith.constant 576 : index
    %75 = vector.load %arg7[%c0_26, %c576] : memref<256x1152xbf16, #tpu.memory_space<vmem>>, vector<256x64xbf16>
    %c0_27 = arith.constant 0 : index
    %c960 = arith.constant 960 : index
    %76 = vector.load %arg7[%c0_27, %c960] : memref<256x1152xbf16, #tpu.memory_space<vmem>>, vector<256x64xbf16>
    %cst_28 = arith.constant dense<0.000000e+00> : vector<128x256xf32>
    %77 = tpu.matmul %74, %75, %cst_28 {dimension_numbers = #tpu.dot_dimension_numbers<[1], [1], [0], [0], [0, 0, 1, 0], [], []>} : vector<128x64xbf16>, vector<256x64xbf16>, vector<128x256xf32> -> vector<128x256xf32>
    %78 = arith.addf %77, %12 : vector<128x256xf32>
    %cst_29 = arith.constant dense<0xFF800000> : vector<128xf32>
    %79 = vector.multi_reduction <maximumf>, %78, %cst_29 [1] : vector<128x256xf32> to vector<128xf32>
    %80 = vector.shape_cast %79 : vector<128xf32> to vector<128x1xf32>
    %81 = vector.broadcast %80 : vector<128x1xf32> to vector<128x256xf32>
    %82 = arith.subf %78, %81 : vector<128x256xf32>
    %83 = math.exp %82 : vector<128x256xf32>
    %cst_30 = arith.constant dense<0.000000e+00> : vector<128xf32>
    %84 = vector.multi_reduction <add>, %83, %cst_30 [1] : vector<128x256xf32> to vector<128xf32>
    %85 = vector.shape_cast %84 : vector<128xf32> to vector<128x1xf32>
    %86 = tpu.reciprocal %85 {approx = true} : vector<128x1xf32> -> vector<128x1xf32>
    %87 = vector.broadcast %86 : vector<128x1xf32> to vector<128x256xf32>
    %88 = arith.mulf %83, %87 : vector<128x256xf32>
    %89 = arith.truncf %88 : vector<128x256xf32> to vector<128x256xbf16>
    %cst_31 = arith.constant dense<0.000000e+00> : vector<128x64xf32>
    %90 = tpu.matmul %89, %76, %cst_31 {dimension_numbers = #tpu.dot_dimension_numbers<[1], [0], [0], [1], [0, 0, 1, 1], [], []>} : vector<128x256xbf16>, vector<256x64xbf16>, vector<128x64xf32> -> vector<128x64xf32>
    %91 = arith.truncf %90 : vector<128x64xf32> to vector<128x64xbf16>
    %c0_32 = arith.constant 0 : index
    %c192_33 = arith.constant 192 : index
    %92 = vector.load %arg8[%c0_32, %c192_33] : memref<128x384xbf16, #tpu.memory_space<vmem>>, vector<128x64xbf16>
    tpu.vector_store %arg8[%c0_32, %c192_33], %91 {strides = array<i32>} : memref<128x384xbf16, #tpu.memory_space<vmem>>, vector<128x64xbf16>,
    %93 = arith.index_cast %4 : i32 to index
    %c256 = arith.constant 256 : index
    %94 = vector.load %arg7[%93, %c256] : memref<256x1152xbf16, #tpu.memory_space<vmem>>, vector<128x64xbf16>
    %c0_34 = arith.constant 0 : index
    %c640 = arith.constant 640 : index
    %95 = vector.load %arg7[%c0_34, %c640] : memref<256x1152xbf16, #tpu.memory_space<vmem>>, vector<256x64xbf16>
    %c0_35 = arith.constant 0 : index
    %c1024 = arith.constant 1024 : index
    %96 = vector.load %arg7[%c0_35, %c1024] : memref<256x1152xbf16, #tpu.memory_space<vmem>>, vector<256x64xbf16>
    %cst_36 = arith.constant dense<0.000000e+00> : vector<128x256xf32>
    %97 = tpu.matmul %94, %95, %cst_36 {dimension_numbers = #tpu.dot_dimension_numbers<[1], [1], [0], [0], [0, 0, 1, 0], [], []>} : vector<128x64xbf16>, vector<256x64xbf16>, vector<128x256xf32> -> vector<128x256xf32>
    %98 = arith.addf %97, %12 : vector<128x256xf32>
    %cst_37 = arith.constant dense<0xFF800000> : vector<128xf32>
    %99 = vector.multi_reduction <maximumf>, %98, %cst_37 [1] : vector<128x256xf32> to vector<128xf32>
    %100 = vector.shape_cast %99 : vector<128xf32> to vector<128x1xf32>
    %101 = vector.broadcast %100 : vector<128x1xf32> to vector<128x256xf32>
    %102 = arith.subf %98, %101 : vector<128x256xf32>
    %103 = math.exp %102 : vector<128x256xf32>
    %cst_38 = arith.constant dense<0.000000e+00> : vector<128xf32>
    %104 = vector.multi_reduction <add>, %103, %cst_38 [1] : vector<128x256xf32> to vector<128xf32>
    %105 = vector.shape_cast %104 : vector<128xf32> to vector<128x1xf32>
    %106 = tpu.reciprocal %105 {approx = true} : vector<128x1xf32> -> vector<128x1xf32>
    %107 = vector.broadcast %106 : vector<128x1xf32> to vector<128x256xf32>
    %108 = arith.mulf %103, %107 : vector<128x256xf32>
    %109 = arith.truncf %108 : vector<128x256xf32> to vector<128x256xbf16>
    %cst_39 = arith.constant dense<0.000000e+00> : vector<128x64xf32>
    %110 = tpu.matmul %109, %96, %cst_39 {dimension_numbers = #tpu.dot_dimension_numbers<[1], [0], [0], [1], [0, 0, 1, 1], [], []>} : vector<128x256xbf16>, vector<256x64xbf16>, vector<128x64xf32> -> vector<128x64xf32>
    %111 = arith.truncf %110 : vector<128x64xf32> to vector<128x64xbf16>
    %c0_40 = arith.constant 0 : index
    %c256_41 = arith.constant 256 : index
    %112 = vector.load %arg8[%c0_40, %c256_41] : memref<128x384xbf16, #tpu.memory_space<vmem>>, vector<128x64xbf16>
    tpu.vector_store %arg8[%c0_40, %c256_41], %111 {strides = array<i32>} : memref<128x384xbf16, #tpu.memory_space<vmem>>, vector<128x64xbf16>,
    %113 = arith.index_cast %4 : i32 to index
    %c320 = arith.constant 320 : index
    %114 = vector.load %arg7[%113, %c320] : memref<256x1152xbf16, #tpu.memory_space<vmem>>, vector<128x64xbf16>
    %c0_42 = arith.constant 0 : index
    %c704 = arith.constant 704 : index
    %115 = vector.load %arg7[%c0_42, %c704] : memref<256x1152xbf16, #tpu.memory_space<vmem>>, vector<256x64xbf16>
    %c0_43 = arith.constant 0 : index
    %c1088 = arith.constant 1088 : index
    %116 = vector.load %arg7[%c0_43, %c1088] : memref<256x1152xbf16, #tpu.memory_space<vmem>>, vector<256x64xbf16>
    %cst_44 = arith.constant dense<0.000000e+00> : vector<128x256xf32>
    %117 = tpu.matmul %114, %115, %cst_44 {dimension_numbers = #tpu.dot_dimension_numbers<[1], [1], [0], [0], [0, 0, 1, 0], [], []>} : vector<128x64xbf16>, vector<256x64xbf16>, vector<128x256xf32> -> vector<128x256xf32>
    %118 = arith.addf %117, %12 : vector<128x256xf32>
    %cst_45 = arith.constant dense<0xFF800000> : vector<128xf32>
    %119 = vector.multi_reduction <maximumf>, %118, %cst_45 [1] : vector<128x256xf32> to vector<128xf32>
    %120 = vector.shape_cast %119 : vector<128xf32> to vector<128x1xf32>
    %121 = vector.broadcast %120 : vector<128x1xf32> to vector<128x256xf32>
    %122 = arith.subf %118, %121 : vector<128x256xf32>
    %123 = math.exp %122 : vector<128x256xf32>
    %cst_46 = arith.constant dense<0.000000e+00> : vector<128xf32>
    %124 = vector.multi_reduction <add>, %123, %cst_46 [1] : vector<128x256xf32> to vector<128xf32>
    %125 = vector.shape_cast %124 : vector<128xf32> to vector<128x1xf32>
    %126 = tpu.reciprocal %125 {approx = true} : vector<128x1xf32> -> vector<128x1xf32>
    %127 = vector.broadcast %126 : vector<128x1xf32> to vector<128x256xf32>
    %128 = arith.mulf %123, %127 : vector<128x256xf32>
    %129 = arith.truncf %128 : vector<128x256xf32> to vector<128x256xbf16>
    %cst_47 = arith.constant dense<0.000000e+00> : vector<128x64xf32>
    %130 = tpu.matmul %129, %116, %cst_47 {dimension_numbers = #tpu.dot_dimension_numbers<[1], [0], [0], [1], [0, 0, 1, 1], [], []>} : vector<128x256xbf16>, vector<256x64xbf16>, vector<128x64xf32> -> vector<128x64xf32>
    %131 = arith.truncf %130 : vector<128x64xf32> to vector<128x64xbf16>
    %c0_48 = arith.constant 0 : index
    %c320_49 = arith.constant 320 : index
    %132 = vector.load %arg8[%c0_48, %c320_49] : memref<128x384xbf16, #tpu.memory_space<vmem>>, vector<128x64xbf16>
    tpu.vector_store %arg8[%c0_48, %c320_49], %131 {strides = array<i32>} : memref<128x384xbf16, #tpu.memory_space<vmem>>, vector<128x64xbf16>,
    %c0_50 = arith.constant 0 : index
    %c0_51 = arith.constant 0 : index
    %133 = vector.load %arg8[%c0_50, %c0_51] : memref<128x384xbf16, #tpu.memory_space<vmem>>, vector<128x384xbf16>
    %c0_52 = arith.constant 0 : index
    %c0_53 = arith.constant 0 : index
    %134 = vector.load %arg4[%c0_52, %c0_53] : memref<384x384xbf16, #tpu.memory_space<vmem>>, vector<384x384xbf16>
    %cst_54 = arith.constant dense<0.000000e+00> : vector<128x384xf32>
    %135 = tpu.matmul %133, %134, %cst_54 {dimension_numbers = #tpu.dot_dimension_numbers<[1], [0], [0], [1], [0, 0, 1, 1], [], []>} : vector<128x384xbf16>, vector<384x384xbf16>, vector<128x384xf32> -> vector<128x384xf32>
    %c0_55 = arith.constant 0 : index
    %c0_56 = arith.constant 0 : index
    %136 = vector.load %arg5[%c0_55, %c0_56] : memref<1x384xf32, #tpu.memory_space<vmem>>, vector<1x384xf32>
    %137 = vector.broadcast %136 : vector<1x384xf32> to vector<128x384xf32>
    %138 = arith.addf %135, %137 : vector<128x384xf32>
    %c0_57 = arith.constant 0 : index
    %c0_58 = arith.constant 0 : index
    %c0_59 = arith.constant 0 : index
    %139 = vector.load %arg6[%c0_57, %c0_58, %c0_59] : memref<1x128x384xf32, #tpu.memory_space<vmem>>, vector<1x128x384xf32>
    %140 = vector.shape_cast %139 : vector<1x128x384xf32> to vector<128x384xf32>
    %141 = vector.shape_cast %138 : vector<128x384xf32> to vector<1x128x384xf32>
    tpu.vector_store %arg6[%c0_57, %c0_58, %c0_59], %141 {strides = array<i32>} : memref<1x128x384xf32, #tpu.memory_space<vmem>>, vector<1x128x384xf32>,
    return
  }
  func.func @transform_0(%arg0: i32, %arg1: i32) -> (i32, i32, i32) {
    %c0_i32 = arith.constant 0 : i32
    %c0_i32_0 = arith.constant 0 : i32
    %c0_i32_1 = arith.constant 0 : i32
    return %arg0, %c0_i32, %c0_i32_0 : i32, i32, i32
  }
  func.func @transform_1(%arg0: i32, %arg1: i32) -> (i32, i32) {
    %c0_i32 = arith.constant 0 : i32
    %c0_i32_0 = arith.constant 0 : i32
    %c0_i32_1 = arith.constant 0 : i32
    return %c0_i32, %c0_i32_0 : i32, i32
  }
  func.func @transform_2(%arg0: i32, %arg1: i32) -> (i32, i32) {
    %c0_i32 = arith.constant 0 : i32
    %c0_i32_0 = arith.constant 0 : i32
    %c0_i32_1 = arith.constant 0 : i32
    return %c0_i32, %c0_i32_0 : i32, i32
  }
  func.func @transform_3(%arg0: i32, %arg1: i32) -> (i32, i32) {
    %c0_i32 = arith.constant 0 : i32
    %c0_i32_0 = arith.constant 0 : i32
    %c0_i32_1 = arith.constant 0 : i32
    return %c0_i32, %c0_i32_0 : i32, i32
  }
  func.func @transform_4(%arg0: i32, %arg1: i32) -> (i32, i32, i32) {
    %c0_i32 = arith.constant 0 : i32
    %c0_i32_0 = arith.constant 0 : i32
    return %arg0, %arg1, %c0_i32 : i32, i32, i32
  }
}

</mosaic_0001>

<llo_original>
// kernel: tpu_custom_call.1
$region0: #{tpu_custom_call.1}
  #allocation0 [shape = 'u32[]', space=smem, size = 0x4, offset = 0x4, fixed_abs, tag = 'smem constant byte address 0x4 - core index']
  #allocation1 [shape = 'u32[144,128]{1,0:T(1,128)}', space=vmem, size = 0x12000, scoped, tag = 'internal scratch']
  #allocation2 [shape = 'bf16[256,1152]{1,0:T(16,128)(2,1)}', space=vmem, size = 0x90000, scoped, tag = 'scratch operand']
  #allocation3 [shape = 'bf16[128,384]{1,0:T(16,128)(2,1)}', space=vmem, size = 0x18000, scoped, tag = 'scratch operand']
  %s0 = inlined_call_operand.hbm [shape: f32[2,256,384], index: 0, kind: input, shape index: {}]
  %s1 = inlined_call_operand.hbm [shape: bf16[384,1152], index: 1, kind: input, shape index: {}]
  %s2 = inlined_call_operand.hbm [shape: bf16[384,384], index: 2, kind: input, shape index: {}]
  %s3 = inlined_call_operand.vmem [shape: f32[1,384], index: 3, kind: input, shape index: {}]
  %s4 = inlined_call_operand.hbm [shape: f32[2,256,384], index: 4, kind: output, shape index: {}]
  %s5 = sld [smem:[#allocation0]]
  $region65: #{tpu_custom_call.1} parent=0
    _
  %s7 = ssub.s32 1, %s5
  %s8 = scalar_select 0, %s7, %s5
  $region1: #{tpu_custom_call.1} parent=0
    #allocation4 [shape = 'u8[786432]{0}', space=vmem, size = 0xc0000, scoped, tag = 'input window, operand 0']
    #allocation5 [shape = 's32[2]{0}', space=sflag, size = 0x8, scoped, tag = 'scoped memory for tpu_custom_call.1']
    #allocation6 [shape = 's32[2]{0}', space=sflag, size = 0x8, scoped, tag = 'scoped memory for tpu_custom_call.1']
    #allocation7 [shape = 'u8[884736]{0}', space=vmem, size = 0xd8000, scoped, tag = 'input window, operand 1, single buffered']
    #allocation8 [shape = 's32[1]{0}', space=sflag, size = 0x4, scoped, tag = 'scoped memory for tpu_custom_call.1']
    #allocation9 [shape = 'u8[294912]{0}', space=vmem, size = 0x48000, scoped, tag = 'input window, operand 2, single buffered']
    #allocation10 [shape = 'u8[393216]{0}', space=vmem, size = 0x60000, scoped, tag = 'output window, operand 0']
    %9 = vsyncpa [#allocation5], 0
    %s10 = scalar_lea.sflag [#allocation5], 1
    %11 = vsyncpa %s10, 0
    %12 = vsyncpa [#allocation8], 0
    %13 = vsyncpa [#allocation6], 0
    %s14 = scalar_lea.sflag [#allocation6], 1
    %15 = vsyncpa %s14, 0
    loop: start=0, step=1, limit=6
    $region2: #{tpu_custom_call.1} parent=1 // loop_pre_header
      _
    $region3: #{tpu_custom_call.1} parent=1 // loop_header
      %s17 = sphi 0, %s21
      %p18 = scmp.ge.s32.totalorder %s17, 6
      %s24 = sphi 0, %s36
      %s25 = sphi 0, %s32
      %s26 = sphi 0, %s24
      %s27 = sphi 0, %s25
      %s28 = sphi 0, %s26
      %s29 = sphi 0, %s27
      %s39 = sphi 0, %s41
      %s42 = sphi 0, %s39
      %s43 = sphi 0, %s42
      %s59 = sphi 0, %s43
      %s63 = sphi 0, %s63
      %s65 = sphi 0, %s63
      %s66 = sphi 0, %s65
      %s80 = sphi 0, %s66
      %s84 = sphi 0, %s84
      %s86 = sphi 0, %s84
      %s87 = sphi 0, %s86
      %s101 = sphi 0, %s87
      %s105 = sphi 0, %s105
      %s107 = sphi 0, %s105
      %s108 = sphi 0, %s107
      %s122 = sphi 0, %s108
      %s130 = sphi 0, %s132
      %s133 = sphi 0, %s130
      %s134 = sphi 0, %s133
      %s150 = sphi 0, %s134
    $region4: #{tpu_custom_call.1} parent=1 // loop_header_branch
      %20 = sbr.rel (%p18) target = $region8
    $region5: #{tpu_custom_call.1} parent=1 // loop_body
      %s22 = ssub.s32 %s17, 1
      %s23 = ssub.s32 %s17, 2
      %s30 = sadd.s32 1, %s25
      %p31 = scmp.ge.s32.totalorder %s30, 2
      %s32 = scalar_select %p31, 0, %s30
      %s33 = sadd.s32 1, %s24
      %s34 = scalar_select %p31, %s33, %s24
      %p35 = scmp.ge.s32.totalorder %s34, 2
      %s36 = scalar_select %p35, 0, %s34
      %s37 = ssub.s32 %s24, %s36
      %p38 = scmp.eq.s32.totalorder %s37, 0
      %s40 = sadd.s32 %s39, 1
      %s41 = scalar_select %p38, %s39, %s40
      %p44 = pneg %p38
      %p45 = scmp.eq.s32.totalorder %s17, 3
      %p46 = por %p44, %p45
      %p47 = scmp.ne.s32.totalorder %s39, %s42
      %p48 = scmp.eq.s32.totalorder %s17, 0
      %p49 = por %p47, %p48
      %p50 = scmp.ne.s32.totalorder %s39, %s42
      %p51 = scmp.eq.s32.totalorder %s22, 3
      %p52 = por %p50, %p51
      %p53 = scmp.ne.s32.totalorder %s42, %s43
      %p54 = scmp.eq.s32.totalorder %s22, 0
      %p55 = por %p53, %p54
      %p56 = scmp.ne.s32.totalorder %s42, %s43
      %p57 = scmp.eq.s32.totalorder %s23, 3
      %p58 = por %p56, %p57
      %p60 = scmp.ne.s32.totalorder %s43, %s59
      %p61 = scmp.eq.s32.totalorder %s23, 0
      %p62 = por %p60, %p61
      %s64 = sadd.s32 %s63, 1
      %p67 = scmp.eq.s32.totalorder %s17, 3
      %p68 = scmp.ne.s32.totalorder %s63, %s65
      %p69 = scmp.eq.s32.totalorder %s17, 0
      %p70 = por %p68, %p69
      %p71 = scmp.ne.s32.totalorder %s63, %s65
      %p72 = scmp.eq.s32.totalorder %s22, 3
      %p73 = por %p71, %p72
      %p74 = scmp.ne.s32.totalorder %s65, %s66
      %p75 = scmp.eq.s32.totalorder %s22, 0
      %p76 = por %p74, %p75
      %p77 = scmp.ne.s32.totalorder %s65, %s66
      %p78 = scmp.eq.s32.totalorder %s23, 3
      %p79 = por %p77, %p78
      %p81 = scmp.ne.s32.totalorder %s66, %s80
      %p82 = scmp.eq.s32.totalorder %s23, 0
      %p83 = por %p81, %p82
      %s85 = sadd.s32 %s84, 1
      %p88 = scmp.eq.s32.totalorder %s17, 3
      %p89 = scmp.ne.s32.totalorder %s84, %s86
      %p90 = scmp.eq.s32.totalorder %s17, 0
      %p91 = por %p89, %p90
      %p92 = scmp.ne.s32.totalorder %s84, %s86
      %p93 = scmp.eq.s32.totalorder %s22, 3
      %p94 = por %p92, %p93
      %p95 = scmp.ne.s32.totalorder %s86, %s87
      %p96 = scmp.eq.s32.totalorder %s22, 0
      %p97 = por %p95, %p96
      %p98 = scmp.ne.s32.totalorder %s86, %s87
      %p99 = scmp.eq.s32.totalorder %s23, 3
      %p100 = por %p98, %p99
      %p102 = scmp.ne.s32.totalorder %s87, %s101
      %p103 = scmp.eq.s32.totalorder %s23, 0
      %p104 = por %p102, %p103
      %s106 = sadd.s32 %s105, 1
      %p109 = scmp.eq.s32.totalorder %s17, 3
      %p110 = scmp.ne.s32.totalorder %s105, %s107
      %p111 = scmp.eq.s32.totalorder %s17, 0
      %p112 = por %p110, %p111
      %p113 = scmp.ne.s32.totalorder %s105, %s107
      %p114 = scmp.eq.s32.totalorder %s22, 3
      %p115 = por %p113, %p114
      %p116 = scmp.ne.s32.totalorder %s107, %s108
      %p117 = scmp.eq.s32.totalorder %s22, 0
      %p118 = por %p116, %p117
      %p119 = scmp.ne.s32.totalorder %s107, %s108
      %p120 = scmp.eq.s32.totalorder %s23, 3
      %p121 = por %p119, %p120
      %p123 = scmp.ne.s32.totalorder %s108, %s122
      %p124 = scmp.eq.s32.totalorder %s23, 0
      %p125 = por %p123, %p124
      %s126 = ssub.s32 %s24, %s36
      %s127 = ssub.s32 %s25, %s32
      %s128 = sor.u32 %s126, %s127
      %p129 = scmp.eq.s32.totalorder %s128, 0
      %s131 = sadd.s32 %s130, 1
      %s132 = scalar_select %p129, %s130, %s131
      %p135 = pneg %p129
      %p136 = scmp.eq.s32.totalorder %s17, 3
      %p137 = por %p135, %p136
      %p138 = scmp.ne.s32.totalorder %s130, %s133
      %p139 = scmp.eq.s32.totalorder %s17, 0
      %p140 = por %p138, %p139
      %p141 = scmp.ne.s32.totalorder %s130, %s133
      %p142 = scmp.eq.s32.totalorder %s22, 3
      %p143 = por %p141, %p142
      %p144 = scmp.ne.s32.totalorder %s133, %s134
      %p145 = scmp.eq.s32.totalorder %s22, 0
      %p146 = por %p144, %p145
      %p147 = scmp.ne.s32.totalorder %s133, %s134
      %p148 = scmp.eq.s32.totalorder %s23, 3
      %p149 = por %p147, %p148
      %p151 = scmp.ne.s32.totalorder %s134, %s150
      %p152 = scmp.eq.s32.totalorder %s23, 0
      %p153 = por %p151, %p152
      %p154 = scmp.le.s32.totalorder 1, %s17
      %p155 = scmp.lt.s32.totalorder %s17, 5
      %p156 = pnand %p154, %p155
      %p157 = pneg %p156
      // Predicated region
      $region9: #{tpu_custom_call.1} parent=5 // pred_check
        _
      $region10: #{tpu_custom_call.1} parent=5 // pred_check_branch
        %159 = sbr.rel (%p156) target = $region12
      $region11: #{tpu_custom_call.1} parent=5 // pred_region
        %s160 = ssub.s32 %s17, 1
        // Predicated region
        $region13: #{tpu_custom_call.1} parent=11 // pred_check
          %p161 = pneg %p76
        $region14: #{tpu_custom_call.1} parent=11 // pred_check_branch
          %163 = sbr.rel (%p161) target = $region16
        $region15: #{tpu_custom_call.1} parent=11 // pred_region
          %s165 = ssub.s32 27648, 27648
          %166 = vsyncadd [#allocation8], %s165
          %s167 = sshll.u32 [#allocation7], 4
          %s168 = int_to_ptr.vmem [resolvable:$true] %s167
          %173 = dma.hbm_to_vmem [thread:$0]  %s1, 27648, %s168, [#allocation8], 576, 576, 36
        $region16: #{tpu_custom_call.1} parent=11 // pred_fallthru
          _
        // Predicated region
        $region17: #{tpu_custom_call.1} parent=11 // pred_check
          %p174 = pneg %p97
        $region18: #{tpu_custom_call.1} parent=11 // pred_check_branch
          %176 = sbr.rel (%p174) target = $region20
        $region19: #{tpu_custom_call.1} parent=11 // pred_region
          %s178 = ssub.s32 9216, 9216
          %179 = vsyncadd [#allocation8], %s178
          %s180 = sshll.u32 [#allocation9], 4
          %s181 = int_to_ptr.vmem [resolvable:$true] %s180
          %186 = dma.hbm_to_vmem [thread:$0]  %s2, 9216, %s181, [#allocation8], 192, 192, 12
        $region20: #{tpu_custom_call.1} parent=11 // pred_fallthru
          _
        // Predicated region
        $region21: #{tpu_custom_call.1} parent=11 // pred_check
          %p187 = pneg %p118
        $region22: #{tpu_custom_call.1} parent=11 // pred_check_branch
          %189 = sbr.rel (%p187) target = $region24
        $region23: #{tpu_custom_call.1} parent=11 // pred_region
          _
        $region24: #{tpu_custom_call.1} parent=11 // pred_fallthru
          _
      $region12: #{tpu_custom_call.1} parent=5 // pred_fallthru
        _
      %p190 = scmp.lt.s32.totalorder %s17, 4
      // Predicated region
      $region25: #{tpu_custom_call.1} parent=5 // pred_check
        %p191 = pneg %p190
      $region26: #{tpu_custom_call.1} parent=5 // pred_check_branch
        %193 = sbr.rel (%p191) target = $region28
      $region27: #{tpu_custom_call.1} parent=5 // pred_region
        // Predicated region
        $region29: #{tpu_custom_call.1} parent=27 // pred_check
          %p194 = pneg %p49
        $region30: #{tpu_custom_call.1} parent=27 // pred_check_branch
          %196 = sbr.rel (%p194) target = $region32
        $region31: #{tpu_custom_call.1} parent=27 // pred_region
          %s197 = sand.u32 %s39, 1
          %s198 = scalar_lea.sflag [#allocation5], %s197
          %s199 = sand.u32 %s39, 1
          %s200 = smul.addr %s199, 768
          %s201 = scalar_lea.vmem [#allocation4], %s200
          %s203 = ssub.s32 12288, 12288
          %204 = vsyncadd %s198, %s203
          %s205 = smul.addr %s24, 96
          %s206 = smul.addr %s205, 128
          %s207 = scalar_lea.hbm %s0, %s206
          %s208 = sshll.u32 %s201, 4
          %s209 = int_to_ptr.vmem [resolvable:$true] %s208
          %214 = dma.hbm_to_vmem [thread:$0]  %s207, 12288, %s209, %s198, 384, 384, 24
        $region32: #{tpu_custom_call.1} parent=27 // pred_fallthru
          _
      $region28: #{tpu_custom_call.1} parent=5 // pred_fallthru
        _
      %p215 = scmp.le.s32.totalorder 1, %s17
      %p216 = scmp.lt.s32.totalorder %s17, 5
      %p217 = pnand %p215, %p216
      %p218 = pneg %p217
      // Predicated region
      $region33: #{tpu_custom_call.1} parent=5 // pred_check
        _
      $region34: #{tpu_custom_call.1} parent=5 // pred_check_branch
        %220 = sbr.rel (%p217) target = $region36
      $region35: #{tpu_custom_call.1} parent=5 // pred_region
        %s221 = ssub.s32 %s17, 1
        %s222 = sand.u32 %s42, 1
        %s223 = scalar_lea.sflag [#allocation5], %s222
        %s224 = sand.u32 %s42, 1
        %s225 = smul.addr %s224, 768
        %s226 = scalar_lea.vmem [#allocation4], %s225
        // Predicated region
        $region37: #{tpu_custom_call.1} parent=35 // pred_check
          %p227 = pneg %p55
        $region38: #{tpu_custom_call.1} parent=35 // pred_check_branch
          %229 = sbr.rel (%p227) target = $region40
        $region39: #{tpu_custom_call.1} parent=35 // pred_region
          %230 = dma.done %s223, 12288
        $region40: #{tpu_custom_call.1} parent=35 // pred_fallthru
          _
        // Predicated region
        $region41: #{tpu_custom_call.1} parent=35 // pred_check
          %p231 = pneg %p76
        $region42: #{tpu_custom_call.1} parent=35 // pred_check_branch
          %233 = sbr.rel (%p231) target = $region44
        $region43: #{tpu_custom_call.1} parent=35 // pred_region
          %234 = dma.done [#allocation8], 27648
        $region44: #{tpu_custom_call.1} parent=35 // pred_fallthru
          _
        // Predicated region
        $region45: #{tpu_custom_call.1} parent=35 // pred_check
          %p235 = pneg %p97
        $region46: #{tpu_custom_call.1} parent=35 // pred_check_branch
          %237 = sbr.rel (%p235) target = $region48
        $region47: #{tpu_custom_call.1} parent=35 // pred_region
          %238 = dma.done [#allocation8], 9216
        $region48: #{tpu_custom_call.1} parent=35 // pred_fallthru
          _
        %s239 = sand.u32 %s42, 1
        %s240 = scalar_lea.sflag [#allocation5], %s239
        %s241 = sand.u32 %s42, 1
        %s242 = smul.addr %s241, 768
        %s243 = scalar_lea.vmem [#allocation4], %s242
        %p244 = pneg %p55
        %p245 = pneg %p52
        %p246 = pneg %p76
        %p247 = pneg %p73
        %p248 = pneg %p97
        %p249 = pneg %p94
        %p250 = pneg %p118
        %p251 = pneg %p115
        %p252 = pneg %p146
        %p253 = pneg %p143
        %s254 = sand.u32 %s133, 1
        %s255 = scalar_lea.sflag [#allocation6], %s254
        %s256 = sand.u32 %s133, 1
        %s257 = smul.addr %s256, 384
        %s258 = scalar_lea.vmem [#allocation10], %s257
        %s259 = smul.u32 16, %s27
        %p261 = scmp.eq.s32.totalorder %s27, 0
        // Predicated region
        $region49: #{tpu_custom_call.1} parent=35 // pred_check
          %p262 = pneg %p261
        $region50: #{tpu_custom_call.1} parent=35 // pred_check_branch
          %264 = sbr.rel (%p262) target = $region52
        $region51: #{tpu_custom_call.1} parent=35 // pred_region
          %v265 = vld [vmem:[%s226] sm:$0xff]
          %v266 = vld [vmem:[%s226 + $0x8] sm:$0xff]
          %v267 = vld [vmem:[%s226 + $0x10] sm:$0xff]
          %v268 = vld [vmem:[%s226 + $0x18] sm:$0xff]
          %v269 = vld [vmem:[%s226 + $0x20] sm:$0xff]
          %v270 = vld [vmem:[%s226 + $0x28] sm:$0xff]
          %v271 = vld [vmem:[%s226 + $0x30] sm:$0xff]
          %v272 = vld [vmem:[%s226 + $0x38] sm:$0xff]
          %v273 = vld [vmem:[%s226 + $0x40] sm:$0xff]
          %v274 = vld [vmem:[%s226 + $0x48] sm:$0xff]
          %v275 = vld [vmem:[%s226 + $0x50] sm:$0xff]
          %v276 = vld [vmem:[%s226 + $0x58] sm:$0xff]
          %v277 = vld [vmem:[%s226 + $0x60] sm:$0xff]
          %v278 = vld [vmem:[%s226 + $0x68] sm:$0xff]
          %v279 = vld [vmem:[%s226 + $0x70] sm:$0xff]
          %v280 = vld [vmem:[%s226 + $0x78] sm:$0xff]
          %v281 = vld [vmem:[%s226 + $0x80] sm:$0xff]
          %v282 = vld [vmem:[%s226 + $0x88] sm:$0xff]
          %v283 = vld [vmem:[%s226 + $0x90] sm:$0xff]
          %v284 = vld [vmem:[%s226 + $0x98] sm:$0xff]
          %v285 = vld [vmem:[%s226 + $0xa0] sm:$0xff]
          %v286 = vld [vmem:[%s226 + $0xa8] sm:$0xff]
          %v287 = vld [vmem:[%s226 + $0xb0] sm:$0xff]
          %v288 = vld [vmem:[%s226 + $0xb8] sm:$0xff]
          %v289 = vld [vmem:[%s226 + $0xc0] sm:$0xff]
          %v290 = vld [vmem:[%s226 + $0xc8] sm:$0xff]
          %v291 = vld [vmem:[%s226 + $0xd0] sm:$0xff]
          %v292 = vld [vmem:[%s226 + $0xd8] sm:$0xff]
          %v293 = vld [vmem:[%s226 + $0xe0] sm:$0xff]
          %v294 = vld [vmem:[%s226 + $0xe8] sm:$0xff]
          %v295 = vld [vmem:[%s226 + $0xf0] sm:$0xff]
          %v296 = vld [vmem:[%s226 + $0xf8] sm:$0xff]
          %v297 = vld [vmem:[%s226 + $0x100] sm:$0xff]
          %v298 = vld [vmem:[%s226 + $0x108] sm:$0xff]
          %v299 = vld [vmem:[%s226 + $0x110] sm:$0xff]
          %v300 = vld [vmem:[%s226 + $0x118] sm:$0xff]
          %v301 = vld [vmem:[%s226 + $0x120] sm:$0xff]
          %v302 = vld [vmem:[%s226 + $0x128] sm:$0xff]
          %v303 = vld [vmem:[%s226 + $0x130] sm:$0xff]
          %v304 = vld [vmem:[%s226 + $0x138] sm:$0xff]
          %v305 = vld [vmem:[%s226 + $0x140] sm:$0xff]
          %v306 = vld [vmem:[%s226 + $0x148] sm:$0xff]
          %v307 = vld [vmem:[%s226 + $0x150] sm:$0xff]
          %v308 = vld [vmem:[%s226 + $0x158] sm:$0xff]
          %v309 = vld [vmem:[%s226 + $0x160] sm:$0xff]
          %v310 = vld [vmem:[%s226 + $0x168] sm:$0xff]
          %v311 = vld [vmem:[%s226 + $0x170] sm:$0xff]
          %v312 = vld [vmem:[%s226 + $0x178] sm:$0xff]
          %v313 = vld [vmem:[%s226 + $0x180] sm:$0xff]
          %v314 = vld [vmem:[%s226 + $0x188] sm:$0xff]
          %v315 = vld [vmem:[%s226 + $0x190] sm:$0xff]
          %v316 = vld [vmem:[%s226 + $0x198] sm:$0xff]
          %v317 = vld [vmem:[%s226 + $0x1a0] sm:$0xff]
          %v318 = vld [vmem:[%s226 + $0x1a8] sm:$0xff]
          %v319 = vld [vmem:[%s226 + $0x1b0] sm:$0xff]
          %v320 = vld [vmem:[%s226 + $0x1b8] sm:$0xff]
          %v321 = vld [vmem:[%s226 + $0x1c0] sm:$0xff]
          %v322 = vld [vmem:[%s226 + $0x1c8] sm:$0xff]
          %v323 = vld [vmem:[%s226 + $0x1d0] sm:$0xff]
          %v324 = vld [vmem:[%s226 + $0x1d8] sm:$0xff]
          %v325 = vld [vmem:[%s226 + $0x1e0] sm:$0xff]
          %v326 = vld [vmem:[%s226 + $0x1e8] sm:$0xff]
          %v327 = vld [vmem:[%s226 + $0x1f0] sm:$0xff]
          %v328 = vld [vmem:[%s226 + $0x1f8] sm:$0xff]
          %v329 = vld [vmem:[%s226 + $0x200] sm:$0xff]
          %v330 = vld [vmem:[%s226 + $0x208] sm:$0xff]
          %v331 = vld [vmem:[%s226 + $0x210] sm:$0xff]
          %v332 = vld [vmem:[%s226 + $0x218] sm:$0xff]
          %v333 = vld [vmem:[%s226 + $0x220] sm:$0xff]
          %v334 = vld [vmem:[%s226 + $0x228] sm:$0xff]
          %v335 = vld [vmem:[%s226 + $0x230] sm:$0xff]
          %v336 = vld [vmem:[%s226 + $0x238] sm:$0xff]
          %v337 = vld [vmem:[%s226 + $0x240] sm:$0xff]
          %v338 = vld [vmem:[%s226 + $0x248] sm:$0xff]
          %v339 = vld [vmem:[%s226 + $0x250] sm:$0xff]
          %v340 = vld [vmem:[%s226 + $0x258] sm:$0xff]
          %v341 = vld [vmem:[%s226 + $0x260] sm:$0xff]
          %v342 = vld [vmem:[%s226 + $0x268] sm:$0xff]
          %v343 = vld [vmem:[%s226 + $0x270] sm:$0xff]
          %v344 = vld [vmem:[%s226 + $0x278] sm:$0xff]
          %v345 = vld [vmem:[%s226 + $0x280] sm:$0xff]
          %v346 = vld [vmem:[%s226 + $0x288] sm:$0xff]
          %v347 = vld [vmem:[%s226 + $0x290] sm:$0xff]
          %v348 = vld [vmem:[%s226 + $0x298] sm:$0xff]
          %v349 = vld [vmem:[%s226 + $0x2a0] sm:$0xff]
          %v350 = vld [vmem:[%s226 + $0x2a8] sm:$0xff]
          %v351 = vld [vmem:[%s226 + $0x2b0] sm:$0xff]
          %v352 = vld [vmem:[%s226 + $0x2b8] sm:$0xff]
          %v353 = vld [vmem:[%s226 + $0x2c0] sm:$0xff]
          %v354 = vld [vmem:[%s226 + $0x2c8] sm:$0xff]
          %v355 = vld [vmem:[%s226 + $0x2d0] sm:$0xff]
          %v356 = vld [vmem:[%s226 + $0x2d8] sm:$0xff]
          %v357 = vld [vmem:[%s226 + $0x2e0] sm:$0xff]
          %v358 = vld [vmem:[%s226 + $0x2e8] sm:$0xff]
          %v359 = vld [vmem:[%s226 + $0x2f0] sm:$0xff]
          %v360 = vld [vmem:[%s226 + $0x2f8] sm:$0xff]
          %v361 = vpack.c.bf16 %v268, %v265
          %v362 = vpack.c.bf16 %v269, %v266
          %v363 = vpack.c.bf16 %v270, %v267
          %v364 = vpack.c.bf16 %v274, %v271
          %v365 = vpack.c.bf16 %v275, %v272
          %v366 = vpack.c.bf16 %v276, %v273
          %v367 = vpack.c.bf16 %v280, %v277
          %v368 = vpack.c.bf16 %v281, %v278
          %v369 = vpack.c.bf16 %v282, %v279
          %v370 = vpack.c.bf16 %v286, %v283
          %v371 = vpack.c.bf16 %v287, %v284
          %v372 = vpack.c.bf16 %v288, %v285
          %v373 = vpack.c.bf16 %v292, %v289
          %v374 = vpack.c.bf16 %v293, %v290
          %v375 = vpack.c.bf16 %v294, %v291
          %v376 = vpack.c.bf16 %v298, %v295
          %v377 = vpack.c.bf16 %v299, %v296
          %v378 = vpack.c.bf16 %v300, %v297
          %v379 = vpack.c.bf16 %v304, %v301
          %v380 = vpack.c.bf16 %v305, %v302
          %v381 = vpack.c.bf16 %v306, %v303
          %v382 = vpack.c.bf16 %v310, %v307
          %v383 = vpack.c.bf16 %v311, %v308
          %v384 = vpack.c.bf16 %v312, %v309
          %v385 = vpack.c.bf16 %v316, %v313
          %v386 = vpack.c.bf16 %v317, %v314
          %v387 = vpack.c.bf16 %v318, %v315
          %v388 = vpack.c.bf16 %v322, %v319
          %v389 = vpack.c.bf16 %v323, %v320
          %v390 = vpack.c.bf16 %v324, %v321
          %v391 = vpack.c.bf16 %v328, %v325
          %v392 = vpack.c.bf16 %v329, %v326
          %v393 = vpack.c.bf16 %v330, %v327
          %v394 = vpack.c.bf16 %v334, %v331
          %v395 = vpack.c.bf16 %v335, %v332
          %v396 = vpack.c.bf16 %v336, %v333
          %v397 = vpack.c.bf16 %v340, %v337
          %v398 = vpack.c.bf16 %v341, %v338
          %v399 = vpack.c.bf16 %v342, %v339
          %v400 = vpack.c.bf16 %v346, %v343
          %v401 = vpack.c.bf16 %v347, %v344
          %v402 = vpack.c.bf16 %v348, %v345
          %v403 = vpack.c.bf16 %v352, %v349
          %v404 = vpack.c.bf16 %v353, %v350
          %v405 = vpack.c.bf16 %v354, %v351
          %v406 = vpack.c.bf16 %v358, %v355
          %v407 = vpack.c.bf16 %v359, %v356
          %v408 = vpack.c.bf16 %v360, %v357
          %v409 = vld [vmem:[#allocation7] sm:$0xff]
          %v410 = vld [vmem:[#allocation7 + $0x8] sm:$0xf]
          %v411 = vld [vmem:[#allocation7 + $0x24] sm:$0xff]
          %v412 = vld [vmem:[#allocation7 + $0x2c] sm:$0xf]
          %v413 = vld [vmem:[#allocation7 + $0x48] sm:$0xff]
          %v414 = vld [vmem:[#allocation7 + $0x50] sm:$0xf]
          %v415 = vld [vmem:[#allocation7 + $0x6c] sm:$0xff]
          %v416 = vld [vmem:[#allocation7 + $0x74] sm:$0xf]
          %v417 = vld [vmem:[#allocation7 + $0x90] sm:$0xff]
          %v418 = vld [vmem:[#allocation7 + $0x98] sm:$0xf]
          %v419 = vld [vmem:[#allocation7 + $0xb4] sm:$0xff]
          %v420 = vld [vmem:[#allocation7 + $0xbc] sm:$0xf]
          %v421 = vld [vmem:[#allocation7 + $0xd8] sm:$0xff]
          %v422 = vld [vmem:[#allocation7 + $0xe0] sm:$0xf]
          %v423 = vld [vmem:[#allocation7 + $0xfc] sm:$0xff]
          %v424 = vld [vmem:[#allocation7 + $0x104] sm:$0xf]
          %v425 = vld [vmem:[#allocation7 + $0x120] sm:$0xff]
          %v426 = vld [vmem:[#allocation7 + $0x128] sm:$0xf]
          %v427 = vld [vmem:[#allocation7 + $0x144] sm:$0xff]
          %v428 = vld [vmem:[#allocation7 + $0x14c] sm:$0xf]
          %v429 = vld [vmem:[#allocation7 + $0x168] sm:$0xff]
          %v430 = vld [vmem:[#allocation7 + $0x170] sm:$0xf]
          %v431 = vld [vmem:[#allocation7 + $0x18c] sm:$0xff]
          %v432 = vld [vmem:[#allocation7 + $0x194] sm:$0xf]
          %v433 = vld [vmem:[#allocation7 + $0x1b0] sm:$0xff]
          %v434 = vld [vmem:[#allocation7 + $0x1b8] sm:$0xf]
          %v435 = vld [vmem:[#allocation7 + $0x1d4] sm:$0xff]
          %v436 = vld [vmem:[#allocation7 + $0x1dc] sm:$0xf]
          %v437 = vld [vmem:[#allocation7 + $0x1f8] sm:$0xff]
          %v438 = vld [vmem:[#allocation7 + $0x200] sm:$0xf]
          %v439 = vld [vmem:[#allocation7 + $0x21c] sm:$0xff]
          %v440 = vld [vmem:[#allocation7 + $0x224] sm:$0xf]
          %v441 = vld [vmem:[#allocation7 + $0x240] sm:$0xff]
          %v442 = vld [vmem:[#allocation7 + $0x248] sm:$0xf]
          %v443 = vld [vmem:[#allocation7 + $0x264] sm:$0xff]
          %v444 = vld [vmem:[#allocation7 + $0x26c] sm:$0xf]
          %v445 = vld [vmem:[#allocation7 + $0x288] sm:$0xff]
          %v446 = vld [vmem:[#allocation7 + $0x290] sm:$0xf]
          %v447 = vld [vmem:[#allocation7 + $0x2ac] sm:$0xff]
          %v448 = vld [vmem:[#allocation7 + $0x2b4] sm:$0xf]
          %v449 = vld [vmem:[#allocation7 + $0x2d0] sm:$0xff]
          %v450 = vld [vmem:[#allocation7 + $0x2d8] sm:$0xf]
          %v451 = vld [vmem:[#allocation7 + $0x2f4] sm:$0xff]
          %v452 = vld [vmem:[#allocation7 + $0x2fc] sm:$0xf]
          %v453 = vld [vmem:[#allocation7 + $0x318] sm:$0xff]
          %v454 = vld [vmem:[#allocation7 + $0x320] sm:$0xf]
          %v455 = vld [vmem:[#allocation7 + $0x33c] sm:$0xff]
          %v456 = vld [vmem:[#allocation7 + $0x344] sm:$0xf]
          %v457 = vld [vmem:[#allocation7 + $0x360] sm:$0xff]
          %v458 = vld [vmem:[#allocation7 + $0x368] sm:$0xf]
          %v459 = vld [vmem:[#allocation7 + $0x384] sm:$0xff]
          %v460 = vld [vmem:[#allocation7 + $0x38c] sm:$0xf]
          %v461 = vld [vmem:[#allocation7 + $0x3a8] sm:$0xff]
          %v462 = vld [vmem:[#allocation7 + $0x3b0] sm:$0xf]
          %v463 = vld [vmem:[#allocation7 + $0x3cc] sm:$0xff]
          %v464 = vld [vmem:[#allocation7 + $0x3d4] sm:$0xf]
          %v465 = vld [vmem:[#allocation7 + $0x3f0] sm:$0xff]
          %v466 = vld [vmem:[#allocation7 + $0x3f8] sm:$0xf]
          %v467 = vld [vmem:[#allocation7 + $0x414] sm:$0xff]
          %v468 = vld [vmem:[#allocation7 + $0x41c] sm:$0xf]
          %v469 = vld [vmem:[#allocation7 + $0x438] sm:$0xff]
          %v470 = vld [vmem:[#allocation7 + $0x440] sm:$0xf]
          %v471 = vld [vmem:[#allocation7 + $0x45c] sm:$0xff]
          %v472 = vld [vmem:[#allocation7 + $0x464] sm:$0xf]
          %v473 = vld [vmem:[#allocation7 + $0x480] sm:$0xff]
          %v474 = vld [vmem:[#allocation7 + $0x488] sm:$0xf]
          %v475 = vld [vmem:[#allocation7 + $0x4a4] sm:$0xff]
          %v476 = vld [vmem:[#allocation7 + $0x4ac] sm:$0xf]
          %v477 = vld [vmem:[#allocation7 + $0x4c8] sm:$0xff]
          %v478 = vld [vmem:[#allocation7 + $0x4d0] sm:$0xf]
          %v479 = vld [vmem:[#allocation7 + $0x4ec] sm:$0xff]
          %v480 = vld [vmem:[#allocation7 + $0x4f4] sm:$0xf]
          %v481 = vld [vmem:[#allocation7 + $0x510] sm:$0xff]
          %v482 = vld [vmem:[#allocation7 + $0x518] sm:$0xf]
          %v483 = vld [vmem:[#allocation7 + $0x534] sm:$0xff]
          %v484 = vld [vmem:[#allocation7 + $0x53c] sm:$0xf]
          %v485 = vld [vmem:[#allocation7 + $0x558] sm:$0xff]
          %v486 = vld [vmem:[#allocation7 + $0x560] sm:$0xf]
          %v487 = vld [vmem:[#allocation7 + $0x57c] sm:$0xff]
          %v488 = vld [vmem:[#allocation7 + $0x584] sm:$0xf]
          %v489 = vld [vmem:[#allocation7 + $0x5a0] sm:$0xff]
          %v490 = vld [vmem:[#allocation7 + $0x5a8] sm:$0xf]
          %v491 = vld [vmem:[#allocation7 + $0x5c4] sm:$0xff]
          %v492 = vld [vmem:[#allocation7 + $0x5cc] sm:$0xf]
          %v493 = vld [vmem:[#allocation7 + $0x5e8] sm:$0xff]
          %v494 = vld [vmem:[#allocation7 + $0x5f0] sm:$0xf]
          %v495 = vld [vmem:[#allocation7 + $0x60c] sm:$0xff]
          %v496 = vld [vmem:[#allocation7 + $0x614] sm:$0xf]
          %v497 = vld [vmem:[#allocation7 + $0x630] sm:$0xff]
          %v498 = vld [vmem:[#allocation7 + $0x638] sm:$0xf]
          %v499 = vld [vmem:[#allocation7 + $0x654] sm:$0xff]
          %v500 = vld [vmem:[#allocation7 + $0x65c] sm:$0xf]
          %v501 = vld [vmem:[#allocation7 + $0x678] sm:$0xff]
          %v502 = vld [vmem:[#allocation7 + $0x680] sm:$0xf]
          %v503 = vld [vmem:[#allocation7 + $0x69c] sm:$0xff]
          %v504 = vld [vmem:[#allocation7 + $0x6a4] sm:$0xf]
          %v601 = vunpack.c.l.b16 %v409
          %v602 = vunpack.c.h.b16 %v409
          %v603 = vunpack.c.l.b16 %v410
          %v604 = vunpack.c.l.b16 %v411
          %v605 = vunpack.c.h.b16 %v411
          %v606 = vunpack.c.l.b16 %v412
          %v607 = vunpack.c.l.b16 %v413
          %v608 = vunpack.c.h.b16 %v413
          %v609 = vunpack.c.l.b16 %v414
          %v610 = vunpack.c.l.b16 %v415
          %v611 = vunpack.c.h.b16 %v415
          %v612 = vunpack.c.l.b16 %v416
          %v613 = vunpack.c.l.b16 %v417
          %v614 = vunpack.c.h.b16 %v417
          %v615 = vunpack.c.l.b16 %v418
          %v616 = vunpack.c.l.b16 %v419
          %v617 = vunpack.c.h.b16 %v419
          %v618 = vunpack.c.l.b16 %v420
          %v619 = vunpack.c.l.b16 %v421
          %v620 = vunpack.c.h.b16 %v421
          %v621 = vunpack.c.l.b16 %v422
          %v622 = vunpack.c.l.b16 %v423
          %v623 = vunpack.c.h.b16 %v423
          %v624 = vunpack.c.l.b16 %v424
          %v625 = vunpack.c.l.b16 %v425
          %v626 = vunpack.c.h.b16 %v425
          %v627 = vunpack.c.l.b16 %v426
          %v628 = vunpack.c.l.b16 %v427
          %v629 = vunpack.c.h.b16 %v427
          %v630 = vunpack.c.l.b16 %v428
          %v631 = vunpack.c.l.b16 %v429
          %v632 = vunpack.c.h.b16 %v429
          %v633 = vunpack.c.l.b16 %v430
          %v634 = vunpack.c.l.b16 %v431
          %v635 = vunpack.c.h.b16 %v431
          %v636 = vunpack.c.l.b16 %v432
          %v637 = vunpack.c.l.b16 %v433
          %v638 = vunpack.c.h.b16 %v433
          %v639 = vunpack.c.l.b16 %v434
          %v640 = vunpack.c.l.b16 %v435
          %v641 = vunpack.c.h.b16 %v435
          %v642 = vunpack.c.l.b16 %v436
          %v643 = vunpack.c.l.b16 %v437
          %v644 = vunpack.c.h.b16 %v437
          %v645 = vunpack.c.l.b16 %v438
          %v646 = vunpack.c.l.b16 %v439
          %v647 = vunpack.c.h.b16 %v439
          %v648 = vunpack.c.l.b16 %v440
          %v649 = vunpack.c.l.b16 %v441
          %v650 = vunpack.c.h.b16 %v441
          %v651 = vunpack.c.l.b16 %v442
          %v652 = vunpack.c.l.b16 %v443
          %v653 = vunpack.c.h.b16 %v443
          %v654 = vunpack.c.l.b16 %v444
          %v655 = vunpack.c.l.b16 %v445
          %v656 = vunpack.c.h.b16 %v445
          %v657 = vunpack.c.l.b16 %v446
          %v658 = vunpack.c.l.b16 %v447
          %v659 = vunpack.c.h.b16 %v447
          %v660 = vunpack.c.l.b16 %v448
          %v661 = vunpack.c.l.b16 %v449
          %v662 = vunpack.c.h.b16 %v449
          %v663 = vunpack.c.l.b16 %v450
          %v664 = vunpack.c.l.b16 %v451
          %v665 = vunpack.c.h.b16 %v451
          %v666 = vunpack.c.l.b16 %v452
          %v667 = vunpack.c.l.b16 %v453
          %v668 = vunpack.c.h.b16 %v453
          %v669 = vunpack.c.l.b16 %v454
          %v670 = vunpack.c.l.b16 %v455
          %v671 = vunpack.c.h.b16 %v455
          %v672 = vunpack.c.l.b16 %v456
          %v673 = vunpack.c.l.b16 %v457
          %v674 = vunpack.c.h.b16 %v457
          %v675 = vunpack.c.l.b16 %v458
          %v676 = vunpack.c.l.b16 %v459
          %v677 = vunpack.c.h.b16 %v459
          %v678 = vunpack.c.l.b16 %v460
          %v679 = vunpack.c.l.b16 %v461
          %v680 = vunpack.c.h.b16 %v461
          %v681 = vunpack.c.l.b16 %v462
          %v682 = vunpack.c.l.b16 %v463
          %v683 = vunpack.c.h.b16 %v463
          %v684 = vunpack.c.l.b16 %v464
          %v685 = vunpack.c.l.b16 %v465
          %v686 = vunpack.c.h.b16 %v465
          %v687 = vunpack.c.l.b16 %v466
          %v688 = vunpack.c.l.b16 %v467
          %v689 = vunpack.c.h.b16 %v467
          %v690 = vunpack.c.l.b16 %v468
          %v691 = vunpack.c.l.b16 %v469
          %v692 = vunpack.c.h.b16 %v469
          %v693 = vunpack.c.l.b16 %v470
          %v694 = vunpack.c.l.b16 %v471
          %v695 = vunpack.c.h.b16 %v471
          %v696 = vunpack.c.l.b16 %v472
          %v697 = vunpack.c.l.b16 %v473
          %v698 = vunpack.c.h.b16 %v473
          %v699 = vunpack.c.l.b16 %v474
          %v700 = vunpack.c.l.b16 %v475
          %v701 = vunpack.c.h.b16 %v475
          %v702 = vunpack.c.l.b16 %v476
          %v703 = vunpack.c.l.b16 %v477
          %v704 = vunpack.c.h.b16 %v477
          %v705 = vunpack.c.l.b16 %v478
          %v706 = vunpack.c.l.b16 %v479
          %v707 = vunpack.c.h.b16 %v479
          %v708 = vunpack.c.l.b16 %v480
          %v709 = vunpack.c.l.b16 %v481
          %v710 = vunpack.c.h.b16 %v481
          %v711 = vunpack.c.l.b16 %v482
          %v712 = vunpack.c.l.b16 %v483
          %v713 = vunpack.c.h.b16 %v483
          %v714 = vunpack.c.l.b16 %v484
          %v715 = vunpack.c.l.b16 %v485
          %v716 = vunpack.c.h.b16 %v485
          %v717 = vunpack.c.l.b16 %v486
          %v718 = vunpack.c.l.b16 %v487
          %v719 = vunpack.c.h.b16 %v487
          %v720 = vunpack.c.l.b16 %v488
          %v721 = vunpack.c.l.b16 %v489
          %v722 = vunpack.c.h.b16 %v489
          %v723 = vunpack.c.l.b16 %v490
          %v724 = vunpack.c.l.b16 %v491
          %v725 = vunpack.c.h.b16 %v491
          %v726 = vunpack.c.l.b16 %v492
          %v727 = vunpack.c.l.b16 %v493
          %v728 = vunpack.c.h.b16 %v493
          %v729 = vunpack.c.l.b16 %v494
          %v730 = vunpack.c.l.b16 %v495
          %v731 = vunpack.c.h.b16 %v495
          %v732 = vunpack.c.l.b16 %v496
          %v733 = vunpack.c.l.b16 %v497
          %v734 = vunpack.c.h.b16 %v497
          %v735 = vunpack.c.l.b16 %v498
          %v736 = vunpack.c.l.b16 %v499
          %v737 = vunpack.c.h.b16 %v499
          %v738 = vunpack.c.l.b16 %v500
          %v739 = vunpack.c.l.b16 %v501
          %v740 = vunpack.c.h.b16 %v501
          %v741 = vunpack.c.l.b16 %v502
          %v742 = vunpack.c.l.b16 %v503
          %v743 = vunpack.c.h.b16 %v503
          %v744 = vunpack.c.l.b16 %v504
          %v745 = vpack.c.b16 %v604, %v601
          %v746 = vpack.c.b16 %v605, %v602
          %v747 = vpack.c.b16 %v606, %v603
          %v748 = vpack.c.b16 %v610, %v607
          %v749 = vpack.c.b16 %v611, %v608
          %v750 = vpack.c.b16 %v612, %v609
          %v751 = vpack.c.b16 %v616, %v613
          %v752 = vpack.c.b16 %v617, %v614
          %v753 = vpack.c.b16 %v618, %v615
          %v754 = vpack.c.b16 %v622, %v619
          %v755 = vpack.c.b16 %v623, %v620
          %v756 = vpack.c.b16 %v624, %v621
          %v757 = vpack.c.b16 %v628, %v625
          %v758 = vpack.c.b16 %v629, %v626
          %v759 = vpack.c.b16 %v630, %v627
          %v760 = vpack.c.b16 %v634, %v631
          %v761 = vpack.c.b16 %v635, %v632
          %v762 = vpack.c.b16 %v636, %v633
          %v763 = vpack.c.b16 %v640, %v637
          %v764 = vpack.c.b16 %v641, %v638
          %v765 = vpack.c.b16 %v642, %v639
          %v766 = vpack.c.b16 %v646, %v643
          %v767 = vpack.c.b16 %v647, %v644
          %v768 = vpack.c.b16 %v648, %v645
          %v769 = vpack.c.b16 %v652, %v649
          %v770 = vpack.c.b16 %v653, %v650
          %v771 = vpack.c.b16 %v654, %v651
          %v772 = vpack.c.b16 %v658, %v655
          %v773 = vpack.c.b16 %v659, %v656
          %v774 = vpack.c.b16 %v660, %v657
          %v775 = vpack.c.b16 %v664, %v661
          %v776 = vpack.c.b16 %v665, %v662
          %v777 = vpack.c.b16 %v666, %v663
          %v778 = vpack.c.b16 %v670, %v667
          %v779 = vpack.c.b16 %v671, %v668
          %v780 = vpack.c.b16 %v672, %v669
          %v781 = vpack.c.b16 %v676, %v673
          %v782 = vpack.c.b16 %v677, %v674
          %v783 = vpack.c.b16 %v678, %v675
          %v784 = vpack.c.b16 %v682, %v679
          %v785 = vpack.c.b16 %v683, %v680
          %v786 = vpack.c.b16 %v684, %v681
          %v787 = vpack.c.b16 %v688, %v685
          %v788 = vpack.c.b16 %v689, %v686
          %v789 = vpack.c.b16 %v690, %v687
          %v790 = vpack.c.b16 %v694, %v691
          %v791 = vpack.c.b16 %v695, %v692
          %v792 = vpack.c.b16 %v696, %v693
          %v793 = vpack.c.b16 %v700, %v697
          %v794 = vpack.c.b16 %v701, %v698
          %v795 = vpack.c.b16 %v702, %v699
          %v796 = vpack.c.b16 %v706, %v703
          %v797 = vpack.c.b16 %v707, %v704
          %v798 = vpack.c.b16 %v708, %v705
          %v799 = vpack.c.b16 %v712, %v709
          %v800 = vpack.c.b16 %v713, %v710
          %v801 = vpack.c.b16 %v714, %v711
          %v802 = vpack.c.b16 %v718, %v715
          %v803 = vpack.c.b16 %v719, %v716
          %v804 = vpack.c.b16 %v720, %v717
          %v805 = vpack.c.b16 %v724, %v721
          %v806 = vpack.c.b16 %v725, %v722
          %v807 = vpack.c.b16 %v726, %v723
          %v808 = vpack.c.b16 %v730, %v727
          %v809 = vpack.c.b16 %v731, %v728
          %v810 = vpack.c.b16 %v732, %v729
          %v811 = vpack.c.b16 %v736, %v733
          %v812 = vpack.c.b16 %v737, %v734
          %v813 = vpack.c.b16 %v738, %v735
          %v814 = vpack.c.b16 %v742, %v739
          %v815 = vpack.c.b16 %v743, %v740
          %v816 = vpack.c.b16 %v744, %v741
          %889 = vmatprep.subr.bf16.mxu0 %v746
          %890 = vmatpush1.bf16.msra.mxu0 %v745
          %891 = vmatprep.subr.bf16.mxu0 %v749
          %892 = vmatpush1.bf16.msra.mxu0 %v748
          %893 = vmatprep.subr.bf16.mxu0 %v752
          %894 = vmatpush1.bf16.msra.mxu0 %v751
          %895 = vmatprep.subr.bf16.mxu0 %v755
          %896 = vmatpush1.bf16.msra.mxu0 %v754
          %897 = vmatprep.subr.bf16.mxu0 %v758
          %898 = vmatpush1.bf16.msra.mxu0 %v757
          %899 = vmatprep.subr.bf16.mxu0 %v761
          %900 = vmatpush1.bf16.msra.mxu0 %v760
          %901 = vmatprep.subr.bf16.mxu0 %v764
          %902 = vmatpush1.bf16.msra.mxu0 %v763
          %903 = vmatprep.subr.bf16.mxu0 %v767
          %904 = vmatpush1.bf16.msra.mxu0 %v766
          %905 = vmatprep.subr.bf16.mxu0 %v770
          %906 = vmatpush1.bf16.msra.mxu0 %v769
          %907 = vmatprep.subr.bf16.mxu0 %v773
          %908 = vmatpush1.bf16.msra.mxu0 %v772
          %909 = vmatprep.subr.bf16.mxu0 %v776
          %910 = vmatpush1.bf16.msra.mxu0 %v775
          %911 = vmatprep.subr.bf16.mxu0 %v779
          %912 = vmatpush1.bf16.msra.mxu0 %v778
          %913 = vmatprep.subr.bf16.mxu0 %v782
          %914 = vmatpush1.bf16.msra.mxu0 %v781
          %915 = vmatprep.subr.bf16.mxu0 %v785
          %916 = vmatpush1.bf16.msra.mxu0 %v784
          %917 = vmatprep.subr.bf16.mxu0 %v788
          %918 = vmatpush1.bf16.msra.mxu0 %v787
          %919 = vmatprep.subr.bf16.mxu0 %v791
          %920 = vmatpush1.bf16.msra.mxu0 %v790
          %921 = vmatprep.mubr.bf16.mxu0 %v362
          %922 = vmatmul.mubr.bf16.gmra.mrb[0].mxu0 %v361
          %v923 = vpop.f32.mrb[0].mxu0
          %v924 = vadd.f32 0.0, %v923
          %v925 = vpop.f32.mrb[0].mxu0
          %v926 = vadd.f32 0.0, %v925
          %v927 = vpop.f32.mrb[0].mxu0
          %v928 = vadd.f32 0.0, %v927
          %v929 = vpop.f32.mrb[0].mxu0
          %v930 = vadd.f32 0.0, %v929
          %931 = vmatprep.mubr.bf16.mxu0 %v365
          %932 = vmatmul.mubr.bf16.gmra.mrb[0].mxu0 %v364
          %v933 = vpop.f32.mrb[0].mxu0
          %v934 = vadd.f32 0.0, %v933
          %v935 = vpop.f32.mrb[0].mxu0
          %v936 = vadd.f32 0.0, %v935
          %v937 = vpop.f32.mrb[0].mxu0
          %v938 = vadd.f32 0.0, %v937
          %v939 = vpop.f32.mrb[0].mxu0
          %v940 = vadd.f32 0.0, %v939
          %941 = vmatprep.mubr.bf16.mxu0 %v368
          %942 = vmatmul.mubr.bf16.gmra.mrb[0].mxu0 %v367
          %v943 = vpop.f32.mrb[0].mxu0
          %v944 = vadd.f32 0.0, %v943
          %v945 = vpop.f32.mrb[0].mxu0
          %v946 = vadd.f32 0.0, %v945
          %v947 = vpop.f32.mrb[0].mxu0
          %v948 = vadd.f32 0.0, %v947
          %v949 = vpop.f32.mrb[0].mxu0
          %v950 = vadd.f32 0.0, %v949
          %951 = vmatprep.mubr.bf16.mxu0 %v371
          %952 = vmatmul.mubr.bf16.gmra.mrb[0].mxu0 %v370
          %v953 = vpop.f32.mrb[0].mxu0
          %v954 = vadd.f32 0.0, %v953
          %v955 = vpop.f32.mrb[0].mxu0
          %v956 = vadd.f32 0.0, %v955
          %v957 = vpop.f32.mrb[0].mxu0
          %v958 = vadd.f32 0.0, %v957
          %v959 = vpop.f32.mrb[0].mxu0
          %v960 = vadd.f32 0.0, %v959
          %961 = vmatprep.mubr.bf16.mxu0 %v374
          %962 = vmatmul.mubr.bf16.gmra.mrb[0].mxu0 %v373
          %v963 = vpop.f32.mrb[0].mxu0
          %v964 = vadd.f32 0.0, %v963
          %v965 = vpop.f32.mrb[0].mxu0
          %v966 = vadd.f32 0.0, %v965
          %v967 = vpop.f32.mrb[0].mxu0
          %v968 = vadd.f32 0.0, %v967
          %v969 = vpop.f32.mrb[0].mxu0
          %v970 = vadd.f32 0.0, %v969
          %971 = vmatprep.mubr.bf16.mxu0 %v377
          %972 = vmatmul.mubr.bf16.gmra.mrb[0].mxu0 %v376
          %v973 = vpop.f32.mrb[0].mxu0
          %v974 = vadd.f32 0.0, %v973
          %v975 = vpop.f32.mrb[0].mxu0
          %v976 = vadd.f32 0.0, %v975
          %v977 = vpop.f32.mrb[0].mxu0
          %v978 = vadd.f32 0.0, %v977
          %v979 = vpop.f32.mrb[0].mxu0
          %v980 = vadd.f32 0.0, %v979
          %981 = vmatprep.mubr.bf16.mxu0 %v380
          %982 = vmatmul.mubr.bf16.gmra.mrb[0].mxu0 %v379
          %v983 = vpop.f32.mrb[0].mxu0
          %v984 = vadd.f32 0.0, %v983
          %v985 = vpop.f32.mrb[0].mxu0
          %v986 = vadd.f32 0.0, %v985
          %v987 = vpop.f32.mrb[0].mxu0
          %v988 = vadd.f32 0.0, %v987
          %v989 = vpop.f32.mrb[0].mxu0
          %v990 = vadd.f32 0.0, %v989
          %991 = vmatprep.mubr.bf16.mxu0 %v383
          %992 = vmatmul.mubr.bf16.gmra.mrb[0].mxu0 %v382
          %v993 = vpop.f32.mrb[0].mxu0
          %v994 = vadd.f32 0.0, %v993
          %v995 = vpop.f32.mrb[0].mxu0
          %v996 = vadd.f32 0.0, %v995
          %v997 = vpop.f32.mrb[0].mxu0
          %v998 = vadd.f32 0.0, %v997
          %v999 = vpop.f32.mrb[0].mxu0
          %v1000 = vadd.f32 0.0, %v999
          %1001 = vmatprep.mubr.bf16.mxu0 %v386
          %1002 = vmatmul.mubr.bf16.gmra.mrb[0].mxu0 %v385
          %v1003 = vpop.f32.mrb[0].mxu0
          %v1004 = vadd.f32 0.0, %v1003
          %v1005 = vpop.f32.mrb[0].mxu0
          %v1006 = vadd.f32 0.0, %v1005
          %v1007 = vpop.f32.mrb[0].mxu0
          %v1008 = vadd.f32 0.0, %v1007
          %v1009 = vpop.f32.mrb[0].mxu0
          %v1010 = vadd.f32 0.0, %v1009
          %1011 = vmatprep.mubr.bf16.mxu0 %v389
          %1012 = vmatmul.mubr.bf16.gmra.mrb[0].mxu0 %v388
          %v1013 = vpop.f32.mrb[0].mxu0
          %v1014 = vadd.f32 0.0, %v1013
          %v1015 = vpop.f32.mrb[0].mxu0
          %v1016 = vadd.f32 0.0, %v1015
          %v1017 = vpop.f32.mrb[0].mxu0
          %v1018 = vadd.f32 0.0, %v1017
          %v1019 = vpop.f32.mrb[0].mxu0
          %v1020 = vadd.f32 0.0, %v1019
          %1021 = vmatprep.mubr.bf16.mxu0 %v392
          %1022 = vmatmul.mubr.bf16.gmra.mrb[0].mxu0 %v391
          %v1023 = vpop.f32.mrb[0].mxu0
          %v1024 = vadd.f32 0.0, %v1023
          %v1025 = vpop.f32.mrb[0].mxu0
          %v1026 = vadd.f32 0.0, %v1025
          %v1027 = vpop.f32.mrb[0].mxu0
          %v1028 = vadd.f32 0.0, %v1027
          %v1029 = vpop.f32.mrb[0].mxu0
          %v1030 = vadd.f32 0.0, %v1029
          %1031 = vmatprep.mubr.bf16.mxu0 %v395
          %1032 = vmatmul.mubr.bf16.gmra.mrb[0].mxu0 %v394
          %v1033 = vpop.f32.mrb[0].mxu0
          %v1034 = vadd.f32 0.0, %v1033
          %v1035 = vpop.f32.mrb[0].mxu0
          %v1036 = vadd.f32 0.0, %v1035
          %v1037 = vpop.f32.mrb[0].mxu0
          %v1038 = vadd.f32 0.0, %v1037
          %v1039 = vpop.f32.mrb[0].mxu0
          %v1040 = vadd.f32 0.0, %v1039
          %1041 = vmatprep.mubr.bf16.mxu0 %v398
          %1042 = vmatmul.mubr.bf16.gmra.mrb[0].mxu0 %v397
          %v1043 = vpop.f32.mrb[0].mxu0
          %v1044 = vadd.f32 0.0, %v1043
          %v1045 = vpop.f32.mrb[0].mxu0
          %v1046 = vadd.f32 0.0, %v1045
          %v1047 = vpop.f32.mrb[0].mxu0
          %v1048 = vadd.f32 0.0, %v1047
          %v1049 = vpop.f32.mrb[0].mxu0
          %v1050 = vadd.f32 0.0, %v1049
          %1051 = vmatprep.mubr.bf16.mxu0 %v401
          %1052 = vmatmul.mubr.bf16.gmra.mrb[0].mxu0 %v400
          %v1053 = vpop.f32.mrb[0].mxu0
          %v1054 = vadd.f32 0.0, %v1053
          %v1055 = vpop.f32.mrb[0].mxu0
          %v1056 = vadd.f32 0.0, %v1055
          %v1057 = vpop.f32.mrb[0].mxu0
          %v1058 = vadd.f32 0.0, %v1057
          %v1059 = vpop.f32.mrb[0].mxu0
          %v1060 = vadd.f32 0.0, %v1059
          %1061 = vmatprep.mubr.bf16.mxu0 %v404
          %1062 = vmatmul.mubr.bf16.gmra.mrb[0].mxu0 %v403
          %v1063 = vpop.f32.mrb[0].mxu0
          %v1064 = vadd.f32 0.0, %v1063
          %v1065 = vpop.f32.mrb[0].mxu0
          %v1066 = vadd.f32 0.0, %v1065
          %v1067 = vpop.f32.mrb[0].mxu0
          %v1068 = vadd.f32 0.0, %v1067
          %v1069 = vpop.f32.mrb[0].mxu0
          %v1070 = vadd.f32 0.0, %v1069
          %1071 = vmatprep.mubr.bf16.mxu0 %v407
          %1072 = vmatmul.mubr.bf16.gmra.mrb[0].mxu0 %v406
          %v1073 = vpop.f32.mrb[0].mxu0
          %v1074 = vadd.f32 0.0, %v1073
          %v1075 = vpop.f32.mrb[0].mxu0
          %v1076 = vadd.f32 0.0, %v1075
          %v1077 = vpop.f32.mrb[0].mxu0
          %v1078 = vadd.f32 0.0, %v1077
          %v1079 = vpop.f32.mrb[0].mxu0
          %v1080 = vadd.f32 0.0, %v1079
          %1081 = vdwg.mxu0
          %1082 = vmatprep.subr.bf16.mxu0 %v794
          %1083 = vmatpush1.bf16.msra.mxu0 %v793
          %1084 = vmatprep.subr.bf16.mxu0 %v797
          %1085 = vmatpush1.bf16.msra.mxu0 %v796
          %1086 = vmatprep.subr.bf16.mxu0 %v800
          %1087 = vmatpush1.bf16.msra.mxu0 %v799
          %1088 = vmatprep.subr.bf16.mxu0 %v803
          %1089 = vmatpush1.bf16.msra.mxu0 %v802
          %1090 = vmatprep.subr.bf16.mxu0 %v806
          %1091 = vmatpush1.bf16.msra.mxu0 %v805
          %1092 = vmatprep.subr.bf16.mxu0 %v809
          %1093 = vmatpush1.bf16.msra.mxu0 %v808
          %1094 = vmatprep.subr.bf16.mxu0 %v812
          %1095 = vmatpush1.bf16.msra.mxu0 %v811
          %1096 = vmatprep.subr.bf16.mxu0 %v815
          %1097 = vmatpush1.bf16.msra.mxu0 %v814
          %1098 = vmatprep.subr.bf16.mxu0 0
          %1099 = vmatpush1.bf16.msra.mxu0 0
          %1100 = vmatprep.subr.bf16.mxu0 0
          %1101 = vmatpush1.bf16.msra.mxu0 0
          %1102 = vmatprep.subr.bf16.mxu0 0
          %1103 = vmatpush1.bf16.msra.mxu0 0
          %1104 = vmatprep.subr.bf16.mxu0 0
          %1105 = vmatpush1.bf16.msra.mxu0 0
          %1106 = vmatprep.subr.bf16.mxu0 0
          %1107 = vmatpush1.bf16.msra.mxu0 0
          %1108 = vmatprep.subr.bf16.mxu0 0
          %1109 = vmatpush1.bf16.msra.mxu0 0
          %1110 = vmatprep.subr.bf16.mxu0 0
          %1111 = vmatpush1.bf16.msra.mxu0 0
          %1112 = vmatprep.subr.bf16.mxu0 0
          %1113 = vmatpush1.bf16.msra.mxu0 0
          %1114 = vmatprep.mubr.bf16.mxu0 0
          %1115 = vmatmul.mubr.bf16.gmra.mrb[0].mxu0 %v363
          %v1116 = vpop.f32.mrb[0].mxu0
          %v1117 = vadd.f32 %v924, %v1116
          %v1118 = vpop.f32.mrb[0].mxu0
          %v1119 = vadd.f32 %v926, %v1118
          %v1120 = vpop.f32.mrb[0].mxu0
          %v1121 = vadd.f32 %v928, %v1120
          %v1122 = vpop.f32.mrb[0].mxu0
          %v1123 = vadd.f32 %v930, %v1122
          %1124 = vmatprep.mubr.bf16.mxu0 0
          %1125 = vmatmul.mubr.bf16.gmra.mrb[0].mxu0 %v366
          %v1126 = vpop.f32.mrb[0].mxu0
          %v1127 = vadd.f32 %v934, %v1126
          %v1128 = vpop.f32.mrb[0].mxu0
          %v1129 = vadd.f32 %v936, %v1128
          %v1130 = vpop.f32.mrb[0].mxu0
          %v1131 = vadd.f32 %v938, %v1130
          %v1132 = vpop.f32.mrb[0].mxu0
          %v1133 = vadd.f32 %v940, %v1132
          %1134 = vmatprep.mubr.bf16.mxu0 0
          %1135 = vmatmul.mubr.bf16.gmra.mrb[0].mxu0 %v369
          %v1136 = vpop.f32.mrb[0].mxu0
          %v1137 = vadd.f32 %v944, %v1136
          %v1138 = vpop.f32.mrb[0].mxu0
          %v1139 = vadd.f32 %v946, %v1138
          %v1140 = vpop.f32.mrb[0].mxu0
          %v1141 = vadd.f32 %v948, %v1140
          %v1142 = vpop.f32.mrb[0].mxu0
          %v1143 = vadd.f32 %v950, %v1142
          %1144 = vmatprep.mubr.bf16.mxu0 0
          %1145 = vmatmul.mubr.bf16.gmra.mrb[0].mxu0 %v372
          %v1146 = vpop.f32.mrb[0].mxu0
          %v1147 = vadd.f32 %v954, %v1146
          %v1148 = vpop.f32.mrb[0].mxu0
          %v1149 = vadd.f32 %v956, %v1148
          %v1150 = vpop.f32.mrb[0].mxu0
          %v1151 = vadd.f32 %v958, %v1150
          %v1152 = vpop.f32.mrb[0].mxu0
          %v1153 = vadd.f32 %v960, %v1152
          %1154 = vmatprep.mubr.bf16.mxu0 0
          %1155 = vmatmul.mubr.bf16.gmra.mrb[0].mxu0 %v375
          %v1156 = vpop.f32.mrb[0].mxu0
          %v1157 = vadd.f32 %v964, %v1156
          %v1158 = vpop.f32.mrb[0].mxu0
          %v1159 = vadd.f32 %v966, %v1158
          %v1160 = vpop.f32.mrb[0].mxu0
          %v1161 = vadd.f32 %v968, %v1160
          %v1162 = vpop.f32.mrb[0].mxu0
          %v1163 = vadd.f32 %v970, %v1162
          %1164 = vmatprep.mubr.bf16.mxu0 0
          %1165 = vmatmul.mubr.bf16.gmra.mrb[0].mxu0 %v378
          %v1166 = vpop.f32.mrb[0].mxu0
          %v1167 = vadd.f32 %v974, %v1166
          %v1168 = vpop.f32.mrb[0].mxu0
          %v1169 = vadd.f32 %v976, %v1168
          %v1170 = vpop.f32.mrb[0].mxu0
          %v1171 = vadd.f32 %v978, %v1170
          %v1172 = vpop.f32.mrb[0].mxu0
          %v1173 = vadd.f32 %v980, %v1172
          %1174 = vmatprep.mubr.bf16.mxu0 0
          %1175 = vmatmul.mubr.bf16.gmra.mrb[0].mxu0 %v381
          %v1176 = vpop.f32.mrb[0].mxu0
          %v1177 = vadd.f32 %v984, %v1176
          %v1178 = vpop.f32.mrb[0].mxu0
          %v1179 = vadd.f32 %v986, %v1178
          %v1180 = vpop.f32.mrb[0].mxu0
          %v1181 = vadd.f32 %v988, %v1180
          %v1182 = vpop.f32.mrb[0].mxu0
          %v1183 = vadd.f32 %v990, %v1182
          %1184 = vmatprep.mubr.bf16.mxu0 0
          %1185 = vmatmul.mubr.bf16.gmra.mrb[0].mxu0 %v384
          %v1186 = vpop.f32.mrb[0].mxu0
          %v1187 = vadd.f32 %v994, %v1186
          %v1188 = vpop.f32.mrb[0].mxu0
          %v1189 = vadd.f32 %v996, %v1188
          %v1190 = vpop.f32.mrb[0].mxu0
          %v1191 = vadd.f32 %v998, %v1190
          %v1192 = vpop.f32.mrb[0].mxu0
          %v1193 = vadd.f32 %v1000, %v1192
          %1194 = vmatprep.mubr.bf16.mxu0 0
          %1195 = vmatmul.mubr.bf16.gmra.mrb[0].mxu0 %v387
          %v1196 = vpop.f32.mrb[0].mxu0
          %v1197 = vadd.f32 %v1004, %v1196
          %v1198 = vpop.f32.mrb[0].mxu0
          %v1199 = vadd.f32 %v1006, %v1198
          %v1200 = vpop.f32.mrb[0].mxu0
          %v1201 = vadd.f32 %v1008, %v1200
          %v1202 = vpop.f32.mrb[0].mxu0
          %v1203 = vadd.f32 %v1010, %v1202
          %1204 = vmatprep.mubr.bf16.mxu0 0
          %1205 = vmatmul.mubr.bf16.gmra.mrb[0].mxu0 %v390
          %v1206 = vpop.f32.mrb[0].mxu0
          %v1207 = vadd.f32 %v1014, %v1206
          %v1208 = vpop.f32.mrb[0].mxu0
          %v1209 = vadd.f32 %v1016, %v1208
          %v1210 = vpop.f32.mrb[0].mxu0
          %v1211 = vadd.f32 %v1018, %v1210
          %v1212 = vpop.f32.mrb[0].mxu0
          %v1213 = vadd.f32 %v1020, %v1212
          %1214 = vmatprep.mubr.bf16.mxu0 0
          %1215 = vmatmul.mubr.bf16.gmra.mrb[0].mxu0 %v393
          %v1216 = vpop.f32.mrb[0].mxu0
          %v1217 = vadd.f32 %v1024, %v1216
          %v1218 = vpop.f32.mrb[0].mxu0
          %v1219 = vadd.f32 %v1026, %v1218
          %v1220 = vpop.f32.mrb[0].mxu0
          %v1221 = vadd.f32 %v1028, %v1220
          %v1222 = vpop.f32.mrb[0].mxu0
          %v1223 = vadd.f32 %v1030, %v1222
          %1224 = vmatprep.mubr.bf16.mxu0 0
          %1225 = vmatmul.mubr.bf16.gmra.mrb[0].mxu0 %v396
          %v1226 = vpop.f32.mrb[0].mxu0
          %v1227 = vadd.f32 %v1034, %v1226
          %v1228 = vpop.f32.mrb[0].mxu0
          %v1229 = vadd.f32 %v1036, %v1228
          %v1230 = vpop.f32.mrb[0].mxu0
          %v1231 = vadd.f32 %v1038, %v1230
          %v1232 = vpop.f32.mrb[0].mxu0
          %v1233 = vadd.f32 %v1040, %v1232
          %1234 = vmatprep.mubr.bf16.mxu0 0
          %1235 = vmatmul.mubr.bf16.gmra.mrb[0].mxu0 %v399
          %v1236 = vpop.f32.mrb[0].mxu0
          %v1237 = vadd.f32 %v1044, %v1236
          %v1238 = vpop.f32.mrb[0].mxu0
          %v1239 = vadd.f32 %v1046, %v1238
          %v1240 = vpop.f32.mrb[0].mxu0
          %v1241 = vadd.f32 %v1048, %v1240
          %v1242 = vpop.f32.mrb[0].mxu0
          %v1243 = vadd.f32 %v1050, %v1242
          %1244 = vmatprep.mubr.bf16.mxu0 0
          %1245 = vmatmul.mubr.bf16.gmra.mrb[0].mxu0 %v402
          %v1246 = vpop.f32.mrb[0].mxu0
          %v1247 = vadd.f32 %v1054, %v1246
          %v1248 = vpop.f32.mrb[0].mxu0
          %v1249 = vadd.f32 %v1056, %v1248
          %v1250 = vpop.f32.mrb[0].mxu0
          %v1251 = vadd.f32 %v1058, %v1250
          %v1252 = vpop.f32.mrb[0].mxu0
          %v1253 = vadd.f32 %v1060, %v1252
          %1254 = vmatprep.mubr.bf16.mxu0 0
          %1255 = vmatmul.mubr.bf16.gmra.mrb[0].mxu0 %v405
          %v1256 = vpop.f32.mrb[0].mxu0
          %v1257 = vadd.f32 %v1064, %v1256
          %v1258 = vpop.f32.mrb[0].mxu0
          %v1259 = vadd.f32 %v1066, %v1258
          %v1260 = vpop.f32.mrb[0].mxu0
          %v1261 = vadd.f32 %v1068, %v1260
          %v1262 = vpop.f32.mrb[0].mxu0
          %v1263 = vadd.f32 %v1070, %v1262
          %1264 = vmatprep.mubr.bf16.mxu0 0
          %1265 = vmatmul.mubr.bf16.gmra.mrb[0].mxu0 %v408
          %v1266 = vpop.f32.mrb[0].mxu0
          %v1267 = vadd.f32 %v1074, %v1266
          %v1268 = vpop.f32.mrb[0].mxu0
          %v1269 = vadd.f32 %v1076, %v1268
          %v1270 = vpop.f32.mrb[0].mxu0
          %v1271 = vadd.f32 %v1078, %v1270
          %v1272 = vpop.f32.mrb[0].mxu0
          %v1273 = vadd.f32 %v1080, %v1272
          %1274 = vdwg.mxu0
          %1275 = vmatprep.subr.bf16.mxu0 0
          %1276 = vmatpush1.bf16.msra.mxu0 %v747
          %1277 = vmatprep.subr.bf16.mxu0 0
          %1278 = vmatpush1.bf16.msra.mxu0 %v750
          %1279 = vmatprep.subr.bf16.mxu0 0
          %1280 = vmatpush1.bf16.msra.mxu0 %v753
          %1281 = vmatprep.subr.bf16.mxu0 0
          %1282 = vmatpush1.bf16.msra.mxu0 %v756
          %1283 = vmatprep.subr.bf16.mxu0 0
          %1284 = vmatpush1.bf16.msra.mxu0 %v759
          %1285 = vmatprep.subr.bf16.mxu0 0
          %1286 = vmatpush1.bf16.msra.mxu0 %v762
          %1287 = vmatprep.subr.bf16.mxu0 0
          %1288 = vmatpush1.bf16.msra.mxu0 %v765
          %1289 = vmatprep.subr.bf16.mxu0 0
          %1290 = vmatpush1.bf16.msra.mxu0 %v768
          %1291 = vmatprep.subr.bf16.mxu0 0
          %1292 = vmatpush1.bf16.msra.mxu0 %v771
          %1293 = vmatprep.subr.bf16.mxu0 0
          %1294 = vmatpush1.bf16.msra.mxu0 %v774
          %1295 = vmatprep.subr.bf16.mxu0 0
          %1296 = vmatpush1.bf16.msra.mxu0 %v777
          %1297 = vmatprep.subr.bf16.mxu0 0
          %1298 = vmatpush1.bf16.msra.mxu0 %v780
          %1299 = vmatprep.subr.bf16.mxu0 0
          %1300 = vmatpush1.bf16.msra.mxu0 %v783
          %1301 = vmatprep.subr.bf16.mxu0 0
          %1302 = vmatpush1.bf16.msra.mxu0 %v786
          %1303 = vmatprep.subr.bf16.mxu0 0
          %1304 = vmatpush1.bf16.msra.mxu0 %v789
          %1305 = vmatprep.subr.bf16.mxu0 0
          %1306 = vmatpush1.bf16.msra.mxu0 %v792
          %1307 = vmatprep.mubr.bf16.mxu0 %v362
          %1308 = vmatmul.mubr.bf16.gmra.mrb[0].mxu0 %v361
          %v1309 = vpop.f32.mrb[0].mxu0
          %v1310 = vadd.f32 0.0, %v1309
          %v1311 = vpop.f32.mrb[0].mxu0
          %v1312 = vpop.f32.mrb[0].mxu0
          %v1313 = vadd.f32 0.0, %v1312
          %v1314 = vpop.f32.mrb[0].mxu0
          %1315 = vmatprep.mubr.bf16.mxu0 %v365
          %1316 = vmatmul.mubr.bf16.gmra.mrb[0].mxu0 %v364
          %v1317 = vpop.f32.mrb[0].mxu0
          %v1318 = vadd.f32 0.0, %v1317
          %v1319 = vpop.f32.mrb[0].mxu0
          %v1320 = vpop.f32.mrb[0].mxu0
          %v1321 = vadd.f32 0.0, %v1320
          %v1322 = vpop.f32.mrb[0].mxu0
          %1323 = vmatprep.mubr.bf16.mxu0 %v368
          %1324 = vmatmul.mubr.bf16.gmra.mrb[0].mxu0 %v367
          %v1325 = vpop.f32.mrb[0].mxu0
          %v1326 = vadd.f32 0.0, %v1325
          %v1327 = vpop.f32.mrb[0].mxu0
          %v1328 = vpop.f32.mrb[0].mxu0
          %v1329 = vadd.f32 0.0, %v1328
          %v1330 = vpop.f32.mrb[0].mxu0
          %1331 = vmatprep.mubr.bf16.mxu0 %v371
          %1332 = vmatmul.mubr.bf16.gmra.mrb[0].mxu0 %v370
          %v1333 = vpop.f32.mrb[0].mxu0
          %v1334 = vadd.f32 0.0, %v1333
          %v1335 = vpop.f32.mrb[0].mxu0
          %v1336 = vpop.f32.mrb[0].mxu0
          %v1337 = vadd.f32 0.0, %v1336
          %v1338 = vpop.f32.mrb[0].mxu0
          %1339 = vmatprep.mubr.bf16.mxu0 %v374
          %1340 = vmatmul.mubr.bf16.gmra.mrb[0].mxu0 %v373
          %v1341 = vpop.f32.mrb[0].mxu0
          %v1342 = vadd.f32 0.0, %v1341
          %v1343 = vpop.f32.mrb[0].mxu0
          %v1344 = vpop.f32.mrb[0].mxu0
          %v1345 = vadd.f32 0.0, %v1344
          %v1346 = vpop.f32.mrb[0].mxu0
          %1347 = vmatprep.mubr.bf16.mxu0 %v377
          %1348 = vmatmul.mubr.bf16.gmra.mrb[0].mxu0 %v376
          %v1349 = vpop.f32.mrb[0].mxu0
          %v1350 = vadd.f32 0.0, %v1349
          %v1351 = vpop.f32.mrb[0].mxu0
          %v1352 = vpop.f32.mrb[0].mxu0
          %v1353 = vadd.f32 0.0, %v1352
          %v1354 = vpop.f32.mrb[0].mxu0
          %1355 = vmatprep.mubr.bf16.mxu0 %v380
          %1356 = vmatmul.mubr.bf16.gmra.mrb[0].mxu0 %v379
          %v1357 = vpop.f32.mrb[0].mxu0
          %v1358 = vadd.f32 0.0, %v1357
          %v1359 = vpop.f32.mrb[0].mxu0
          %v1360 = vpop.f32.mrb[0].mxu0
          %v1361 = vadd.f32 0.0, %v1360
          %v1362 = vpop.f32.mrb[0].mxu0
          %1363 = vmatprep.mubr.bf16.mxu0 %v383
          %1364 = vmatmul.mubr.bf16.gmra.mrb[0].mxu0 %v382
          %v1365 = vpop.f32.mrb[0].mxu0
          %v1366 = vadd.f32 0.0, %v1365
          %v1367 = vpop.f32.mrb[0].mxu0
          %v1368 = vpop.f32.mrb[0].mxu0
          %v1369 = vadd.f32 0.0, %v1368
          %v1370 = vpop.f32.mrb[0].mxu0
          %1371 = vmatprep.mubr.bf16.mxu0 %v386
          %1372 = vmatmul.mubr.bf16.gmra.mrb[0].mxu0 %v385
          %v1373 = vpop.f32.mrb[0].mxu0
          %v1374 = vadd.f32 0.0, %v1373
          %v1375 = vpop.f32.mrb[0].mxu0
          %v1376 = vpop.f32.mrb[0].mxu0
          %v1377 = vadd.f32 0.0, %v1376
          %v1378 = vpop.f32.mrb[0].mxu0
          %1379 = vmatprep.mubr.bf16.mxu0 %v389
          %1380 = vmatmul.mubr.bf16.gmra.mrb[0].mxu0 %v388
          %v1381 = vpop.f32.mrb[0].mxu0
          %v1382 = vadd.f32 0.0, %v1381
          %v1383 = vpop.f32.mrb[0].mxu0
          %v1384 = vpop.f32.mrb[0].mxu0
          %v1385 = vadd.f32 0.0, %v1384
          %v1386 = vpop.f32.mrb[0].mxu0
          %1387 = vmatprep.mubr.bf16.mxu0 %v392
          %1388 = vmatmul.mubr.bf16.gmra.mrb[0].mxu0 %v391
          %v1389 = vpop.f32.mrb[0].mxu0
          %v1390 = vadd.f32 0.0, %v1389
          %v1391 = vpop.f32.mrb[0].mxu0
          %v1392 = vpop.f32.mrb[0].mxu0
          %v1393 = vadd.f32 0.0, %v1392
          %v1394 = vpop.f32.mrb[0].mxu0
          %1395 = vmatprep.mubr.bf16.mxu0 %v395
          %1396 = vmatmul.mubr.bf16.gmra.mrb[0].mxu0 %v394
          %v1397 = vpop.f32.mrb[0].mxu0
          %v1398 = vadd.f32 0.0, %v1397
          %v1399 = vpop.f32.mrb[0].mxu0
          %v1400 = vpop.f32.mrb[0].mxu0
          %v1401 = vadd.f32 0.0, %v1400
          %v1402 = vpop.f32.mrb[0].mxu0
          %1403 = vmatprep.mubr.bf16.mxu0 %v398
          %1404 = vmatmul.mubr.bf16.gmra.mrb[0].mxu0 %v397
          %v1405 = vpop.f32.mrb[0].mxu0
          %v1406 = vadd.f32 0.0, %v1405
          %v1407 = vpop.f32.mrb[0].mxu0
          %v1408 = vpop.f32.mrb[0].mxu0
          %v1409 = vadd.f32 0.0, %v1408
          %v1410 = vpop.f32.mrb[0].mxu0
          %1411 = vmatprep.mubr.bf16.mxu0 %v401
          %1412 = vmatmul.mubr.bf16.gmra.mrb[0].mxu0 %v400
          %v1413 = vpop.f32.mrb[0].mxu0
          %v1414 = vadd.f32 0.0, %v1413
          %v1415 = vpop.f32.mrb[0].mxu0
          %v1416 = vpop.f32.mrb[0].mxu0
          %v1417 = vadd.f32 0.0, %v1416
          %v1418 = vpop.f32.mrb[0].mxu0
          %1419 = vmatprep.mubr.bf16.mxu0 %v404
          %1420 = vmatmul.mubr.bf16.gmra.mrb[0].mxu0 %v403
          %v1421 = vpop.f32.mrb[0].mxu0
          %v1422 = vadd.f32 0.0, %v1421
          %v1423 = vpop.f32.mrb[0].mxu0
          %v1424 = vpop.f32.mrb[0].mxu0
          %v1425 = vadd.f32 0.0, %v1424
          %v1426 = vpop.f32.mrb[0].mxu0
          %1427 = vmatprep.mubr.bf16.mxu0 %v407
          %1428 = vmatmul.mubr.bf16.gmra.mrb[0].mxu0 %v406
          %v1429 = vpop.f32.mrb[0].mxu0
          %v1430 = vadd.f32 0.0, %v1429
          %v1431 = vpop.f32.mrb[0].mxu0
          %v1432 = vpop.f32.mrb[0].mxu0
          %v1433 = vadd.f32 0.0, %v1432
          %v1434 = vpop.f32.mrb[0].mxu0
          %1435 = vdwg.mxu0
          %1436 = vmatprep.subr.bf16.mxu0 0
          %1437 = vmatpush1.bf16.msra.mxu0 %v795
          %1438 = vmatprep.subr.bf16.mxu0 0
          %1439 = vmatpush1.bf16.msra.mxu0 %v798
          %1440 = vmatprep.subr.bf16.mxu0 0
          %1441 = vmatpush1.bf16.msra.mxu0 %v801
          %1442 = vmatprep.subr.bf16.mxu0 0
          %1443 = vmatpush1.bf16.msra.mxu0 %v804
          %1444 = vmatprep.subr.bf16.mxu0 0
          %1445 = vmatpush1.bf16.msra.mxu0 %v807
          %1446 = vmatprep.subr.bf16.mxu0 0
          %1447 = vmatpush1.bf16.msra.mxu0 %v810
          %1448 = vmatprep.subr.bf16.mxu0 0
          %1449 = vmatpush1.bf16.msra.mxu0 %v813
          %1450 = vmatprep.subr.bf16.mxu0 0
          %1451 = vmatpush1.bf16.msra.mxu0 %v816
          %1452 = vmatprep.subr.bf16.mxu0 0
          %1453 = vmatpush1.bf16.msra.mxu0 0
          %1454 = vmatprep.subr.bf16.mxu0 0
          %1455 = vmatpush1.bf16.msra.mxu0 0
          %1456 = vmatprep.subr.bf16.mxu0 0
          %1457 = vmatpush1.bf16.msra.mxu0 0
          %1458 = vmatprep.subr.bf16.mxu0 0
          %1459 = vmatpush1.bf16.msra.mxu0 0
          %1460 = vmatprep.subr.bf16.mxu0 0
          %1461 = vmatpush1.bf16.msra.mxu0 0
          %1462 = vmatprep.subr.bf16.mxu0 0
          %1463 = vmatpush1.bf16.msra.mxu0 0
          %1464 = vmatprep.subr.bf16.mxu0 0
          %1465 = vmatpush1.bf16.msra.mxu0 0
          %1466 = vmatprep.subr.bf16.mxu0 0
          %1467 = vmatpush1.bf16.msra.mxu0 0
          %1468 = vmatprep.mubr.bf16.mxu0 0
          %1469 = vmatmul.mubr.bf16.gmra.mrb[0].mxu0 %v363
          %v1470 = vpop.f32.mrb[0].mxu0
          %v1471 = vadd.f32 %v1310, %v1470
          %v1472 = vpop.f32.mrb[0].mxu0
          %v1473 = vpop.f32.mrb[0].mxu0
          %v1474 = vadd.f32 %v1313, %v1473
          %v1475 = vpop.f32.mrb[0].mxu0
          %1476 = vmatprep.mubr.bf16.mxu0 0
          %1477 = vmatmul.mubr.bf16.gmra.mrb[0].mxu0 %v366
          %v1478 = vpop.f32.mrb[0].mxu0
          %v1479 = vadd.f32 %v1318, %v1478
          %v1480 = vpop.f32.mrb[0].mxu0
          %v1481 = vpop.f32.mrb[0].mxu0
          %v1482 = vadd.f32 %v1321, %v1481
          %v1483 = vpop.f32.mrb[0].mxu0
          %1484 = vmatprep.mubr.bf16.mxu0 0
          %1485 = vmatmul.mubr.bf16.gmra.mrb[0].mxu0 %v369
          %v1486 = vpop.f32.mrb[0].mxu0
          %v1487 = vadd.f32 %v1326, %v1486
          %v1488 = vpop.f32.mrb[0].mxu0
          %v1489 = vpop.f32.mrb[0].mxu0
          %v1490 = vadd.f32 %v1329, %v1489
          %v1491 = vpop.f32.mrb[0].mxu0
          %1492 = vmatprep.mubr.bf16.mxu0 0
          %1493 = vmatmul.mubr.bf16.gmra.mrb[0].mxu0 %v372
          %v1494 = vpop.f32.mrb[0].mxu0
          %v1495 = vadd.f32 %v1334, %v1494
          %v1496 = vpop.f32.mrb[0].mxu0
          %v1497 = vpop.f32.mrb[0].mxu0
          %v1498 = vadd.f32 %v1337, %v1497
          %v1499 = vpop.f32.mrb[0].mxu0
          %1500 = vmatprep.mubr.bf16.mxu0 0
          %1501 = vmatmul.mubr.bf16.gmra.mrb[0].mxu0 %v375
          %v1502 = vpop.f32.mrb[0].mxu0
          %v1503 = vadd.f32 %v1342, %v1502
          %v1504 = vpop.f32.mrb[0].mxu0
          %v1505 = vpop.f32.mrb[0].mxu0
          %v1506 = vadd.f32 %v1345, %v1505
          %v1507 = vpop.f32.mrb[0].mxu0
          %1508 = vmatprep.mubr.bf16.mxu0 0
          %1509 = vmatmul.mubr.bf16.gmra.mrb[0].mxu0 %v378
          %v1510 = vpop.f32.mrb[0].mxu0
          %v1511 = vadd.f32 %v1350, %v1510
          %v1512 = vpop.f32.mrb[0].mxu0
          %v1513 = vpop.f32.mrb[0].mxu0
          %v1514 = vadd.f32 %v1353, %v1513
          %v1515 = vpop.f32.mrb[0].mxu0
          %1516 = vmatprep.mubr.bf16.mxu0 0
          %1517 = vmatmul.mubr.bf16.gmra.mrb[0].mxu0 %v381
          %v1518 = vpop.f32.mrb[0].mxu0
          %v1519 = vadd.f32 %v1358, %v1518
          %v1520 = vpop.f32.mrb[0].mxu0
          %v1521 = vpop.f32.mrb[0].mxu0
          %v1522 = vadd.f32 %v1361, %v1521
          %v1523 = vpop.f32.mrb[0].mxu0
          %1524 = vmatprep.mubr.bf16.mxu0 0
          %1525 = vmatmul.mubr.bf16.gmra.mrb[0].mxu0 %v384
          %v1526 = vpop.f32.mrb[0].mxu0
          %v1527 = vadd.f32 %v1366, %v1526
          %v1528 = vpop.f32.mrb[0].mxu0
          %v1529 = vpop.f32.mrb[0].mxu0
          %v1530 = vadd.f32 %v1369, %v1529
          %v1531 = vpop.f32.mrb[0].mxu0
          %1532 = vmatprep.mubr.bf16.mxu0 0
          %1533 = vmatmul.mubr.bf16.gmra.mrb[0].mxu0 %v387
          %v1534 = vpop.f32.mrb[0].mxu0
          %v1535 = vadd.f32 %v1374, %v1534
          %v1536 = vpop.f32.mrb[0].mxu0
          %v1537 = vpop.f32.mrb[0].mxu0
          %v1538 = vadd.f32 %v1377, %v1537
          %v1539 = vpop.f32.mrb[0].mxu0
          %1540 = vmatprep.mubr.bf16.mxu0 0
          %1541 = vmatmul.mubr.bf16.gmra.mrb[0].mxu0 %v390
          %v1542 = vpop.f32.mrb[0].mxu0
          %v1543 = vadd.f32 %v1382, %v1542
          %v1544 = vpop.f32.mrb[0].mxu0
          %v1545 = vpop.f32.mrb[0].mxu0
          %v1546 = vadd.f32 %v1385, %v1545
          %v1547 = vpop.f32.mrb[0].mxu0
          %1548 = vmatprep.mubr.bf16.mxu0 0
          %1549 = vmatmul.mubr.bf16.gmra.mrb[0].mxu0 %v393
          %v1550 = vpop.f32.mrb[0].mxu0
          %v1551 = vadd.f32 %v1390, %v1550
          %v1552 = vpop.f32.mrb[0].mxu0
          %v1553 = vpop.f32.mrb[0].mxu0
          %v1554 = vadd.f32 %v1393, %v1553
          %v1555 = vpop.f32.mrb[0].mxu0
          %1556 = vmatprep.mubr.bf16.mxu0 0
          %1557 = vmatmul.mubr.bf16.gmra.mrb[0].mxu0 %v396
          %v1558 = vpop.f32.mrb[0].mxu0
          %v1559 = vadd.f32 %v1398, %v1558
          %v1560 = vpop.f32.mrb[0].mxu0
          %v1561 = vpop.f32.mrb[0].mxu0
          %v1562 = vadd.f32 %v1401, %v1561
          %v1563 = vpop.f32.mrb[0].mxu0
          %1564 = vmatprep.mubr.bf16.mxu0 0
          %1565 = vmatmul.mubr.bf16.gmra.mrb[0].mxu0 %v399
          %v1566 = vpop.f32.mrb[0].mxu0
          %v1567 = vadd.f32 %v1406, %v1566
          %v1568 = vpop.f32.mrb[0].mxu0
          %v1569 = vpop.f32.mrb[0].mxu0
          %v1570 = vadd.f32 %v1409, %v1569
          %v1571 = vpop.f32.mrb[0].mxu0
          %1572 = vmatprep.mubr.bf16.mxu0 0
          %1573 = vmatmul.mubr.bf16.gmra.mrb[0].mxu0 %v402
          %v1574 = vpop.f32.mrb[0].mxu0
          %v1575 = vadd.f32 %v1414, %v1574
          %v1576 = vpop.f32.mrb[0].mxu0
          %v1577 = vpop.f32.mrb[0].mxu0
          %v1578 = vadd.f32 %v1417, %v1577
          %v1579 = vpop.f32.mrb[0].mxu0
          %1580 = vmatprep.mubr.bf16.mxu0 0
          %1581 = vmatmul.mubr.bf16.gmra.mrb[0].mxu0 %v405
          %v1582 = vpop.f32.mrb[0].mxu0
          %v1583 = vadd.f32 %v1422, %v1582
          %v1584 = vpop.f32.mrb[0].mxu0
          %v1585 = vpop.f32.mrb[0].mxu0
          %v1586 = vadd.f32 %v1425, %v1585
          %v1587 = vpop.f32.mrb[0].mxu0
          %1588 = vmatprep.mubr.bf16.mxu0 0
          %1589 = vmatmul.mubr.bf16.gmra.mrb[0].mxu0 %v408
          %v1590 = vpop.f32.mrb[0].mxu0
          %v1591 = vadd.f32 %v1430, %v1590
          %v1592 = vpop.f32.mrb[0].mxu0
          %v1593 = vpop.f32.mrb[0].mxu0
          %v1594 = vadd.f32 %v1433, %v1593
          %v1595 = vpop.f32.mrb[0].mxu0
          %1596 = vdwg.mxu0
          %v1597 = vpack.c.bf16 %v1121, %v1117
          %v1598 = vpack.c.bf16 %v1123, %v1119
          %v1599 = vpack.c.bf16 %v1474, %v1471
          %v1600 = vpack.c.bf16 %v1131, %v1127
          %v1601 = vpack.c.bf16 %v1133, %v1129
          %v1602 = vpack.c.bf16 %v1482, %v1479
          %v1603 = vpack.c.bf16 %v1141, %v1137
          %v1604 = vpack.c.bf16 %v1143, %v1139
          %v1605 = vpack.c.bf16 %v1490, %v1487
          %v1606 = vpack.c.bf16 %v1151, %v1147
          %v1607 = vpack.c.bf16 %v1153, %v1149
          %v1608 = vpack.c.bf16 %v1498, %v1495
          %v1609 = vpack.c.bf16 %v1161, %v1157
          %v1610 = vpack.c.bf16 %v1163, %v1159
          %v1611 = vpack.c.bf16 %v1506, %v1503
          %v1612 = vpack.c.bf16 %v1171, %v1167
          %v1613 = vpack.c.bf16 %v1173, %v1169
          %v1614 = vpack.c.bf16 %v1514, %v1511
          %v1615 = vpack.c.bf16 %v1181, %v1177
          %v1616 = vpack.c.bf16 %v1183, %v1179
          %v1617 = vpack.c.bf16 %v1522, %v1519
          %v1618 = vpack.c.bf16 %v1191, %v1187
          %v1619 = vpack.c.bf16 %v1193, %v1189
          %v1620 = vpack.c.bf16 %v1530, %v1527
          %v1621 = vpack.c.bf16 %v1201, %v1197
          %v1622 = vpack.c.bf16 %v1203, %v1199
          %v1623 = vpack.c.bf16 %v1538, %v1535
          %v1624 = vpack.c.bf16 %v1211, %v1207
          %v1625 = vpack.c.bf16 %v1213, %v1209
          %v1626 = vpack.c.bf16 %v1546, %v1543
          %v1627 = vpack.c.bf16 %v1221, %v1217
          %v1628 = vpack.c.bf16 %v1223, %v1219
          %v1629 = vpack.c.bf16 %v1554, %v1551
          %v1630 = vpack.c.bf16 %v1231, %v1227
          %v1631 = vpack.c.bf16 %v1233, %v1229
          %v1632 = vpack.c.bf16 %v1562, %v1559
          %v1633 = vpack.c.bf16 %v1241, %v1237
          %v1634 = vpack.c.bf16 %v1243, %v1239
          %v1635 = vpack.c.bf16 %v1570, %v1567
          %v1636 = vpack.c.bf16 %v1251, %v1247
          %v1637 = vpack.c.bf16 %v1253, %v1249
          %v1638 = vpack.c.bf16 %v1578, %v1575
          %v1639 = vpack.c.bf16 %v1261, %v1257
          %v1640 = vpack.c.bf16 %v1263, %v1259
          %v1641 = vpack.c.bf16 %v1586, %v1583
          %v1642 = vpack.c.bf16 %v1271, %v1267
          %v1643 = vpack.c.bf16 %v1273, %v1269
          %v1644 = vpack.c.bf16 %v1594, %v1591
          %1645 = vst [vmem:[#allocation2] sm:$0xff] %v1597
          %1646 = vst [vmem:[#allocation2 + $0x8] sm:$0xff] %v1598
          %1647 = vst [vmem:[#allocation2 + $0x10] sm:$0xff] %v1599
          %1648 = vst [vmem:[#allocation2 + $0x48] sm:$0xff] %v1600
          %1649 = vst [vmem:[#allocation2 + $0x50] sm:$0xff] %v1601
          %1650 = vst [vmem:[#allocation2 + $0x58] sm:$0xff] %v1602
          %1651 = vst [vmem:[#allocation2 + $0x90] sm:$0xff] %v1603
          %1652 = vst [vmem:[#allocation2 + $0x98] sm:$0xff] %v1604
          %1653 = vst [vmem:[#allocation2 + $0xa0] sm:$0xff] %v1605
          %1654 = vst [vmem:[#allocation2 + $0xd8] sm:$0xff] %v1606
          %1655 = vst [vmem:[#allocation2 + $0xe0] sm:$0xff] %v1607
          %1656 = vst [vmem:[#allocation2 + $0xe8] sm:$0xff] %v1608
          %1657 = vst [vmem:[#allocation2 + $0x120] sm:$0xff] %v1609
          %1658 = vst [vmem:[#allocation2 + $0x128] sm:$0xff] %v1610
          %1659 = vst [vmem:[#allocation2 + $0x130] sm:$0xff] %v1611
          %1660 = vst [vmem:[#allocation2 + $0x168] sm:$0xff] %v1612
          %1661 = vst [vmem:[#allocation2 + $0x170] sm:$0xff] %v1613
          %1662 = vst [vmem:[#allocation2 + $0x178] sm:$0xff] %v1614
          %1663 = vst [vmem:[#allocation2 + $0x1b0] sm:$0xff] %v1615
          %1664 = vst [vmem:[#allocation2 + $0x1b8] sm:$0xff] %v1616
          %1665 = vst [vmem:[#allocation2 + $0x1c0] sm:$0xff] %v1617
          %1666 = vst [vmem:[#allocation2 + $0x1f8] sm:$0xff] %v1618
          %1667 = vst [vmem:[#allocation2 + $0x200] sm:$0xff] %v1619
          %1668 = vst [vmem:[#allocation2 + $0x208] sm:$0xff] %v1620
          %1669 = vst [vmem:[#allocation2 + $0x240] sm:$0xff] %v1621
          %1670 = vst [vmem:[#allocation2 + $0x248] sm:$0xff] %v1622
          %1671 = vst [vmem:[#allocation2 + $0x250] sm:$0xff] %v1623
          %1672 = vst [vmem:[#allocation2 + $0x288] sm:$0xff] %v1624
          %1673 = vst [vmem:[#allocation2 + $0x290] sm:$0xff] %v1625
          %1674 = vst [vmem:[#allocation2 + $0x298] sm:$0xff] %v1626
          %1675 = vst [vmem:[#allocation2 + $0x2d0] sm:$0xff] %v1627
          %1676 = vst [vmem:[#allocation2 + $0x2d8] sm:$0xff] %v1628
          %1677 = vst [vmem:[#allocation2 + $0x2e0] sm:$0xff] %v1629
          %1678 = vst [vmem:[#allocation2 + $0x318] sm:$0xff] %v1630
          %1679 = vst [vmem:[#allocation2 + $0x320] sm:$0xff] %v1631
          %1680 = vst [vmem:[#allocation2 + $0x328] sm:$0xff] %v1632
          %1681 = vst [vmem:[#allocation2 + $0x360] sm:$0xff] %v1633
          %1682 = vst [vmem:[#allocation2 + $0x368] sm:$0xff] %v1634
          %1683 = vst [vmem:[#allocation2 + $0x370] sm:$0xff] %v1635
          %1684 = vst [vmem:[#allocation2 + $0x3a8] sm:$0xff] %v1636
          %1685 = vst [vmem:[#allocation2 + $0x3b0] sm:$0xff] %v1637
          %1686 = vst [vmem:[#allocation2 + $0x3b8] sm:$0xff] %v1638
          %1687 = vst [vmem:[#allocation2 + $0x3f0] sm:$0xff] %v1639
          %1688 = vst [vmem:[#allocation2 + $0x3f8] sm:$0xff] %v1640
          %1689 = vst [vmem:[#allocation2 + $0x400] sm:$0xff] %v1641
          %1690 = vst [vmem:[#allocation2 + $0x438] sm:$0xff] %v1642
          %1691 = vst [vmem:[#allocation2 + $0x440] sm:$0xff] %v1643
          %1692 = vst [vmem:[#allocation2 + $0x448] sm:$0xff] %v1644
          %v1693 = vld [vmem:[#allocation7 + $0xc] sm:$0xff]
          %v1694 = vld [vmem:[#allocation7 + $0x14] sm:$0xf]
          %v1695 = vld [vmem:[#allocation7 + $0x30] sm:$0xff]
          %v1696 = vld [vmem:[#allocation7 + $0x38] sm:$0xf]
          %v1697 = vld [vmem:[#allocation7 + $0x54] sm:$0xff]
          %v1698 = vld [vmem:[#allocation7 + $0x5c] sm:$0xf]
          %v1699 = vld [vmem:[#allocation7 + $0x78] sm:$0xff]
          %v1700 = vld [vmem:[#allocation7 + $0x80] sm:$0xf]
          %v1701 = vld [vmem:[#allocation7 + $0x9c] sm:$0xff]
          %v1702 = vld [vmem:[#allocation7 + $0xa4] sm:$0xf]
          %v1703 = vld [vmem:[#allocation7 + $0xc0] sm:$0xff]
          %v1704 = vld [vmem:[#allocation7 + $0xc8] sm:$0xf]
          %v1705 = vld [vmem:[#allocation7 + $0xe4] sm:$0xff]
          %v1706 = vld [vmem:[#allocation7 + $0xec] sm:$0xf]
          %v1707 = vld [vmem:[#allocation7 + $0x108] sm:$0xff]
          %v1708 = vld [vmem:[#allocation7 + $0x110] sm:$0xf]
          %v1709 = vld [vmem:[#allocation7 + $0x12c] sm:$0xff]
          %v1710 = vld [vmem:[#allocation7 + $0x134] sm:$0xf]
          %v1711 = vld [vmem:[#allocation7 + $0x150] sm:$0xff]
          %v1712 = vld [vmem:[#allocation7 + $0x158] sm:$0xf]
          %v1713 = vld [vmem:[#allocation7 + $0x174] sm:$0xff]
          %v1714 = vld [vmem:[#allocation7 + $0x17c] sm:$0xf]
          %v1715 = vld [vmem:[#allocation7 + $0x198] sm:$0xff]
          %v1716 = vld [vmem:[#allocation7 + $0x1a0] sm:$0xf]
          %v1717 = vld [vmem:[#allocation7 + $0x1bc] sm:$0xff]
          %v1718 = vld [vmem:[#allocation7 + $0x1c4] sm:$0xf]
          %v1719 = vld [vmem:[#allocation7 + $0x1e0] sm:$0xff]
          %v1720 = vld [vmem:[#allocation7 + $0x1e8] sm:$0xf]
          %v1721 = vld [vmem:[#allocation7 + $0x204] sm:$0xff]
          %v1722 = vld [vmem:[#allocation7 + $0x20c] sm:$0xf]
          %v1723 = vld [vmem:[#allocation7 + $0x228] sm:$0xff]
          %v1724 = vld [vmem:[#allocation7 + $0x230] sm:$0xf]
          %v1725 = vld [vmem:[#allocation7 + $0x24c] sm:$0xff]
          %v1726 = vld [vmem:[#allocation7 + $0x254] sm:$0xf]
          %v1727 = vld [vmem:[#allocation7 + $0x270] sm:$0xff]
          %v1728 = vld [vmem:[#allocation7 + $0x278] sm:$0xf]
          %v1729 = vld [vmem:[#allocation7 + $0x294] sm:$0xff]
          %v1730 = vld [vmem:[#allocation7 + $0x29c] sm:$0xf]
          %v1731 = vld [vmem:[#allocation7 + $0x2b8] sm:$0xff]
          %v1732 = vld [vmem:[#allocation7 + $0x2c0] sm:$0xf]
          %v1733 = vld [vmem:[#allocation7 + $0x2dc] sm:$0xff]
          %v1734 = vld [vmem:[#allocation7 + $0x2e4] sm:$0xf]
          %v1735 = vld [vmem:[#allocation7 + $0x300] sm:$0xff]
          %v1736 = vld [vmem:[#allocation7 + $0x308] sm:$0xf]
          %v1737 = vld [vmem:[#allocation7 + $0x324] sm:$0xff]
          %v1738 = vld [vmem:[#allocation7 + $0x32c] sm:$0xf]
          %v1739 = vld [vmem:[#allocation7 + $0x348] sm:$0xff]
          %v1740 = vld [vmem:[#allocation7 + $0x350] sm:$0xf]
          %v1741 = vld [vmem:[#allocation7 + $0x36c] sm:$0xff]
          %v1742 = vld [vmem:[#allocation7 + $0x374] sm:$0xf]
          %v1743 = vld [vmem:[#allocation7 + $0x390] sm:$0xff]
          %v1744 = vld [vmem:[#allocation7 + $0x398] sm:$0xf]
          %v1745 = vld [vmem:[#allocation7 + $0x3b4] sm:$0xff]
          %v1746 = vld [vmem:[#allocation7 + $0x3bc] sm:$0xf]
          %v1747 = vld [vmem:[#allocation7 + $0x3d8] sm:$0xff]
          %v1748 = vld [vmem:[#allocation7 + $0x3e0] sm:$0xf]
          %v1749 = vld [vmem:[#allocation7 + $0x3fc] sm:$0xff]
          %v1750 = vld [vmem:[#allocation7 + $0x404] sm:$0xf]
          %v1751 = vld [vmem:[#allocation7 + $0x420] sm:$0xff]
          %v1752 = vld [vmem:[#allocation7 + $0x428] sm:$0xf]
          %v1753 = vld [vmem:[#allocation7 + $0x444] sm:$0xff]
          %v1754 = vld [vmem:[#allocation7 + $0x44c] sm:$0xf]
          %v1755 = vld [vmem:[#allocation7 + $0x468] sm:$0xff]
          %v1756 = vld [vmem:[#allocation7 + $0x470] sm:$0xf]
          %v1757 = vld [vmem:[#allocation7 + $0x48c] sm:$0xff]
          %v1758 = vld [vmem:[#allocation7 + $0x494] sm:$0xf]
          %v1759 = vld [vmem:[#allocation7 + $0x4b0] sm:$0xff]
          %v1760 = vld [vmem:[#allocation7 + $0x4b8] sm:$0xf]
          %v1761 = vld [vmem:[#allocation7 + $0x4d4] sm:$0xff]
          %v1762 = vld [vmem:[#allocation7 + $0x4dc] sm:$0xf]
          %v1763 = vld [vmem:[#allocation7 + $0x4f8] sm:$0xff]
          %v1764 = vld [vmem:[#allocation7 + $0x500] sm:$0xf]
          %v1765 = vld [vmem:[#allocation7 + $0x51c] sm:$0xff]
          %v1766 = vld [vmem:[#allocation7 + $0x524] sm:$0xf]
          %v1767 = vld [vmem:[#allocation7 + $0x540] sm:$0xff]
          %v1768 = vld [vmem:[#allocation7 + $0x548] sm:$0xf]
          %v1769 = vld [vmem:[#allocation7 + $0x564] sm:$0xff]
          %v1770 = vld [vmem:[#allocation7 + $0x56c] sm:$0xf]
          %v1771 = vld [vmem:[#allocation7 + $0x588] sm:$0xff]
          %v1772 = vld [vmem:[#allocation7 + $0x590] sm:$0xf]
          %v1773 = vld [vmem:[#allocation7 + $0x5ac] sm:$0xff]
          %v1774 = vld [vmem:[#allocation7 + $0x5b4] sm:$0xf]
          %v1775 = vld [vmem:[#allocation7 + $0x5d0] sm:$0xff]
          %v1776 = vld [vmem:[#allocation7 + $0x5d8] sm:$0xf]
          %v1777 = vld [vmem:[#allocation7 + $0x5f4] sm:$0xff]
          %v1778 = vld [vmem:[#allocation7 + $0x5fc] sm:$0xf]
          %v1779 = vld [vmem:[#allocation7 + $0x618] sm:$0xff]
          %v1780 = vld [vmem:[#allocation7 + $0x620] sm:$0xf]
          %v1781 = vld [vmem:[#allocation7 + $0x63c] sm:$0xff]
          %v1782 = vld [vmem:[#allocation7 + $0x644] sm:$0xf]
          %v1783 = vld [vmem:[#allocation7 + $0x660] sm:$0xff]
          %v1784 = vld [vmem:[#allocation7 + $0x668] sm:$0xf]
          %v1785 = vld [vmem:[#allocation7 + $0x684] sm:$0xff]
          %v1786 = vld [vmem:[#allocation7 + $0x68c] sm:$0xf]
          %v1787 = vld [vmem:[#allocation7 + $0x6a8] sm:$0xff]
          %v1788 = vld [vmem:[#allocation7 + $0x6b0] sm:$0xf]
          %v1885 = vunpack.c.l.b16 %v1693
          %v1886 = vunpack.c.h.b16 %v1693
          %v1887 = vunpack.c.l.b16 %v1694
          %v1888 = vunpack.c.l.b16 %v1695
          %v1889 = vunpack.c.h.b16 %v1695
          %v1890 = vunpack.c.l.b16 %v1696
          %v1891 = vunpack.c.l.b16 %v1697
          %v1892 = vunpack.c.h.b16 %v1697
          %v1893 = vunpack.c.l.b16 %v1698
          %v1894 = vunpack.c.l.b16 %v1699
          %v1895 = vunpack.c.h.b16 %v1699
          %v1896 = vunpack.c.l.b16 %v1700
          %v1897 = vunpack.c.l.b16 %v1701
          %v1898 = vunpack.c.h.b16 %v1701
          %v1899 = vunpack.c.l.b16 %v1702
          %v1900 = vunpack.c.l.b16 %v1703
          %v1901 = vunpack.c.h.b16 %v1703
          %v1902 = vunpack.c.l.b16 %v1704
          %v1903 = vunpack.c.l.b16 %v1705
          %v1904 = vunpack.c.h.b16 %v1705
          %v1905 = vunpack.c.l.b16 %v1706
          %v1906 = vunpack.c.l.b16 %v1707
          %v1907 = vunpack.c.h.b16 %v1707
          %v1908 = vunpack.c.l.b16 %v1708
          %v1909 = vunpack.c.l.b16 %v1709
          %v1910 = vunpack.c.h.b16 %v1709
          %v1911 = vunpack.c.l.b16 %v1710
          %v1912 = vunpack.c.l.b16 %v1711
          %v1913 = vunpack.c.h.b16 %v1711
          %v1914 = vunpack.c.l.b16 %v1712
          %v1915 = vunpack.c.l.b16 %v1713
          %v1916 = vunpack.c.h.b16 %v1713
          %v1917 = vunpack.c.l.b16 %v1714
          %v1918 = vunpack.c.l.b16 %v1715
          %v1919 = vunpack.c.h.b16 %v1715
          %v1920 = vunpack.c.l.b16 %v1716
          %v1921 = vunpack.c.l.b16 %v1717
          %v1922 = vunpack.c.h.b16 %v1717
          %v1923 = vunpack.c.l.b16 %v1718
          %v1924 = vunpack.c.l.b16 %v1719
          %v1925 = vunpack.c.h.b16 %v1719
          %v1926 = vunpack.c.l.b16 %v1720
          %v1927 = vunpack.c.l.b16 %v1721
          %v1928 = vunpack.c.h.b16 %v1721
          %v1929 = vunpack.c.l.b16 %v1722
          %v1930 = vunpack.c.l.b16 %v1723
          %v1931 = vunpack.c.h.b16 %v1723
          %v1932 = vunpack.c.l.b16 %v1724
          %v1933 = vunpack.c.l.b16 %v1725
          %v1934 = vunpack.c.h.b16 %v1725
          %v1935 = vunpack.c.l.b16 %v1726
          %v1936 = vunpack.c.l.b16 %v1727
          %v1937 = vunpack.c.h.b16 %v1727
          %v1938 = vunpack.c.l.b16 %v1728
          %v1939 = vunpack.c.l.b16 %v1729
          %v1940 = vunpack.c.h.b16 %v1729
          %v1941 = vunpack.c.l.b16 %v1730
          %v1942 = vunpack.c.l.b16 %v1731
          %v1943 = vunpack.c.h.b16 %v1731
          %v1944 = vunpack.c.l.b16 %v1732
          %v1945 = vunpack.c.l.b16 %v1733
          %v1946 = vunpack.c.h.b16 %v1733
          %v1947 = vunpack.c.l.b16 %v1734
          %v1948 = vunpack.c.l.b16 %v1735
          %v1949 = vunpack.c.h.b16 %v1735
          %v1950 = vunpack.c.l.b16 %v1736
          %v1951 = vunpack.c.l.b16 %v1737
          %v1952 = vunpack.c.h.b16 %v1737
          %v1953 = vunpack.c.l.b16 %v1738
          %v1954 = vunpack.c.l.b16 %v1739
          %v1955 = vunpack.c.h.b16 %v1739
          %v1956 = vunpack.c.l.b16 %v1740
          %v1957 = vunpack.c.l.b16 %v1741
          %v1958 = vunpack.c.h.b16 %v1741
          %v1959 = vunpack.c.l.b16 %v1742
          %v1960 = vunpack.c.l.b16 %v1743
          %v1961 = vunpack.c.h.b16 %v1743
          %v1962 = vunpack.c.l.b16 %v1744
          %v1963 = vunpack.c.l.b16 %v1745
          %v1964 = vunpack.c.h.b16 %v1745
          %v1965 = vunpack.c.l.b16 %v1746
          %v1966 = vunpack.c.l.b16 %v1747
          %v1967 = vunpack.c.h.b16 %v1747
          %v1968 = vunpack.c.l.b16 %v1748
          %v1969 = vunpack.c.l.b16 %v1749
          %v1970 = vunpack.c.h.b16 %v1749
          %v1971 = vunpack.c.l.b16 %v1750
          %v1972 = vunpack.c.l.b16 %v1751
          %v1973 = vunpack.c.h.b16 %v1751
          %v1974 = vunpack.c.l.b16 %v1752
          %v1975 = vunpack.c.l.b16 %v1753
          %v1976 = vunpack.c.h.b16 %v1753
          %v1977 = vunpack.c.l.b16 %v1754
          %v1978 = vunpack.c.l.b16 %v1755
          %v1979 = vunpack.c.h.b16 %v1755
          %v1980 = vunpack.c.l.b16 %v1756
          %v1981 = vunpack.c.l.b16 %v1757
          %v1982 = vunpack.c.h.b16 %v1757
          %v1983 = vunpack.c.l.b16 %v1758
          %v1984 = vunpack.c.l.b16 %v1759
          %v1985 = vunpack.c.h.b16 %v1759
          %v1986 = vunpack.c.l.b16 %v1760
          %v1987 = vunpack.c.l.b16 %v1761
          %v1988 = vunpack.c.h.b16 %v1761
          %v1989 = vunpack.c.l.b16 %v1762
          %v1990 = vunpack.c.l.b16 %v1763
          %v1991 = vunpack.c.h.b16 %v1763
          %v1992 = vunpack.c.l.b16 %v1764
          %v1993 = vunpack.c.l.b16 %v1765
          %v1994 = vunpack.c.h.b16 %v1765
          %v1995 = vunpack.c.l.b16 %v1766
          %v1996 = vunpack.c.l.b16 %v1767
          %v1997 = vunpack.c.h.b16 %v1767
          %v1998 = vunpack.c.l.b16 %v1768
          %v1999 = vunpack.c.l.b16 %v1769
          %v2000 = vunpack.c.h.b16 %v1769
          %v2001 = vunpack.c.l.b16 %v1770
          %v2002 = vunpack.c.l.b16 %v1771
          %v2003 = vunpack.c.h.b16 %v1771
          %v2004 = vunpack.c.l.b16 %v1772
          %v2005 = vunpack.c.l.b16 %v1773
          %v2006 = vunpack.c.h.b16 %v1773
          %v2007 = vunpack.c.l.b16 %v1774
          %v2008 = vunpack.c.l.b16 %v1775
          %v2009 = vunpack.c.h.b16 %v1775
          %v2010 = vunpack.c.l.b16 %v1776
          %v2011 = vunpack.c.l.b16 %v1777
          %v2012 = vunpack.c.h.b16 %v1777
          %v2013 = vunpack.c.l.b16 %v1778
          %v2014 = vunpack.c.l.b16 %v1779
          %v2015 = vunpack.c.h.b16 %v1779
          %v2016 = vunpack.c.l.b16 %v1780
          %v2017 = vunpack.c.l.b16 %v1781
          %v2018 = vunpack.c.h.b16 %v1781
          %v2019 = vunpack.c.l.b16 %v1782
          %v2020 = vunpack.c.l.b16 %v1783
          %v2021 = vunpack.c.h.b16 %v1783
          %v2022 = vunpack.c.l.b16 %v1784
          %v2023 = vunpack.c.l.b16 %v1785
          %v2024 = vunpack.c.h.b16 %v1785
          %v2025 = vunpack.c.l.b16 %v1786
          %v2026 = vunpack.c.l.b16 %v1787
          %v2027 = vunpack.c.h.b16 %v1787
          %v2028 = vunpack.c.l.b16 %v1788
          %v2029 = vpack.c.b16 %v1888, %v1885
          %v2030 = vpack.c.b16 %v1889, %v1886
          %v2031 = vpack.c.b16 %v1890, %v1887
          %v2032 = vpack.c.b16 %v1894, %v1891
          %v2033 = vpack.c.b16 %v1895, %v1892
          %v2034 = vpack.c.b16 %v1896, %v1893
          %v2035 = vpack.c.b16 %v1900, %v1897
          %v2036 = vpack.c.b16 %v1901, %v1898
          %v2037 = vpack.c.b16 %v1902, %v1899
          %v2038 = vpack.c.b16 %v1906, %v1903
          %v2039 = vpack.c.b16 %v1907, %v1904
          %v2040 = vpack.c.b16 %v1908, %v1905
          %v2041 = vpack.c.b16 %v1912, %v1909
          %v2042 = vpack.c.b16 %v1913, %v1910
          %v2043 = vpack.c.b16 %v1914, %v1911
          %v2044 = vpack.c.b16 %v1918, %v1915
          %v2045 = vpack.c.b16 %v1919, %v1916
          %v2046 = vpack.c.b16 %v1920, %v1917
          %v2047 = vpack.c.b16 %v1924, %v1921
          %v2048 = vpack.c.b16 %v1925, %v1922
          %v2049 = vpack.c.b16 %v1926, %v1923
          %v2050 = vpack.c.b16 %v1930, %v1927
          %v2051 = vpack.c.b16 %v1931, %v1928
          %v2052 = vpack.c.b16 %v1932, %v1929
          %v2053 = vpack.c.b16 %v1936, %v1933
          %v2054 = vpack.c.b16 %v1937, %v1934
          %v2055 = vpack.c.b16 %v1938, %v1935
          %v2056 = vpack.c.b16 %v1942, %v1939
          %v2057 = vpack.c.b16 %v1943, %v1940
          %v2058 = vpack.c.b16 %v1944, %v1941
          %v2059 = vpack.c.b16 %v1948, %v1945
          %v2060 = vpack.c.b16 %v1949, %v1946
          %v2061 = vpack.c.b16 %v1950, %v1947
          %v2062 = vpack.c.b16 %v1954, %v1951
          %v2063 = vpack.c.b16 %v1955, %v1952
          %v2064 = vpack.c.b16 %v1956, %v1953
          %v2065 = vpack.c.b16 %v1960, %v1957
          %v2066 = vpack.c.b16 %v1961, %v1958
          %v2067 = vpack.c.b16 %v1962, %v1959
          %v2068 = vpack.c.b16 %v1966, %v1963
          %v2069 = vpack.c.b16 %v1967, %v1964
          %v2070 = vpack.c.b16 %v1968, %v1965
          %v2071 = vpack.c.b16 %v1972, %v1969
          %v2072 = vpack.c.b16 %v1973, %v1970
          %v2073 = vpack.c.b16 %v1974, %v1971
          %v2074 = vpack.c.b16 %v1978, %v1975
          %v2075 = vpack.c.b16 %v1979, %v1976
          %v2076 = vpack.c.b16 %v1980, %v1977
          %v2077 = vpack.c.b16 %v1984, %v1981
          %v2078 = vpack.c.b16 %v1985, %v1982
          %v2079 = vpack.c.b16 %v1986, %v1983
          %v2080 = vpack.c.b16 %v1990, %v1987
          %v2081 = vpack.c.b16 %v1991, %v1988
          %v2082 = vpack.c.b16 %v1992, %v1989
          %v2083 = vpack.c.b16 %v1996, %v1993
          %v2084 = vpack.c.b16 %v1997, %v1994
          %v2085 = vpack.c.b16 %v1998, %v1995
          %v2086 = vpack.c.b16 %v2002, %v1999
          %v2087 = vpack.c.b16 %v2003, %v2000
          %v2088 = vpack.c.b16 %v2004, %v2001
          %v2089 = vpack.c.b16 %v2008, %v2005
          %v2090 = vpack.c.b16 %v2009, %v2006
          %v2091 = vpack.c.b16 %v2010, %v2007
          %v2092 = vpack.c.b16 %v2014, %v2011
          %v2093 = vpack.c.b16 %v2015, %v2012
          %v2094 = vpack.c.b16 %v2016, %v2013
          %v2095 = vpack.c.b16 %v2020, %v2017
          %v2096 = vpack.c.b16 %v2021, %v2018
          %v2097 = vpack.c.b16 %v2022, %v2019
          %v2098 = vpack.c.b16 %v2026, %v2023
          %v2099 = vpack.c.b16 %v2027, %v2024
          %v2100 = vpack.c.b16 %v2028, %v2025
          %2173 = vmatprep.subr.bf16.mxu0 %v2030
          %2174 = vmatpush1.bf16.msra.mxu0 %v2029
          %2175 = vmatprep.subr.bf16.mxu0 %v2033
          %2176 = vmatpush1.bf16.msra.mxu0 %v2032
          %2177 = vmatprep.subr.bf16.mxu0 %v2036
          %2178 = vmatpush1.bf16.msra.mxu0 %v2035
          %2179 = vmatprep.subr.bf16.mxu0 %v2039
          %2180 = vmatpush1.bf16.msra.mxu0 %v2038
          %2181 = vmatprep.subr.bf16.mxu0 %v2042
          %2182 = vmatpush1.bf16.msra.mxu0 %v2041
          %2183 = vmatprep.subr.bf16.mxu0 %v2045
          %2184 = vmatpush1.bf16.msra.mxu0 %v2044
          %2185 = vmatprep.subr.bf16.mxu0 %v2048
          %2186 = vmatpush1.bf16.msra.mxu0 %v2047
          %2187 = vmatprep.subr.bf16.mxu0 %v2051
          %2188 = vmatpush1.bf16.msra.mxu0 %v2050
          %2189 = vmatprep.subr.bf16.mxu0 %v2054
          %2190 = vmatpush1.bf16.msra.mxu0 %v2053
          %2191 = vmatprep.subr.bf16.mxu0 %v2057
          %2192 = vmatpush1.bf16.msra.mxu0 %v2056
          %2193 = vmatprep.subr.bf16.mxu0 %v2060
          %2194 = vmatpush1.bf16.msra.mxu0 %v2059
          %2195 = vmatprep.subr.bf16.mxu0 %v2063
          %2196 = vmatpush1.bf16.msra.mxu0 %v2062
          %2197 = vmatprep.subr.bf16.mxu0 %v2066
          %2198 = vmatpush1.bf16.msra.mxu0 %v2065
          %2199 = vmatprep.subr.bf16.mxu0 %v2069
          %2200 = vmatpush1.bf16.msra.mxu0 %v2068
          %2201 = vmatprep.subr.bf16.mxu0 %v2072
          %2202 = vmatpush1.bf16.msra.mxu0 %v2071
          %2203 = vmatprep.subr.bf16.mxu0 %v2075
          %2204 = vmatpush1.bf16.msra.mxu0 %v2074
          %2205 = vmatprep.mubr.bf16.mxu0 %v362
          %2206 = vmatmul.mubr.bf16.gmra.mrb[0].mxu0 %v361
          %v2207 = vpop.f32.mrb[0].mxu0
          %v2208 = vadd.f32 0.0, %v2207
          %v2209 = vpop.f32.mrb[0].mxu0
          %v2210 = vadd.f32 0.0, %v2209
          %v2211 = vpop.f32.mrb[0].mxu0
          %v2212 = vadd.f32 0.0, %v2211
          %v2213 = vpop.f32.mrb[0].mxu0
          %v2214 = vadd.f32 0.0, %v2213
          %2215 = vmatprep.mubr.bf16.mxu0 %v365
          %2216 = vmatmul.mubr.bf16.gmra.mrb[0].mxu0 %v364
          %v2217 = vpop.f32.mrb[0].mxu0
          %v2218 = vadd.f32 0.0, %v2217
          %v2219 = vpop.f32.mrb[0].mxu0
          %v2220 = vadd.f32 0.0, %v2219
          %v2221 = vpop.f32.mrb[0].mxu0
          %v2222 = vadd.f32 0.0, %v2221
          %v2223 = vpop.f32.mrb[0].mxu0
          %v2224 = vadd.f32 0.0, %v2223
          %2225 = vmatprep.mubr.bf16.mxu0 %v368
          %2226 = vmatmul.mubr.bf16.gmra.mrb[0].mxu0 %v367
          %v2227 = vpop.f32.mrb[0].mxu0
          %v2228 = vadd.f32 0.0, %v2227
          %v2229 = vpop.f32.mrb[0].mxu0
          %v2230 = vadd.f32 0.0, %v2229
          %v2231 = vpop.f32.mrb[0].mxu0
          %v2232 = vadd.f32 0.0, %v2231
          %v2233 = vpop.f32.mrb[0].mxu0
          %v2234 = vadd.f32 0.0, %v2233
          %2235 = vmatprep.mubr.bf16.mxu0 %v371
          %2236 = vmatmul.mubr.bf16.gmra.mrb[0].mxu0 %v370
          %v2237 = vpop.f32.mrb[0].mxu0
          %v2238 = vadd.f32 0.0, %v2237
          %v2239 = vpop.f32.mrb[0].mxu0
          %v2240 = vadd.f32 0.0, %v2239
          %v2241 = vpop.f32.mrb[0].mxu0
          %v2242 = vadd.f32 0.0, %v2241
          %v2243 = vpop.f32.mrb[0].mxu0
          %v2244 = vadd.f32 0.0, %v2243
          %2245 = vmatprep.mubr.bf16.mxu0 %v374
          %2246 = vmatmul.mubr.bf16.gmra.mrb[0].mxu0 %v373
          %v2247 = vpop.f32.mrb[0].mxu0
          %v2248 = vadd.f32 0.0, %v2247
          %v2249 = vpop.f32.mrb[0].mxu0
          %v2250 = vadd.f32 0.0, %v2249
          %v2251 = vpop.f32.mrb[0].mxu0
          %v2252 = vadd.f32 0.0, %v2251
          %v2253 = vpop.f32.mrb[0].mxu0
          %v2254 = vadd.f32 0.0, %v2253
          %2255 = vmatprep.mubr.bf16.mxu0 %v377
          %2256 = vmatmul.mubr.bf16.gmra.mrb[0].mxu0 %v376
          %v2257 = vpop.f32.mrb[0].mxu0
          %v2258 = vadd.f32 0.0, %v2257
          %v2259 = vpop.f32.mrb[0].mxu0
          %v2260 = vadd.f32 0.0, %v2259
          %v2261 = vpop.f32.mrb[0].mxu0
          %v2262 = vadd.f32 0.0, %v2261
          %v2263 = vpop.f32.mrb[0].mxu0
          %v2264 = vadd.f32 0.0, %v2263
          %2265 = vmatprep.mubr.bf16.mxu0 %v380
          %2266 = vmatmul.mubr.bf16.gmra.mrb[0].mxu0 %v379
          %v2267 = vpop.f32.mrb[0].mxu0
          %v2268 = vadd.f32 0.0, %v2267
          %v2269 = vpop.f32.mrb[0].mxu0
          %v2270 = vadd.f32 0.0, %v2269
          %v2271 = vpop.f32.mrb[0].mxu0
          %v2272 = vadd.f32 0.0, %v2271
          %v2273 = vpop.f32.mrb[0].mxu0
          %v2274 = vadd.f32 0.0, %v2273
          %2275 = vmatprep.mubr.bf16.mxu0 %v383
          %2276 = vmatmul.mubr.bf16.gmra.mrb[0].mxu0 %v382
          %v2277 = vpop.f32.mrb[0].mxu0
          %v2278 = vadd.f32 0.0, %v2277
          %v2279 = vpop.f32.mrb[0].mxu0
          %v2280 = vadd.f32 0.0, %v2279
          %v2281 = vpop.f32.mrb[0].mxu0
          %v2282 = vadd.f32 0.0, %v2281
          %v2283 = vpop.f32.mrb[0].mxu0
          %v2284 = vadd.f32 0.0, %v2283
          %2285 = vmatprep.mubr.bf16.mxu0 %v386
          %2286 = vmatmul.mubr.bf16.gmra.mrb[0].mxu0 %v385
          %v2287 = vpop.f32.mrb[0].mxu0
          %v2288 = vadd.f32 0.0, %v2287
          %v2289 = vpop.f32.mrb[0].mxu0
          %v2290 = vadd.f32 0.0, %v2289
          %v2291 = vpop.f32.mrb[0].mxu0
          %v2292 = vadd.f32 0.0, %v2291
          %v2293 = vpop.f32.mrb[0].mxu0
          %v2294 = vadd.f32 0.0, %v2293
          %2295 = vmatprep.mubr.bf16.mxu0 %v389
          %2296 = vmatmul.mubr.bf16.gmra.mrb[0].mxu0 %v388
          %v2297 = vpop.f32.mrb[0].mxu0
          %v2298 = vadd.f32 0.0, %v2297
          %v2299 = vpop.f32.mrb[0].mxu0
          %v2300 = vadd.f32 0.0, %v2299
          %v2301 = vpop.f32.mrb[0].mxu0
          %v2302 = vadd.f32 0.0, %v2301
          %v2303 = vpop.f32.mrb[0].mxu0
          %v2304 = vadd.f32 0.0, %v2303
          %2305 = vmatprep.mubr.bf16.mxu0 %v392
          %2306 = vmatmul.mubr.bf16.gmra.mrb[0].mxu0 %v391
          %v2307 = vpop.f32.mrb[0].mxu0
          %v2308 = vadd.f32 0.0, %v2307
          %v2309 = vpop.f32.mrb[0].mxu0
          %v2310 = vadd.f32 0.0, %v2309
          %v2311 = vpop.f32.mrb[0].mxu0
          %v2312 = vadd.f32 0.0, %v2311
          %v2313 = vpop.f32.mrb[0].mxu0
          %v2314 = vadd.f32 0.0, %v2313
          %2315 = vmatprep.mubr.bf16.mxu0 %v395
          %2316 = vmatmul.mubr.bf16.gmra.mrb[0].mxu0 %v394
          %v2317 = vpop.f32.mrb[0].mxu0
          %v2318 = vadd.f32 0.0, %v2317
          %v2319 = vpop.f32.mrb[0].mxu0
          %v2320 = vadd.f32 0.0, %v2319
          %v2321 = vpop.f32.mrb[0].mxu0
          %v2322 = vadd.f32 0.0, %v2321
          %v2323 = vpop.f32.mrb[0].mxu0
          %v2324 = vadd.f32 0.0, %v2323
          %2325 = vmatprep.mubr.bf16.mxu0 %v398
          %2326 = vmatmul.mubr.bf16.gmra.mrb[0].mxu0 %v397
          %v2327 = vpop.f32.mrb[0].mxu0
          %v2328 = vadd.f32 0.0, %v2327
          %v2329 = vpop.f32.mrb[0].mxu0
          %v2330 = vadd.f32 0.0, %v2329
          %v2331 = vpop.f32.mrb[0].mxu0
          %v2332 = vadd.f32 0.0, %v2331
          %v2333 = vpop.f32.mrb[0].mxu0
          %v2334 = vadd.f32 0.0, %v2333
          %2335 = vmatprep.mubr.bf16.mxu0 %v401
          %2336 = vmatmul.mubr.bf16.gmra.mrb[0].mxu0 %v400
          %v2337 = vpop.f32.mrb[0].mxu0
          %v2338 = vadd.f32 0.0, %v2337
          %v2339 = vpop.f32.mrb[0].mxu0
          %v2340 = vadd.f32 0.0, %v2339
          %v2341 = vpop.f32.mrb[0].mxu0
          %v2342 = vadd.f32 0.0, %v2341
          %v2343 = vpop.f32.mrb[0].mxu0
          %v2344 = vadd.f32 0.0, %v2343
          %2345 = vmatprep.mubr.bf16.mxu0 %v404
          %2346 = vmatmul.mubr.bf16.gmra.mrb[0].mxu0 %v403
          %v2347 = vpop.f32.mrb[0].mxu0
          %v2348 = vadd.f32 0.0, %v2347
          %v2349 = vpop.f32.mrb[0].mxu0
          %v2350 = vadd.f32 0.0, %v2349
          %v2351 = vpop.f32.mrb[0].mxu0
          %v2352 = vadd.f32 0.0, %v2351
          %v2353 = vpop.f32.mrb[0].mxu0
          %v2354 = vadd.f32 0.0, %v2353
          %2355 = vmatprep.mubr.bf16.mxu0 %v407
          %2356 = vmatmul.mubr.bf16.gmra.mrb[0].mxu0 %v406
          %v2357 = vpop.f32.mrb[0].mxu0
          %v2358 = vadd.f32 0.0, %v2357
          %v2359 = vpop.f32.mrb[0].mxu0
          %v2360 = vadd.f32 0.0, %v2359
          %v2361 = vpop.f32.mrb[0].mxu0
          %v2362 = vadd.f32 0.0, %v2361
          %v2363 = vpop.f32.mrb[0].mxu0
          %v2364 = vadd.f32 0.0, %v2363
          %2365 = vdwg.mxu0
          %2366 = vmatprep.subr.bf16.mxu0 %v2078
          %2367 = vmatpush1.bf16.msra.mxu0 %v2077
          %2368 = vmatprep.subr.bf16.mxu0 %v2081
          %2369 = vmatpush1.bf16.msra.mxu0 %v2080
          %2370 = vmatprep.subr.bf16.mxu0 %v2084
          %2371 = vmatpush1.bf16.msra.mxu0 %v2083
          %2372 = vmatprep.subr.bf16.mxu0 %v2087
          %2373 = vmatpush1.bf16.msra.mxu0 %v2086
          %2374 = vmatprep.subr.bf16.mxu0 %v2090
          %2375 = vmatpush1.bf16.msra.mxu0 %v2089
          %2376 = vmatprep.subr.bf16.mxu0 %v2093
          %2377 = vmatpush1.bf16.msra.mxu0 %v2092
          %2378 = vmatprep.subr.bf16.mxu0 %v2096
          %2379 = vmatpush1.bf16.msra.mxu0 %v2095
          %2380 = vmatprep.subr.bf16.mxu0 %v2099
          %2381 = vmatpush1.bf16.msra.mxu0 %v2098
          %2382 = vmatprep.subr.bf16.mxu0 0
          %2383 = vmatpush1.bf16.msra.mxu0 0
          %2384 = vmatprep.subr.bf16.mxu0 0
          %2385 = vmatpush1.bf16.msra.mxu0 0
          %2386 = vmatprep.subr.bf16.mxu0 0
          %2387 = vmatpush1.bf16.msra.mxu0 0
          %2388 = vmatprep.subr.bf16.mxu0 0
          %2389 = vmatpush1.bf16.msra.mxu0 0
          %2390 = vmatprep.subr.bf16.mxu0 0
          %2391 = vmatpush1.bf16.msra.mxu0 0
          %2392 = vmatprep.subr.bf16.mxu0 0
          %2393 = vmatpush1.bf16.msra.mxu0 0
          %2394 = vmatprep.subr.bf16.mxu0 0
          %2395 = vmatpush1.bf16.msra.mxu0 0
          %2396 = vmatprep.subr.bf16.mxu0 0
          %2397 = vmatpush1.bf16.msra.mxu0 0
          %2398 = vmatprep.mubr.bf16.mxu0 0
          %2399 = vmatmul.mubr.bf16.gmra.mrb[0].mxu0 %v363
          %v2400 = vpop.f32.mrb[0].mxu0
          %v2401 = vadd.f32 %v2208, %v2400
          %v2402 = vpop.f32.mrb[0].mxu0
          %v2403 = vadd.f32 %v2210, %v2402
          %v2404 = vpop.f32.mrb[0].mxu0
          %v2405 = vadd.f32 %v2212, %v2404
          %v2406 = vpop.f32.mrb[0].mxu0
          %v2407 = vadd.f32 %v2214, %v2406
          %2408 = vmatprep.mubr.bf16.mxu0 0
          %2409 = vmatmul.mubr.bf16.gmra.mrb[0].mxu0 %v366
          %v2410 = vpop.f32.mrb[0].mxu0
          %v2411 = vadd.f32 %v2218, %v2410
          %v2412 = vpop.f32.mrb[0].mxu0
          %v2413 = vadd.f32 %v2220, %v2412
          %v2414 = vpop.f32.mrb[0].mxu0
          %v2415 = vadd.f32 %v2222, %v2414
          %v2416 = vpop.f32.mrb[0].mxu0
          %v2417 = vadd.f32 %v2224, %v2416
          %2418 = vmatprep.mubr.bf16.mxu0 0
          %2419 = vmatmul.mubr.bf16.gmra.mrb[0].mxu0 %v369
          %v2420 = vpop.f32.mrb[0].mxu0
          %v2421 = vadd.f32 %v2228, %v2420
          %v2422 = vpop.f32.mrb[0].mxu0
          %v2423 = vadd.f32 %v2230, %v2422
          %v2424 = vpop.f32.mrb[0].mxu0
          %v2425 = vadd.f32 %v2232, %v2424
          %v2426 = vpop.f32.mrb[0].mxu0
          %v2427 = vadd.f32 %v2234, %v2426
          %2428 = vmatprep.mubr.bf16.mxu0 0
          %2429 = vmatmul.mubr.bf16.gmra.mrb[0].mxu0 %v372
          %v2430 = vpop.f32.mrb[0].mxu0
          %v2431 = vadd.f32 %v2238, %v2430
          %v2432 = vpop.f32.mrb[0].mxu0
          %v2433 = vadd.f32 %v2240, %v2432
          %v2434 = vpop.f32.mrb[0].mxu0
          %v2435 = vadd.f32 %v2242, %v2434
          %v2436 = vpop.f32.mrb[0].mxu0
          %v2437 = vadd.f32 %v2244, %v2436
          %2438 = vmatprep.mubr.bf16.mxu0 0
          %2439 = vmatmul.mubr.bf16.gmra.mrb[0].mxu0 %v375
          %v2440 = vpop.f32.mrb[0].mxu0
          %v2441 = vadd.f32 %v2248, %v2440
          %v2442 = vpop.f32.mrb[0].mxu0
          %v2443 = vadd.f32 %v2250, %v2442
          %v2444 = vpop.f32.mrb[0].mxu0
          %v2445 = vadd.f32 %v2252, %v2444
          %v2446 = vpop.f32.mrb[0].mxu0
          %v2447 = vadd.f32 %v2254, %v2446
          %2448 = vmatprep.mubr.bf16.mxu0 0
          %2449 = vmatmul.mubr.bf16.gmra.mrb[0].mxu0 %v378
          %v2450 = vpop.f32.mrb[0].mxu0
          %v2451 = vadd.f32 %v2258, %v2450
          %v2452 = vpop.f32.mrb[0].mxu0
          %v2453 = vadd.f32 %v2260, %v2452
          %v2454 = vpop.f32.mrb[0].mxu0
          %v2455 = vadd.f32 %v2262, %v2454
          %v2456 = vpop.f32.mrb[0].mxu0
          %v2457 = vadd.f32 %v2264, %v2456
          %2458 = vmatprep.mubr.bf16.mxu0 0
          %2459 = vmatmul.mubr.bf16.gmra.mrb[0].mxu0 %v381
          %v2460 = vpop.f32.mrb[0].mxu0
          %v2461 = vadd.f32 %v2268, %v2460
          %v2462 = vpop.f32.mrb[0].mxu0
          %v2463 = vadd.f32 %v2270, %v2462
          %v2464 = vpop.f32.mrb[0].mxu0
          %v2465 = vadd.f32 %v2272, %v2464
          %v2466 = vpop.f32.mrb[0].mxu0
          %v2467 = vadd.f32 %v2274, %v2466
          %2468 = vmatprep.mubr.bf16.mxu0 0
          %2469 = vmatmul.mubr.bf16.gmra.mrb[0].mxu0 %v384
          %v2470 = vpop.f32.mrb[0].mxu0
          %v2471 = vadd.f32 %v2278, %v2470
          %v2472 = vpop.f32.mrb[0].mxu0
          %v2473 = vadd.f32 %v2280, %v2472
          %v2474 = vpop.f32.mrb[0].mxu0
          %v2475 = vadd.f32 %v2282, %v2474
          %v2476 = vpop.f32.mrb[0].mxu0
          %v2477 = vadd.f32 %v2284, %v2476
          %2478 = vmatprep.mubr.bf16.mxu0 0
          %2479 = vmatmul.mubr.bf16.gmra.mrb[0].mxu0 %v387
          %v2480 = vpop.f32.mrb[0].mxu0
          %v2481 = vadd.f32 %v2288, %v2480
          %v2482 = vpop.f32.mrb[0].mxu0
          %v2483 = vadd.f32 %v2290, %v2482
          %v2484 = vpop.f32.mrb[0].mxu0
          %v2485 = vadd.f32 %v2292, %v2484
          %v2486 = vpop.f32.mrb[0].mxu0
          %v2487 = vadd.f32 %v2294, %v2486
          %2488 = vmatprep.mubr.bf16.mxu0 0
          %2489 = vmatmul.mubr.bf16.gmra.mrb[0].mxu0 %v390
          %v2490 = vpop.f32.mrb[0].mxu0
          %v2491 = vadd.f32 %v2298, %v2490
          %v2492 = vpop.f32.mrb[0].mxu0
          %v2493 = vadd.f32 %v2300, %v2492
          %v2494 = vpop.f32.mrb[0].mxu0
          %v2495 = vadd.f32 %v2302, %v2494
          %v2496 = vpop.f32.mrb[0].mxu0
          %v2497 = vadd.f32 %v2304, %v2496
          %2498 = vmatprep.mubr.bf16.mxu0 0
          %2499 = vmatmul.mubr.bf16.gmra.mrb[0].mxu0 %v393
          %v2500 = vpop.f32.mrb[0].mxu0
          %v2501 = vadd.f32 %v2308, %v2500
          %v2502 = vpop.f32.mrb[0].mxu0
          %v2503 = vadd.f32 %v2310, %v2502
          %v2504 = vpop.f32.mrb[0].mxu0
          %v2505 = vadd.f32 %v2312, %v2504
          %v2506 = vpop.f32.mrb[0].mxu0
          %v2507 = vadd.f32 %v2314, %v2506
          %2508 = vmatprep.mubr.bf16.mxu0 0
          %2509 = vmatmul.mubr.bf16.gmra.mrb[0].mxu0 %v396
          %v2510 = vpop.f32.mrb[0].mxu0
          %v2511 = vadd.f32 %v2318, %v2510
          %v2512 = vpop.f32.mrb[0].mxu0
          %v2513 = vadd.f32 %v2320, %v2512
          %v2514 = vpop.f32.mrb[0].mxu0
          %v2515 = vadd.f32 %v2322, %v2514
          %v2516 = vpop.f32.mrb[0].mxu0
          %v2517 = vadd.f32 %v2324, %v2516
          %2518 = vmatprep.mubr.bf16.mxu0 0
          %2519 = vmatmul.mubr.bf16.gmra.mrb[0].mxu0 %v399
          %v2520 = vpop.f32.mrb[0].mxu0
          %v2521 = vadd.f32 %v2328, %v2520
          %v2522 = vpop.f32.mrb[0].mxu0
          %v2523 = vadd.f32 %v2330, %v2522
          %v2524 = vpop.f32.mrb[0].mxu0
          %v2525 = vadd.f32 %v2332, %v2524
          %v2526 = vpop.f32.mrb[0].mxu0
          %v2527 = vadd.f32 %v2334, %v2526
          %2528 = vmatprep.mubr.bf16.mxu0 0
          %2529 = vmatmul.mubr.bf16.gmra.mrb[0].mxu0 %v402
          %v2530 = vpop.f32.mrb[0].mxu0
          %v2531 = vadd.f32 %v2338, %v2530
          %v2532 = vpop.f32.mrb[0].mxu0
          %v2533 = vadd.f32 %v2340, %v2532
          %v2534 = vpop.f32.mrb[0].mxu0
          %v2535 = vadd.f32 %v2342, %v2534
          %v2536 = vpop.f32.mrb[0].mxu0
          %v2537 = vadd.f32 %v2344, %v2536
          %2538 = vmatprep.mubr.bf16.mxu0 0
          %2539 = vmatmul.mubr.bf16.gmra.mrb[0].mxu0 %v405
          %v2540 = vpop.f32.mrb[0].mxu0
          %v2541 = vadd.f32 %v2348, %v2540
          %v2542 = vpop.f32.mrb[0].mxu0
          %v2543 = vadd.f32 %v2350, %v2542
          %v2544 = vpop.f32.mrb[0].mxu0
          %v2545 = vadd.f32 %v2352, %v2544
          %v2546 = vpop.f32.mrb[0].mxu0
          %v2547 = vadd.f32 %v2354, %v2546
          %2548 = vmatprep.mubr.bf16.mxu0 0
          %2549 = vmatmul.mubr.bf16.gmra.mrb[0].mxu0 %v408
          %v2550 = vpop.f32.mrb[0].mxu0
          %v2551 = vadd.f32 %v2358, %v2550
          %v2552 = vpop.f32.mrb[0].mxu0
          %v2553 = vadd.f32 %v2360, %v2552
          %v2554 = vpop.f32.mrb[0].mxu0
          %v2555 = vadd.f32 %v2362, %v2554
          %v2556 = vpop.f32.mrb[0].mxu0
          %v2557 = vadd.f32 %v2364, %v2556
          %2558 = vdwg.mxu0
          %2559 = vmatprep.subr.bf16.mxu0 0
          %2560 = vmatpush1.bf16.msra.mxu0 %v2031
          %2561 = vmatprep.subr.bf16.mxu0 0
          %2562 = vmatpush1.bf16.msra.mxu0 %v2034
          %2563 = vmatprep.subr.bf16.mxu0 0
          %2564 = vmatpush1.bf16.msra.mxu0 %v2037
          %2565 = vmatprep.subr.bf16.mxu0 0
          %2566 = vmatpush1.bf16.msra.mxu0 %v2040
          %2567 = vmatprep.subr.bf16.mxu0 0
          %2568 = vmatpush1.bf16.msra.mxu0 %v2043
          %2569 = vmatprep.subr.bf16.mxu0 0
          %2570 = vmatpush1.bf16.msra.mxu0 %v2046
          %2571 = vmatprep.subr.bf16.mxu0 0
          %2572 = vmatpush1.bf16.msra.mxu0 %v2049
          %2573 = vmatprep.subr.bf16.mxu0 0
          %2574 = vmatpush1.bf16.msra.mxu0 %v2052
          %2575 = vmatprep.subr.bf16.mxu0 0
          %2576 = vmatpush1.bf16.msra.mxu0 %v2055
          %2577 = vmatprep.subr.bf16.mxu0 0
          %2578 = vmatpush1.bf16.msra.mxu0 %v2058
          %2579 = vmatprep.subr.bf16.mxu0 0
          %2580 = vmatpush1.bf16.msra.mxu0 %v2061
          %2581 = vmatprep.subr.bf16.mxu0 0
          %2582 = vmatpush1.bf16.msra.mxu0 %v2064
          %2583 = vmatprep.subr.bf16.mxu0 0
          %2584 = vmatpush1.bf16.msra.mxu0 %v2067
          %2585 = vmatprep.subr.bf16.mxu0 0
          %2586 = vmatpush1.bf16.msra.mxu0 %v2070
          %2587 = vmatprep.subr.bf16.mxu0 0
          %2588 = vmatpush1.bf16.msra.mxu0 %v2073
          %2589 = vmatprep.subr.bf16.mxu0 0
          %2590 = vmatpush1.bf16.msra.mxu0 %v2076
          %2591 = vmatprep.mubr.bf16.mxu0 %v362
          %2592 = vmatmul.mubr.bf16.gmra.mrb[0].mxu0 %v361
          %v2593 = vpop.f32.mrb[0].mxu0
          %v2594 = vadd.f32 0.0, %v2593
          %v2595 = vpop.f32.mrb[0].mxu0
          %v2596 = vpop.f32.mrb[0].mxu0
          %v2597 = vadd.f32 0.0, %v2596
          %v2598 = vpop.f32.mrb[0].mxu0
          %2599 = vmatprep.mubr.bf16.mxu0 %v365
          %2600 = vmatmul.mubr.bf16.gmra.mrb[0].mxu0 %v364
          %v2601 = vpop.f32.mrb[0].mxu0
          %v2602 = vadd.f32 0.0, %v2601
          %v2603 = vpop.f32.mrb[0].mxu0
          %v2604 = vpop.f32.mrb[0].mxu0
          %v2605 = vadd.f32 0.0, %v2604
          %v2606 = vpop.f32.mrb[0].mxu0
          %2607 = vmatprep.mubr.bf16.mxu0 %v368
          %2608 = vmatmul.mubr.bf16.gmra.mrb[0].mxu0 %v367
          %v2609 = vpop.f32.mrb[0].mxu0
          %v2610 = vadd.f32 0.0, %v2609
          %v2611 = vpop.f32.mrb[0].mxu0
          %v2612 = vpop.f32.mrb[0].mxu0
          %v2613 = vadd.f32 0.0, %v2612
          %v2614 = vpop.f32.mrb[0].mxu0
          %2615 = vmatprep.mubr.bf16.mxu0 %v371
          %2616 = vmatmul.mubr.bf16.gmra.mrb[0].mxu0 %v370
          %v2617 = vpop.f32.mrb[0].mxu0
          %v2618 = vadd.f32 0.0, %v2617
          %v2619 = vpop.f32.mrb[0].mxu0
          %v2620 = vpop.f32.mrb[0].mxu0
          %v2621 = vadd.f32 0.0, %v2620
          %v2622 = vpop.f32.mrb[0].mxu0
          %2623 = vmatprep.mubr.bf16.mxu0 %v374
          %2624 = vmatmul.mubr.bf16.gmra.mrb[0].mxu0 %v373
          %v2625 = vpop.f32.mrb[0].mxu0
          %v2626 = vadd.f32 0.0, %v2625
          %v2627 = vpop.f32.mrb[0].mxu0
          %v2628 = vpop.f32.mrb[0].mxu0
          %v2629 = vadd.f32 0.0, %v2628
          %v2630 = vpop.f32.mrb[0].mxu0
          %2631 = vmatprep.mubr.bf16.mxu0 %v377
          %2632 = vmatmul.mubr.bf16.gmra.mrb[0].mxu0 %v376
          %v2633 = vpop.f32.mrb[0].mxu0
          %v2634 = vadd.f32 0.0, %v2633
          %v2635 = vpop.f32.mrb[0].mxu0
          %v2636 = vpop.f32.mrb[0].mxu0
          %v2637 = vadd.f32 0.0, %v2636
          %v2638 = vpop.f32.mrb[0].mxu0
          %2639 = vmatprep.mubr.bf16.mxu0 %v380
          %2640 = vmatmul.mubr.bf16.gmra.mrb[0].mxu0 %v379
          %v2641 = vpop.f32.mrb[0].mxu0
          %v2642 = vadd.f32 0.0, %v2641
          %v2643 = vpop.f32.mrb[0].mxu0
          %v2644 = vpop.f32.mrb[0].mxu0
          %v2645 = vadd.f32 0.0, %v2644
          %v2646 = vpop.f32.mrb[0].mxu0
          %2647 = vmatprep.mubr.bf16.mxu0 %v383
          %2648 = vmatmul.mubr.bf16.gmra.mrb[0].mxu0 %v382
          %v2649 = vpop.f32.mrb[0].mxu0
          %v2650 = vadd.f32 0.0, %v2649
          %v2651 = vpop.f32.mrb[0].mxu0
          %v2652 = vpop.f32.mrb[0].mxu0
          %v2653 = vadd.f32 0.0, %v2652
          %v2654 = vpop.f32.mrb[0].mxu0
          %2655 = vmatprep.mubr.bf16.mxu0 %v386
          %2656 = vmatmul.mubr.bf16.gmra.mrb[0].mxu0 %v385
          %v2657 = vpop.f32.mrb[0].mxu0
          %v2658 = vadd.f32 0.0, %v2657
          %v2659 = vpop.f32.mrb[0].mxu0
          %v2660 = vpop.f32.mrb[0].mxu0
          %v2661 = vadd.f32 0.0, %v2660
          %v2662 = vpop.f32.mrb[0].mxu0
          %2663 = vmatprep.mubr.bf16.mxu0 %v389
          %2664 = vmatmul.mubr.bf16.gmra.mrb[0].mxu0 %v388
          %v2665 = vpop.f32.mrb[0].mxu0
          %v2666 = vadd.f32 0.0, %v2665
          %v2667 = vpop.f32.mrb[0].mxu0
          %v2668 = vpop.f32.mrb[0].mxu0
          %v2669 = vadd.f32 0.0, %v2668
          %v2670 = vpop.f32.mrb[0].mxu0
          %2671 = vmatprep.mubr.bf16.mxu0 %v392
          %2672 = vmatmul.mubr.bf16.gmra.mrb[0].mxu0 %v391
          %v2673 = vpop.f32.mrb[0].mxu0
          %v2674 = vadd.f32 0.0, %v2673
          %v2675 = vpop.f32.mrb[0].mxu0
          %v2676 = vpop.f32.mrb[0].mxu0
          %v2677 = vadd.f32 0.0, %v2676
          %v2678 = vpop.f32.mrb[0].mxu0
          %2679 = vmatprep.mubr.bf16.mxu0 %v395
          %2680 = vmatmul.mubr.bf16.gmra.mrb[0].mxu0 %v394
          %v2681 = vpop.f32.mrb[0].mxu0
          %v2682 = vadd.f32 0.0, %v2681
          %v2683 = vpop.f32.mrb[0].mxu0
          %v2684 = vpop.f32.mrb[0].mxu0
          %v2685 = vadd.f32 0.0, %v2684
          %v2686 = vpop.f32.mrb[0].mxu0
          %2687 = vmatprep.mubr.bf16.mxu0 %v398
          %2688 = vmatmul.mubr.bf16.gmra.mrb[0].mxu0 %v397
          %v2689 = vpop.f32.mrb[0].mxu0
          %v2690 = vadd.f32 0.0, %v2689
          %v2691 = vpop.f32.mrb[0].mxu0
          %v2692 = vpop.f32.mrb[0].mxu0
          %v2693 = vadd.f32 0.0, %v2692
          %v2694 = vpop.f32.mrb[0].mxu0
          %2695 = vmatprep.mubr.bf16.mxu0 %v401
          %2696 = vmatmul.mubr.bf16.gmra.mrb[0].mxu0 %v400
          %v2697 = vpop.f32.mrb[0].mxu0
          %v2698 = vadd.f32 0.0, %v2697
          %v2699 = vpop.f32.mrb[0].mxu0
          %v2700 = vpop.f32.mrb[0].mxu0
          %v2701 = vadd.f32 0.0, %v2700
          %v2702 = vpop.f32.mrb[0].mxu0
          %2703 = vmatprep.mubr.bf16.mxu0 %v404
          %2704 = vmatmul.mubr.bf16.gmra.mrb[0].mxu0 %v403
          %v2705 = vpop.f32.mrb[0].mxu0
          %v2706 = vadd.f32 0.0, %v2705
          %v2707 = vpop.f32.mrb[0].mxu0
          %v2708 = vpop.f32.mrb[0].mxu0
          %v2709 = vadd.f32 0.0, %v2708
          %v2710 = vpop.f32.mrb[0].mxu0
          %2711 = vmatprep.mubr.bf16.mxu0 %v407
          %2712 = vmatmul.mubr.bf16.gmra.mrb[0].mxu0 %v406
          %v2713 = vpop.f32.mrb[0].mxu0
          %v2714 = vadd.f32 0.0, %v2713
          %v2715 = vpop.f32.mrb[0].mxu0
          %v2716 = vpop.f32.mrb[0].mxu0
          %v2717 = vadd.f32 0.0, %v2716
          %v2718 = vpop.f32.mrb[0].mxu0
          %2719 = vdwg.mxu0
          %2720 = vmatprep.subr.bf16.mxu0 0
          %2721 = vmatpush1.bf16.msra.mxu0 %v2079
          %2722 = vmatprep.subr.bf16.mxu0 0
          %2723 = vmatpush1.bf16.msra.mxu0 %v2082
          %2724 = vmatprep.subr.bf16.mxu0 0
          %2725 = vmatpush1.bf16.msra.mxu0 %v2085
          %2726 = vmatprep.subr.bf16.mxu0 0
          %2727 = vmatpush1.bf16.msra.mxu0 %v2088
          %2728 = vmatprep.subr.bf16.mxu0 0
          %2729 = vmatpush1.bf16.msra.mxu0 %v2091
          %2730 = vmatprep.subr.bf16.mxu0 0
          %2731 = vmatpush1.bf16.msra.mxu0 %v2094
          %2732 = vmatprep.subr.bf16.mxu0 0
          %2733 = vmatpush1.bf16.msra.mxu0 %v2097
          %2734 = vmatprep.subr.bf16.mxu0 0
          %2735 = vmatpush1.bf16.msra.mxu0 %v2100
          %2736 = vmatprep.subr.bf16.mxu0 0
          %2737 = vmatpush1.bf16.msra.mxu0 0
          %2738 = vmatprep.subr.bf16.mxu0 0
          %2739 = vmatpush1.bf16.msra.mxu0 0
          %2740 = vmatprep.subr.bf16.mxu0 0
          %2741 = vmatpush1.bf16.msra.mxu0 0
          %2742 = vmatprep.subr.bf16.mxu0 0
          %2743 = vmatpush1.bf16.msra.mxu0 0
          %2744 = vmatprep.subr.bf16.mxu0 0
          %2745 = vmatpush1.bf16.msra.mxu0 0
          %2746 = vmatprep.subr.bf16.mxu0 0
          %2747 = vmatpush1.bf16.msra.mxu0 0
          %2748 = vmatprep.subr.bf16.mxu0 0
          %2749 = vmatpush1.bf16.msra.mxu0 0
          %2750 = vmatprep.subr.bf16.mxu0 0
          %2751 = vmatpush1.bf16.msra.mxu0 0
          %2752 = vmatprep.mubr.bf16.mxu0 0
          %2753 = vmatmul.mubr.bf16.gmra.mrb[0].mxu0 %v363
          %v2754 = vpop.f32.mrb[0].mxu0
          %v2755 = vadd.f32 %v2594, %v2754
          %v2756 = vpop.f32.mrb[0].mxu0
          %v2757 = vpop.f32.mrb[0].mxu0
          %v2758 = vadd.f32 %v2597, %v2757
          %v2759 = vpop.f32.mrb[0].mxu0
          %2760 = vmatprep.mubr.bf16.mxu0 0
          %2761 = vmatmul.mubr.bf16.gmra.mrb[0].mxu0 %v366
          %v2762 = vpop.f32.mrb[0].mxu0
          %v2763 = vadd.f32 %v2602, %v2762
          %v2764 = vpop.f32.mrb[0].mxu0
          %v2765 = vpop.f32.mrb[0].mxu0
          %v2766 = vadd.f32 %v2605, %v2765
          %v2767 = vpop.f32.mrb[0].mxu0
          %2768 = vmatprep.mubr.bf16.mxu0 0
          %2769 = vmatmul.mubr.bf16.gmra.mrb[0].mxu0 %v369
          %v2770 = vpop.f32.mrb[0].mxu0
          %v2771 = vadd.f32 %v2610, %v2770
          %v2772 = vpop.f32.mrb[0].mxu0
          %v2773 = vpop.f32.mrb[0].mxu0
          %v2774 = vadd.f32 %v2613, %v2773
          %v2775 = vpop.f32.mrb[0].mxu0
          %2776 = vmatprep.mubr.bf16.mxu0 0
          %2777 = vmatmul.mubr.bf16.gmra.mrb[0].mxu0 %v372
          %v2778 = vpop.f32.mrb[0].mxu0
          %v2779 = vadd.f32 %v2618, %v2778
          %v2780 = vpop.f32.mrb[0].mxu0
          %v2781 = vpop.f32.mrb[0].mxu0
          %v2782 = vadd.f32 %v2621, %v2781
          %v2783 = vpop.f32.mrb[0].mxu0
          %2784 = vmatprep.mubr.bf16.mxu0 0
          %2785 = vmatmul.mubr.bf16.gmra.mrb[0].mxu0 %v375
          %v2786 = vpop.f32.mrb[0].mxu0
          %v2787 = vadd.f32 %v2626, %v2786
          %v2788 = vpop.f32.mrb[0].mxu0
          %v2789 = vpop.f32.mrb[0].mxu0
          %v2790 = vadd.f32 %v2629, %v2789
          %v2791 = vpop.f32.mrb[0].mxu0
          %2792 = vmatprep.mubr.bf16.mxu0 0
          %2793 = vmatmul.mubr.bf16.gmra.mrb[0].mxu0 %v378
          %v2794 = vpop.f32.mrb[0].mxu0
          %v2795 = vadd.f32 %v2634, %v2794
          %v2796 = vpop.f32.mrb[0].mxu0
          %v2797 = vpop.f32.mrb[0].mxu0
          %v2798 = vadd.f32 %v2637, %v2797
          %v2799 = vpop.f32.mrb[0].mxu0
          %2800 = vmatprep.mubr.bf16.mxu0 0
          %2801 = vmatmul.mubr.bf16.gmra.mrb[0].mxu0 %v381
          %v2802 = vpop.f32.mrb[0].mxu0
          %v2803 = vadd.f32 %v2642, %v2802
          %v2804 = vpop.f32.mrb[0].mxu0
          %v2805 = vpop.f32.mrb[0].mxu0
          %v2806 = vadd.f32 %v2645, %v2805
          %v2807 = vpop.f32.mrb[0].mxu0
          %2808 = vmatprep.mubr.bf16.mxu0 0
          %2809 = vmatmul.mubr.bf16.gmra.mrb[0].mxu0 %v384
          %v2810 = vpop.f32.mrb[0].mxu0
          %v2811 = vadd.f32 %v2650, %v2810
          %v2812 = vpop.f32.mrb[0].mxu0
          %v2813 = vpop.f32.mrb[0].mxu0
          %v2814 = vadd.f32 %v2653, %v2813
          %v2815 = vpop.f32.mrb[0].mxu0
          %2816 = vmatprep.mubr.bf16.mxu0 0
          %2817 = vmatmul.mubr.bf16.gmra.mrb[0].mxu0 %v387
          %v2818 = vpop.f32.mrb[0].mxu0
          %v2819 = vadd.f32 %v2658, %v2818
          %v2820 = vpop.f32.mrb[0].mxu0
          %v2821 = vpop.f32.mrb[0].mxu0
          %v2822 = vadd.f32 %v2661, %v2821
          %v2823 = vpop.f32.mrb[0].mxu0
          %2824 = vmatprep.mubr.bf16.mxu0 0
          %2825 = vmatmul.mubr.bf16.gmra.mrb[0].mxu0 %v390
          %v2826 = vpop.f32.mrb[0].mxu0
          %v2827 = vadd.f32 %v2666, %v2826
          %v2828 = vpop.f32.mrb[0].mxu0
          %v2829 = vpop.f32.mrb[0].mxu0
          %v2830 = vadd.f32 %v2669, %v2829
          %v2831 = vpop.f32.mrb[0].mxu0
          %2832 = vmatprep.mubr.bf16.mxu0 0
          %2833 = vmatmul.mubr.bf16.gmra.mrb[0].mxu0 %v393
          %v2834 = vpop.f32.mrb[0].mxu0
          %v2835 = vadd.f32 %v2674, %v2834
          %v2836 = vpop.f32.mrb[0].mxu0
          %v2837 = vpop.f32.mrb[0].mxu0
          %v2838 = vadd.f32 %v2677, %v2837
          %v2839 = vpop.f32.mrb[0].mxu0
          %2840 = vmatprep.mubr.bf16.mxu0 0
          %2841 = vmatmul.mubr.bf16.gmra.mrb[0].mxu0 %v396
          %v2842 = vpop.f32.mrb[0].mxu0
          %v2843 = vadd.f32 %v2682, %v2842
          %v2844 = vpop.f32.mrb[0].mxu0
          %v2845 = vpop.f32.mrb[0].mxu0
          %v2846 = vadd.f32 %v2685, %v2845
          %v2847 = vpop.f32.mrb[0].mxu0
          %2848 = vmatprep.mubr.bf16.mxu0 0
          %2849 = vmatmul.mubr.bf16.gmra.mrb[0].mxu0 %v399
          %v2850 = vpop.f32.mrb[0].mxu0
          %v2851 = vadd.f32 %v2690, %v2850
          %v2852 = vpop.f32.mrb[0].mxu0
          %v2853 = vpop.f32.mrb[0].mxu0
          %v2854 = vadd.f32 %v2693, %v2853
          %v2855 = vpop.f32.mrb[0].mxu0
          %2856 = vmatprep.mubr.bf16.mxu0 0
          %2857 = vmatmul.mubr.bf16.gmra.mrb[0].mxu0 %v402
          %v2858 = vpop.f32.mrb[0].mxu0
          %v2859 = vadd.f32 %v2698, %v2858
          %v2860 = vpop.f32.mrb[0].mxu0
          %v2861 = vpop.f32.mrb[0].mxu0
          %v2862 = vadd.f32 %v2701, %v2861
          %v2863 = vpop.f32.mrb[0].mxu0
          %2864 = vmatprep.mubr.bf16.mxu0 0
          %2865 = vmatmul.mubr.bf16.gmra.mrb[0].mxu0 %v405
          %v2866 = vpop.f32.mrb[0].mxu0
          %v2867 = vadd.f32 %v2706, %v2866
          %v2868 = vpop.f32.mrb[0].mxu0
          %v2869 = vpop.f32.mrb[0].mxu0
          %v2870 = vadd.f32 %v2709, %v2869
          %v2871 = vpop.f32.mrb[0].mxu0
          %2872 = vmatprep.mubr.bf16.mxu0 0
          %2873 = vmatmul.mubr.bf16.gmra.mrb[0].mxu0 %v408
          %v2874 = vpop.f32.mrb[0].mxu0
          %v2875 = vadd.f32 %v2714, %v2874
          %v2876 = vpop.f32.mrb[0].mxu0
          %v2877 = vpop.f32.mrb[0].mxu0
          %v2878 = vadd.f32 %v2717, %v2877
          %v2879 = vpop.f32.mrb[0].mxu0
          %2880 = vdwg.mxu0
          %v2881 = vpack.c.bf16 %v2405, %v2401
          %v2882 = vpack.c.bf16 %v2407, %v2403
          %v2883 = vpack.c.bf16 %v2758, %v2755
          %v2884 = vpack.c.bf16 %v2415, %v2411
          %v2885 = vpack.c.bf16 %v2417, %v2413
          %v2886 = vpack.c.bf16 %v2766, %v2763
          %v2887 = vpack.c.bf16 %v2425, %v2421
          %v2888 = vpack.c.bf16 %v2427, %v2423
          %v2889 = vpack.c.bf16 %v2774, %v2771
          %v2890 = vpack.c.bf16 %v2435, %v2431
          %v2891 = vpack.c.bf16 %v2437, %v2433
          %v2892 = vpack.c.bf16 %v2782, %v2779
          %v2893 = vpack.c.bf16 %v2445, %v2441
          %v2894 = vpack.c.bf16 %v2447, %v2443
          %v2895 = vpack.c.bf16 %v2790, %v2787
          %v2896 = vpack.c.bf16 %v2455, %v2451
          %v2897 = vpack.c.bf16 %v2457, %v2453
          %v2898 = vpack.c.bf16 %v2798, %v2795
          %v2899 = vpack.c.bf16 %v2465, %v2461
          %v2900 = vpack.c.bf16 %v2467, %v2463
          %v2901 = vpack.c.bf16 %v2806, %v2803
          %v2902 = vpack.c.bf16 %v2475, %v2471
          %v2903 = vpack.c.bf16 %v2477, %v2473
          %v2904 = vpack.c.bf16 %v2814, %v2811
          %v2905 = vpack.c.bf16 %v2485, %v2481
          %v2906 = vpack.c.bf16 %v2487, %v2483
          %v2907 = vpack.c.bf16 %v2822, %v2819
          %v2908 = vpack.c.bf16 %v2495, %v2491
          %v2909 = vpack.c.bf16 %v2497, %v2493
          %v2910 = vpack.c.bf16 %v2830, %v2827
          %v2911 = vpack.c.bf16 %v2505, %v2501
          %v2912 = vpack.c.bf16 %v2507, %v2503
          %v2913 = vpack.c.bf16 %v2838, %v2835
          %v2914 = vpack.c.bf16 %v2515, %v2511
          %v2915 = vpack.c.bf16 %v2517, %v2513
          %v2916 = vpack.c.bf16 %v2846, %v2843
          %v2917 = vpack.c.bf16 %v2525, %v2521
          %v2918 = vpack.c.bf16 %v2527, %v2523
          %v2919 = vpack.c.bf16 %v2854, %v2851
          %v2920 = vpack.c.bf16 %v2535, %v2531
          %v2921 = vpack.c.bf16 %v2537, %v2533
          %v2922 = vpack.c.bf16 %v2862, %v2859
          %v2923 = vpack.c.bf16 %v2545, %v2541
          %v2924 = vpack.c.bf16 %v2547, %v2543
          %v2925 = vpack.c.bf16 %v2870, %v2867
          %v2926 = vpack.c.bf16 %v2555, %v2551
          %v2927 = vpack.c.bf16 %v2557, %v2553
          %v2928 = vpack.c.bf16 %v2878, %v2875
          %2929 = vst [vmem:[#allocation2 + $0x18] sm:$0xff] %v2881
          %2930 = vst [vmem:[#allocation2 + $0x20] sm:$0xff] %v2882
          %2931 = vst [vmem:[#allocation2 + $0x28] sm:$0xff] %v2883
          %2932 = vst [vmem:[#allocation2 + $0x60] sm:$0xff] %v2884
          %2933 = vst [vmem:[#allocation2 + $0x68] sm:$0xff] %v2885
          %2934 = vst [vmem:[#allocation2 + $0x70] sm:$0xff] %v2886
          %2935 = vst [vmem:[#allocation2 + $0xa8] sm:$0xff] %v2887
          %2936 = vst [vmem:[#allocation2 + $0xb0] sm:$0xff] %v2888
          %2937 = vst [vmem:[#allocation2 + $0xb8] sm:$0xff] %v2889
          %2938 = vst [vmem:[#allocation2 + $0xf0] sm:$0xff] %v2890
          %2939 = vst [vmem:[#allocation2 + $0xf8] sm:$0xff] %v2891
          %2940 = vst [vmem:[#allocation2 + $0x100] sm:$0xff] %v2892
          %2941 = vst [vmem:[#allocation2 + $0x138] sm:$0xff] %v2893
          %2942 = vst [vmem:[#allocation2 + $0x140] sm:$0xff] %v2894
          %2943 = vst [vmem:[#allocation2 + $0x148] sm:$0xff] %v2895
          %2944 = vst [vmem:[#allocation2 + $0x180] sm:$0xff] %v2896
          %2945 = vst [vmem:[#allocation2 + $0x188] sm:$0xff] %v2897
          %2946 = vst [vmem:[#allocation2 + $0x190] sm:$0xff] %v2898
          %2947 = vst [vmem:[#allocation2 + $0x1c8] sm:$0xff] %v2899
          %2948 = vst [vmem:[#allocation2 + $0x1d0] sm:$0xff] %v2900
          %2949 = vst [vmem:[#allocation2 + $0x1d8] sm:$0xff] %v2901
          %2950 = vst [vmem:[#allocation2 + $0x210] sm:$0xff] %v2902
          %2951 = vst [vmem:[#allocation2 + $0x218] sm:$0xff] %v2903
          %2952 = vst [vmem:[#allocation2 + $0x220] sm:$0xff] %v2904
          %2953 = vst [vmem:[#allocation2 + $0x258] sm:$0xff] %v2905
          %2954 = vst [vmem:[#allocation2 + $0x260] sm:$0xff] %v2906
          %2955 = vst [vmem:[#allocation2 + $0x268] sm:$0xff] %v2907
          %2956 = vst [vmem:[#allocation2 + $0x2a0] sm:$0xff] %v2908
          %2957 = vst [vmem:[#allocation2 + $0x2a8] sm:$0xff] %v2909
          %2958 = vst [vmem:[#allocation2 + $0x2b0] sm:$0xff] %v2910
          %2959 = vst [vmem:[#allocation2 + $0x2e8] sm:$0xff] %v2911
          %2960 = vst [vmem:[#allocation2 + $0x2f0] sm:$0xff] %v2912
          %2961 = vst [vmem:[#allocation2 + $0x2f8] sm:$0xff] %v2913
          %2962 = vst [vmem:[#allocation2 + $0x330] sm:$0xff] %v2914
          %2963 = vst [vmem:[#allocation2 + $0x338] sm:$0xff] %v2915
          %2964 = vst [vmem:[#allocation2 + $0x340] sm:$0xff] %v2916
          %2965 = vst [vmem:[#allocation2 + $0x378] sm:$0xff] %v2917
          %2966 = vst [vmem:[#allocation2 + $0x380] sm:$0xff] %v2918
          %2967 = vst [vmem:[#allocation2 + $0x388] sm:$0xff] %v2919
          %2968 = vst [vmem:[#allocation2 + $0x3c0] sm:$0xff] %v2920
          %2969 = vst [vmem:[#allocation2 + $0x3c8] sm:$0xff] %v2921
          %2970 = vst [vmem:[#allocation2 + $0x3d0] sm:$0xff] %v2922
          %2971 = vst [vmem:[#allocation2 + $0x408] sm:$0xff] %v2923
          %2972 = vst [vmem:[#allocation2 + $0x410] sm:$0xff] %v2924
          %2973 = vst [vmem:[#allocation2 + $0x418] sm:$0xff] %v2925
          %2974 = vst [vmem:[#allocation2 + $0x450] sm:$0xff] %v2926
          %2975 = vst [vmem:[#allocation2 + $0x458] sm:$0xff] %v2927
          %2976 = vst [vmem:[#allocation2 + $0x460] sm:$0xff] %v2928
          %v2977 = vld [vmem:[#allocation7 + $0x18] sm:$0xff]
          %v2978 = vld [vmem:[#allocation7 + $0x20] sm:$0xf]
          %v2979 = vld [vmem:[#allocation7 + $0x3c] sm:$0xff]
          %v2980 = vld [vmem:[#allocation7 + $0x44] sm:$0xf]
          %v2981 = vld [vmem:[#allocation7 + $0x60] sm:$0xff]
          %v2982 = vld [vmem:[#allocation7 + $0x68] sm:$0xf]
          %v2983 = vld [vmem:[#allocation7 + $0x84] sm:$0xff]
          %v2984 = vld [vmem:[#allocation7 + $0x8c] sm:$0xf]
          %v2985 = vld [vmem:[#allocation7 + $0xa8] sm:$0xff]
          %v2986 = vld [vmem:[#allocation7 + $0xb0] sm:$0xf]
          %v2987 = vld [vmem:[#allocation7 + $0xcc] sm:$0xff]
          %v2988 = vld [vmem:[#allocation7 + $0xd4] sm:$0xf]
          %v2989 = vld [vmem:[#allocation7 + $0xf0] sm:$0xff]
          %v2990 = vld [vmem:[#allocation7 + $0xf8] sm:$0xf]
          %v2991 = vld [vmem:[#allocation7 + $0x114] sm:$0xff]
          %v2992 = vld [vmem:[#allocation7 + $0x11c] sm:$0xf]
          %v2993 = vld [vmem:[#allocation7 + $0x138] sm:$0xff]
          %v2994 = vld [vmem:[#allocation7 + $0x140] sm:$0xf]
          %v2995 = vld [vmem:[#allocation7 + $0x15c] sm:$0xff]
          %v2996 = vld [vmem:[#allocation7 + $0x164] sm:$0xf]
          %v2997 = vld [vmem:[#allocation7 + $0x180] sm:$0xff]
          %v2998 = vld [vmem:[#allocation7 + $0x188] sm:$0xf]
          %v2999 = vld [vmem:[#allocation7 + $0x1a4] sm:$0xff]
          %v3000 = vld [vmem:[#allocation7 + $0x1ac] sm:$0xf]
          %v3001 = vld [vmem:[#allocation7 + $0x1c8] sm:$0xff]
          %v3002 = vld [vmem:[#allocation7 + $0x1d0] sm:$0xf]
          %v3003 = vld [vmem:[#allocation7 + $0x1ec] sm:$0xff]
          %v3004 = vld [vmem:[#allocation7 + $0x1f4] sm:$0xf]
          %v3005 = vld [vmem:[#allocation7 + $0x210] sm:$0xff]
          %v3006 = vld [vmem:[#allocation7 + $0x218] sm:$0xf]
          %v3007 = vld [vmem:[#allocation7 + $0x234] sm:$0xff]
          %v3008 = vld [vmem:[#allocation7 + $0x23c] sm:$0xf]
          %v3009 = vld [vmem:[#allocation7 + $0x258] sm:$0xff]
          %v3010 = vld [vmem:[#allocation7 + $0x260] sm:$0xf]
          %v3011 = vld [vmem:[#allocation7 + $0x27c] sm:$0xff]
          %v3012 = vld [vmem:[#allocation7 + $0x284] sm:$0xf]
          %v3013 = vld [vmem:[#allocation7 + $0x2a0] sm:$0xff]
          %v3014 = vld [vmem:[#allocation7 + $0x2a8] sm:$0xf]
          %v3015 = vld [vmem:[#allocation7 + $0x2c4] sm:$0xff]
          %v3016 = vld [vmem:[#allocation7 + $0x2cc] sm:$0xf]
          %v3017 = vld [vmem:[#allocation7 + $0x2e8] sm:$0xff]
          %v3018 = vld [vmem:[#allocation7 + $0x2f0] sm:$0xf]
          %v3019 = vld [vmem:[#allocation7 + $0x30c] sm:$0xff]
          %v3020 = vld [vmem:[#allocation7 + $0x314] sm:$0xf]
          %v3021 = vld [vmem:[#allocation7 + $0x330] sm:$0xff]
          %v3022 = vld [vmem:[#allocation7 + $0x338] sm:$0xf]
          %v3023 = vld [vmem:[#allocation7 + $0x354] sm:$0xff]
          %v3024 = vld [vmem:[#allocation7 + $0x35c] sm:$0xf]
          %v3025 = vld [vmem:[#allocation7 + $0x378] sm:$0xff]
          %v3026 = vld [vmem:[#allocation7 + $0x380] sm:$0xf]
          %v3027 = vld [vmem:[#allocation7 + $0x39c] sm:$0xff]
          %v3028 = vld [vmem:[#allocation7 + $0x3a4] sm:$0xf]
          %v3029 = vld [vmem:[#allocation7 + $0x3c0] sm:$0xff]
          %v3030 = vld [vmem:[#allocation7 + $0x3c8] sm:$0xf]
          %v3031 = vld [vmem:[#allocation7 + $0x3e4] sm:$0xff]
          %v3032 = vld [vmem:[#allocation7 + $0x3ec] sm:$0xf]
          %v3033 = vld [vmem:[#allocation7 + $0x408] sm:$0xff]
          %v3034 = vld [vmem:[#allocation7 + $0x410] sm:$0xf]
          %v3035 = vld [vmem:[#allocation7 + $0x42c] sm:$0xff]
          %v3036 = vld [vmem:[#allocation7 + $0x434] sm:$0xf]
          %v3037 = vld [vmem:[#allocation7 + $0x450] sm:$0xff]
          %v3038 = vld [vmem:[#allocation7 + $0x458] sm:$0xf]
          %v3039 = vld [vmem:[#allocation7 + $0x474] sm:$0xff]
          %v3040 = vld [vmem:[#allocation7 + $0x47c] sm:$0xf]
          %v3041 = vld [vmem:[#allocation7 + $0x498] sm:$0xff]
          %v3042 = vld [vmem:[#allocation7 + $0x4a0] sm:$0xf]
          %v3043 = vld [vmem:[#allocation7 + $0x4bc] sm:$0xff]
          %v3044 = vld [vmem:[#allocation7 + $0x4c4] sm:$0xf]
          %v3045 = vld [vmem:[#allocation7 + $0x4e0] sm:$0xff]
          %v3046 = vld [vmem:[#allocation7 + $0x4e8] sm:$0xf]
          %v3047 = vld [vmem:[#allocation7 + $0x504] sm:$0xff]
          %v3048 = vld [vmem:[#allocation7 + $0x50c] sm:$0xf]
          %v3049 = vld [vmem:[#allocation7 + $0x528] sm:$0xff]
          %v3050 = vld [vmem:[#allocation7 + $0x530] sm:$0xf]
          %v3051 = vld [vmem:[#allocation7 + $0x54c] sm:$0xff]
          %v3052 = vld [vmem:[#allocation7 + $0x554] sm:$0xf]
          %v3053 = vld [vmem:[#allocation7 + $0x570] sm:$0xff]
          %v3054 = vld [vmem:[#allocation7 + $0x578] sm:$0xf]
          %v3055 = vld [vmem:[#allocation7 + $0x594] sm:$0xff]
          %v3056 = vld [vmem:[#allocation7 + $0x59c] sm:$0xf]
          %v3057 = vld [vmem:[#allocation7 + $0x5b8] sm:$0xff]
          %v3058 = vld [vmem:[#allocation7 + $0x5c0] sm:$0xf]
          %v3059 = vld [vmem:[#allocation7 + $0x5dc] sm:$0xff]
          %v3060 = vld [vmem:[#allocation7 + $0x5e4] sm:$0xf]
          %v3061 = vld [vmem:[#allocation7 + $0x600] sm:$0xff]
          %v3062 = vld [vmem:[#allocation7 + $0x608] sm:$0xf]
          %v3063 = vld [vmem:[#allocation7 + $0x624] sm:$0xff]
          %v3064 = vld [vmem:[#allocation7 + $0x62c] sm:$0xf]
          %v3065 = vld [vmem:[#allocation7 + $0x648] sm:$0xff]
          %v3066 = vld [vmem:[#allocation7 + $0x650] sm:$0xf]
          %v3067 = vld [vmem:[#allocation7 + $0x66c] sm:$0xff]
          %v3068 = vld [vmem:[#allocation7 + $0x674] sm:$0xf]
          %v3069 = vld [vmem:[#allocation7 + $0x690] sm:$0xff]
          %v3070 = vld [vmem:[#allocation7 + $0x698] sm:$0xf]
          %v3071 = vld [vmem:[#allocation7 + $0x6b4] sm:$0xff]
          %v3072 = vld [vmem:[#allocation7 + $0x6bc] sm:$0xf]
          %v3169 = vunpack.c.l.b16 %v2977
          %v3170 = vunpack.c.h.b16 %v2977
          %v3171 = vunpack.c.l.b16 %v2978
          %v3172 = vunpack.c.l.b16 %v2979
          %v3173 = vunpack.c.h.b16 %v2979
          %v3174 = vunpack.c.l.b16 %v2980
          %v3175 = vunpack.c.l.b16 %v2981
          %v3176 = vunpack.c.h.b16 %v2981
          %v3177 = vunpack.c.l.b16 %v2982
          %v3178 = vunpack.c.l.b16 %v2983
          %v3179 = vunpack.c.h.b16 %v2983
          %v3180 = vunpack.c.l.b16 %v2984
          %v3181 = vunpack.c.l.b16 %v2985
          %v3182 = vunpack.c.h.b16 %v2985
          %v3183 = vunpack.c.l.b16 %v2986
          %v3184 = vunpack.c.l.b16 %v2987
          %v3185 = vunpack.c.h.b16 %v2987
          %v3186 = vunpack.c.l.b16 %v2988
          %v3187 = vunpack.c.l.b16 %v2989
          %v3188 = vunpack.c.h.b16 %v2989
          %v3189 = vunpack.c.l.b16 %v2990
          %v3190 = vunpack.c.l.b16 %v2991
          %v3191 = vunpack.c.h.b16 %v2991
          %v3192 = vunpack.c.l.b16 %v2992
          %v3193 = vunpack.c.l.b16 %v2993
          %v3194 = vunpack.c.h.b16 %v2993
          %v3195 = vunpack.c.l.b16 %v2994
          %v3196 = vunpack.c.l.b16 %v2995
          %v3197 = vunpack.c.h.b16 %v2995
          %v3198 = vunpack.c.l.b16 %v2996
          %v3199 = vunpack.c.l.b16 %v2997
          %v3200 = vunpack.c.h.b16 %v2997
          %v3201 = vunpack.c.l.b16 %v2998
          %v3202 = vunpack.c.l.b16 %v2999
          %v3203 = vunpack.c.h.b16 %v2999
          %v3204 = vunpack.c.l.b16 %v3000
          %v3205 = vunpack.c.l.b16 %v3001
          %v3206 = vunpack.c.h.b16 %v3001
          %v3207 = vunpack.c.l.b16 %v3002
          %v3208 = vunpack.c.l.b16 %v3003
          %v3209 = vunpack.c.h.b16 %v3003
          %v3210 = vunpack.c.l.b16 %v3004
          %v3211 = vunpack.c.l.b16 %v3005
          %v3212 = vunpack.c.h.b16 %v3005
          %v3213 = vunpack.c.l.b16 %v3006
          %v3214 = vunpack.c.l.b16 %v3007
          %v3215 = vunpack.c.h.b16 %v3007
          %v3216 = vunpack.c.l.b16 %v3008
          %v3217 = vunpack.c.l.b16 %v3009
          %v3218 = vunpack.c.h.b16 %v3009
          %v3219 = vunpack.c.l.b16 %v3010
          %v3220 = vunpack.c.l.b16 %v3011
          %v3221 = vunpack.c.h.b16 %v3011
          %v3222 = vunpack.c.l.b16 %v3012
          %v3223 = vunpack.c.l.b16 %v3013
          %v3224 = vunpack.c.h.b16 %v3013
          %v3225 = vunpack.c.l.b16 %v3014
          %v3226 = vunpack.c.l.b16 %v3015
          %v3227 = vunpack.c.h.b16 %v3015
          %v3228 = vunpack.c.l.b16 %v3016
          %v3229 = vunpack.c.l.b16 %v3017
          %v3230 = vunpack.c.h.b16 %v3017
          %v3231 = vunpack.c.l.b16 %v3018
          %v3232 = vunpack.c.l.b16 %v3019
          %v3233 = vunpack.c.h.b16 %v3019
          %v3234 = vunpack.c.l.b16 %v3020
          %v3235 = vunpack.c.l.b16 %v3021
          %v3236 = vunpack.c.h.b16 %v3021
          %v3237 = vunpack.c.l.b16 %v3022
          %v3238 = vunpack.c.l.b16 %v3023
          %v3239 = vunpack.c.h.b16 %v3023
          %v3240 = vunpack.c.l.b16 %v3024
          %v3241 = vunpack.c.l.b16 %v3025
          %v3242 = vunpack.c.h.b16 %v3025
          %v3243 = vunpack.c.l.b16 %v3026
          %v3244 = vunpack.c.l.b16 %v3027
          %v3245 = vunpack.c.h.b16 %v3027
          %v3246 = vunpack.c.l.b16 %v3028
          %v3247 = vunpack.c.l.b16 %v3029
          %v3248 = vunpack.c.h.b16 %v3029
          %v3249 = vunpack.c.l.b16 %v3030
          %v3250 = vunpack.c.l.b16 %v3031
          %v3251 = vunpack.c.h.b16 %v3031
          %v3252 = vunpack.c.l.b16 %v3032
          %v3253 = vunpack.c.l.b16 %v3033
          %v3254 = vunpack.c.h.b16 %v3033
          %v3255 = vunpack.c.l.b16 %v3034
          %v3256 = vunpack.c.l.b16 %v3035
          %v3257 = vunpack.c.h.b16 %v3035
          %v3258 = vunpack.c.l.b16 %v3036
          %v3259 = vunpack.c.l.b16 %v3037
          %v3260 = vunpack.c.h.b16 %v3037
          %v3261 = vunpack.c.l.b16 %v3038
          %v3262 = vunpack.c.l.b16 %v3039
          %v3263 = vunpack.c.h.b16 %v3039
          %v3264 = vunpack.c.l.b16 %v3040
          %v3265 = vunpack.c.l.b16 %v3041
          %v3266 = vunpack.c.h.b16 %v3041
          %v3267 = vunpack.c.l.b16 %v3042
          %v3268 = vunpack.c.l.b16 %v3043
          %v3269 = vunpack.c.h.b16 %v3043
          %v3270 = vunpack.c.l.b16 %v3044
          %v3271 = vunpack.c.l.b16 %v3045
          %v3272 = vunpack.c.h.b16 %v3045
          %v3273 = vunpack.c.l.b16 %v3046
          %v3274 = vunpack.c.l.b16 %v3047
          %v3275 = vunpack.c.h.b16 %v3047
          %v3276 = vunpack.c.l.b16 %v3048
          %v3277 = vunpack.c.l.b16 %v3049
          %v3278 = vunpack.c.h.b16 %v3049
          %v3279 = vunpack.c.l.b16 %v3050
          %v3280 = vunpack.c.l.b16 %v3051
          %v3281 = vunpack.c.h.b16 %v3051
          %v3282 = vunpack.c.l.b16 %v3052
          %v3283 = vunpack.c.l.b16 %v3053
          %v3284 = vunpack.c.h.b16 %v3053
          %v3285 = vunpack.c.l.b16 %v3054
          %v3286 = vunpack.c.l.b16 %v3055
          %v3287 = vunpack.c.h.b16 %v3055
          %v3288 = vunpack.c.l.b16 %v3056
          %v3289 = vunpack.c.l.b16 %v3057
          %v3290 = vunpack.c.h.b16 %v3057
          %v3291 = vunpack.c.l.b16 %v3058
          %v3292 = vunpack.c.l.b16 %v3059
          %v3293 = vunpack.c.h.b16 %v3059
          %v3294 = vunpack.c.l.b16 %v3060
          %v3295 = vunpack.c.l.b16 %v3061
          %v3296 = vunpack.c.h.b16 %v3061
          %v3297 = vunpack.c.l.b16 %v3062
          %v3298 = vunpack.c.l.b16 %v3063
          %v3299 = vunpack.c.h.b16 %v3063
          %v3300 = vunpack.c.l.b16 %v3064
          %v3301 = vunpack.c.l.b16 %v3065
          %v3302 = vunpack.c.h.b16 %v3065
          %v3303 = vunpack.c.l.b16 %v3066
          %v3304 = vunpack.c.l.b16 %v3067
          %v3305 = vunpack.c.h.b16 %v3067
          %v3306 = vunpack.c.l.b16 %v3068
          %v3307 = vunpack.c.l.b16 %v3069
          %v3308 = vunpack.c.h.b16 %v3069
          %v3309 = vunpack.c.l.b16 %v3070
          %v3310 = vunpack.c.l.b16 %v3071
          %v3311 = vunpack.c.h.b16 %v3071
          %v3312 = vunpack.c.l.b16 %v3072
          %v3313 = vpack.c.b16 %v3172, %v3169
          %v3314 = vpack.c.b16 %v3173, %v3170
          %v3315 = vpack.c.b16 %v3174, %v3171
          %v3316 = vpack.c.b16 %v3178, %v3175
          %v3317 = vpack.c.b16 %v3179, %v3176
          %v3318 = vpack.c.b16 %v3180, %v3177
          %v3319 = vpack.c.b16 %v3184, %v3181
          %v3320 = vpack.c.b16 %v3185, %v3182
          %v3321 = vpack.c.b16 %v3186, %v3183
          %v3322 = vpack.c.b16 %v3190, %v3187
          %v3323 = vpack.c.b16 %v3191, %v3188
          %v3324 = vpack.c.b16 %v3192, %v3189
          %v3325 = vpack.c.b16 %v3196, %v3193
          %v3326 = vpack.c.b16 %v3197, %v3194
          %v3327 = vpack.c.b16 %v3198, %v3195
          %v3328 = vpack.c.b16 %v3202, %v3199
          %v3329 = vpack.c.b16 %v3203, %v3200
          %v3330 = vpack.c.b16 %v3204, %v3201
          %v3331 = vpack.c.b16 %v3208, %v3205
          %v3332 = vpack.c.b16 %v3209, %v3206
          %v3333 = vpack.c.b16 %v3210, %v3207
          %v3334 = vpack.c.b16 %v3214, %v3211
          %v3335 = vpack.c.b16 %v3215, %v3212
          %v3336 = vpack.c.b16 %v3216, %v3213
          %v3337 = vpack.c.b16 %v3220, %v3217
          %v3338 = vpack.c.b16 %v3221, %v3218
          %v3339 = vpack.c.b16 %v3222, %v3219
          %v3340 = vpack.c.b16 %v3226, %v3223
          %v3341 = vpack.c.b16 %v3227, %v3224
          %v3342 = vpack.c.b16 %v3228, %v3225
          %v3343 = vpack.c.b16 %v3232, %v3229
          %v3344 = vpack.c.b16 %v3233, %v3230
          %v3345 = vpack.c.b16 %v3234, %v3231
          %v3346 = vpack.c.b16 %v3238, %v3235
          %v3347 = vpack.c.b16 %v3239, %v3236
          %v3348 = vpack.c.b16 %v3240, %v3237
          %v3349 = vpack.c.b16 %v3244, %v3241
          %v3350 = vpack.c.b16 %v3245, %v3242
          %v3351 = vpack.c.b16 %v3246, %v3243
          %v3352 = vpack.c.b16 %v3250, %v3247
          %v3353 = vpack.c.b16 %v3251, %v3248
          %v3354 = vpack.c.b16 %v3252, %v3249
          %v3355 = vpack.c.b16 %v3256, %v3253
          %v3356 = vpack.c.b16 %v3257, %v3254
          %v3357 = vpack.c.b16 %v3258, %v3255
          %v3358 = vpack.c.b16 %v3262, %v3259
          %v3359 = vpack.c.b16 %v3263, %v3260
          %v3360 = vpack.c.b16 %v3264, %v3261
          %v3361 = vpack.c.b16 %v3268, %v3265
          %v3362 = vpack.c.b16 %v3269, %v3266
          %v3363 = vpack.c.b16 %v3270, %v3267
          %v3364 = vpack.c.b16 %v3274, %v3271
          %v3365 = vpack.c.b16 %v3275, %v3272
          %v3366 = vpack.c.b16 %v3276, %v3273
          %v3367 = vpack.c.b16 %v3280, %v3277
          %v3368 = vpack.c.b16 %v3281, %v3278
          %v3369 = vpack.c.b16 %v3282, %v3279
          %v3370 = vpack.c.b16 %v3286, %v3283
          %v3371 = vpack.c.b16 %v3287, %v3284
          %v3372 = vpack.c.b16 %v3288, %v3285
          %v3373 = vpack.c.b16 %v3292, %v3289
          %v3374 = vpack.c.b16 %v3293, %v3290
          %v3375 = vpack.c.b16 %v3294, %v3291
          %v3376 = vpack.c.b16 %v3298, %v3295
          %v3377 = vpack.c.b16 %v3299, %v3296
          %v3378 = vpack.c.b16 %v3300, %v3297
          %v3379 = vpack.c.b16 %v3304, %v3301
          %v3380 = vpack.c.b16 %v3305, %v3302
          %v3381 = vpack.c.b16 %v3306, %v3303
          %v3382 = vpack.c.b16 %v3310, %v3307
          %v3383 = vpack.c.b16 %v3311, %v3308
          %v3384 = vpack.c.b16 %v3312, %v3309
          %3457 = vmatprep.subr.bf16.mxu0 %v3314
          %3458 = vmatpush1.bf16.msra.mxu0 %v3313
          %3459 = vmatprep.subr.bf16.mxu0 %v3317
          %3460 = vmatpush1.bf16.msra.mxu0 %v3316
          %3461 = vmatprep.subr.bf16.mxu0 %v3320
          %3462 = vmatpush1.bf16.msra.mxu0 %v3319
          %3463 = vmatprep.subr.bf16.mxu0 %v3323
          %3464 = vmatpush1.bf16.msra.mxu0 %v3322
          %3465 = vmatprep.subr.bf16.mxu0 %v3326
          %3466 = vmatpush1.bf16.msra.mxu0 %v3325
          %3467 = vmatprep.subr.bf16.mxu0 %v3329
          %3468 = vmatpush1.bf16.msra.mxu0 %v3328
          %3469 = vmatprep.subr.bf16.mxu0 %v3332
          %3470 = vmatpush1.bf16.msra.mxu0 %v3331
          %3471 = vmatprep.subr.bf16.mxu0 %v3335
          %3472 = vmatpush1.bf16.msra.mxu0 %v3334
          %3473 = vmatprep.subr.bf16.mxu0 %v3338
          %3474 = vmatpush1.bf16.msra.mxu0 %v3337
          %3475 = vmatprep.subr.bf16.mxu0 %v3341
          %3476 = vmatpush1.bf16.msra.mxu0 %v3340
          %3477 = vmatprep.subr.bf16.mxu0 %v3344
          %3478 = vmatpush1.bf16.msra.mxu0 %v3343
          %3479 = vmatprep.subr.bf16.mxu0 %v3347
          %3480 = vmatpush1.bf16.msra.mxu0 %v3346
          %3481 = vmatprep.subr.bf16.mxu0 %v3350
          %3482 = vmatpush1.bf16.msra.mxu0 %v3349
          %3483 = vmatprep.subr.bf16.mxu0 %v3353
          %3484 = vmatpush1.bf16.msra.mxu0 %v3352
          %3485 = vmatprep.subr.bf16.mxu0 %v3356
          %3486 = vmatpush1.bf16.msra.mxu0 %v3355
          %3487 = vmatprep.subr.bf16.mxu0 %v3359
          %3488 = vmatpush1.bf16.msra.mxu0 %v3358
          %3489 = vmatprep.mubr.bf16.mxu0 %v362
          %3490 = vmatmul.mubr.bf16.gmra.mrb[0].mxu0 %v361
          %v3491 = vpop.f32.mrb[0].mxu0
          %v3492 = vadd.f32 0.0, %v3491
          %v3493 = vpop.f32.mrb[0].mxu0
          %v3494 = vadd.f32 0.0, %v3493
          %v3495 = vpop.f32.mrb[0].mxu0
          %v3496 = vadd.f32 0.0, %v3495
          %v3497 = vpop.f32.mrb[0].mxu0
          %v3498 = vadd.f32 0.0, %v3497
          %3499 = vmatprep.mubr.bf16.mxu0 %v365
          %3500 = vmatmul.mubr.bf16.gmra.mrb[0].mxu0 %v364
          %v3501 = vpop.f32.mrb[0].mxu0
          %v3502 = vadd.f32 0.0, %v3501
          %v3503 = vpop.f32.mrb[0].mxu0
          %v3504 = vadd.f32 0.0, %v3503
          %v3505 = vpop.f32.mrb[0].mxu0
          %v3506 = vadd.f32 0.0, %v3505
          %v3507 = vpop.f32.mrb[0].mxu0
          %v3508 = vadd.f32 0.0, %v3507
          %3509 = vmatprep.mubr.bf16.mxu0 %v368
          %3510 = vmatmul.mubr.bf16.gmra.mrb[0].mxu0 %v367
          %v3511 = vpop.f32.mrb[0].mxu0
          %v3512 = vadd.f32 0.0, %v3511
          %v3513 = vpop.f32.mrb[0].mxu0
          %v3514 = vadd.f32 0.0, %v3513
          %v3515 = vpop.f32.mrb[0].mxu0
          %v3516 = vadd.f32 0.0, %v3515
          %v3517 = vpop.f32.mrb[0].mxu0
          %v3518 = vadd.f32 0.0, %v3517
          %3519 = vmatprep.mubr.bf16.mxu0 %v371
          %3520 = vmatmul.mubr.bf16.gmra.mrb[0].mxu0 %v370
          %v3521 = vpop.f32.mrb[0].mxu0
          %v3522 = vadd.f32 0.0, %v3521
          %v3523 = vpop.f32.mrb[0].mxu0
          %v3524 = vadd.f32 0.0, %v3523
          %v3525 = vpop.f32.mrb[0].mxu0
          %v3526 = vadd.f32 0.0, %v3525
          %v3527 = vpop.f32.mrb[0].mxu0
          %v3528 = vadd.f32 0.0, %v3527
          %3529 = vmatprep.mubr.bf16.mxu0 %v374
          %3530 = vmatmul.mubr.bf16.gmra.mrb[0].mxu0 %v373
          %v3531 = vpop.f32.mrb[0].mxu0
          %v3532 = vadd.f32 0.0, %v3531
          %v3533 = vpop.f32.mrb[0].mxu0
          %v3534 = vadd.f32 0.0, %v3533
          %v3535 = vpop.f32.mrb[0].mxu0
          %v3536 = vadd.f32 0.0, %v3535
          %v3537 = vpop.f32.mrb[0].mxu0
          %v3538 = vadd.f32 0.0, %v3537
          %3539 = vmatprep.mubr.bf16.mxu0 %v377
          %3540 = vmatmul.mubr.bf16.gmra.mrb[0].mxu0 %v376
          %v3541 = vpop.f32.mrb[0].mxu0
          %v3542 = vadd.f32 0.0, %v3541
          %v3543 = vpop.f32.mrb[0].mxu0
          %v3544 = vadd.f32 0.0, %v3543
          %v3545 = vpop.f32.mrb[0].mxu0
          %v3546 = vadd.f32 0.0, %v3545
          %v3547 = vpop.f32.mrb[0].mxu0
          %v3548 = vadd.f32 0.0, %v3547
          %3549 = vmatprep.mubr.bf16.mxu0 %v380
          %3550 = vmatmul.mubr.bf16.gmra.mrb[0].mxu0 %v379
          %v3551 = vpop.f32.mrb[0].mxu0
          %v3552 = vadd.f32 0.0, %v3551
          %v3553 = vpop.f32.mrb[0].mxu0
          %v3554 = vadd.f32 0.0, %v3553
          %v3555 = vpop.f32.mrb[0].mxu0
          %v3556 = vadd.f32 0.0, %v3555
          %v3557 = vpop.f32.mrb[0].mxu0
          %v3558 = vadd.f32 0.0, %v3557
          %3559 = vmatprep.mubr.bf16.mxu0 %v383
          %3560 = vmatmul.mubr.bf16.gmra.mrb[0].mxu0 %v382
          %v3561 = vpop.f32.mrb[0].mxu0
          %v3562 = vadd.f32 0.0, %v3561
          %v3563 = vpop.f32.mrb[0].mxu0
          %v3564 = vadd.f32 0.0, %v3563
          %v3565 = vpop.f32.mrb[0].mxu0
          %v3566 = vadd.f32 0.0, %v3565
          %v3567 = vpop.f32.mrb[0].mxu0
          %v3568 = vadd.f32 0.0, %v3567
          %3569 = vmatprep.mubr.bf16.mxu0 %v386
          %3570 = vmatmul.mubr.bf16.gmra.mrb[0].mxu0 %v385
          %v3571 = vpop.f32.mrb[0].mxu0
          %v3572 = vadd.f32 0.0, %v3571
          %v3573 = vpop.f32.mrb[0].mxu0
          %v3574 = vadd.f32 0.0, %v3573
          %v3575 = vpop.f32.mrb[0].mxu0
          %v3576 = vadd.f32 0.0, %v3575
          %v3577 = vpop.f32.mrb[0].mxu0
          %v3578 = vadd.f32 0.0, %v3577
          %3579 = vmatprep.mubr.bf16.mxu0 %v389
          %3580 = vmatmul.mubr.bf16.gmra.mrb[0].mxu0 %v388
          %v3581 = vpop.f32.mrb[0].mxu0
          %v3582 = vadd.f32 0.0, %v3581
          %v3583 = vpop.f32.mrb[0].mxu0
          %v3584 = vadd.f32 0.0, %v3583
          %v3585 = vpop.f32.mrb[0].mxu0
          %v3586 = vadd.f32 0.0, %v3585
          %v3587 = vpop.f32.mrb[0].mxu0
          %v3588 = vadd.f32 0.0, %v3587
          %3589 = vmatprep.mubr.bf16.mxu0 %v392
          %3590 = vmatmul.mubr.bf16.gmra.mrb[0].mxu0 %v391
          %v3591 = vpop.f32.mrb[0].mxu0
          %v3592 = vadd.f32 0.0, %v3591
          %v3593 = vpop.f32.mrb[0].mxu0
          %v3594 = vadd.f32 0.0, %v3593
          %v3595 = vpop.f32.mrb[0].mxu0
          %v3596 = vadd.f32 0.0, %v3595
          %v3597 = vpop.f32.mrb[0].mxu0
          %v3598 = vadd.f32 0.0, %v3597
          %3599 = vmatprep.mubr.bf16.mxu0 %v395
          %3600 = vmatmul.mubr.bf16.gmra.mrb[0].mxu0 %v394
          %v3601 = vpop.f32.mrb[0].mxu0
          %v3602 = vadd.f32 0.0, %v3601
          %v3603 = vpop.f32.mrb[0].mxu0
          %v3604 = vadd.f32 0.0, %v3603
          %v3605 = vpop.f32.mrb[0].mxu0
          %v3606 = vadd.f32 0.0, %v3605
          %v3607 = vpop.f32.mrb[0].mxu0
          %v3608 = vadd.f32 0.0, %v3607
          %3609 = vmatprep.mubr.bf16.mxu0 %v398
          %3610 = vmatmul.mubr.bf16.gmra.mrb[0].mxu0 %v397
          %v3611 = vpop.f32.mrb[0].mxu0
          %v3612 = vadd.f32 0.0, %v3611
          %v3613 = vpop.f32.mrb[0].mxu0
          %v3614 = vadd.f32 0.0, %v3613
          %v3615 = vpop.f32.mrb[0].mxu0
          %v3616 = vadd.f32 0.0, %v3615
          %v3617 = vpop.f32.mrb[0].mxu0
          %v3618 = vadd.f32 0.0, %v3617
          %3619 = vmatprep.mubr.bf16.mxu0 %v401
          %3620 = vmatmul.mubr.bf16.gmra.mrb[0].mxu0 %v400
          %v3621 = vpop.f32.mrb[0].mxu0
          %v3622 = vadd.f32 0.0, %v3621
          %v3623 = vpop.f32.mrb[0].mxu0
          %v3624 = vadd.f32 0.0, %v3623
          %v3625 = vpop.f32.mrb[0].mxu0
          %v3626 = vadd.f32 0.0, %v3625
          %v3627 = vpop.f32.mrb[0].mxu0
          %v3628 = vadd.f32 0.0, %v3627
          %3629 = vmatprep.mubr.bf16.mxu0 %v404
          %3630 = vmatmul.mubr.bf16.gmra.mrb[0].mxu0 %v403
          %v3631 = vpop.f32.mrb[0].mxu0
          %v3632 = vadd.f32 0.0, %v3631
          %v3633 = vpop.f32.mrb[0].mxu0
          %v3634 = vadd.f32 0.0, %v3633
          %v3635 = vpop.f32.mrb[0].mxu0
          %v3636 = vadd.f32 0.0, %v3635
          %v3637 = vpop.f32.mrb[0].mxu0
          %v3638 = vadd.f32 0.0, %v3637
          %3639 = vmatprep.mubr.bf16.mxu0 %v407
          %3640 = vmatmul.mubr.bf16.gmra.mrb[0].mxu0 %v406
          %v3641 = vpop.f32.mrb[0].mxu0
          %v3642 = vadd.f32 0.0, %v3641
          %v3643 = vpop.f32.mrb[0].mxu0
          %v3644 = vadd.f32 0.0, %v3643
          %v3645 = vpop.f32.mrb[0].mxu0
          %v3646 = vadd.f32 0.0, %v3645
          %v3647 = vpop.f32.mrb[0].mxu0
          %v3648 = vadd.f32 0.0, %v3647
          %3649 = vdwg.mxu0
          %3650 = vmatprep.subr.bf16.mxu0 %v3362
          %3651 = vmatpush1.bf16.msra.mxu0 %v3361
          %3652 = vmatprep.subr.bf16.mxu0 %v3365
          %3653 = vmatpush1.bf16.msra.mxu0 %v3364
          %3654 = vmatprep.subr.bf16.mxu0 %v3368
          %3655 = vmatpush1.bf16.msra.mxu0 %v3367
          %3656 = vmatprep.subr.bf16.mxu0 %v3371
          %3657 = vmatpush1.bf16.msra.mxu0 %v3370
          %3658 = vmatprep.subr.bf16.mxu0 %v3374
          %3659 = vmatpush1.bf16.msra.mxu0 %v3373
          %3660 = vmatprep.subr.bf16.mxu0 %v3377
          %3661 = vmatpush1.bf16.msra.mxu0 %v3376
          %3662 = vmatprep.subr.bf16.mxu0 %v3380
          %3663 = vmatpush1.bf16.msra.mxu0 %v3379
          %3664 = vmatprep.subr.bf16.mxu0 %v3383
          %3665 = vmatpush1.bf16.msra.mxu0 %v3382
          %3666 = vmatprep.subr.bf16.mxu0 0
          %3667 = vmatpush1.bf16.msra.mxu0 0
          %3668 = vmatprep.subr.bf16.mxu0 0
          %3669 = vmatpush1.bf16.msra.mxu0 0
          %3670 = vmatprep.subr.bf16.mxu0 0
          %3671 = vmatpush1.bf16.msra.mxu0 0
          %3672 = vmatprep.subr.bf16.mxu0 0
          %3673 = vmatpush1.bf16.msra.mxu0 0
          %3674 = vmatprep.subr.bf16.mxu0 0
          %3675 = vmatpush1.bf16.msra.mxu0 0
          %3676 = vmatprep.subr.bf16.mxu0 0
          %3677 = vmatpush1.bf16.msra.mxu0 0
          %3678 = vmatprep.subr.bf16.mxu0 0
          %3679 = vmatpush1.bf16.msra.mxu0 0
          %3680 = vmatprep.subr.bf16.mxu0 0
          %3681 = vmatpush1.bf16.msra.mxu0 0
          %3682 = vmatprep.mubr.bf16.mxu0 0
          %3683 = vmatmul.mubr.bf16.gmra.mrb[0].mxu0 %v363
          %v3684 = vpop.f32.mrb[0].mxu0
          %v3685 = vadd.f32 %v3492, %v3684
          %v3686 = vpop.f32.mrb[0].mxu0
          %v3687 = vadd.f32 %v3494, %v3686
          %v3688 = vpop.f32.mrb[0].mxu0
          %v3689 = vadd.f32 %v3496, %v3688
          %v3690 = vpop.f32.mrb[0].mxu0
          %v3691 = vadd.f32 %v3498, %v3690
          %3692 = vmatprep.mubr.bf16.mxu0 0
          %3693 = vmatmul.mubr.bf16.gmra.mrb[0].mxu0 %v366
          %v3694 = vpop.f32.mrb[0].mxu0
          %v3695 = vadd.f32 %v3502, %v3694
          %v3696 = vpop.f32.mrb[0].mxu0
          %v3697 = vadd.f32 %v3504, %v3696
          %v3698 = vpop.f32.mrb[0].mxu0
          %v3699 = vadd.f32 %v3506, %v3698
          %v3700 = vpop.f32.mrb[0].mxu0
          %v3701 = vadd.f32 %v3508, %v3700
          %3702 = vmatprep.mubr.bf16.mxu0 0
          %3703 = vmatmul.mubr.bf16.gmra.mrb[0].mxu0 %v369
          %v3704 = vpop.f32.mrb[0].mxu0
          %v3705 = vadd.f32 %v3512, %v3704
          %v3706 = vpop.f32.mrb[0].mxu0
          %v3707 = vadd.f32 %v3514, %v3706
          %v3708 = vpop.f32.mrb[0].mxu0
          %v3709 = vadd.f32 %v3516, %v3708
          %v3710 = vpop.f32.mrb[0].mxu0
          %v3711 = vadd.f32 %v3518, %v3710
          %3712 = vmatprep.mubr.bf16.mxu0 0
          %3713 = vmatmul.mubr.bf16.gmra.mrb[0].mxu0 %v372
          %v3714 = vpop.f32.mrb[0].mxu0
          %v3715 = vadd.f32 %v3522, %v3714
          %v3716 = vpop.f32.mrb[0].mxu0
          %v3717 = vadd.f32 %v3524, %v3716
          %v3718 = vpop.f32.mrb[0].mxu0
          %v3719 = vadd.f32 %v3526, %v3718
          %v3720 = vpop.f32.mrb[0].mxu0
          %v3721 = vadd.f32 %v3528, %v3720
          %3722 = vmatprep.mubr.bf16.mxu0 0
          %3723 = vmatmul.mubr.bf16.gmra.mrb[0].mxu0 %v375
          %v3724 = vpop.f32.mrb[0].mxu0
          %v3725 = vadd.f32 %v3532, %v3724
          %v3726 = vpop.f32.mrb[0].mxu0
          %v3727 = vadd.f32 %v3534, %v3726
          %v3728 = vpop.f32.mrb[0].mxu0
          %v3729 = vadd.f32 %v3536, %v3728
          %v3730 = vpop.f32.mrb[0].mxu0
          %v3731 = vadd.f32 %v3538, %v3730
          %3732 = vmatprep.mubr.bf16.mxu0 0
          %3733 = vmatmul.mubr.bf16.gmra.mrb[0].mxu0 %v378
          %v3734 = vpop.f32.mrb[0].mxu0
          %v3735 = vadd.f32 %v3542, %v3734
          %v3736 = vpop.f32.mrb[0].mxu0
          %v3737 = vadd.f32 %v3544, %v3736
          %v3738 = vpop.f32.mrb[0].mxu0
          %v3739 = vadd.f32 %v3546, %v3738
          %v3740 = vpop.f32.mrb[0].mxu0
          %v3741 = vadd.f32 %v3548, %v3740
          %3742 = vmatprep.mubr.bf16.mxu0 0
          %3743 = vmatmul.mubr.bf16.gmra.mrb[0].mxu0 %v381
          %v3744 = vpop.f32.mrb[0].mxu0
          %v3745 = vadd.f32 %v3552, %v3744
          %v3746 = vpop.f32.mrb[0].mxu0
          %v3747 = vadd.f32 %v3554, %v3746
          %v3748 = vpop.f32.mrb[0].mxu0
          %v3749 = vadd.f32 %v3556, %v3748
          %v3750 = vpop.f32.mrb[0].mxu0
          %v3751 = vadd.f32 %v3558, %v3750
          %3752 = vmatprep.mubr.bf16.mxu0 0
          %3753 = vmatmul.mubr.bf16.gmra.mrb[0].mxu0 %v384
          %v3754 = vpop.f32.mrb[0].mxu0
          %v3755 = vadd.f32 %v3562, %v3754
          %v3756 = vpop.f32.mrb[0].mxu0
          %v3757 = vadd.f32 %v3564, %v3756
          %v3758 = vpop.f32.mrb[0].mxu0
          %v3759 = vadd.f32 %v3566, %v3758
          %v3760 = vpop.f32.mrb[0].mxu0
          %v3761 = vadd.f32 %v3568, %v3760
          %3762 = vmatprep.mubr.bf16.mxu0 0
          %3763 = vmatmul.mubr.bf16.gmra.mrb[0].mxu0 %v387
          %v3764 = vpop.f32.mrb[0].mxu0
          %v3765 = vadd.f32 %v3572, %v3764
          %v3766 = vpop.f32.mrb[0].mxu0
          %v3767 = vadd.f32 %v3574, %v3766
          %v3768 = vpop.f32.mrb[0].mxu0
          %v3769 = vadd.f32 %v3576, %v3768
          %v3770 = vpop.f32.mrb[0].mxu0
          %v3771 = vadd.f32 %v3578, %v3770
          %3772 = vmatprep.mubr.bf16.mxu0 0
          %3773 = vmatmul.mubr.bf16.gmra.mrb[0].mxu0 %v390
          %v3774 = vpop.f32.mrb[0].mxu0
          %v3775 = vadd.f32 %v3582, %v3774
          %v3776 = vpop.f32.mrb[0].mxu0
          %v3777 = vadd.f32 %v3584, %v3776
          %v3778 = vpop.f32.mrb[0].mxu0
          %v3779 = vadd.f32 %v3586, %v3778
          %v3780 = vpop.f32.mrb[0].mxu0
          %v3781 = vadd.f32 %v3588, %v3780
          %3782 = vmatprep.mubr.bf16.mxu0 0
          %3783 = vmatmul.mubr.bf16.gmra.mrb[0].mxu0 %v393
          %v3784 = vpop.f32.mrb[0].mxu0
          %v3785 = vadd.f32 %v3592, %v3784
          %v3786 = vpop.f32.mrb[0].mxu0
          %v3787 = vadd.f32 %v3594, %v3786
          %v3788 = vpop.f32.mrb[0].mxu0
          %v3789 = vadd.f32 %v3596, %v3788
          %v3790 = vpop.f32.mrb[0].mxu0
          %v3791 = vadd.f32 %v3598, %v3790
          %3792 = vmatprep.mubr.bf16.mxu0 0
          %3793 = vmatmul.mubr.bf16.gmra.mrb[0].mxu0 %v396
          %v3794 = vpop.f32.mrb[0].mxu0
          %v3795 = vadd.f32 %v3602, %v3794
          %v3796 = vpop.f32.mrb[0].mxu0
          %v3797 = vadd.f32 %v3604, %v3796
          %v3798 = vpop.f32.mrb[0].mxu0
          %v3799 = vadd.f32 %v3606, %v3798
          %v3800 = vpop.f32.mrb[0].mxu0
          %v3801 = vadd.f32 %v3608, %v3800
          %3802 = vmatprep.mubr.bf16.mxu0 0
          %3803 = vmatmul.mubr.bf16.gmra.mrb[0].mxu0 %v399
          %v3804 = vpop.f32.mrb[0].mxu0
          %v3805 = vadd.f32 %v3612, %v3804
          %v3806 = vpop.f32.mrb[0].mxu0
          %v3807 = vadd.f32 %v3614, %v3806
          %v3808 = vpop.f32.mrb[0].mxu0
          %v3809 = vadd.f32 %v3616, %v3808
          %v3810 = vpop.f32.mrb[0].mxu0
          %v3811 = vadd.f32 %v3618, %v3810
          %3812 = vmatprep.mubr.bf16.mxu0 0
          %3813 = vmatmul.mubr.bf16.gmra.mrb[0].mxu0 %v402
          %v3814 = vpop.f32.mrb[0].mxu0
          %v3815 = vadd.f32 %v3622, %v3814
          %v3816 = vpop.f32.mrb[0].mxu0
          %v3817 = vadd.f32 %v3624, %v3816
          %v3818 = vpop.f32.mrb[0].mxu0
          %v3819 = vadd.f32 %v3626, %v3818
          %v3820 = vpop.f32.mrb[0].mxu0
          %v3821 = vadd.f32 %v3628, %v3820
          %3822 = vmatprep.mubr.bf16.mxu0 0
          %3823 = vmatmul.mubr.bf16.gmra.mrb[0].mxu0 %v405
          %v3824 = vpop.f32.mrb[0].mxu0
          %v3825 = vadd.f32 %v3632, %v3824
          %v3826 = vpop.f32.mrb[0].mxu0
          %v3827 = vadd.f32 %v3634, %v3826
          %v3828 = vpop.f32.mrb[0].mxu0
          %v3829 = vadd.f32 %v3636, %v3828
          %v3830 = vpop.f32.mrb[0].mxu0
          %v3831 = vadd.f32 %v3638, %v3830
          %3832 = vmatprep.mubr.bf16.mxu0 0
          %3833 = vmatmul.mubr.bf16.gmra.mrb[0].mxu0 %v408
          %v3834 = vpop.f32.mrb[0].mxu0
          %v3835 = vadd.f32 %v3642, %v3834
          %v3836 = vpop.f32.mrb[0].mxu0
          %v3837 = vadd.f32 %v3644, %v3836
          %v3838 = vpop.f32.mrb[0].mxu0
          %v3839 = vadd.f32 %v3646, %v3838
          %v3840 = vpop.f32.mrb[0].mxu0
          %v3841 = vadd.f32 %v3648, %v3840
          %3842 = vdwg.mxu0
          %3843 = vmatprep.subr.bf16.mxu0 0
          %3844 = vmatpush1.bf16.msra.mxu0 %v3315
          %3845 = vmatprep.subr.bf16.mxu0 0
          %3846 = vmatpush1.bf16.msra.mxu0 %v3318
          %3847 = vmatprep.subr.bf16.mxu0 0
          %3848 = vmatpush1.bf16.msra.mxu0 %v3321
          %3849 = vmatprep.subr.bf16.mxu0 0
          %3850 = vmatpush1.bf16.msra.mxu0 %v3324
          %3851 = vmatprep.subr.bf16.mxu0 0
          %3852 = vmatpush1.bf16.msra.mxu0 %v3327
          %3853 = vmatprep.subr.bf16.mxu0 0
          %3854 = vmatpush1.bf16.msra.mxu0 %v3330
          %3855 = vmatprep.subr.bf16.mxu0 0
          %3856 = vmatpush1.bf16.msra.mxu0 %v3333
          %3857 = vmatprep.subr.bf16.mxu0 0
          %3858 = vmatpush1.bf16.msra.mxu0 %v3336
          %3859 = vmatprep.subr.bf16.mxu0 0
          %3860 = vmatpush1.bf16.msra.mxu0 %v3339
          %3861 = vmatprep.subr.bf16.mxu0 0
          %3862 = vmatpush1.bf16.msra.mxu0 %v3342
          %3863 = vmatprep.subr.bf16.mxu0 0
          %3864 = vmatpush1.bf16.msra.mxu0 %v3345
          %3865 = vmatprep.subr.bf16.mxu0 0
          %3866 = vmatpush1.bf16.msra.mxu0 %v3348
          %3867 = vmatprep.subr.bf16.mxu0 0
          %3868 = vmatpush1.bf16.msra.mxu0 %v3351
          %3869 = vmatprep.subr.bf16.mxu0 0
          %3870 = vmatpush1.bf16.msra.mxu0 %v3354
          %3871 = vmatprep.subr.bf16.mxu0 0
          %3872 = vmatpush1.bf16.msra.mxu0 %v3357
          %3873 = vmatprep.subr.bf16.mxu0 0
          %3874 = vmatpush1.bf16.msra.mxu0 %v3360
          %3875 = vmatprep.mubr.bf16.mxu0 %v362
          %3876 = vmatmul.mubr.bf16.gmra.mrb[0].mxu0 %v361
          %v3877 = vpop.f32.mrb[0].mxu0
          %v3878 = vadd.f32 0.0, %v3877
          %v3879 = vpop.f32.mrb[0].mxu0
          %v3880 = vpop.f32.mrb[0].mxu0
          %v3881 = vadd.f32 0.0, %v3880
          %v3882 = vpop.f32.mrb[0].mxu0
          %3883 = vmatprep.mubr.bf16.mxu0 %v365
          %3884 = vmatmul.mubr.bf16.gmra.mrb[0].mxu0 %v364
          %v3885 = vpop.f32.mrb[0].mxu0
          %v3886 = vadd.f32 0.0, %v3885
          %v3887 = vpop.f32.mrb[0].mxu0
          %v3888 = vpop.f32.mrb[0].mxu0
          %v3889 = vadd.f32 0.0, %v3888
          %v3890 = vpop.f32.mrb[0].mxu0
          %3891 = vmatprep.mubr.bf16.mxu0 %v368
          %3892 = vmatmul.mubr.bf16.gmra.mrb[0].mxu0 %v367
          %v3893 = vpop.f32.mrb[0].mxu0
          %v3894 = vadd.f32 0.0, %v3893
          %v3895 = vpop.f32.mrb[0].mxu0
          %v3896 = vpop.f32.mrb[0].mxu0
          %v3897 = vadd.f32 0.0, %v3896
          %v3898 = vpop.f32.mrb[0].mxu0
          %3899 = vmatprep.mubr.bf16.mxu0 %v371
          %3900 = vmatmul.mubr.bf16.gmra.mrb[0].mxu0 %v370
          %v3901 = vpop.f32.mrb[0].mxu0
          %v3902 = vadd.f32 0.0, %v3901
          %v3903 = vpop.f32.mrb[0].mxu0
          %v3904 = vpop.f32.mrb[0].mxu0
          %v3905 = vadd.f32 0.0, %v3904
          %v3906 = vpop.f32.mrb[0].mxu0
          %3907 = vmatprep.mubr.bf16.mxu0 %v374
          %3908 = vmatmul.mubr.bf16.gmra.mrb[0].mxu0 %v373
          %v3909 = vpop.f32.mrb[0].mxu0
          %v3910 = vadd.f32 0.0, %v3909
          %v3911 = vpop.f32.mrb[0].mxu0
          %v3912 = vpop.f32.mrb[0].mxu0
          %v3913 = vadd.f32 0.0, %v3912
          %v3914 = vpop.f32.mrb[0].mxu0
          %3915 = vmatprep.mubr.bf16.mxu0 %v377
          %3916 = vmatmul.mubr.bf16.gmra.mrb[0].mxu0 %v376
          %v3917 = vpop.f32.mrb[0].mxu0
          %v3918 = vadd.f32 0.0, %v3917
          %v3919 = vpop.f32.mrb[0].mxu0
          %v3920 = vpop.f32.mrb[0].mxu0
          %v3921 = vadd.f32 0.0, %v3920
          %v3922 = vpop.f32.mrb[0].mxu0
          %3923 = vmatprep.mubr.bf16.mxu0 %v380
          %3924 = vmatmul.mubr.bf16.gmra.mrb[0].mxu0 %v379
          %v3925 = vpop.f32.mrb[0].mxu0
          %v3926 = vadd.f32 0.0, %v3925
          %v3927 = vpop.f32.mrb[0].mxu0
          %v3928 = vpop.f32.mrb[0].mxu0
          %v3929 = vadd.f32 0.0, %v3928
          %v3930 = vpop.f32.mrb[0].mxu0
          %3931 = vmatprep.mubr.bf16.mxu0 %v383
          %3932 = vmatmul.mubr.bf16.gmra.mrb[0].mxu0 %v382
          %v3933 = vpop.f32.mrb[0].mxu0
          %v3934 = vadd.f32 0.0, %v3933
          %v3935 = vpop.f32.mrb[0].mxu0
          %v3936 = vpop.f32.mrb[0].mxu0
          %v3937 = vadd.f32 0.0, %v3936
          %v3938 = vpop.f32.mrb[0].mxu0
          %3939 = vmatprep.mubr.bf16.mxu0 %v386
          %3940 = vmatmul.mubr.bf16.gmra.mrb[0].mxu0 %v385
          %v3941 = vpop.f32.mrb[0].mxu0
          %v3942 = vadd.f32 0.0, %v3941
          %v3943 = vpop.f32.mrb[0].mxu0
          %v3944 = vpop.f32.mrb[0].mxu0
          %v3945 = vadd.f32 0.0, %v3944
          %v3946 = vpop.f32.mrb[0].mxu0
          %3947 = vmatprep.mubr.bf16.mxu0 %v389
          %3948 = vmatmul.mubr.bf16.gmra.mrb[0].mxu0 %v388
          %v3949 = vpop.f32.mrb[0].mxu0
          %v3950 = vadd.f32 0.0, %v3949
          %v3951 = vpop.f32.mrb[0].mxu0
          %v3952 = vpop.f32.mrb[0].mxu0
          %v3953 = vadd.f32 0.0, %v3952
          %v3954 = vpop.f32.mrb[0].mxu0
          %3955 = vmatprep.mubr.bf16.mxu0 %v392
          %3956 = vmatmul.mubr.bf16.gmra.mrb[0].mxu0 %v391
          %v3957 = vpop.f32.mrb[0].mxu0
          %v3958 = vadd.f32 0.0, %v3957
          %v3959 = vpop.f32.mrb[0].mxu0
          %v3960 = vpop.f32.mrb[0].mxu0
          %v3961 = vadd.f32 0.0, %v3960
          %v3962 = vpop.f32.mrb[0].mxu0
          %3963 = vmatprep.mubr.bf16.mxu0 %v395
          %3964 = vmatmul.mubr.bf16.gmra.mrb[0].mxu0 %v394
          %v3965 = vpop.f32.mrb[0].mxu0
          %v3966 = vadd.f32 0.0, %v3965
          %v3967 = vpop.f32.mrb[0].mxu0
          %v3968 = vpop.f32.mrb[0].mxu0
          %v3969 = vadd.f32 0.0, %v3968
          %v3970 = vpop.f32.mrb[0].mxu0
          %3971 = vmatprep.mubr.bf16.mxu0 %v398
          %3972 = vmatmul.mubr.bf16.gmra.mrb[0].mxu0 %v397
          %v3973 = vpop.f32.mrb[0].mxu0
          %v3974 = vadd.f32 0.0, %v3973
          %v3975 = vpop.f32.mrb[0].mxu0
          %v3976 = vpop.f32.mrb[0].mxu0
          %v3977 = vadd.f32 0.0, %v3976
          %v3978 = vpop.f32.mrb[0].mxu0
          %3979 = vmatprep.mubr.bf16.mxu0 %v401
          %3980 = vmatmul.mubr.bf16.gmra.mrb[0].mxu0 %v400
          %v3981 = vpop.f32.mrb[0].mxu0
          %v3982 = vadd.f32 0.0, %v3981
          %v3983 = vpop.f32.mrb[0].mxu0
          %v3984 = vpop.f32.mrb[0].mxu0
          %v3985 = vadd.f32 0.0, %v3984
          %v3986 = vpop.f32.mrb[0].mxu0
          %3987 = vmatprep.mubr.bf16.mxu0 %v404
          %3988 = vmatmul.mubr.bf16.gmra.mrb[0].mxu0 %v403
          %v3989 = vpop.f32.mrb[0].mxu0
          %v3990 = vadd.f32 0.0, %v3989
          %v3991 = vpop.f32.mrb[0].mxu0
          %v3992 = vpop.f32.mrb[0].mxu0
          %v3993 = vadd.f32 0.0, %v3992
          %v3994 = vpop.f32.mrb[0].mxu0
          %3995 = vmatprep.mubr.bf16.mxu0 %v407
          %3996 = vmatmul.mubr.bf16.gmra.mrb[0].mxu0 %v406
          %v3997 = vpop.f32.mrb[0].mxu0
          %v3998 = vadd.f32 0.0, %v3997
          %v3999 = vpop.f32.mrb[0].mxu0
          %v4000 = vpop.f32.mrb[0].mxu0
          %v4001 = vadd.f32 0.0, %v4000
          %v4002 = vpop.f32.mrb[0].mxu0
          %4003 = vdwg.mxu0
          %4004 = vmatprep.subr.bf16.mxu0 0
          %4005 = vmatpush1.bf16.msra.mxu0 %v3363
          %4006 = vmatprep.subr.bf16.mxu0 0
          %4007 = vmatpush1.bf16.msra.mxu0 %v3366
          %4008 = vmatprep.subr.bf16.mxu0 0
          %4009 = vmatpush1.bf16.msra.mxu0 %v3369
          %4010 = vmatprep.subr.bf16.mxu0 0
          %4011 = vmatpush1.bf16.msra.mxu0 %v3372
          %4012 = vmatprep.subr.bf16.mxu0 0
          %4013 = vmatpush1.bf16.msra.mxu0 %v3375
          %4014 = vmatprep.subr.bf16.mxu0 0
          %4015 = vmatpush1.bf16.msra.mxu0 %v3378
          %4016 = vmatprep.subr.bf16.mxu0 0
          %4017 = vmatpush1.bf16.msra.mxu0 %v3381
          %4018 = vmatprep.subr.bf16.mxu0 0
          %4019 = vmatpush1.bf16.msra.mxu0 %v3384
          %4020 = vmatprep.subr.bf16.mxu0 0
          %4021 = vmatpush1.bf16.msra.mxu0 0
          %4022 = vmatprep.subr.bf16.mxu0 0
          %4023 = vmatpush1.bf16.msra.mxu0 0
          %4024 = vmatprep.subr.bf16.mxu0 0
          %4025 = vmatpush1.bf16.msra.mxu0 0
          %4026 = vmatprep.subr.bf16.mxu0 0
          %4027 = vmatpush1.bf16.msra.mxu0 0
          %4028 = vmatprep.subr.bf16.mxu0 0
          %4029 = vmatpush1.bf16.msra.mxu0 0
          %4030 = vmatprep.subr.bf16.mxu0 0
          %4031 = vmatpush1.bf16.msra.mxu0 0
          %4032 = vmatprep.subr.bf16.mxu0 0
          %4033 = vmatpush1.bf16.msra.mxu0 0
          %4034 = vmatprep.subr.bf16.mxu0 0
          %4035 = vmatpush1.bf16.msra.mxu0 0
          %4036 = vmatprep.mubr.bf16.mxu0 0
          %4037 = vmatmul.mubr.bf16.gmra.mrb[0].mxu0 %v363
          %v4038 = vpop.f32.mrb[0].mxu0
          %v4039 = vadd.f32 %v3878, %v4038
          %v4040 = vpop.f32.mrb[0].mxu0
          %v4041 = vpop.f32.mrb[0].mxu0
          %v4042 = vadd.f32 %v3881, %v4041
          %v4043 = vpop.f32.mrb[0].mxu0
          %4044 = vmatprep.mubr.bf16.mxu0 0
          %4045 = vmatmul.mubr.bf16.gmra.mrb[0].mxu0 %v366
          %v4046 = vpop.f32.mrb[0].mxu0
          %v4047 = vadd.f32 %v3886, %v4046
          %v4048 = vpop.f32.mrb[0].mxu0
          %v4049 = vpop.f32.mrb[0].mxu0
          %v4050 = vadd.f32 %v3889, %v4049
          %v4051 = vpop.f32.mrb[0].mxu0
          %4052 = vmatprep.mubr.bf16.mxu0 0
          %4053 = vmatmul.mubr.bf16.gmra.mrb[0].mxu0 %v369
          %v4054 = vpop.f32.mrb[0].mxu0
          %v4055 = vadd.f32 %v3894, %v4054
          %v4056 = vpop.f32.mrb[0].mxu0
          %v4057 = vpop.f32.mrb[0].mxu0
          %v4058 = vadd.f32 %v3897, %v4057
          %v4059 = vpop.f32.mrb[0].mxu0
          %4060 = vmatprep.mubr.bf16.mxu0 0
          %4061 = vmatmul.mubr.bf16.gmra.mrb[0].mxu0 %v372
          %v4062 = vpop.f32.mrb[0].mxu0
          %v4063 = vadd.f32 %v3902, %v4062
          %v4064 = vpop.f32.mrb[0].mxu0
          %v4065 = vpop.f32.mrb[0].mxu0
          %v4066 = vadd.f32 %v3905, %v4065
          %v4067 = vpop.f32.mrb[0].mxu0
          %4068 = vmatprep.mubr.bf16.mxu0 0
          %4069 = vmatmul.mubr.bf16.gmra.mrb[0].mxu0 %v375
          %v4070 = vpop.f32.mrb[0].mxu0
          %v4071 = vadd.f32 %v3910, %v4070
          %v4072 = vpop.f32.mrb[0].mxu0
          %v4073 = vpop.f32.mrb[0].mxu0
          %v4074 = vadd.f32 %v3913, %v4073
          %v4075 = vpop.f32.mrb[0].mxu0
          %4076 = vmatprep.mubr.bf16.mxu0 0
          %4077 = vmatmul.mubr.bf16.gmra.mrb[0].mxu0 %v378
          %v4078 = vpop.f32.mrb[0].mxu0
          %v4079 = vadd.f32 %v3918, %v4078
          %v4080 = vpop.f32.mrb[0].mxu0
          %v4081 = vpop.f32.mrb[0].mxu0
          %v4082 = vadd.f32 %v3921, %v4081
          %v4083 = vpop.f32.mrb[0].mxu0
          %4084 = vmatprep.mubr.bf16.mxu0 0
          %4085 = vmatmul.mubr.bf16.gmra.mrb[0].mxu0 %v381
          %v4086 = vpop.f32.mrb[0].mxu0
          %v4087 = vadd.f32 %v3926, %v4086
          %v4088 = vpop.f32.mrb[0].mxu0
          %v4089 = vpop.f32.mrb[0].mxu0
          %v4090 = vadd.f32 %v3929, %v4089
          %v4091 = vpop.f32.mrb[0].mxu0
          %4092 = vmatprep.mubr.bf16.mxu0 0
          %4093 = vmatmul.mubr.bf16.gmra.mrb[0].mxu0 %v384
          %v4094 = vpop.f32.mrb[0].mxu0
          %v4095 = vadd.f32 %v3934, %v4094
          %v4096 = vpop.f32.mrb[0].mxu0
          %v4097 = vpop.f32.mrb[0].mxu0
          %v4098 = vadd.f32 %v3937, %v4097
          %v4099 = vpop.f32.mrb[0].mxu0
          %4100 = vmatprep.mubr.bf16.mxu0 0
          %4101 = vmatmul.mubr.bf16.gmra.mrb[0].mxu0 %v387
          %v4102 = vpop.f32.mrb[0].mxu0
          %v4103 = vadd.f32 %v3942, %v4102
          %v4104 = vpop.f32.mrb[0].mxu0
          %v4105 = vpop.f32.mrb[0].mxu0
          %v4106 = vadd.f32 %v3945, %v4105
          %v4107 = vpop.f32.mrb[0].mxu0
          %4108 = vmatprep.mubr.bf16.mxu0 0
          %4109 = vmatmul.mubr.bf16.gmra.mrb[0].mxu0 %v390
          %v4110 = vpop.f32.mrb[0].mxu0
          %v4111 = vadd.f32 %v3950, %v4110
          %v4112 = vpop.f32.mrb[0].mxu0
          %v4113 = vpop.f32.mrb[0].mxu0
          %v4114 = vadd.f32 %v3953, %v4113
          %v4115 = vpop.f32.mrb[0].mxu0
          %4116 = vmatprep.mubr.bf16.mxu0 0
          %4117 = vmatmul.mubr.bf16.gmra.mrb[0].mxu0 %v393
          %v4118 = vpop.f32.mrb[0].mxu0
          %v4119 = vadd.f32 %v3958, %v4118
          %v4120 = vpop.f32.mrb[0].mxu0
          %v4121 = vpop.f32.mrb[0].mxu0
          %v4122 = vadd.f32 %v3961, %v4121
          %v4123 = vpop.f32.mrb[0].mxu0
          %4124 = vmatprep.mubr.bf16.mxu0 0
          %4125 = vmatmul.mubr.bf16.gmra.mrb[0].mxu0 %v396
          %v4126 = vpop.f32.mrb[0].mxu0
          %v4127 = vadd.f32 %v3966, %v4126
          %v4128 = vpop.f32.mrb[0].mxu0
          %v4129 = vpop.f32.mrb[0].mxu0
          %v4130 = vadd.f32 %v3969, %v4129
          %v4131 = vpop.f32.mrb[0].mxu0
          %4132 = vmatprep.mubr.bf16.mxu0 0
          %4133 = vmatmul.mubr.bf16.gmra.mrb[0].mxu0 %v399
          %v4134 = vpop.f32.mrb[0].mxu0
          %v4135 = vadd.f32 %v3974, %v4134
          %v4136 = vpop.f32.mrb[0].mxu0
          %v4137 = vpop.f32.mrb[0].mxu0
          %v4138 = vadd.f32 %v3977, %v4137
          %v4139 = vpop.f32.mrb[0].mxu0
          %4140 = vmatprep.mubr.bf16.mxu0 0
          %4141 = vmatmul.mubr.bf16.gmra.mrb[0].mxu0 %v402
          %v4142 = vpop.f32.mrb[0].mxu0
          %v4143 = vadd.f32 %v3982, %v4142
          %v4144 = vpop.f32.mrb[0].mxu0
          %v4145 = vpop.f32.mrb[0].mxu0
          %v4146 = vadd.f32 %v3985, %v4145
          %v4147 = vpop.f32.mrb[0].mxu0
          %4148 = vmatprep.mubr.bf16.mxu0 0
          %4149 = vmatmul.mubr.bf16.gmra.mrb[0].mxu0 %v405
          %v4150 = vpop.f32.mrb[0].mxu0
          %v4151 = vadd.f32 %v3990, %v4150
          %v4152 = vpop.f32.mrb[0].mxu0
          %v4153 = vpop.f32.mrb[0].mxu0
          %v4154 = vadd.f32 %v3993, %v4153
          %v4155 = vpop.f32.mrb[0].mxu0
          %4156 = vmatprep.mubr.bf16.mxu0 0
          %4157 = vmatmul.mubr.bf16.gmra.mrb[0].mxu0 %v408
          %v4158 = vpop.f32.mrb[0].mxu0
          %v4159 = vadd.f32 %v3998, %v4158
          %v4160 = vpop.f32.mrb[0].mxu0
          %v4161 = vpop.f32.mrb[0].mxu0
          %v4162 = vadd.f32 %v4001, %v4161
          %v4163 = vpop.f32.mrb[0].mxu0
          %4164 = vdwg.mxu0
          %v4165 = vpack.c.bf16 %v3689, %v3685
          %v4166 = vpack.c.bf16 %v3691, %v3687
          %v4167 = vpack.c.bf16 %v4042, %v4039
          %v4168 = vpack.c.bf16 %v3699, %v3695
          %v4169 = vpack.c.bf16 %v3701, %v3697
          %v4170 = vpack.c.bf16 %v4050, %v4047
          %v4171 = vpack.c.bf16 %v3709, %v3705
          %v4172 = vpack.c.bf16 %v3711, %v3707
          %v4173 = vpack.c.bf16 %v4058, %v4055
          %v4174 = vpack.c.bf16 %v3719, %v3715
          %v4175 = vpack.c.bf16 %v3721, %v3717
          %v4176 = vpack.c.bf16 %v4066, %v4063
          %v4177 = vpack.c.bf16 %v3729, %v3725
          %v4178 = vpack.c.bf16 %v3731, %v3727
          %v4179 = vpack.c.bf16 %v4074, %v4071
          %v4180 = vpack.c.bf16 %v3739, %v3735
          %v4181 = vpack.c.bf16 %v3741, %v3737
          %v4182 = vpack.c.bf16 %v4082, %v4079
          %v4183 = vpack.c.bf16 %v3749, %v3745
          %v4184 = vpack.c.bf16 %v3751, %v3747
          %v4185 = vpack.c.bf16 %v4090, %v4087
          %v4186 = vpack.c.bf16 %v3759, %v3755
          %v4187 = vpack.c.bf16 %v3761, %v3757
          %v4188 = vpack.c.bf16 %v4098, %v4095
          %v4189 = vpack.c.bf16 %v3769, %v3765
          %v4190 = vpack.c.bf16 %v3771, %v3767
          %v4191 = vpack.c.bf16 %v4106, %v4103
          %v4192 = vpack.c.bf16 %v3779, %v3775
          %v4193 = vpack.c.bf16 %v3781, %v3777
          %v4194 = vpack.c.bf16 %v4114, %v4111
          %v4195 = vpack.c.bf16 %v3789, %v3785
          %v4196 = vpack.c.bf16 %v3791, %v3787
          %v4197 = vpack.c.bf16 %v4122, %v4119
          %v4198 = vpack.c.bf16 %v3799, %v3795
          %v4199 = vpack.c.bf16 %v3801, %v3797
          %v4200 = vpack.c.bf16 %v4130, %v4127
          %v4201 = vpack.c.bf16 %v3809, %v3805
          %v4202 = vpack.c.bf16 %v3811, %v3807
          %v4203 = vpack.c.bf16 %v4138, %v4135
          %v4204 = vpack.c.bf16 %v3819, %v3815
          %v4205 = vpack.c.bf16 %v3821, %v3817
          %v4206 = vpack.c.bf16 %v4146, %v4143
          %v4207 = vpack.c.bf16 %v3829, %v3825
          %v4208 = vpack.c.bf16 %v3831, %v3827
          %v4209 = vpack.c.bf16 %v4154, %v4151
          %v4210 = vpack.c.bf16 %v3839, %v3835
          %v4211 = vpack.c.bf16 %v3841, %v3837
          %v4212 = vpack.c.bf16 %v4162, %v4159
          %4213 = vst [vmem:[#allocation2 + $0x30] sm:$0xff] %v4165
          %4214 = vst [vmem:[#allocation2 + $0x38] sm:$0xff] %v4166
          %4215 = vst [vmem:[#allocation2 + $0x40] sm:$0xff] %v4167
          %4216 = vst [vmem:[#allocation2 + $0x78] sm:$0xff] %v4168
          %4217 = vst [vmem:[#allocation2 + $0x80] sm:$0xff] %v4169
          %4218 = vst [vmem:[#allocation2 + $0x88] sm:$0xff] %v4170
          %4219 = vst [vmem:[#allocation2 + $0xc0] sm:$0xff] %v4171
          %4220 = vst [vmem:[#allocation2 + $0xc8] sm:$0xff] %v4172
          %4221 = vst [vmem:[#allocation2 + $0xd0] sm:$0xff] %v4173
          %4222 = vst [vmem:[#allocation2 + $0x108] sm:$0xff] %v4174
          %4223 = vst [vmem:[#allocation2 + $0x110] sm:$0xff] %v4175
          %4224 = vst [vmem:[#allocation2 + $0x118] sm:$0xff] %v4176
          %4225 = vst [vmem:[#allocation2 + $0x150] sm:$0xff] %v4177
          %4226 = vst [vmem:[#allocation2 + $0x158] sm:$0xff] %v4178
          %4227 = vst [vmem:[#allocation2 + $0x160] sm:$0xff] %v4179
          %4228 = vst [vmem:[#allocation2 + $0x198] sm:$0xff] %v4180
          %4229 = vst [vmem:[#allocation2 + $0x1a0] sm:$0xff] %v4181
          %4230 = vst [vmem:[#allocation2 + $0x1a8] sm:$0xff] %v4182
          %4231 = vst [vmem:[#allocation2 + $0x1e0] sm:$0xff] %v4183
          %4232 = vst [vmem:[#allocation2 + $0x1e8] sm:$0xff] %v4184
          %4233 = vst [vmem:[#allocation2 + $0x1f0] sm:$0xff] %v4185
          %4234 = vst [vmem:[#allocation2 + $0x228] sm:$0xff] %v4186
          %4235 = vst [vmem:[#allocation2 + $0x230] sm:$0xff] %v4187
          %4236 = vst [vmem:[#allocation2 + $0x238] sm:$0xff] %v4188
          %4237 = vst [vmem:[#allocation2 + $0x270] sm:$0xff] %v4189
          %4238 = vst [vmem:[#allocation2 + $0x278] sm:$0xff] %v4190
          %4239 = vst [vmem:[#allocation2 + $0x280] sm:$0xff] %v4191
          %4240 = vst [vmem:[#allocation2 + $0x2b8] sm:$0xff] %v4192
          %4241 = vst [vmem:[#allocation2 + $0x2c0] sm:$0xff] %v4193
          %4242 = vst [vmem:[#allocation2 + $0x2c8] sm:$0xff] %v4194
          %4243 = vst [vmem:[#allocation2 + $0x300] sm:$0xff] %v4195
          %4244 = vst [vmem:[#allocation2 + $0x308] sm:$0xff] %v4196
          %4245 = vst [vmem:[#allocation2 + $0x310] sm:$0xff] %v4197
          %4246 = vst [vmem:[#allocation2 + $0x348] sm:$0xff] %v4198
          %4247 = vst [vmem:[#allocation2 + $0x350] sm:$0xff] %v4199
          %4248 = vst [vmem:[#allocation2 + $0x358] sm:$0xff] %v4200
          %4249 = vst [vmem:[#allocation2 + $0x390] sm:$0xff] %v4201
          %4250 = vst [vmem:[#allocation2 + $0x398] sm:$0xff] %v4202
          %4251 = vst [vmem:[#allocation2 + $0x3a0] sm:$0xff] %v4203
          %4252 = vst [vmem:[#allocation2 + $0x3d8] sm:$0xff] %v4204
          %4253 = vst [vmem:[#allocation2 + $0x3e0] sm:$0xff] %v4205
          %4254 = vst [vmem:[#allocation2 + $0x3e8] sm:$0xff] %v4206
          %4255 = vst [vmem:[#allocation2 + $0x420] sm:$0xff] %v4207
          %4256 = vst [vmem:[#allocation2 + $0x428] sm:$0xff] %v4208
          %4257 = vst [vmem:[#allocation2 + $0x430] sm:$0xff] %v4209
          %4258 = vst [vmem:[#allocation2 + $0x468] sm:$0xff] %v4210
          %4259 = vst [vmem:[#allocation2 + $0x470] sm:$0xff] %v4211
          %4260 = vst [vmem:[#allocation2 + $0x478] sm:$0xff] %v4212
        $region52: #{tpu_custom_call.1} parent=35 // pred_fallthru
          _
        %s4261 = smul.u32 %s27, 128
        %v4262 = vlaneseq
        %v4263 = vshrl.u32 %v4262, 7
        %v4264 = vadd.s32 %v4263, 8
        %v4265 = vadd.s32 %v4263, 16
        %v4266 = vadd.s32 %v4263, 24
        %v4267 = vadd.s32 %v4263, 32
        %v4268 = vadd.s32 %v4263, 40
        %v4269 = vadd.s32 %v4263, 48
        %v4270 = vadd.s32 %v4263, 56
        %v4271 = vadd.s32 %v4263, 64
        %v4272 = vadd.s32 %v4263, 72
        %v4273 = vadd.s32 %v4263, 80
        %v4274 = vadd.s32 %v4263, 88
        %v4275 = vadd.s32 %v4263, 96
        %v4276 = vadd.s32 %v4263, 104
        %v4277 = vadd.s32 %v4263, 112
        %v4278 = vadd.s32 %v4263, 120
        %v4279 = vstv %s4261
        %v4280 = vadd.s32 %v4263, %v4279
        %v4281 = vadd.s32 %v4264, %v4279
        %v4282 = vadd.s32 %v4265, %v4279
        %v4283 = vadd.s32 %v4266, %v4279
        %v4284 = vadd.s32 %v4267, %v4279
        %v4285 = vadd.s32 %v4268, %v4279
        %v4286 = vadd.s32 %v4269, %v4279
        %v4287 = vadd.s32 %v4270, %v4279
        %v4288 = vadd.s32 %v4271, %v4279
        %v4289 = vadd.s32 %v4272, %v4279
        %v4290 = vadd.s32 %v4273, %v4279
        %v4291 = vadd.s32 %v4274, %v4279
        %v4292 = vadd.s32 %v4275, %v4279
        %v4293 = vadd.s32 %v4276, %v4279
        %v4294 = vadd.s32 %v4277, %v4279
        %v4295 = vadd.s32 %v4278, %v4279
        %v4296 = vlaneseq
        %v4297 = vand.u32 %v4296, 127
        %v4298 = vadd.s32 %v4297, 128
        %vm4299 = vcmp.le.s32.totalorder %v4297, %v4280
        %vm4300 = vcmp.le.s32.totalorder %v4298, %v4280
        %vm4301 = vcmp.le.s32.totalorder %v4297, %v4281
        %vm4302 = vcmp.le.s32.totalorder %v4298, %v4281
        %vm4303 = vcmp.le.s32.totalorder %v4297, %v4282
        %vm4304 = vcmp.le.s32.totalorder %v4298, %v4282
        %vm4305 = vcmp.le.s32.totalorder %v4297, %v4283
        %vm4306 = vcmp.le.s32.totalorder %v4298, %v4283
        %vm4307 = vcmp.le.s32.totalorder %v4297, %v4284
        %vm4308 = vcmp.le.s32.totalorder %v4298, %v4284
        %vm4309 = vcmp.le.s32.totalorder %v4297, %v4285
        %vm4310 = vcmp.le.s32.totalorder %v4298, %v4285
        %vm4311 = vcmp.le.s32.totalorder %v4297, %v4286
        %vm4312 = vcmp.le.s32.totalorder %v4298, %v4286
        %vm4313 = vcmp.le.s32.totalorder %v4297, %v4287
        %vm4314 = vcmp.le.s32.totalorder %v4298, %v4287
        %vm4315 = vcmp.le.s32.totalorder %v4297, %v4288
        %vm4316 = vcmp.le.s32.totalorder %v4298, %v4288
        %vm4317 = vcmp.le.s32.totalorder %v4297, %v4289
        %vm4318 = vcmp.le.s32.totalorder %v4298, %v4289
        %vm4319 = vcmp.le.s32.totalorder %v4297, %v4290
        %vm4320 = vcmp.le.s32.totalorder %v4298, %v4290
        %vm4321 = vcmp.le.s32.totalorder %v4297, %v4291
        %vm4322 = vcmp.le.s32.totalorder %v4298, %v4291
        %vm4323 = vcmp.le.s32.totalorder %v4297, %v4292
        %vm4324 = vcmp.le.s32.totalorder %v4298, %v4292
        %vm4325 = vcmp.le.s32.totalorder %v4297, %v4293
        %vm4326 = vcmp.le.s32.totalorder %v4298, %v4293
        %vm4327 = vcmp.le.s32.totalorder %v4297, %v4294
        %vm4328 = vcmp.le.s32.totalorder %v4298, %v4294
        %vm4329 = vcmp.le.s32.totalorder %v4297, %v4295
        %vm4330 = vcmp.le.s32.totalorder %v4298, %v4295
        %v4331 = vsel %vm4299, 0.0, -1e+30
        %v4332 = vsel %vm4300, 0.0, -1e+30
        %v4333 = vsel %vm4301, 0.0, -1e+30
        %v4334 = vsel %vm4302, 0.0, -1e+30
        %v4335 = vsel %vm4303, 0.0, -1e+30
        %v4336 = vsel %vm4304, 0.0, -1e+30
        %v4337 = vsel %vm4305, 0.0, -1e+30
        %v4338 = vsel %vm4306, 0.0, -1e+30
        %v4339 = vsel %vm4307, 0.0, -1e+30
        %v4340 = vsel %vm4308, 0.0, -1e+30
        %v4341 = vsel %vm4309, 0.0, -1e+30
        %v4342 = vsel %vm4310, 0.0, -1e+30
        %v4343 = vsel %vm4311, 0.0, -1e+30
        %v4344 = vsel %vm4312, 0.0, -1e+30
        %v4345 = vsel %vm4313, 0.0, -1e+30
        %v4346 = vsel %vm4314, 0.0, -1e+30
        %v4347 = vsel %vm4315, 0.0, -1e+30
        %v4348 = vsel %vm4316, 0.0, -1e+30
        %v4349 = vsel %vm4317, 0.0, -1e+30
        %v4350 = vsel %vm4318, 0.0, -1e+30
        %v4351 = vsel %vm4319, 0.0, -1e+30
        %v4352 = vsel %vm4320, 0.0, -1e+30
        %v4353 = vsel %vm4321, 0.0, -1e+30
        %v4354 = vsel %vm4322, 0.0, -1e+30
        %v4355 = vsel %vm4323, 0.0, -1e+30
        %v4356 = vsel %vm4324, 0.0, -1e+30
        %v4357 = vsel %vm4325, 0.0, -1e+30
        %v4358 = vsel %vm4326, 0.0, -1e+30
        %v4359 = vsel %vm4327, 0.0, -1e+30
        %v4360 = vsel %vm4328, 0.0, -1e+30
        %v4361 = vsel %vm4329, 0.0, -1e+30
        %v4362 = vsel %vm4330, 0.0, -1e+30
        %s4363 = sshra.s32 %s4261, 4
        %s4364 = sand.u32 %s4261, 15
        %s4365 = smul.u32 %s4363, 9
        %s4366 = smul.addr %s4365, 8
        %s4367 = scalar_lea.vmem [#allocation2], %s4366
        %v4368 = vld [vmem:[%s4367] sm:$0xff]
        %v4369 = vld [vmem:[%s4367 + $0x48] sm:$0xff]
        %v4370 = vld [vmem:[%s4367 + $0x90] sm:$0xff]
        %v4371 = vld [vmem:[%s4367 + $0xd8] sm:$0xff]
        %v4372 = vld [vmem:[%s4367 + $0x120] sm:$0xff]
        %v4373 = vld [vmem:[%s4367 + $0x168] sm:$0xff]
        %v4374 = vld [vmem:[%s4367 + $0x1b0] sm:$0xff]
        %v4375 = vld [vmem:[%s4367 + $0x1f8] sm:$0xff]
        %v4376 = vld [vmem:[#allocation2 + $0x18] sm:$0xff]
        %v4377 = vld [vmem:[#allocation2 + $0x60] sm:$0xff]
        %v4378 = vld [vmem:[#allocation2 + $0xa8] sm:$0xff]
        %v4379 = vld [vmem:[#allocation2 + $0xf0] sm:$0xff]
        %v4380 = vld [vmem:[#allocation2 + $0x138] sm:$0xff]
        %v4381 = vld [vmem:[#allocation2 + $0x180] sm:$0xff]
        %v4382 = vld [vmem:[#allocation2 + $0x1c8] sm:$0xff]
        %v4383 = vld [vmem:[#allocation2 + $0x210] sm:$0xff]
        %v4384 = vld [vmem:[#allocation2 + $0x258] sm:$0xff]
        %v4385 = vld [vmem:[#allocation2 + $0x2a0] sm:$0xff]
        %v4386 = vld [vmem:[#allocation2 + $0x2e8] sm:$0xff]
        %v4387 = vld [vmem:[#allocation2 + $0x330] sm:$0xff]
        %v4388 = vld [vmem:[#allocation2 + $0x378] sm:$0xff]
        %v4389 = vld [vmem:[#allocation2 + $0x3c0] sm:$0xff]
        %v4390 = vld [vmem:[#allocation2 + $0x408] sm:$0xff]
        %v4391 = vld [vmem:[#allocation2 + $0x450] sm:$0xff]
        %v4392 = vld [vmem:[#allocation2 + $0x30] sm:$0xff]
        %v4393 = vld [vmem:[#allocation2 + $0x78] sm:$0xff]
        %v4394 = vld [vmem:[#allocation2 + $0xc0] sm:$0xff]
        %v4395 = vld [vmem:[#allocation2 + $0x108] sm:$0xff]
        %v4396 = vld [vmem:[#allocation2 + $0x150] sm:$0xff]
        %v4397 = vld [vmem:[#allocation2 + $0x198] sm:$0xff]
        %v4398 = vld [vmem:[#allocation2 + $0x1e0] sm:$0xff]
        %v4399 = vld [vmem:[#allocation2 + $0x228] sm:$0xff]
        %v4400 = vld [vmem:[#allocation2 + $0x270] sm:$0xff]
        %v4401 = vld [vmem:[#allocation2 + $0x2b8] sm:$0xff]
        %v4402 = vld [vmem:[#allocation2 + $0x300] sm:$0xff]
        %v4403 = vld [vmem:[#allocation2 + $0x348] sm:$0xff]
        %v4404 = vld [vmem:[#allocation2 + $0x390] sm:$0xff]
        %v4405 = vld [vmem:[#allocation2 + $0x3d8] sm:$0xff]
        %v4406 = vld [vmem:[#allocation2 + $0x420] sm:$0xff]
        %v4407 = vld [vmem:[#allocation2 + $0x468] sm:$0xff]
        %vm4408 = vcmask 523264
        %v4410 = vsel %vm4408, %v4368, 0
        %v4413 = vsel %vm4408, %v4369, 0
        %v4416 = vsel %vm4408, %v4370, 0
        %v4419 = vsel %vm4408, %v4371, 0
        %v4422 = vsel %vm4408, %v4372, 0
        %v4425 = vsel %vm4408, %v4373, 0
        %v4428 = vsel %vm4408, %v4374, 0
        %v4431 = vsel %vm4408, %v4375, 0
        %v4434 = vsel %vm4408, %v4376, 0
        %v4437 = vsel %vm4408, %v4377, 0
        %v4440 = vsel %vm4408, %v4378, 0
        %v4443 = vsel %vm4408, %v4379, 0
        %v4446 = vsel %vm4408, %v4380, 0
        %v4449 = vsel %vm4408, %v4381, 0
        %v4452 = vsel %vm4408, %v4382, 0
        %v4455 = vsel %vm4408, %v4383, 0
        %v4458 = vsel %vm4408, %v4384, 0
        %v4461 = vsel %vm4408, %v4385, 0
        %v4464 = vsel %vm4408, %v4386, 0
        %v4467 = vsel %vm4408, %v4387, 0
        %v4470 = vsel %vm4408, %v4388, 0
        %v4473 = vsel %vm4408, %v4389, 0
        %v4476 = vsel %vm4408, %v4390, 0
        %v4479 = vsel %vm4408, %v4391, 0
        %4481 = vmatprep.subr.bf16.mxu0 0
        %4482 = vmatpush1.bf16.xpose.msra.mxu0 %v4434
        %4483 = vmatprep.subr.bf16.mxu0 0
        %4484 = vmatpush1.bf16.xpose.msra.mxu0 %v4437
        %4485 = vmatprep.subr.bf16.mxu0 0
        %4486 = vmatpush1.bf16.xpose.msra.mxu0 %v4440
        %4487 = vmatprep.subr.bf16.mxu0 0
        %4488 = vmatpush1.bf16.xpose.msra.mxu0 %v4443
        %4489 = vmatprep.subr.bf16.mxu0 0
        %4490 = vmatpush1.bf16.xpose.msra.mxu0 %v4446
        %4491 = vmatprep.subr.bf16.mxu0 0
        %4492 = vmatpush1.bf16.xpose.msra.mxu0 %v4449
        %4493 = vmatprep.subr.bf16.mxu0 0
        %4494 = vmatpush1.bf16.xpose.msra.mxu0 %v4452
        %4495 = vmatprep.subr.bf16.mxu0 0
        %4496 = vmatpush1.bf16.xpose.msra.mxu0 %v4455
        %4497 = vmatprep.subr.bf16.mxu0 0
        %4498 = vmatpush1.bf16.xpose.msra.mxu0 %v4458
        %4499 = vmatprep.subr.bf16.mxu0 0
        %4500 = vmatpush1.bf16.xpose.msra.mxu0 %v4461
        %4501 = vmatprep.subr.bf16.mxu0 0
        %4502 = vmatpush1.bf16.xpose.msra.mxu0 %v4464
        %4503 = vmatprep.subr.bf16.mxu0 0
        %4504 = vmatpush1.bf16.xpose.msra.mxu0 %v4467
        %4505 = vmatprep.subr.bf16.mxu0 0
        %4506 = vmatpush1.bf16.xpose.msra.mxu0 %v4470
        %4507 = vmatprep.subr.bf16.mxu0 0
        %4508 = vmatpush1.bf16.xpose.msra.mxu0 %v4473
        %4509 = vmatprep.subr.bf16.mxu0 0
        %4510 = vmatpush1.bf16.xpose.msra.mxu0 %v4476
        %4511 = vmatprep.subr.bf16.mxu0 0
        %4512 = vmatpush1.bf16.xpose.msra.mxu0 %v4479
        %4513 = vmatprep.mubr.bf16.mxu0 0
        %4514 = vmatmul.mubr.bf16.gmra.mrb[0].mxu0 %v4410
        %v4515 = vpop.f32.mrb[0].mxu0
        %v4516 = vadd.f32 %v4331, %v4515
        %v4517 = vpop.f32.mrb[0].mxu0
        %v4518 = vadd.f32 %v4332, %v4517
        %v4519 = vpop.f32.mrb[0].mxu0
        %v4520 = vadd.f32 %v4333, %v4519
        %v4521 = vpop.f32.mrb[0].mxu0
        %v4522 = vadd.f32 %v4334, %v4521
        %4523 = vmatprep.mubr.bf16.mxu0 0
        %4524 = vmatmul.mubr.bf16.gmra.mrb[0].mxu0 %v4413
        %v4525 = vpop.f32.mrb[0].mxu0
        %v4526 = vadd.f32 %v4335, %v4525
        %v4527 = vpop.f32.mrb[0].mxu0
        %v4528 = vadd.f32 %v4336, %v4527
        %v4529 = vpop.f32.mrb[0].mxu0
        %v4530 = vadd.f32 %v4337, %v4529
        %v4531 = vpop.f32.mrb[0].mxu0
        %v4532 = vadd.f32 %v4338, %v4531
        %4533 = vmatprep.mubr.bf16.mxu0 0
        %4534 = vmatmul.mubr.bf16.gmra.mrb[0].mxu0 %v4416
        %v4535 = vpop.f32.mrb[0].mxu0
        %v4536 = vadd.f32 %v4339, %v4535
        %v4537 = vpop.f32.mrb[0].mxu0
        %v4538 = vadd.f32 %v4340, %v4537
        %v4539 = vpop.f32.mrb[0].mxu0
        %v4540 = vadd.f32 %v4341, %v4539
        %v4541 = vpop.f32.mrb[0].mxu0
        %v4542 = vadd.f32 %v4342, %v4541
        %4543 = vmatprep.mubr.bf16.mxu0 0
        %4544 = vmatmul.mubr.bf16.gmra.mrb[0].mxu0 %v4419
        %v4545 = vpop.f32.mrb[0].mxu0
        %v4546 = vadd.f32 %v4343, %v4545
        %v4547 = vpop.f32.mrb[0].mxu0
        %v4548 = vadd.f32 %v4344, %v4547
        %v4549 = vpop.f32.mrb[0].mxu0
        %v4550 = vadd.f32 %v4345, %v4549
        %v4551 = vpop.f32.mrb[0].mxu0
        %v4552 = vadd.f32 %v4346, %v4551
        %4553 = vmatprep.mubr.bf16.mxu0 0
        %4554 = vmatmul.mubr.bf16.gmra.mrb[0].mxu0 %v4422
        %v4555 = vpop.f32.mrb[0].mxu0
        %v4556 = vadd.f32 %v4347, %v4555
        %v4557 = vpop.f32.mrb[0].mxu0
        %v4558 = vadd.f32 %v4348, %v4557
        %v4559 = vpop.f32.mrb[0].mxu0
        %v4560 = vadd.f32 %v4349, %v4559
        %v4561 = vpop.f32.mrb[0].mxu0
        %v4562 = vadd.f32 %v4350, %v4561
        %4563 = vmatprep.mubr.bf16.mxu0 0
        %4564 = vmatmul.mubr.bf16.gmra.mrb[0].mxu0 %v4425
        %v4565 = vpop.f32.mrb[0].mxu0
        %v4566 = vadd.f32 %v4351, %v4565
        %v4567 = vpop.f32.mrb[0].mxu0
        %v4568 = vadd.f32 %v4352, %v4567
        %v4569 = vpop.f32.mrb[0].mxu0
        %v4570 = vadd.f32 %v4353, %v4569
        %v4571 = vpop.f32.mrb[0].mxu0
        %v4572 = vadd.f32 %v4354, %v4571
        %4573 = vmatprep.mubr.bf16.mxu0 0
        %4574 = vmatmul.mubr.bf16.gmra.mrb[0].mxu0 %v4428
        %v4575 = vpop.f32.mrb[0].mxu0
        %v4576 = vadd.f32 %v4355, %v4575
        %v4577 = vpop.f32.mrb[0].mxu0
        %v4578 = vadd.f32 %v4356, %v4577
        %v4579 = vpop.f32.mrb[0].mxu0
        %v4580 = vadd.f32 %v4357, %v4579
        %v4581 = vpop.f32.mrb[0].mxu0
        %v4582 = vadd.f32 %v4358, %v4581
        %4583 = vmatprep.mubr.bf16.mxu0 0
        %4584 = vmatmul.mubr.bf16.gmra.mrb[0].mxu0 %v4431
        %v4585 = vpop.f32.mrb[0].mxu0
        %v4586 = vadd.f32 %v4359, %v4585
        %v4587 = vpop.f32.mrb[0].mxu0
        %v4588 = vadd.f32 %v4360, %v4587
        %v4589 = vpop.f32.mrb[0].mxu0
        %v4590 = vadd.f32 %v4361, %v4589
        %v4591 = vpop.f32.mrb[0].mxu0
        %v4592 = vadd.f32 %v4362, %v4591
        %4593 = vdwg.mxu0
        %v4594 = vmax.f32 %v4516, %v4518
        %4595 = vmax.xlane.f32.xlu0 %v4594
        %v4596 = vpop.xlane.xlu0 %4595
        %v4597 = vmax.f32 %v4520, %v4522
        %4598 = vmax.xlane.f32.xlu0 %v4597
        %v4599 = vpop.xlane.xlu0 %4598
        %v4600 = vmax.f32 %v4526, %v4528
        %4601 = vmax.xlane.f32.xlu0 %v4600
        %v4602 = vpop.xlane.xlu0 %4601
        %v4603 = vmax.f32 %v4530, %v4532
        %4604 = vmax.xlane.f32.xlu0 %v4603
        %v4605 = vpop.xlane.xlu0 %4604
        %v4606 = vmax.f32 %v4536, %v4538
        %4607 = vmax.xlane.f32.xlu0 %v4606
        %v4608 = vpop.xlane.xlu0 %4607
        %v4609 = vmax.f32 %v4540, %v4542
        %4610 = vmax.xlane.f32.xlu0 %v4609
        %v4611 = vpop.xlane.xlu0 %4610
        %v4612 = vmax.f32 %v4546, %v4548
        %4613 = vmax.xlane.f32.xlu0 %v4612
        %v4614 = vpop.xlane.xlu0 %4613
        %v4615 = vmax.f32 %v4550, %v4552
        %4616 = vmax.xlane.f32.xlu0 %v4615
        %v4617 = vpop.xlane.xlu0 %4616
        %v4618 = vmax.f32 %v4556, %v4558
        %4619 = vmax.xlane.f32.xlu0 %v4618
        %v4620 = vpop.xlane.xlu0 %4619
        %v4621 = vmax.f32 %v4560, %v4562
        %4622 = vmax.xlane.f32.xlu0 %v4621
        %v4623 = vpop.xlane.xlu0 %4622
        %v4624 = vmax.f32 %v4566, %v4568
        %4625 = vmax.xlane.f32.xlu0 %v4624
        %v4626 = vpop.xlane.xlu0 %4625
        %v4627 = vmax.f32 %v4570, %v4572
        %4628 = vmax.xlane.f32.xlu0 %v4627
        %v4629 = vpop.xlane.xlu0 %4628
        %v4630 = vmax.f32 %v4576, %v4578
        %4631 = vmax.xlane.f32.xlu0 %v4630
        %v4632 = vpop.xlane.xlu0 %4631
        %v4633 = vmax.f32 %v4580, %v4582
        %4634 = vmax.xlane.f32.xlu0 %v4633
        %v4635 = vpop.xlane.xlu0 %4634
        %v4636 = vmax.f32 %v4586, %v4588
        %4637 = vmax.xlane.f32.xlu0 %v4636
        %v4638 = vpop.xlane.xlu0 %4637
        %v4639 = vmax.f32 %v4590, %v4592
        %4640 = vmax.xlane.f32.xlu0 %v4639
        %v4641 = vpop.xlane.xlu0 %4640
        %v4642 = vsub.f32 %v4516, %v4596
        %v4643 = vsub.f32 %v4518, %v4596
        %v4644 = vsub.f32 %v4520, %v4599
        %v4645 = vsub.f32 %v4522, %v4599
        %v4646 = vsub.f32 %v4526, %v4602
        %v4647 = vsub.f32 %v4528, %v4602
        %v4648 = vsub.f32 %v4530, %v4605
        %v4649 = vsub.f32 %v4532, %v4605
        %v4650 = vsub.f32 %v4536, %v4608
        %v4651 = vsub.f32 %v4538, %v4608
        %v4652 = vsub.f32 %v4540, %v4611
        %v4653 = vsub.f32 %v4542, %v4611
        %v4654 = vsub.f32 %v4546, %v4614
        %v4655 = vsub.f32 %v4548, %v4614
        %v4656 = vsub.f32 %v4550, %v4617
        %v4657 = vsub.f32 %v4552, %v4617
        %v4658 = vsub.f32 %v4556, %v4620
        %v4659 = vsub.f32 %v4558, %v4620
        %v4660 = vsub.f32 %v4560, %v4623
        %v4661 = vsub.f32 %v4562, %v4623
        %v4662 = vsub.f32 %v4566, %v4626
        %v4663 = vsub.f32 %v4568, %v4626
        %v4664 = vsub.f32 %v4570, %v4629
        %v4665 = vsub.f32 %v4572, %v4629
        %v4666 = vsub.f32 %v4576, %v4632
        %v4667 = vsub.f32 %v4578, %v4632
        %v4668 = vsub.f32 %v4580, %v4635
        %v4669 = vsub.f32 %v4582, %v4635
        %v4670 = vsub.f32 %v4586, %v4638
        %v4671 = vsub.f32 %v4588, %v4638
        %v4672 = vsub.f32 %v4590, %v4641
        %v4673 = vsub.f32 %v4592, %v4641
        %v4674 = vmul.f32 %v4642, 1.442695
        %v4675 = vpow.pop %v4674
        %v4676 = vmul.f32 %v4643, 1.442695
        %v4677 = vpow.pop %v4676
        %v4678 = vmul.f32 %v4644, 1.442695
        %v4679 = vpow.pop %v4678
        %v4680 = vmul.f32 %v4645, 1.442695
        %v4681 = vpow.pop %v4680
        %v4682 = vmul.f32 %v4646, 1.442695
        %v4683 = vpow.pop %v4682
        %v4684 = vmul.f32 %v4647, 1.442695
        %v4685 = vpow.pop %v4684
        %v4686 = vmul.f32 %v4648, 1.442695
        %v4687 = vpow.pop %v4686
        %v4688 = vmul.f32 %v4649, 1.442695
        %v4689 = vpow.pop %v4688
        %v4690 = vmul.f32 %v4650, 1.442695
        %v4691 = vpow.pop %v4690
        %v4692 = vmul.f32 %v4651, 1.442695
        %v4693 = vpow.pop %v4692
        %v4694 = vmul.f32 %v4652, 1.442695
        %v4695 = vpow.pop %v4694
        %v4696 = vmul.f32 %v4653, 1.442695
        %v4697 = vpow.pop %v4696
        %v4698 = vmul.f32 %v4654, 1.442695
        %v4699 = vpow.pop %v4698
        %v4700 = vmul.f32 %v4655, 1.442695
        %v4701 = vpow.pop %v4700
        %v4702 = vmul.f32 %v4656, 1.442695
        %v4703 = vpow.pop %v4702
        %v4704 = vmul.f32 %v4657, 1.442695
        %v4705 = vpow.pop %v4704
        %v4706 = vmul.f32 %v4658, 1.442695
        %v4707 = vpow.pop %v4706
        %v4708 = vmul.f32 %v4659, 1.442695
        %v4709 = vpow.pop %v4708
        %v4710 = vmul.f32 %v4660, 1.442695
        %v4711 = vpow.pop %v4710
        %v4712 = vmul.f32 %v4661, 1.442695
        %v4713 = vpow.pop %v4712
        %v4714 = vmul.f32 %v4662, 1.442695
        %v4715 = vpow.pop %v4714
        %v4716 = vmul.f32 %v4663, 1.442695
        %v4717 = vpow.pop %v4716
        %v4718 = vmul.f32 %v4664, 1.442695
        %v4719 = vpow.pop %v4718
        %v4720 = vmul.f32 %v4665, 1.442695
        %v4721 = vpow.pop %v4720
        %v4722 = vmul.f32 %v4666, 1.442695
        %v4723 = vpow.pop %v4722
        %v4724 = vmul.f32 %v4667, 1.442695
        %v4725 = vpow.pop %v4724
        %v4726 = vmul.f32 %v4668, 1.442695
        %v4727 = vpow.pop %v4726
        %v4728 = vmul.f32 %v4669, 1.442695
        %v4729 = vpow.pop %v4728
        %v4730 = vmul.f32 %v4670, 1.442695
        %v4731 = vpow.pop %v4730
        %v4732 = vmul.f32 %v4671, 1.442695
        %v4733 = vpow.pop %v4732
        %v4734 = vmul.f32 %v4672, 1.442695
        %v4735 = vpow.pop %v4734
        %v4736 = vmul.f32 %v4673, 1.442695
        %v4737 = vpow.pop %v4736
        %v4738 = vadd.f32 %v4675, %v4677
        %4739 = vadd.xlane.f32.xlu0 %v4738
        %v4740 = vpop.xlane.xlu0 %4739
        %v4741 = vadd.f32 %v4679, %v4681
        %4742 = vadd.xlane.f32.xlu0 %v4741
        %v4743 = vpop.xlane.xlu0 %4742
        %v4744 = vadd.f32 %v4683, %v4685
        %4745 = vadd.xlane.f32.xlu0 %v4744
        %v4746 = vpop.xlane.xlu0 %4745
        %v4747 = vadd.f32 %v4687, %v4689
        %4748 = vadd.xlane.f32.xlu0 %v4747
        %v4749 = vpop.xlane.xlu0 %4748
        %v4750 = vadd.f32 %v4691, %v4693
        %4751 = vadd.xlane.f32.xlu0 %v4750
        %v4752 = vpop.xlane.xlu0 %4751
        %v4753 = vadd.f32 %v4695, %v4697
        %4754 = vadd.xlane.f32.xlu0 %v4753
        %v4755 = vpop.xlane.xlu0 %4754
        %v4756 = vadd.f32 %v4699, %v4701
        %4757 = vadd.xlane.f32.xlu0 %v4756
        %v4758 = vpop.xlane.xlu0 %4757
        %v4759 = vadd.f32 %v4703, %v4705
        %4760 = vadd.xlane.f32.xlu0 %v4759
        %v4761 = vpop.xlane.xlu0 %4760
        %v4762 = vadd.f32 %v4707, %v4709
        %4763 = vadd.xlane.f32.xlu0 %v4762
        %v4764 = vpop.xlane.xlu0 %4763
        %v4765 = vadd.f32 %v4711, %v4713
        %4766 = vadd.xlane.f32.xlu0 %v4765
        %v4767 = vpop.xlane.xlu0 %4766
        %v4768 = vadd.f32 %v4715, %v4717
        %4769 = vadd.xlane.f32.xlu0 %v4768
        %v4770 = vpop.xlane.xlu0 %4769
        %v4771 = vadd.f32 %v4719, %v4721
        %4772 = vadd.xlane.f32.xlu0 %v4771
        %v4773 = vpop.xlane.xlu0 %4772
        %v4774 = vadd.f32 %v4723, %v4725
        %4775 = vadd.xlane.f32.xlu0 %v4774
        %v4776 = vpop.xlane.xlu0 %4775
        %v4777 = vadd.f32 %v4727, %v4729
        %4778 = vadd.xlane.f32.xlu0 %v4777
        %v4779 = vpop.xlane.xlu0 %4778
        %v4780 = vadd.f32 %v4731, %v4733
        %4781 = vadd.xlane.f32.xlu0 %v4780
        %v4782 = vpop.xlane.xlu0 %4781
        %v4783 = vadd.f32 %v4735, %v4737
        %4784 = vadd.xlane.f32.xlu0 %v4783
        %v4785 = vpop.xlane.xlu0 %4784
        %v4786 = vrcp.pop %v4740
        %v4787 = vrcp.pop %v4743
        %v4788 = vrcp.pop %v4746
        %v4789 = vrcp.pop %v4749
        %v4790 = vrcp.pop %v4752
        %v4791 = vrcp.pop %v4755
        %v4792 = vrcp.pop %v4758
        %v4793 = vrcp.pop %v4761
        %v4794 = vrcp.pop %v4764
        %v4795 = vrcp.pop %v4767
        %v4796 = vrcp.pop %v4770
        %v4797 = vrcp.pop %v4773
        %v4798 = vrcp.pop %v4776
        %v4799 = vrcp.pop %v4779
        %v4800 = vrcp.pop %v4782
        %v4801 = vrcp.pop %v4785
        %v4802 = vmul.f32 %v4675, %v4786
        %v4803 = vmul.f32 %v4677, %v4786
        %v4804 = vmul.f32 %v4679, %v4787
        %v4805 = vmul.f32 %v4681, %v4787
        %v4806 = vmul.f32 %v4683, %v4788
        %v4807 = vmul.f32 %v4685, %v4788
        %v4808 = vmul.f32 %v4687, %v4789
        %v4809 = vmul.f32 %v4689, %v4789
        %v4810 = vmul.f32 %v4691, %v4790
        %v4811 = vmul.f32 %v4693, %v4790
        %v4812 = vmul.f32 %v4695, %v4791
        %v4813 = vmul.f32 %v4697, %v4791
        %v4814 = vmul.f32 %v4699, %v4792
        %v4815 = vmul.f32 %v4701, %v4792
        %v4816 = vmul.f32 %v4703, %v4793
        %v4817 = vmul.f32 %v4705, %v4793
        %v4818 = vmul.f32 %v4707, %v4794
        %v4819 = vmul.f32 %v4709, %v4794
        %v4820 = vmul.f32 %v4711, %v4795
        %v4821 = vmul.f32 %v4713, %v4795
        %v4822 = vmul.f32 %v4715, %v4796
        %v4823 = vmul.f32 %v4717, %v4796
        %v4824 = vmul.f32 %v4719, %v4797
        %v4825 = vmul.f32 %v4721, %v4797
        %v4826 = vmul.f32 %v4723, %v4798
        %v4827 = vmul.f32 %v4725, %v4798
        %v4828 = vmul.f32 %v4727, %v4799
        %v4829 = vmul.f32 %v4729, %v4799
        %v4830 = vmul.f32 %v4731, %v4800
        %v4831 = vmul.f32 %v4733, %v4800
        %v4832 = vmul.f32 %v4735, %v4801
        %v4833 = vmul.f32 %v4737, %v4801
        %v4834 = vpack.c.bf16 %v4804, %v4802
        %v4835 = vpack.c.bf16 %v4805, %v4803
        %v4836 = vpack.c.bf16 %v4808, %v4806
        %v4837 = vpack.c.bf16 %v4809, %v4807
        %v4838 = vpack.c.bf16 %v4812, %v4810
        %v4839 = vpack.c.bf16 %v4813, %v4811
        %v4840 = vpack.c.bf16 %v4816, %v4814
        %v4841 = vpack.c.bf16 %v4817, %v4815
        %v4842 = vpack.c.bf16 %v4820, %v4818
        %v4843 = vpack.c.bf16 %v4821, %v4819
        %v4844 = vpack.c.bf16 %v4824, %v4822
        %v4845 = vpack.c.bf16 %v4825, %v4823
        %v4846 = vpack.c.bf16 %v4828, %v4826
        %v4847 = vpack.c.bf16 %v4829, %v4827
        %v4848 = vpack.c.bf16 %v4832, %v4830
        %v4849 = vpack.c.bf16 %v4833, %v4831
        %4850 = vmatprep.subr.bf16.mxu0 0
        %4851 = vmatpush1.bf16.msra.mxu0 %v4392
        %4852 = vmatprep.subr.bf16.mxu0 0
        %4853 = vmatpush1.bf16.msra.mxu0 %v4393
        %4854 = vmatprep.subr.bf16.mxu0 0
        %4855 = vmatpush1.bf16.msra.mxu0 %v4394
        %4856 = vmatprep.subr.bf16.mxu0 0
        %4857 = vmatpush1.bf16.msra.mxu0 %v4395
        %4858 = vmatprep.subr.bf16.mxu0 0
        %4859 = vmatpush1.bf16.msra.mxu0 %v4396
        %4860 = vmatprep.subr.bf16.mxu0 0
        %4861 = vmatpush1.bf16.msra.mxu0 %v4397
        %4862 = vmatprep.subr.bf16.mxu0 0
        %4863 = vmatpush1.bf16.msra.mxu0 %v4398
        %4864 = vmatprep.subr.bf16.mxu0 0
        %4865 = vmatpush1.bf16.msra.mxu0 %v4399
        %4866 = vmatprep.subr.bf16.mxu0 0
        %4867 = vmatpush1.bf16.msra.mxu0 %v4400
        %4868 = vmatprep.subr.bf16.mxu0 0
        %4869 = vmatpush1.bf16.msra.mxu0 %v4401
        %4870 = vmatprep.subr.bf16.mxu0 0
        %4871 = vmatpush1.bf16.msra.mxu0 %v4402
        %4872 = vmatprep.subr.bf16.mxu0 0
        %4873 = vmatpush1.bf16.msra.mxu0 %v4403
        %4874 = vmatprep.subr.bf16.mxu0 0
        %4875 = vmatpush1.bf16.msra.mxu0 %v4404
        %4876 = vmatprep.subr.bf16.mxu0 0
        %4877 = vmatpush1.bf16.msra.mxu0 %v4405
        %4878 = vmatprep.subr.bf16.mxu0 0
        %4879 = vmatpush1.bf16.msra.mxu0 %v4406
        %4880 = vmatprep.subr.bf16.mxu0 0
        %4881 = vmatpush1.bf16.msra.mxu0 %v4407
        %4882 = vmatprep.mubr.bf16.mxu0 %v4835
        %4883 = vmatmul.mubr.bf16.gmra.mrb[0].mxu0 %v4834
        %v4884 = vpop.f32.mrb[0].mxu0
        %v4885 = vadd.f32 0.0, %v4884
        %v4886 = vpop.f32.mrb[0].mxu0
        %v4887 = vpop.f32.mrb[0].mxu0
        %v4888 = vadd.f32 0.0, %v4887
        %v4889 = vpop.f32.mrb[0].mxu0
        %4890 = vmatprep.mubr.bf16.mxu0 %v4837
        %4891 = vmatmul.mubr.bf16.gmra.mrb[0].mxu0 %v4836
        %v4892 = vpop.f32.mrb[0].mxu0
        %v4893 = vadd.f32 0.0, %v4892
        %v4894 = vpop.f32.mrb[0].mxu0
        %v4895 = vpop.f32.mrb[0].mxu0
        %v4896 = vadd.f32 0.0, %v4895
        %v4897 = vpop.f32.mrb[0].mxu0
        %4898 = vmatprep.mubr.bf16.mxu0 %v4839
        %4899 = vmatmul.mubr.bf16.gmra.mrb[0].mxu0 %v4838
        %v4900 = vpop.f32.mrb[0].mxu0
        %v4901 = vadd.f32 0.0, %v4900
        %v4902 = vpop.f32.mrb[0].mxu0
        %v4903 = vpop.f32.mrb[0].mxu0
        %v4904 = vadd.f32 0.0, %v4903
        %v4905 = vpop.f32.mrb[0].mxu0
        %4906 = vmatprep.mubr.bf16.mxu0 %v4841
        %4907 = vmatmul.mubr.bf16.gmra.mrb[0].mxu0 %v4840
        %v4908 = vpop.f32.mrb[0].mxu0
        %v4909 = vadd.f32 0.0, %v4908
        %v4910 = vpop.f32.mrb[0].mxu0
        %v4911 = vpop.f32.mrb[0].mxu0
        %v4912 = vadd.f32 0.0, %v4911
        %v4913 = vpop.f32.mrb[0].mxu0
        %4914 = vmatprep.mubr.bf16.mxu0 %v4843
        %4915 = vmatmul.mubr.bf16.gmra.mrb[0].mxu0 %v4842
        %v4916 = vpop.f32.mrb[0].mxu0
        %v4917 = vadd.f32 0.0, %v4916
        %v4918 = vpop.f32.mrb[0].mxu0
        %v4919 = vpop.f32.mrb[0].mxu0
        %v4920 = vadd.f32 0.0, %v4919
        %v4921 = vpop.f32.mrb[0].mxu0
        %4922 = vmatprep.mubr.bf16.mxu0 %v4845
        %4923 = vmatmul.mubr.bf16.gmra.mrb[0].mxu0 %v4844
        %v4924 = vpop.f32.mrb[0].mxu0
        %v4925 = vadd.f32 0.0, %v4924
        %v4926 = vpop.f32.mrb[0].mxu0
        %v4927 = vpop.f32.mrb[0].mxu0
        %v4928 = vadd.f32 0.0, %v4927
        %v4929 = vpop.f32.mrb[0].mxu0
        %4930 = vmatprep.mubr.bf16.mxu0 %v4847
        %4931 = vmatmul.mubr.bf16.gmra.mrb[0].mxu0 %v4846
        %v4932 = vpop.f32.mrb[0].mxu0
        %v4933 = vadd.f32 0.0, %v4932
        %v4934 = vpop.f32.mrb[0].mxu0
        %v4935 = vpop.f32.mrb[0].mxu0
        %v4936 = vadd.f32 0.0, %v4935
        %v4937 = vpop.f32.mrb[0].mxu0
        %4938 = vmatprep.mubr.bf16.mxu0 %v4849
        %4939 = vmatmul.mubr.bf16.gmra.mrb[0].mxu0 %v4848
        %v4940 = vpop.f32.mrb[0].mxu0
        %v4941 = vadd.f32 0.0, %v4940
        %v4942 = vpop.f32.mrb[0].mxu0
        %v4943 = vpop.f32.mrb[0].mxu0
        %v4944 = vadd.f32 0.0, %v4943
        %v4945 = vpop.f32.mrb[0].mxu0
        %4946 = vdwg.mxu0
        %v4947 = vpack.c.bf16 %v4888, %v4885
        %v4948 = vpack.c.bf16 %v4896, %v4893
        %v4949 = vpack.c.bf16 %v4904, %v4901
        %v4950 = vpack.c.bf16 %v4912, %v4909
        %v4951 = vpack.c.bf16 %v4920, %v4917
        %v4952 = vpack.c.bf16 %v4928, %v4925
        %v4953 = vpack.c.bf16 %v4936, %v4933
        %v4954 = vpack.c.bf16 %v4944, %v4941
        %4955 = vst.msk [vmem:[#allocation3] sm:$0xff] %vm4408, %v4947
        %4956 = vst.msk [vmem:[#allocation3 + $0x18] sm:$0xff] %vm4408, %v4948
        %4957 = vst.msk [vmem:[#allocation3 + $0x30] sm:$0xff] %vm4408, %v4949
        %4958 = vst.msk [vmem:[#allocation3 + $0x48] sm:$0xff] %vm4408, %v4950
        %4959 = vst.msk [vmem:[#allocation3 + $0x60] sm:$0xff] %vm4408, %v4951
        %4960 = vst.msk [vmem:[#allocation3 + $0x78] sm:$0xff] %vm4408, %v4952
        %4961 = vst.msk [vmem:[#allocation3 + $0x90] sm:$0xff] %vm4408, %v4953
        %4962 = vst.msk [vmem:[#allocation3 + $0xa8] sm:$0xff] %vm4408, %v4954
        %v4963 = vld [vmem:[%s4367] sm:$0xff]
        %v4964 = vld [vmem:[%s4367 + $0x48] sm:$0xff]
        %v4965 = vld [vmem:[%s4367 + $0x90] sm:$0xff]
        %v4966 = vld [vmem:[%s4367 + $0xd8] sm:$0xff]
        %v4967 = vld [vmem:[%s4367 + $0x120] sm:$0xff]
        %v4968 = vld [vmem:[%s4367 + $0x168] sm:$0xff]
        %v4969 = vld [vmem:[%s4367 + $0x1b0] sm:$0xff]
        %v4970 = vld [vmem:[%s4367 + $0x1f8] sm:$0xff]
        %v4971 = vld [vmem:[#allocation2 + $0x18] sm:$0xff]
        %v4972 = vld [vmem:[#allocation2 + $0x60] sm:$0xff]
        %v4973 = vld [vmem:[#allocation2 + $0xa8] sm:$0xff]
        %v4974 = vld [vmem:[#allocation2 + $0xf0] sm:$0xff]
        %v4975 = vld [vmem:[#allocation2 + $0x138] sm:$0xff]
        %v4976 = vld [vmem:[#allocation2 + $0x180] sm:$0xff]
        %v4977 = vld [vmem:[#allocation2 + $0x1c8] sm:$0xff]
        %v4978 = vld [vmem:[#allocation2 + $0x210] sm:$0xff]
        %v4979 = vld [vmem:[#allocation2 + $0x258] sm:$0xff]
        %v4980 = vld [vmem:[#allocation2 + $0x2a0] sm:$0xff]
        %v4981 = vld [vmem:[#allocation2 + $0x2e8] sm:$0xff]
        %v4982 = vld [vmem:[#allocation2 + $0x330] sm:$0xff]
        %v4983 = vld [vmem:[#allocation2 + $0x378] sm:$0xff]
        %v4984 = vld [vmem:[#allocation2 + $0x3c0] sm:$0xff]
        %v4985 = vld [vmem:[#allocation2 + $0x408] sm:$0xff]
        %v4986 = vld [vmem:[#allocation2 + $0x450] sm:$0xff]
        %v4987 = vld [vmem:[#allocation2 + $0x30] sm:$0xff]
        %v4988 = vld [vmem:[#allocation2 + $0x78] sm:$0xff]
        %v4989 = vld [vmem:[#allocation2 + $0xc0] sm:$0xff]
        %v4990 = vld [vmem:[#allocation2 + $0x108] sm:$0xff]
        %v4991 = vld [vmem:[#allocation2 + $0x150] sm:$0xff]
        %v4992 = vld [vmem:[#allocation2 + $0x198] sm:$0xff]
        %v4993 = vld [vmem:[#allocation2 + $0x1e0] sm:$0xff]
        %v4994 = vld [vmem:[#allocation2 + $0x228] sm:$0xff]
        %v4995 = vld [vmem:[#allocation2 + $0x270] sm:$0xff]
        %v4996 = vld [vmem:[#allocation2 + $0x2b8] sm:$0xff]
        %v4997 = vld [vmem:[#allocation2 + $0x300] sm:$0xff]
        %v4998 = vld [vmem:[#allocation2 + $0x348] sm:$0xff]
        %v4999 = vld [vmem:[#allocation2 + $0x390] sm:$0xff]
        %v5000 = vld [vmem:[#allocation2 + $0x3d8] sm:$0xff]
        %v5001 = vld [vmem:[#allocation2 + $0x420] sm:$0xff]
        %v5002 = vld [vmem:[#allocation2 + $0x468] sm:$0xff]
        %5011 = vrot.lane.b32.xlu0 %v4963, 64
        %v5012 = vpop.permute.xlu0 %5011
        %5013 = vrot.lane.b32.xlu0 %v4964, 64
        %v5014 = vpop.permute.xlu0 %5013
        %5015 = vrot.lane.b32.xlu0 %v4965, 64
        %v5016 = vpop.permute.xlu0 %5015
        %5017 = vrot.lane.b32.xlu0 %v4966, 64
        %v5018 = vpop.permute.xlu0 %5017
        %5019 = vrot.lane.b32.xlu0 %v4967, 64
        %v5020 = vpop.permute.xlu0 %5019
        %5021 = vrot.lane.b32.xlu0 %v4968, 64
        %v5022 = vpop.permute.xlu0 %5021
        %5023 = vrot.lane.b32.xlu0 %v4969, 64
        %v5024 = vpop.permute.xlu0 %5023
        %5025 = vrot.lane.b32.xlu0 %v4970, 64
        %v5026 = vpop.permute.xlu0 %5025
        %5043 = vrot.lane.b32.xlu0 %v4971, 64
        %v5044 = vpop.permute.xlu0 %5043
        %5045 = vrot.lane.b32.xlu0 %v4972, 64
        %v5046 = vpop.permute.xlu0 %5045
        %5047 = vrot.lane.b32.xlu0 %v4973, 64
        %v5048 = vpop.permute.xlu0 %5047
        %5049 = vrot.lane.b32.xlu0 %v4974, 64
        %v5050 = vpop.permute.xlu0 %5049
        %5051 = vrot.lane.b32.xlu0 %v4975, 64
        %v5052 = vpop.permute.xlu0 %5051
        %5053 = vrot.lane.b32.xlu0 %v4976, 64
        %v5054 = vpop.permute.xlu0 %5053
        %5055 = vrot.lane.b32.xlu0 %v4977, 64
        %v5056 = vpop.permute.xlu0 %5055
        %5057 = vrot.lane.b32.xlu0 %v4978, 64
        %v5058 = vpop.permute.xlu0 %5057
        %5059 = vrot.lane.b32.xlu0 %v4979, 64
        %v5060 = vpop.permute.xlu0 %5059
        %5061 = vrot.lane.b32.xlu0 %v4980, 64
        %v5062 = vpop.permute.xlu0 %5061
        %5063 = vrot.lane.b32.xlu0 %v4981, 64
        %v5064 = vpop.permute.xlu0 %5063
        %5065 = vrot.lane.b32.xlu0 %v4982, 64
        %v5066 = vpop.permute.xlu0 %5065
        %5067 = vrot.lane.b32.xlu0 %v4983, 64
        %v5068 = vpop.permute.xlu0 %5067
        %5069 = vrot.lane.b32.xlu0 %v4984, 64
        %v5070 = vpop.permute.xlu0 %5069
        %5071 = vrot.lane.b32.xlu0 %v4985, 64
        %v5072 = vpop.permute.xlu0 %5071
        %5073 = vrot.lane.b32.xlu0 %v4986, 64
        %v5074 = vpop.permute.xlu0 %5073
        %v5076 = vsel %vm4408, %v5012, 0
        %v5079 = vsel %vm4408, %v5014, 0
        %v5082 = vsel %vm4408, %v5016, 0
        %v5085 = vsel %vm4408, %v5018, 0
        %v5088 = vsel %vm4408, %v5020, 0
        %v5091 = vsel %vm4408, %v5022, 0
        %v5094 = vsel %vm4408, %v5024, 0
        %v5097 = vsel %vm4408, %v5026, 0
        %v5100 = vsel %vm4408, %v5044, 0
        %v5103 = vsel %vm4408, %v5046, 0
        %v5106 = vsel %vm4408, %v5048, 0
        %v5109 = vsel %vm4408, %v5050, 0
        %v5112 = vsel %vm4408, %v5052, 0
        %v5115 = vsel %vm4408, %v5054, 0
        %v5118 = vsel %vm4408, %v5056, 0
        %v5121 = vsel %vm4408, %v5058, 0
        %v5124 = vsel %vm4408, %v5060, 0
        %v5127 = vsel %vm4408, %v5062, 0
        %v5130 = vsel %vm4408, %v5064, 0
        %v5133 = vsel %vm4408, %v5066, 0
        %v5136 = vsel %vm4408, %v5068, 0
        %v5139 = vsel %vm4408, %v5070, 0
        %v5142 = vsel %vm4408, %v5072, 0
        %v5145 = vsel %vm4408, %v5074, 0
        %5147 = vmatprep.subr.bf16.mxu0 0
        %5148 = vmatpush1.bf16.xpose.msra.mxu0 %v5100
        %5149 = vmatprep.subr.bf16.mxu0 0
        %5150 = vmatpush1.bf16.xpose.msra.mxu0 %v5103
        %5151 = vmatprep.subr.bf16.mxu0 0
        %5152 = vmatpush1.bf16.xpose.msra.mxu0 %v5106
        %5153 = vmatprep.subr.bf16.mxu0 0
        %5154 = vmatpush1.bf16.xpose.msra.mxu0 %v5109
        %5155 = vmatprep.subr.bf16.mxu0 0
        %5156 = vmatpush1.bf16.xpose.msra.mxu0 %v5112
        %5157 = vmatprep.subr.bf16.mxu0 0
        %5158 = vmatpush1.bf16.xpose.msra.mxu0 %v5115
        %5159 = vmatprep.subr.bf16.mxu0 0
        %5160 = vmatpush1.bf16.xpose.msra.mxu0 %v5118
        %5161 = vmatprep.subr.bf16.mxu0 0
        %5162 = vmatpush1.bf16.xpose.msra.mxu0 %v5121
        %5163 = vmatprep.subr.bf16.mxu0 0
        %5164 = vmatpush1.bf16.xpose.msra.mxu0 %v5124
        %5165 = vmatprep.subr.bf16.mxu0 0
        %5166 = vmatpush1.bf16.xpose.msra.mxu0 %v5127
        %5167 = vmatprep.subr.bf16.mxu0 0
        %5168 = vmatpush1.bf16.xpose.msra.mxu0 %v5130
        %5169 = vmatprep.subr.bf16.mxu0 0
        %5170 = vmatpush1.bf16.xpose.msra.mxu0 %v5133
        %5171 = vmatprep.subr.bf16.mxu0 0
        %5172 = vmatpush1.bf16.xpose.msra.mxu0 %v5136
        %5173 = vmatprep.subr.bf16.mxu0 0
        %5174 = vmatpush1.bf16.xpose.msra.mxu0 %v5139
        %5175 = vmatprep.subr.bf16.mxu0 0
        %5176 = vmatpush1.bf16.xpose.msra.mxu0 %v5142
        %5177 = vmatprep.subr.bf16.mxu0 0
        %5178 = vmatpush1.bf16.xpose.msra.mxu0 %v5145
        %5179 = vmatprep.mubr.bf16.mxu0 0
        %5180 = vmatmul.mubr.bf16.gmra.mrb[0].mxu0 %v5076
        %v5181 = vpop.f32.mrb[0].mxu0
        %v5182 = vadd.f32 %v4331, %v5181
        %v5183 = vpop.f32.mrb[0].mxu0
        %v5184 = vadd.f32 %v4332, %v5183
        %v5185 = vpop.f32.mrb[0].mxu0
        %v5186 = vadd.f32 %v4333, %v5185
        %v5187 = vpop.f32.mrb[0].mxu0
        %v5188 = vadd.f32 %v4334, %v5187
        %5189 = vmatprep.mubr.bf16.mxu0 0
        %5190 = vmatmul.mubr.bf16.gmra.mrb[0].mxu0 %v5079
        %v5191 = vpop.f32.mrb[0].mxu0
        %v5192 = vadd.f32 %v4335, %v5191
        %v5193 = vpop.f32.mrb[0].mxu0
        %v5194 = vadd.f32 %v4336, %v5193
        %v5195 = vpop.f32.mrb[0].mxu0
        %v5196 = vadd.f32 %v4337, %v5195
        %v5197 = vpop.f32.mrb[0].mxu0
        %v5198 = vadd.f32 %v4338, %v5197
        %5199 = vmatprep.mubr.bf16.mxu0 0
        %5200 = vmatmul.mubr.bf16.gmra.mrb[0].mxu0 %v5082
        %v5201 = vpop.f32.mrb[0].mxu0
        %v5202 = vadd.f32 %v4339, %v5201
        %v5203 = vpop.f32.mrb[0].mxu0
        %v5204 = vadd.f32 %v4340, %v5203
        %v5205 = vpop.f32.mrb[0].mxu0
        %v5206 = vadd.f32 %v4341, %v5205
        %v5207 = vpop.f32.mrb[0].mxu0
        %v5208 = vadd.f32 %v4342, %v5207
        %5209 = vmatprep.mubr.bf16.mxu0 0
        %5210 = vmatmul.mubr.bf16.gmra.mrb[0].mxu0 %v5085
        %v5211 = vpop.f32.mrb[0].mxu0
        %v5212 = vadd.f32 %v4343, %v5211
        %v5213 = vpop.f32.mrb[0].mxu0
        %v5214 = vadd.f32 %v4344, %v5213
        %v5215 = vpop.f32.mrb[0].mxu0
        %v5216 = vadd.f32 %v4345, %v5215
        %v5217 = vpop.f32.mrb[0].mxu0
        %v5218 = vadd.f32 %v4346, %v5217
        %5219 = vmatprep.mubr.bf16.mxu0 0
        %5220 = vmatmul.mubr.bf16.gmra.mrb[0].mxu0 %v5088
        %v5221 = vpop.f32.mrb[0].mxu0
        %v5222 = vadd.f32 %v4347, %v5221
        %v5223 = vpop.f32.mrb[0].mxu0
        %v5224 = vadd.f32 %v4348, %v5223
        %v5225 = vpop.f32.mrb[0].mxu0
        %v5226 = vadd.f32 %v4349, %v5225
        %v5227 = vpop.f32.mrb[0].mxu0
        %v5228 = vadd.f32 %v4350, %v5227
        %5229 = vmatprep.mubr.bf16.mxu0 0
        %5230 = vmatmul.mubr.bf16.gmra.mrb[0].mxu0 %v5091
        %v5231 = vpop.f32.mrb[0].mxu0
        %v5232 = vadd.f32 %v4351, %v5231
        %v5233 = vpop.f32.mrb[0].mxu0
        %v5234 = vadd.f32 %v4352, %v5233
        %v5235 = vpop.f32.mrb[0].mxu0
        %v5236 = vadd.f32 %v4353, %v5235
        %v5237 = vpop.f32.mrb[0].mxu0
        %v5238 = vadd.f32 %v4354, %v5237
        %5239 = vmatprep.mubr.bf16.mxu0 0
        %5240 = vmatmul.mubr.bf16.gmra.mrb[0].mxu0 %v5094
        %v5241 = vpop.f32.mrb[0].mxu0
        %v5242 = vadd.f32 %v4355, %v5241
        %v5243 = vpop.f32.mrb[0].mxu0
        %v5244 = vadd.f32 %v4356, %v5243
        %v5245 = vpop.f32.mrb[0].mxu0
        %v5246 = vadd.f32 %v4357, %v5245
        %v5247 = vpop.f32.mrb[0].mxu0
        %v5248 = vadd.f32 %v4358, %v5247
        %5249 = vmatprep.mubr.bf16.mxu0 0
        %5250 = vmatmul.mubr.bf16.gmra.mrb[0].mxu0 %v5097
        %v5251 = vpop.f32.mrb[0].mxu0
        %v5252 = vadd.f32 %v4359, %v5251
        %v5253 = vpop.f32.mrb[0].mxu0
        %v5254 = vadd.f32 %v4360, %v5253
        %v5255 = vpop.f32.mrb[0].mxu0
        %v5256 = vadd.f32 %v4361, %v5255
        %v5257 = vpop.f32.mrb[0].mxu0
        %v5258 = vadd.f32 %v4362, %v5257
        %5259 = vdwg.mxu0
        %v5260 = vmax.f32 %v5182, %v5184
        %5261 = vmax.xlane.f32.xlu0 %v5260
        %v5262 = vpop.xlane.xlu0 %5261
        %v5263 = vmax.f32 %v5186, %v5188
        %5264 = vmax.xlane.f32.xlu0 %v5263
        %v5265 = vpop.xlane.xlu0 %5264
        %v5266 = vmax.f32 %v5192, %v5194
        %5267 = vmax.xlane.f32.xlu0 %v5266
        %v5268 = vpop.xlane.xlu0 %5267
        %v5269 = vmax.f32 %v5196, %v5198
        %5270 = vmax.xlane.f32.xlu0 %v5269
        %v5271 = vpop.xlane.xlu0 %5270
        %v5272 = vmax.f32 %v5202, %v5204
        %5273 = vmax.xlane.f32.xlu0 %v5272
        %v5274 = vpop.xlane.xlu0 %5273
        %v5275 = vmax.f32 %v5206, %v5208
        %5276 = vmax.xlane.f32.xlu0 %v5275
        %v5277 = vpop.xlane.xlu0 %5276
        %v5278 = vmax.f32 %v5212, %v5214
        %5279 = vmax.xlane.f32.xlu0 %v5278
        %v5280 = vpop.xlane.xlu0 %5279
        %v5281 = vmax.f32 %v5216, %v5218
        %5282 = vmax.xlane.f32.xlu0 %v5281
        %v5283 = vpop.xlane.xlu0 %5282
        %v5284 = vmax.f32 %v5222, %v5224
        %5285 = vmax.xlane.f32.xlu0 %v5284
        %v5286 = vpop.xlane.xlu0 %5285
        %v5287 = vmax.f32 %v5226, %v5228
        %5288 = vmax.xlane.f32.xlu0 %v5287
        %v5289 = vpop.xlane.xlu0 %5288
        %v5290 = vmax.f32 %v5232, %v5234
        %5291 = vmax.xlane.f32.xlu0 %v5290
        %v5292 = vpop.xlane.xlu0 %5291
        %v5293 = vmax.f32 %v5236, %v5238
        %5294 = vmax.xlane.f32.xlu0 %v5293
        %v5295 = vpop.xlane.xlu0 %5294
        %v5296 = vmax.f32 %v5242, %v5244
        %5297 = vmax.xlane.f32.xlu0 %v5296
        %v5298 = vpop.xlane.xlu0 %5297
        %v5299 = vmax.f32 %v5246, %v5248
        %5300 = vmax.xlane.f32.xlu0 %v5299
        %v5301 = vpop.xlane.xlu0 %5300
        %v5302 = vmax.f32 %v5252, %v5254
        %5303 = vmax.xlane.f32.xlu0 %v5302
        %v5304 = vpop.xlane.xlu0 %5303
        %v5305 = vmax.f32 %v5256, %v5258
        %5306 = vmax.xlane.f32.xlu0 %v5305
        %v5307 = vpop.xlane.xlu0 %5306
        %v5308 = vsub.f32 %v5182, %v5262
        %v5309 = vsub.f32 %v5184, %v5262
        %v5310 = vsub.f32 %v5186, %v5265
        %v5311 = vsub.f32 %v5188, %v5265
        %v5312 = vsub.f32 %v5192, %v5268
        %v5313 = vsub.f32 %v5194, %v5268
        %v5314 = vsub.f32 %v5196, %v5271
        %v5315 = vsub.f32 %v5198, %v5271
        %v5316 = vsub.f32 %v5202, %v5274
        %v5317 = vsub.f32 %v5204, %v5274
        %v5318 = vsub.f32 %v5206, %v5277
        %v5319 = vsub.f32 %v5208, %v5277
        %v5320 = vsub.f32 %v5212, %v5280
        %v5321 = vsub.f32 %v5214, %v5280
        %v5322 = vsub.f32 %v5216, %v5283
        %v5323 = vsub.f32 %v5218, %v5283
        %v5324 = vsub.f32 %v5222, %v5286
        %v5325 = vsub.f32 %v5224, %v5286
        %v5326 = vsub.f32 %v5226, %v5289
        %v5327 = vsub.f32 %v5228, %v5289
        %v5328 = vsub.f32 %v5232, %v5292
        %v5329 = vsub.f32 %v5234, %v5292
        %v5330 = vsub.f32 %v5236, %v5295
        %v5331 = vsub.f32 %v5238, %v5295
        %v5332 = vsub.f32 %v5242, %v5298
        %v5333 = vsub.f32 %v5244, %v5298
        %v5334 = vsub.f32 %v5246, %v5301
        %v5335 = vsub.f32 %v5248, %v5301
        %v5336 = vsub.f32 %v5252, %v5304
        %v5337 = vsub.f32 %v5254, %v5304
        %v5338 = vsub.f32 %v5256, %v5307
        %v5339 = vsub.f32 %v5258, %v5307
        %v5340 = vmul.f32 %v5308, 1.442695
        %v5341 = vpow.pop %v5340
        %v5342 = vmul.f32 %v5309, 1.442695
        %v5343 = vpow.pop %v5342
        %v5344 = vmul.f32 %v5310, 1.442695
        %v5345 = vpow.pop %v5344
        %v5346 = vmul.f32 %v5311, 1.442695
        %v5347 = vpow.pop %v5346
        %v5348 = vmul.f32 %v5312, 1.442695
        %v5349 = vpow.pop %v5348
        %v5350 = vmul.f32 %v5313, 1.442695
        %v5351 = vpow.pop %v5350
        %v5352 = vmul.f32 %v5314, 1.442695
        %v5353 = vpow.pop %v5352
        %v5354 = vmul.f32 %v5315, 1.442695
        %v5355 = vpow.pop %v5354
        %v5356 = vmul.f32 %v5316, 1.442695
        %v5357 = vpow.pop %v5356
        %v5358 = vmul.f32 %v5317, 1.442695
        %v5359 = vpow.pop %v5358
        %v5360 = vmul.f32 %v5318, 1.442695
        %v5361 = vpow.pop %v5360
        %v5362 = vmul.f32 %v5319, 1.442695
        %v5363 = vpow.pop %v5362
        %v5364 = vmul.f32 %v5320, 1.442695
        %v5365 = vpow.pop %v5364
        %v5366 = vmul.f32 %v5321, 1.442695
        %v5367 = vpow.pop %v5366
        %v5368 = vmul.f32 %v5322, 1.442695
        %v5369 = vpow.pop %v5368
        %v5370 = vmul.f32 %v5323, 1.442695
        %v5371 = vpow.pop %v5370
        %v5372 = vmul.f32 %v5324, 1.442695
        %v5373 = vpow.pop %v5372
        %v5374 = vmul.f32 %v5325, 1.442695
        %v5375 = vpow.pop %v5374
        %v5376 = vmul.f32 %v5326, 1.442695
        %v5377 = vpow.pop %v5376
        %v5378 = vmul.f32 %v5327, 1.442695
        %v5379 = vpow.pop %v5378
        %v5380 = vmul.f32 %v5328, 1.442695
        %v5381 = vpow.pop %v5380
        %v5382 = vmul.f32 %v5329, 1.442695
        %v5383 = vpow.pop %v5382
        %v5384 = vmul.f32 %v5330, 1.442695
        %v5385 = vpow.pop %v5384
        %v5386 = vmul.f32 %v5331, 1.442695
        %v5387 = vpow.pop %v5386
        %v5388 = vmul.f32 %v5332, 1.442695
        %v5389 = vpow.pop %v5388
        %v5390 = vmul.f32 %v5333, 1.442695
        %v5391 = vpow.pop %v5390
        %v5392 = vmul.f32 %v5334, 1.442695
        %v5393 = vpow.pop %v5392
        %v5394 = vmul.f32 %v5335, 1.442695
        %v5395 = vpow.pop %v5394
        %v5396 = vmul.f32 %v5336, 1.442695
        %v5397 = vpow.pop %v5396
        %v5398 = vmul.f32 %v5337, 1.442695
        %v5399 = vpow.pop %v5398
        %v5400 = vmul.f32 %v5338, 1.442695
        %v5401 = vpow.pop %v5400
        %v5402 = vmul.f32 %v5339, 1.442695
        %v5403 = vpow.pop %v5402
        %v5404 = vadd.f32 %v5341, %v5343
        %5405 = vadd.xlane.f32.xlu0 %v5404
        %v5406 = vpop.xlane.xlu0 %5405
        %v5407 = vadd.f32 %v5345, %v5347
        %5408 = vadd.xlane.f32.xlu0 %v5407
        %v5409 = vpop.xlane.xlu0 %5408
        %v5410 = vadd.f32 %v5349, %v5351
        %5411 = vadd.xlane.f32.xlu0 %v5410
        %v5412 = vpop.xlane.xlu0 %5411
        %v5413 = vadd.f32 %v5353, %v5355
        %5414 = vadd.xlane.f32.xlu0 %v5413
        %v5415 = vpop.xlane.xlu0 %5414
        %v5416 = vadd.f32 %v5357, %v5359
        %5417 = vadd.xlane.f32.xlu0 %v5416
        %v5418 = vpop.xlane.xlu0 %5417
        %v5419 = vadd.f32 %v5361, %v5363
        %5420 = vadd.xlane.f32.xlu0 %v5419
        %v5421 = vpop.xlane.xlu0 %5420
        %v5422 = vadd.f32 %v5365, %v5367
        %5423 = vadd.xlane.f32.xlu0 %v5422
        %v5424 = vpop.xlane.xlu0 %5423
        %v5425 = vadd.f32 %v5369, %v5371
        %5426 = vadd.xlane.f32.xlu0 %v5425
        %v5427 = vpop.xlane.xlu0 %5426
        %v5428 = vadd.f32 %v5373, %v5375
        %5429 = vadd.xlane.f32.xlu0 %v5428
        %v5430 = vpop.xlane.xlu0 %5429
        %v5431 = vadd.f32 %v5377, %v5379
        %5432 = vadd.xlane.f32.xlu0 %v5431
        %v5433 = vpop.xlane.xlu0 %5432
        %v5434 = vadd.f32 %v5381, %v5383
        %5435 = vadd.xlane.f32.xlu0 %v5434
        %v5436 = vpop.xlane.xlu0 %5435
        %v5437 = vadd.f32 %v5385, %v5387
        %5438 = vadd.xlane.f32.xlu0 %v5437
        %v5439 = vpop.xlane.xlu0 %5438
        %v5440 = vadd.f32 %v5389, %v5391
        %5441 = vadd.xlane.f32.xlu0 %v5440
        %v5442 = vpop.xlane.xlu0 %5441
        %v5443 = vadd.f32 %v5393, %v5395
        %5444 = vadd.xlane.f32.xlu0 %v5443
        %v5445 = vpop.xlane.xlu0 %5444
        %v5446 = vadd.f32 %v5397, %v5399
        %5447 = vadd.xlane.f32.xlu0 %v5446
        %v5448 = vpop.xlane.xlu0 %5447
        %v5449 = vadd.f32 %v5401, %v5403
        %5450 = vadd.xlane.f32.xlu0 %v5449
        %v5451 = vpop.xlane.xlu0 %5450
        %v5452 = vrcp.pop %v5406
        %v5453 = vrcp.pop %v5409
        %v5454 = vrcp.pop %v5412
        %v5455 = vrcp.pop %v5415
        %v5456 = vrcp.pop %v5418
        %v5457 = vrcp.pop %v5421
        %v5458 = vrcp.pop %v5424
        %v5459 = vrcp.pop %v5427
        %v5460 = vrcp.pop %v5430
        %v5461 = vrcp.pop %v5433
        %v5462 = vrcp.pop %v5436
        %v5463 = vrcp.pop %v5439
        %v5464 = vrcp.pop %v5442
        %v5465 = vrcp.pop %v5445
        %v5466 = vrcp.pop %v5448
        %v5467 = vrcp.pop %v5451
        %v5468 = vmul.f32 %v5341, %v5452
        %v5469 = vmul.f32 %v5343, %v5452
        %v5470 = vmul.f32 %v5345, %v5453
        %v5471 = vmul.f32 %v5347, %v5453
        %v5472 = vmul.f32 %v5349, %v5454
        %v5473 = vmul.f32 %v5351, %v5454
        %v5474 = vmul.f32 %v5353, %v5455
        %v5475 = vmul.f32 %v5355, %v5455
        %v5476 = vmul.f32 %v5357, %v5456
        %v5477 = vmul.f32 %v5359, %v5456
        %v5478 = vmul.f32 %v5361, %v5457
        %v5479 = vmul.f32 %v5363, %v5457
        %v5480 = vmul.f32 %v5365, %v5458
        %v5481 = vmul.f32 %v5367, %v5458
        %v5482 = vmul.f32 %v5369, %v5459
        %v5483 = vmul.f32 %v5371, %v5459
        %v5484 = vmul.f32 %v5373, %v5460
        %v5485 = vmul.f32 %v5375, %v5460
        %v5486 = vmul.f32 %v5377, %v5461
        %v5487 = vmul.f32 %v5379, %v5461
        %v5488 = vmul.f32 %v5381, %v5462
        %v5489 = vmul.f32 %v5383, %v5462
        %v5490 = vmul.f32 %v5385, %v5463
        %v5491 = vmul.f32 %v5387, %v5463
        %v5492 = vmul.f32 %v5389, %v5464
        %v5493 = vmul.f32 %v5391, %v5464
        %v5494 = vmul.f32 %v5393, %v5465
        %v5495 = vmul.f32 %v5395, %v5465
        %v5496 = vmul.f32 %v5397, %v5466
        %v5497 = vmul.f32 %v5399, %v5466
        %v5498 = vmul.f32 %v5401, %v5467
        %v5499 = vmul.f32 %v5403, %v5467
        %v5500 = vpack.c.bf16 %v5470, %v5468
        %v5501 = vpack.c.bf16 %v5471, %v5469
        %v5502 = vpack.c.bf16 %v5474, %v5472
        %v5503 = vpack.c.bf16 %v5475, %v5473
        %v5504 = vpack.c.bf16 %v5478, %v5476
        %v5505 = vpack.c.bf16 %v5479, %v5477
        %v5506 = vpack.c.bf16 %v5482, %v5480
        %v5507 = vpack.c.bf16 %v5483, %v5481
        %v5508 = vpack.c.bf16 %v5486, %v5484
        %v5509 = vpack.c.bf16 %v5487, %v5485
        %v5510 = vpack.c.bf16 %v5490, %v5488
        %v5511 = vpack.c.bf16 %v5491, %v5489
        %v5512 = vpack.c.bf16 %v5494, %v5492
        %v5513 = vpack.c.bf16 %v5495, %v5493
        %v5514 = vpack.c.bf16 %v5498, %v5496
        %v5515 = vpack.c.bf16 %v5499, %v5497
        %5532 = vrot.lane.b32.xlu0 %v4987, 64
        %v5533 = vpop.permute.xlu0 %5532
        %5534 = vrot.lane.b32.xlu0 %v4988, 64
        %v5535 = vpop.permute.xlu0 %5534
        %5536 = vrot.lane.b32.xlu0 %v4989, 64
        %v5537 = vpop.permute.xlu0 %5536
        %5538 = vrot.lane.b32.xlu0 %v4990, 64
        %v5539 = vpop.permute.xlu0 %5538
        %5540 = vrot.lane.b32.xlu0 %v4991, 64
        %v5541 = vpop.permute.xlu0 %5540
        %5542 = vrot.lane.b32.xlu0 %v4992, 64
        %v5543 = vpop.permute.xlu0 %5542
        %5544 = vrot.lane.b32.xlu0 %v4993, 64
        %v5545 = vpop.permute.xlu0 %5544
        %5546 = vrot.lane.b32.xlu0 %v4994, 64
        %v5547 = vpop.permute.xlu0 %5546
        %5548 = vrot.lane.b32.xlu0 %v4995, 64
        %v5549 = vpop.permute.xlu0 %5548
        %5550 = vrot.lane.b32.xlu0 %v4996, 64
        %v5551 = vpop.permute.xlu0 %5550
        %5552 = vrot.lane.b32.xlu0 %v4997, 64
        %v5553 = vpop.permute.xlu0 %5552
        %5554 = vrot.lane.b32.xlu0 %v4998, 64
        %v5555 = vpop.permute.xlu0 %5554
        %5556 = vrot.lane.b32.xlu0 %v4999, 64
        %v5557 = vpop.permute.xlu0 %5556
        %5558 = vrot.lane.b32.xlu0 %v5000, 64
        %v5559 = vpop.permute.xlu0 %5558
        %5560 = vrot.lane.b32.xlu0 %v5001, 64
        %v5561 = vpop.permute.xlu0 %5560
        %5562 = vrot.lane.b32.xlu0 %v5002, 64
        %v5563 = vpop.permute.xlu0 %5562
        %5580 = vmatprep.subr.bf16.mxu0 0
        %5581 = vmatpush1.bf16.msra.mxu0 %v5533
        %5582 = vmatprep.subr.bf16.mxu0 0
        %5583 = vmatpush1.bf16.msra.mxu0 %v5535
        %5584 = vmatprep.subr.bf16.mxu0 0
        %5585 = vmatpush1.bf16.msra.mxu0 %v5537
        %5586 = vmatprep.subr.bf16.mxu0 0
        %5587 = vmatpush1.bf16.msra.mxu0 %v5539
        %5588 = vmatprep.subr.bf16.mxu0 0
        %5589 = vmatpush1.bf16.msra.mxu0 %v5541
        %5590 = vmatprep.subr.bf16.mxu0 0
        %5591 = vmatpush1.bf16.msra.mxu0 %v5543
        %5592 = vmatprep.subr.bf16.mxu0 0
        %5593 = vmatpush1.bf16.msra.mxu0 %v5545
        %5594 = vmatprep.subr.bf16.mxu0 0
        %5595 = vmatpush1.bf16.msra.mxu0 %v5547
        %5596 = vmatprep.subr.bf16.mxu0 0
        %5597 = vmatpush1.bf16.msra.mxu0 %v5549
        %5598 = vmatprep.subr.bf16.mxu0 0
        %5599 = vmatpush1.bf16.msra.mxu0 %v5551
        %5600 = vmatprep.subr.bf16.mxu0 0
        %5601 = vmatpush1.bf16.msra.mxu0 %v5553
        %5602 = vmatprep.subr.bf16.mxu0 0
        %5603 = vmatpush1.bf16.msra.mxu0 %v5555
        %5604 = vmatprep.subr.bf16.mxu0 0
        %5605 = vmatpush1.bf16.msra.mxu0 %v5557
        %5606 = vmatprep.subr.bf16.mxu0 0
        %5607 = vmatpush1.bf16.msra.mxu0 %v5559
        %5608 = vmatprep.subr.bf16.mxu0 0
        %5609 = vmatpush1.bf16.msra.mxu0 %v5561
        %5610 = vmatprep.subr.bf16.mxu0 0
        %5611 = vmatpush1.bf16.msra.mxu0 %v5563
        %5612 = vmatprep.mubr.bf16.mxu0 %v5501
        %5613 = vmatmul.mubr.bf16.gmra.mrb[0].mxu0 %v5500
        %v5614 = vpop.f32.mrb[0].mxu0
        %v5615 = vadd.f32 0.0, %v5614
        %v5616 = vpop.f32.mrb[0].mxu0
        %v5617 = vpop.f32.mrb[0].mxu0
        %v5618 = vadd.f32 0.0, %v5617
        %v5619 = vpop.f32.mrb[0].mxu0
        %5620 = vmatprep.mubr.bf16.mxu0 %v5503
        %5621 = vmatmul.mubr.bf16.gmra.mrb[0].mxu0 %v5502
        %v5622 = vpop.f32.mrb[0].mxu0
        %v5623 = vadd.f32 0.0, %v5622
        %v5624 = vpop.f32.mrb[0].mxu0
        %v5625 = vpop.f32.mrb[0].mxu0
        %v5626 = vadd.f32 0.0, %v5625
        %v5627 = vpop.f32.mrb[0].mxu0
        %5628 = vmatprep.mubr.bf16.mxu0 %v5505
        %5629 = vmatmul.mubr.bf16.gmra.mrb[0].mxu0 %v5504
        %v5630 = vpop.f32.mrb[0].mxu0
        %v5631 = vadd.f32 0.0, %v5630
        %v5632 = vpop.f32.mrb[0].mxu0
        %v5633 = vpop.f32.mrb[0].mxu0
        %v5634 = vadd.f32 0.0, %v5633
        %v5635 = vpop.f32.mrb[0].mxu0
        %5636 = vmatprep.mubr.bf16.mxu0 %v5507
        %5637 = vmatmul.mubr.bf16.gmra.mrb[0].mxu0 %v5506
        %v5638 = vpop.f32.mrb[0].mxu0
        %v5639 = vadd.f32 0.0, %v5638
        %v5640 = vpop.f32.mrb[0].mxu0
        %v5641 = vpop.f32.mrb[0].mxu0
        %v5642 = vadd.f32 0.0, %v5641
        %v5643 = vpop.f32.mrb[0].mxu0
        %5644 = vmatprep.mubr.bf16.mxu0 %v5509
        %5645 = vmatmul.mubr.bf16.gmra.mrb[0].mxu0 %v5508
        %v5646 = vpop.f32.mrb[0].mxu0
        %v5647 = vadd.f32 0.0, %v5646
        %v5648 = vpop.f32.mrb[0].mxu0
        %v5649 = vpop.f32.mrb[0].mxu0
        %v5650 = vadd.f32 0.0, %v5649
        %v5651 = vpop.f32.mrb[0].mxu0
        %5652 = vmatprep.mubr.bf16.mxu0 %v5511
        %5653 = vmatmul.mubr.bf16.gmra.mrb[0].mxu0 %v5510
        %v5654 = vpop.f32.mrb[0].mxu0
        %v5655 = vadd.f32 0.0, %v5654
        %v5656 = vpop.f32.mrb[0].mxu0
        %v5657 = vpop.f32.mrb[0].mxu0
        %v5658 = vadd.f32 0.0, %v5657
        %v5659 = vpop.f32.mrb[0].mxu0
        %5660 = vmatprep.mubr.bf16.mxu0 %v5513
        %5661 = vmatmul.mubr.bf16.gmra.mrb[0].mxu0 %v5512
        %v5662 = vpop.f32.mrb[0].mxu0
        %v5663 = vadd.f32 0.0, %v5662
        %v5664 = vpop.f32.mrb[0].mxu0
        %v5665 = vpop.f32.mrb[0].mxu0
        %v5666 = vadd.f32 0.0, %v5665
        %v5667 = vpop.f32.mrb[0].mxu0
        %5668 = vmatprep.mubr.bf16.mxu0 %v5515
        %5669 = vmatmul.mubr.bf16.gmra.mrb[0].mxu0 %v5514
        %v5670 = vpop.f32.mrb[0].mxu0
        %v5671 = vadd.f32 0.0, %v5670
        %v5672 = vpop.f32.mrb[0].mxu0
        %v5673 = vpop.f32.mrb[0].mxu0
        %v5674 = vadd.f32 0.0, %v5673
        %v5675 = vpop.f32.mrb[0].mxu0
        %5676 = vdwg.mxu0
        %v5677 = vpack.c.bf16 %v5618, %v5615
        %v5678 = vpack.c.bf16 %v5626, %v5623
        %v5679 = vpack.c.bf16 %v5634, %v5631
        %v5680 = vpack.c.bf16 %v5642, %v5639
        %v5681 = vpack.c.bf16 %v5650, %v5647
        %v5682 = vpack.c.bf16 %v5658, %v5655
        %v5683 = vpack.c.bf16 %v5666, %v5663
        %v5684 = vpack.c.bf16 %v5674, %v5671
        %5693 = vrot.lane.b32.xlu0 %v5677, 64
        %v5694 = vpop.permute.xlu0 %5693
        %5695 = vrot.lane.b32.xlu0 %v5678, 64
        %v5696 = vpop.permute.xlu0 %5695
        %5697 = vrot.lane.b32.xlu0 %v5679, 64
        %v5698 = vpop.permute.xlu0 %5697
        %5699 = vrot.lane.b32.xlu0 %v5680, 64
        %v5700 = vpop.permute.xlu0 %5699
        %5701 = vrot.lane.b32.xlu0 %v5681, 64
        %v5702 = vpop.permute.xlu0 %5701
        %5703 = vrot.lane.b32.xlu0 %v5682, 64
        %v5704 = vpop.permute.xlu0 %5703
        %5705 = vrot.lane.b32.xlu0 %v5683, 64
        %v5706 = vpop.permute.xlu0 %5705
        %5707 = vrot.lane.b32.xlu0 %v5684, 64
        %v5708 = vpop.permute.xlu0 %5707
        %vm5717 = vcmask 1048064
        %5718 = vst.msk [vmem:[#allocation3] sm:$0xff] %vm5717, %v5694
        %5719 = vst.msk [vmem:[#allocation3 + $0x18] sm:$0xff] %vm5717, %v5696
        %5720 = vst.msk [vmem:[#allocation3 + $0x30] sm:$0xff] %vm5717, %v5698
        %5721 = vst.msk [vmem:[#allocation3 + $0x48] sm:$0xff] %vm5717, %v5700
        %5722 = vst.msk [vmem:[#allocation3 + $0x60] sm:$0xff] %vm5717, %v5702
        %5723 = vst.msk [vmem:[#allocation3 + $0x78] sm:$0xff] %vm5717, %v5704
        %5724 = vst.msk [vmem:[#allocation3 + $0x90] sm:$0xff] %vm5717, %v5706
        %5725 = vst.msk [vmem:[#allocation3 + $0xa8] sm:$0xff] %vm5717, %v5708
        %v5726 = vld [vmem:[%s4367 + $0x8] sm:$0xff]
        %v5727 = vld [vmem:[%s4367 + $0x50] sm:$0xff]
        %v5728 = vld [vmem:[%s4367 + $0x98] sm:$0xff]
        %v5729 = vld [vmem:[%s4367 + $0xe0] sm:$0xff]
        %v5730 = vld [vmem:[%s4367 + $0x128] sm:$0xff]
        %v5731 = vld [vmem:[%s4367 + $0x170] sm:$0xff]
        %v5732 = vld [vmem:[%s4367 + $0x1b8] sm:$0xff]
        %v5733 = vld [vmem:[%s4367 + $0x200] sm:$0xff]
        %v5734 = vld [vmem:[#allocation2 + $0x20] sm:$0xff]
        %v5735 = vld [vmem:[#allocation2 + $0x68] sm:$0xff]
        %v5736 = vld [vmem:[#allocation2 + $0xb0] sm:$0xff]
        %v5737 = vld [vmem:[#allocation2 + $0xf8] sm:$0xff]
        %v5738 = vld [vmem:[#allocation2 + $0x140] sm:$0xff]
        %v5739 = vld [vmem:[#allocation2 + $0x188] sm:$0xff]
        %v5740 = vld [vmem:[#allocation2 + $0x1d0] sm:$0xff]
        %v5741 = vld [vmem:[#allocation2 + $0x218] sm:$0xff]
        %v5742 = vld [vmem:[#allocation2 + $0x260] sm:$0xff]
        %v5743 = vld [vmem:[#allocation2 + $0x2a8] sm:$0xff]
        %v5744 = vld [vmem:[#allocation2 + $0x2f0] sm:$0xff]
        %v5745 = vld [vmem:[#allocation2 + $0x338] sm:$0xff]
        %v5746 = vld [vmem:[#allocation2 + $0x380] sm:$0xff]
        %v5747 = vld [vmem:[#allocation2 + $0x3c8] sm:$0xff]
        %v5748 = vld [vmem:[#allocation2 + $0x410] sm:$0xff]
        %v5749 = vld [vmem:[#allocation2 + $0x458] sm:$0xff]
        %v5750 = vld [vmem:[#allocation2 + $0x38] sm:$0xff]
        %v5751 = vld [vmem:[#allocation2 + $0x80] sm:$0xff]
        %v5752 = vld [vmem:[#allocation2 + $0xc8] sm:$0xff]
        %v5753 = vld [vmem:[#allocation2 + $0x110] sm:$0xff]
        %v5754 = vld [vmem:[#allocation2 + $0x158] sm:$0xff]
        %v5755 = vld [vmem:[#allocation2 + $0x1a0] sm:$0xff]
        %v5756 = vld [vmem:[#allocation2 + $0x1e8] sm:$0xff]
        %v5757 = vld [vmem:[#allocation2 + $0x230] sm:$0xff]
        %v5758 = vld [vmem:[#allocation2 + $0x278] sm:$0xff]
        %v5759 = vld [vmem:[#allocation2 + $0x2c0] sm:$0xff]
        %v5760 = vld [vmem:[#allocation2 + $0x308] sm:$0xff]
        %v5761 = vld [vmem:[#allocation2 + $0x350] sm:$0xff]
        %v5762 = vld [vmem:[#allocation2 + $0x398] sm:$0xff]
        %v5763 = vld [vmem:[#allocation2 + $0x3e0] sm:$0xff]
        %v5764 = vld [vmem:[#allocation2 + $0x428] sm:$0xff]
        %v5765 = vld [vmem:[#allocation2 + $0x470] sm:$0xff]
        %v5767 = vsel %vm4408, %v5726, 0
        %v5770 = vsel %vm4408, %v5727, 0
        %v5773 = vsel %vm4408, %v5728, 0
        %v5776 = vsel %vm4408, %v5729, 0
        %v5779 = vsel %vm4408, %v5730, 0
        %v5782 = vsel %vm4408, %v5731, 0
        %v5785 = vsel %vm4408, %v5732, 0
        %v5788 = vsel %vm4408, %v5733, 0
        %v5791 = vsel %vm4408, %v5734, 0
        %v5794 = vsel %vm4408, %v5735, 0
        %v5797 = vsel %vm4408, %v5736, 0
        %v5800 = vsel %vm4408, %v5737, 0
        %v5803 = vsel %vm4408, %v5738, 0
        %v5806 = vsel %vm4408, %v5739, 0
        %v5809 = vsel %vm4408, %v5740, 0
        %v5812 = vsel %vm4408, %v5741, 0
        %v5815 = vsel %vm4408, %v5742, 0
        %v5818 = vsel %vm4408, %v5743, 0
        %v5821 = vsel %vm4408, %v5744, 0
        %v5824 = vsel %vm4408, %v5745, 0
        %v5827 = vsel %vm4408, %v5746, 0
        %v5830 = vsel %vm4408, %v5747, 0
        %v5833 = vsel %vm4408, %v5748, 0
        %v5836 = vsel %vm4408, %v5749, 0
        %5838 = vmatprep.subr.bf16.mxu0 0
        %5839 = vmatpush1.bf16.xpose.msra.mxu0 %v5791
        %5840 = vmatprep.subr.bf16.mxu0 0
        %5841 = vmatpush1.bf16.xpose.msra.mxu0 %v5794
        %5842 = vmatprep.subr.bf16.mxu0 0
        %5843 = vmatpush1.bf16.xpose.msra.mxu0 %v5797
        %5844 = vmatprep.subr.bf16.mxu0 0
        %5845 = vmatpush1.bf16.xpose.msra.mxu0 %v5800
        %5846 = vmatprep.subr.bf16.mxu0 0
        %5847 = vmatpush1.bf16.xpose.msra.mxu0 %v5803
        %5848 = vmatprep.subr.bf16.mxu0 0
        %5849 = vmatpush1.bf16.xpose.msra.mxu0 %v5806
        %5850 = vmatprep.subr.bf16.mxu0 0
        %5851 = vmatpush1.bf16.xpose.msra.mxu0 %v5809
        %5852 = vmatprep.subr.bf16.mxu0 0
        %5853 = vmatpush1.bf16.xpose.msra.mxu0 %v5812
        %5854 = vmatprep.subr.bf16.mxu0 0
        %5855 = vmatpush1.bf16.xpose.msra.mxu0 %v5815
        %5856 = vmatprep.subr.bf16.mxu0 0
        %5857 = vmatpush1.bf16.xpose.msra.mxu0 %v5818
        %5858 = vmatprep.subr.bf16.mxu0 0
        %5859 = vmatpush1.bf16.xpose.msra.mxu0 %v5821
        %5860 = vmatprep.subr.bf16.mxu0 0
        %5861 = vmatpush1.bf16.xpose.msra.mxu0 %v5824
        %5862 = vmatprep.subr.bf16.mxu0 0
        %5863 = vmatpush1.bf16.xpose.msra.mxu0 %v5827
        %5864 = vmatprep.subr.bf16.mxu0 0
        %5865 = vmatpush1.bf16.xpose.msra.mxu0 %v5830
        %5866 = vmatprep.subr.bf16.mxu0 0
        %5867 = vmatpush1.bf16.xpose.msra.mxu0 %v5833
        %5868 = vmatprep.subr.bf16.mxu0 0
        %5869 = vmatpush1.bf16.xpose.msra.mxu0 %v5836
        %5870 = vmatprep.mubr.bf16.mxu0 0
        %5871 = vmatmul.mubr.bf16.gmra.mrb[0].mxu0 %v5767
        %v5872 = vpop.f32.mrb[0].mxu0
        %v5873 = vadd.f32 %v4331, %v5872
        %v5874 = vpop.f32.mrb[0].mxu0
        %v5875 = vadd.f32 %v4332, %v5874
        %v5876 = vpop.f32.mrb[0].mxu0
        %v5877 = vadd.f32 %v4333, %v5876
        %v5878 = vpop.f32.mrb[0].mxu0
        %v5879 = vadd.f32 %v4334, %v5878
        %5880 = vmatprep.mubr.bf16.mxu0 0
        %5881 = vmatmul.mubr.bf16.gmra.mrb[0].mxu0 %v5770
        %v5882 = vpop.f32.mrb[0].mxu0
        %v5883 = vadd.f32 %v4335, %v5882
        %v5884 = vpop.f32.mrb[0].mxu0
        %v5885 = vadd.f32 %v4336, %v5884
        %v5886 = vpop.f32.mrb[0].mxu0
        %v5887 = vadd.f32 %v4337, %v5886
        %v5888 = vpop.f32.mrb[0].mxu0
        %v5889 = vadd.f32 %v4338, %v5888
        %5890 = vmatprep.mubr.bf16.mxu0 0
        %5891 = vmatmul.mubr.bf16.gmra.mrb[0].mxu0 %v5773
        %v5892 = vpop.f32.mrb[0].mxu0
        %v5893 = vadd.f32 %v4339, %v5892
        %v5894 = vpop.f32.mrb[0].mxu0
        %v5895 = vadd.f32 %v4340, %v5894
        %v5896 = vpop.f32.mrb[0].mxu0
        %v5897 = vadd.f32 %v4341, %v5896
        %v5898 = vpop.f32.mrb[0].mxu0
        %v5899 = vadd.f32 %v4342, %v5898
        %5900 = vmatprep.mubr.bf16.mxu0 0
        %5901 = vmatmul.mubr.bf16.gmra.mrb[0].mxu0 %v5776
        %v5902 = vpop.f32.mrb[0].mxu0
        %v5903 = vadd.f32 %v4343, %v5902
        %v5904 = vpop.f32.mrb[0].mxu0
        %v5905 = vadd.f32 %v4344, %v5904
        %v5906 = vpop.f32.mrb[0].mxu0
        %v5907 = vadd.f32 %v4345, %v5906
        %v5908 = vpop.f32.mrb[0].mxu0
        %v5909 = vadd.f32 %v4346, %v5908
        %5910 = vmatprep.mubr.bf16.mxu0 0
        %5911 = vmatmul.mubr.bf16.gmra.mrb[0].mxu0 %v5779
        %v5912 = vpop.f32.mrb[0].mxu0
        %v5913 = vadd.f32 %v4347, %v5912
        %v5914 = vpop.f32.mrb[0].mxu0
        %v5915 = vadd.f32 %v4348, %v5914
        %v5916 = vpop.f32.mrb[0].mxu0
        %v5917 = vadd.f32 %v4349, %v5916
        %v5918 = vpop.f32.mrb[0].mxu0
        %v5919 = vadd.f32 %v4350, %v5918
        %5920 = vmatprep.mubr.bf16.mxu0 0
        %5921 = vmatmul.mubr.bf16.gmra.mrb[0].mxu0 %v5782
        %v5922 = vpop.f32.mrb[0].mxu0
        %v5923 = vadd.f32 %v4351, %v5922
        %v5924 = vpop.f32.mrb[0].mxu0
        %v5925 = vadd.f32 %v4352, %v5924
        %v5926 = vpop.f32.mrb[0].mxu0
        %v5927 = vadd.f32 %v4353, %v5926
        %v5928 = vpop.f32.mrb[0].mxu0
        %v5929 = vadd.f32 %v4354, %v5928
        %5930 = vmatprep.mubr.bf16.mxu0 0
        %5931 = vmatmul.mubr.bf16.gmra.mrb[0].mxu0 %v5785
        %v5932 = vpop.f32.mrb[0].mxu0
        %v5933 = vadd.f32 %v4355, %v5932
        %v5934 = vpop.f32.mrb[0].mxu0
        %v5935 = vadd.f32 %v4356, %v5934
        %v5936 = vpop.f32.mrb[0].mxu0
        %v5937 = vadd.f32 %v4357, %v5936
        %v5938 = vpop.f32.mrb[0].mxu0
        %v5939 = vadd.f32 %v4358, %v5938
        %5940 = vmatprep.mubr.bf16.mxu0 0
        %5941 = vmatmul.mubr.bf16.gmra.mrb[0].mxu0 %v5788
        %v5942 = vpop.f32.mrb[0].mxu0
        %v5943 = vadd.f32 %v4359, %v5942
        %v5944 = vpop.f32.mrb[0].mxu0
        %v5945 = vadd.f32 %v4360, %v5944
        %v5946 = vpop.f32.mrb[0].mxu0
        %v5947 = vadd.f32 %v4361, %v5946
        %v5948 = vpop.f32.mrb[0].mxu0
        %v5949 = vadd.f32 %v4362, %v5948
        %5950 = vdwg.mxu0
        %v5951 = vmax.f32 %v5873, %v5875
        %5952 = vmax.xlane.f32.xlu0 %v5951
        %v5953 = vpop.xlane.xlu0 %5952
        %v5954 = vmax.f32 %v5877, %v5879
        %5955 = vmax.xlane.f32.xlu0 %v5954
        %v5956 = vpop.xlane.xlu0 %5955
        %v5957 = vmax.f32 %v5883, %v5885
        %5958 = vmax.xlane.f32.xlu0 %v5957
        %v5959 = vpop.xlane.xlu0 %5958
        %v5960 = vmax.f32 %v5887, %v5889
        %5961 = vmax.xlane.f32.xlu0 %v5960
        %v5962 = vpop.xlane.xlu0 %5961
        %v5963 = vmax.f32 %v5893, %v5895
        %5964 = vmax.xlane.f32.xlu0 %v5963
        %v5965 = vpop.xlane.xlu0 %5964
        %v5966 = vmax.f32 %v5897, %v5899
        %5967 = vmax.xlane.f32.xlu0 %v5966
        %v5968 = vpop.xlane.xlu0 %5967
        %v5969 = vmax.f32 %v5903, %v5905
        %5970 = vmax.xlane.f32.xlu0 %v5969
        %v5971 = vpop.xlane.xlu0 %5970
        %v5972 = vmax.f32 %v5907, %v5909
        %5973 = vmax.xlane.f32.xlu0 %v5972
        %v5974 = vpop.xlane.xlu0 %5973
        %v5975 = vmax.f32 %v5913, %v5915
        %5976 = vmax.xlane.f32.xlu0 %v5975
        %v5977 = vpop.xlane.xlu0 %5976
        %v5978 = vmax.f32 %v5917, %v5919
        %5979 = vmax.xlane.f32.xlu0 %v5978
        %v5980 = vpop.xlane.xlu0 %5979
        %v5981 = vmax.f32 %v5923, %v5925
        %5982 = vmax.xlane.f32.xlu0 %v5981
        %v5983 = vpop.xlane.xlu0 %5982
        %v5984 = vmax.f32 %v5927, %v5929
        %5985 = vmax.xlane.f32.xlu0 %v5984
        %v5986 = vpop.xlane.xlu0 %5985
        %v5987 = vmax.f32 %v5933, %v5935
        %5988 = vmax.xlane.f32.xlu0 %v5987
        %v5989 = vpop.xlane.xlu0 %5988
        %v5990 = vmax.f32 %v5937, %v5939
        %5991 = vmax.xlane.f32.xlu0 %v5990
        %v5992 = vpop.xlane.xlu0 %5991
        %v5993 = vmax.f32 %v5943, %v5945
        %5994 = vmax.xlane.f32.xlu0 %v5993
        %v5995 = vpop.xlane.xlu0 %5994
        %v5996 = vmax.f32 %v5947, %v5949
        %5997 = vmax.xlane.f32.xlu0 %v5996
        %v5998 = vpop.xlane.xlu0 %5997
        %v5999 = vsub.f32 %v5873, %v5953
        %v6000 = vsub.f32 %v5875, %v5953
        %v6001 = vsub.f32 %v5877, %v5956
        %v6002 = vsub.f32 %v5879, %v5956
        %v6003 = vsub.f32 %v5883, %v5959
        %v6004 = vsub.f32 %v5885, %v5959
        %v6005 = vsub.f32 %v5887, %v5962
        %v6006 = vsub.f32 %v5889, %v5962
        %v6007 = vsub.f32 %v5893, %v5965
        %v6008 = vsub.f32 %v5895, %v5965
        %v6009 = vsub.f32 %v5897, %v5968
        %v6010 = vsub.f32 %v5899, %v5968
        %v6011 = vsub.f32 %v5903, %v5971
        %v6012 = vsub.f32 %v5905, %v5971
        %v6013 = vsub.f32 %v5907, %v5974
        %v6014 = vsub.f32 %v5909, %v5974
        %v6015 = vsub.f32 %v5913, %v5977
        %v6016 = vsub.f32 %v5915, %v5977
        %v6017 = vsub.f32 %v5917, %v5980
        %v6018 = vsub.f32 %v5919, %v5980
        %v6019 = vsub.f32 %v5923, %v5983
        %v6020 = vsub.f32 %v5925, %v5983
        %v6021 = vsub.f32 %v5927, %v5986
        %v6022 = vsub.f32 %v5929, %v5986
        %v6023 = vsub.f32 %v5933, %v5989
        %v6024 = vsub.f32 %v5935, %v5989
        %v6025 = vsub.f32 %v5937, %v5992
        %v6026 = vsub.f32 %v5939, %v5992
        %v6027 = vsub.f32 %v5943, %v5995
        %v6028 = vsub.f32 %v5945, %v5995
        %v6029 = vsub.f32 %v5947, %v5998
        %v6030 = vsub.f32 %v5949, %v5998
        %v6031 = vmul.f32 %v5999, 1.442695
        %v6032 = vpow.pop %v6031
        %v6033 = vmul.f32 %v6000, 1.442695
        %v6034 = vpow.pop %v6033
        %v6035 = vmul.f32 %v6001, 1.442695
        %v6036 = vpow.pop %v6035
        %v6037 = vmul.f32 %v6002, 1.442695
        %v6038 = vpow.pop %v6037
        %v6039 = vmul.f32 %v6003, 1.442695
        %v6040 = vpow.pop %v6039
        %v6041 = vmul.f32 %v6004, 1.442695
        %v6042 = vpow.pop %v6041
        %v6043 = vmul.f32 %v6005, 1.442695
        %v6044 = vpow.pop %v6043
        %v6045 = vmul.f32 %v6006, 1.442695
        %v6046 = vpow.pop %v6045
        %v6047 = vmul.f32 %v6007, 1.442695
        %v6048 = vpow.pop %v6047
        %v6049 = vmul.f32 %v6008, 1.442695
        %v6050 = vpow.pop %v6049
        %v6051 = vmul.f32 %v6009, 1.442695
        %v6052 = vpow.pop %v6051
        %v6053 = vmul.f32 %v6010, 1.442695
        %v6054 = vpow.pop %v6053
        %v6055 = vmul.f32 %v6011, 1.442695
        %v6056 = vpow.pop %v6055
        %v6057 = vmul.f32 %v6012, 1.442695
        %v6058 = vpow.pop %v6057
        %v6059 = vmul.f32 %v6013, 1.442695
        %v6060 = vpow.pop %v6059
        %v6061 = vmul.f32 %v6014, 1.442695
        %v6062 = vpow.pop %v6061
        %v6063 = vmul.f32 %v6015, 1.442695
        %v6064 = vpow.pop %v6063
        %v6065 = vmul.f32 %v6016, 1.442695
        %v6066 = vpow.pop %v6065
        %v6067 = vmul.f32 %v6017, 1.442695
        %v6068 = vpow.pop %v6067
        %v6069 = vmul.f32 %v6018, 1.442695
        %v6070 = vpow.pop %v6069
        %v6071 = vmul.f32 %v6019, 1.442695
        %v6072 = vpow.pop %v6071
        %v6073 = vmul.f32 %v6020, 1.442695
        %v6074 = vpow.pop %v6073
        %v6075 = vmul.f32 %v6021, 1.442695
        %v6076 = vpow.pop %v6075
        %v6077 = vmul.f32 %v6022, 1.442695
        %v6078 = vpow.pop %v6077
        %v6079 = vmul.f32 %v6023, 1.442695
        %v6080 = vpow.pop %v6079
        %v6081 = vmul.f32 %v6024, 1.442695
        %v6082 = vpow.pop %v6081
        %v6083 = vmul.f32 %v6025, 1.442695
        %v6084 = vpow.pop %v6083
        %v6085 = vmul.f32 %v6026, 1.442695
        %v6086 = vpow.pop %v6085
        %v6087 = vmul.f32 %v6027, 1.442695
        %v6088 = vpow.pop %v6087
        %v6089 = vmul.f32 %v6028, 1.442695
        %v6090 = vpow.pop %v6089
        %v6091 = vmul.f32 %v6029, 1.442695
        %v6092 = vpow.pop %v6091
        %v6093 = vmul.f32 %v6030, 1.442695
        %v6094 = vpow.pop %v6093
        %v6095 = vadd.f32 %v6032, %v6034
        %6096 = vadd.xlane.f32.xlu0 %v6095
        %v6097 = vpop.xlane.xlu0 %6096
        %v6098 = vadd.f32 %v6036, %v6038
        %6099 = vadd.xlane.f32.xlu0 %v6098
        %v6100 = vpop.xlane.xlu0 %6099
        %v6101 = vadd.f32 %v6040, %v6042
        %6102 = vadd.xlane.f32.xlu0 %v6101
        %v6103 = vpop.xlane.xlu0 %6102
        %v6104 = vadd.f32 %v6044, %v6046
        %6105 = vadd.xlane.f32.xlu0 %v6104
        %v6106 = vpop.xlane.xlu0 %6105
        %v6107 = vadd.f32 %v6048, %v6050
        %6108 = vadd.xlane.f32.xlu0 %v6107
        %v6109 = vpop.xlane.xlu0 %6108
        %v6110 = vadd.f32 %v6052, %v6054
        %6111 = vadd.xlane.f32.xlu0 %v6110
        %v6112 = vpop.xlane.xlu0 %6111
        %v6113 = vadd.f32 %v6056, %v6058
        %6114 = vadd.xlane.f32.xlu0 %v6113
        %v6115 = vpop.xlane.xlu0 %6114
        %v6116 = vadd.f32 %v6060, %v6062
        %6117 = vadd.xlane.f32.xlu0 %v6116
        %v6118 = vpop.xlane.xlu0 %6117
        %v6119 = vadd.f32 %v6064, %v6066
        %6120 = vadd.xlane.f32.xlu0 %v6119
        %v6121 = vpop.xlane.xlu0 %6120
        %v6122 = vadd.f32 %v6068, %v6070
        %6123 = vadd.xlane.f32.xlu0 %v6122
        %v6124 = vpop.xlane.xlu0 %6123
        %v6125 = vadd.f32 %v6072, %v6074
        %6126 = vadd.xlane.f32.xlu0 %v6125
        %v6127 = vpop.xlane.xlu0 %6126
        %v6128 = vadd.f32 %v6076, %v6078
        %6129 = vadd.xlane.f32.xlu0 %v6128
        %v6130 = vpop.xlane.xlu0 %6129
        %v6131 = vadd.f32 %v6080, %v6082
        %6132 = vadd.xlane.f32.xlu0 %v6131
        %v6133 = vpop.xlane.xlu0 %6132
        %v6134 = vadd.f32 %v6084, %v6086
        %6135 = vadd.xlane.f32.xlu0 %v6134
        %v6136 = vpop.xlane.xlu0 %6135
        %v6137 = vadd.f32 %v6088, %v6090
        %6138 = vadd.xlane.f32.xlu0 %v6137
        %v6139 = vpop.xlane.xlu0 %6138
        %v6140 = vadd.f32 %v6092, %v6094
        %6141 = vadd.xlane.f32.xlu0 %v6140
        %v6142 = vpop.xlane.xlu0 %6141
        %v6143 = vrcp.pop %v6097
        %v6144 = vrcp.pop %v6100
        %v6145 = vrcp.pop %v6103
        %v6146 = vrcp.pop %v6106
        %v6147 = vrcp.pop %v6109
        %v6148 = vrcp.pop %v6112
        %v6149 = vrcp.pop %v6115
        %v6150 = vrcp.pop %v6118
        %v6151 = vrcp.pop %v6121
        %v6152 = vrcp.pop %v6124
        %v6153 = vrcp.pop %v6127
        %v6154 = vrcp.pop %v6130
        %v6155 = vrcp.pop %v6133
        %v6156 = vrcp.pop %v6136
        %v6157 = vrcp.pop %v6139
        %v6158 = vrcp.pop %v6142
        %v6159 = vmul.f32 %v6032, %v6143
        %v6160 = vmul.f32 %v6034, %v6143
        %v6161 = vmul.f32 %v6036, %v6144
        %v6162 = vmul.f32 %v6038, %v6144
        %v6163 = vmul.f32 %v6040, %v6145
        %v6164 = vmul.f32 %v6042, %v6145
        %v6165 = vmul.f32 %v6044, %v6146
        %v6166 = vmul.f32 %v6046, %v6146
        %v6167 = vmul.f32 %v6048, %v6147
        %v6168 = vmul.f32 %v6050, %v6147
        %v6169 = vmul.f32 %v6052, %v6148
        %v6170 = vmul.f32 %v6054, %v6148
        %v6171 = vmul.f32 %v6056, %v6149
        %v6172 = vmul.f32 %v6058, %v6149
        %v6173 = vmul.f32 %v6060, %v6150
        %v6174 = vmul.f32 %v6062, %v6150
        %v6175 = vmul.f32 %v6064, %v6151
        %v6176 = vmul.f32 %v6066, %v6151
        %v6177 = vmul.f32 %v6068, %v6152
        %v6178 = vmul.f32 %v6070, %v6152
        %v6179 = vmul.f32 %v6072, %v6153
        %v6180 = vmul.f32 %v6074, %v6153
        %v6181 = vmul.f32 %v6076, %v6154
        %v6182 = vmul.f32 %v6078, %v6154
        %v6183 = vmul.f32 %v6080, %v6155
        %v6184 = vmul.f32 %v6082, %v6155
        %v6185 = vmul.f32 %v6084, %v6156
        %v6186 = vmul.f32 %v6086, %v6156
        %v6187 = vmul.f32 %v6088, %v6157
        %v6188 = vmul.f32 %v6090, %v6157
        %v6189 = vmul.f32 %v6092, %v6158
        %v6190 = vmul.f32 %v6094, %v6158
        %v6191 = vpack.c.bf16 %v6161, %v6159
        %v6192 = vpack.c.bf16 %v6162, %v6160
        %v6193 = vpack.c.bf16 %v6165, %v6163
        %v6194 = vpack.c.bf16 %v6166, %v6164
        %v6195 = vpack.c.bf16 %v6169, %v6167
        %v6196 = vpack.c.bf16 %v6170, %v6168
        %v6197 = vpack.c.bf16 %v6173, %v6171
        %v6198 = vpack.c.bf16 %v6174, %v6172
        %v6199 = vpack.c.bf16 %v6177, %v6175
        %v6200 = vpack.c.bf16 %v6178, %v6176
        %v6201 = vpack.c.bf16 %v6181, %v6179
        %v6202 = vpack.c.bf16 %v6182, %v6180
        %v6203 = vpack.c.bf16 %v6185, %v6183
        %v6204 = vpack.c.bf16 %v6186, %v6184
        %v6205 = vpack.c.bf16 %v6189, %v6187
        %v6206 = vpack.c.bf16 %v6190, %v6188
        %6207 = vmatprep.subr.bf16.mxu0 0
        %6208 = vmatpush1.bf16.msra.mxu0 %v5750
        %6209 = vmatprep.subr.bf16.mxu0 0
        %6210 = vmatpush1.bf16.msra.mxu0 %v5751
        %6211 = vmatprep.subr.bf16.mxu0 0
        %6212 = vmatpush1.bf16.msra.mxu0 %v5752
        %6213 = vmatprep.subr.bf16.mxu0 0
        %6214 = vmatpush1.bf16.msra.mxu0 %v5753
        %6215 = vmatprep.subr.bf16.mxu0 0
        %6216 = vmatpush1.bf16.msra.mxu0 %v5754
        %6217 = vmatprep.subr.bf16.mxu0 0
        %6218 = vmatpush1.bf16.msra.mxu0 %v5755
        %6219 = vmatprep.subr.bf16.mxu0 0
        %6220 = vmatpush1.bf16.msra.mxu0 %v5756
        %6221 = vmatprep.subr.bf16.mxu0 0
        %6222 = vmatpush1.bf16.msra.mxu0 %v5757
        %6223 = vmatprep.subr.bf16.mxu0 0
        %6224 = vmatpush1.bf16.msra.mxu0 %v5758
        %6225 = vmatprep.subr.bf16.mxu0 0
        %6226 = vmatpush1.bf16.msra.mxu0 %v5759
        %6227 = vmatprep.subr.bf16.mxu0 0
        %6228 = vmatpush1.bf16.msra.mxu0 %v5760
        %6229 = vmatprep.subr.bf16.mxu0 0
        %6230 = vmatpush1.bf16.msra.mxu0 %v5761
        %6231 = vmatprep.subr.bf16.mxu0 0
        %6232 = vmatpush1.bf16.msra.mxu0 %v5762
        %6233 = vmatprep.subr.bf16.mxu0 0
        %6234 = vmatpush1.bf16.msra.mxu0 %v5763
        %6235 = vmatprep.subr.bf16.mxu0 0
        %6236 = vmatpush1.bf16.msra.mxu0 %v5764
        %6237 = vmatprep.subr.bf16.mxu0 0
        %6238 = vmatpush1.bf16.msra.mxu0 %v5765
        %6239 = vmatprep.mubr.bf16.mxu0 %v6192
        %6240 = vmatmul.mubr.bf16.gmra.mrb[0].mxu0 %v6191
        %v6241 = vpop.f32.mrb[0].mxu0
        %v6242 = vadd.f32 0.0, %v6241
        %v6243 = vpop.f32.mrb[0].mxu0
        %v6244 = vpop.f32.mrb[0].mxu0
        %v6245 = vadd.f32 0.0, %v6244
        %v6246 = vpop.f32.mrb[0].mxu0
        %6247 = vmatprep.mubr.bf16.mxu0 %v6194
        %6248 = vmatmul.mubr.bf16.gmra.mrb[0].mxu0 %v6193
        %v6249 = vpop.f32.mrb[0].mxu0
        %v6250 = vadd.f32 0.0, %v6249
        %v6251 = vpop.f32.mrb[0].mxu0
        %v6252 = vpop.f32.mrb[0].mxu0
        %v6253 = vadd.f32 0.0, %v6252
        %v6254 = vpop.f32.mrb[0].mxu0
        %6255 = vmatprep.mubr.bf16.mxu0 %v6196
        %6256 = vmatmul.mubr.bf16.gmra.mrb[0].mxu0 %v6195
        %v6257 = vpop.f32.mrb[0].mxu0
        %v6258 = vadd.f32 0.0, %v6257
        %v6259 = vpop.f32.mrb[0].mxu0
        %v6260 = vpop.f32.mrb[0].mxu0
        %v6261 = vadd.f32 0.0, %v6260
        %v6262 = vpop.f32.mrb[0].mxu0
        %6263 = vmatprep.mubr.bf16.mxu0 %v6198
        %6264 = vmatmul.mubr.bf16.gmra.mrb[0].mxu0 %v6197
        %v6265 = vpop.f32.mrb[0].mxu0
        %v6266 = vadd.f32 0.0, %v6265
        %v6267 = vpop.f32.mrb[0].mxu0
        %v6268 = vpop.f32.mrb[0].mxu0
        %v6269 = vadd.f32 0.0, %v6268
        %v6270 = vpop.f32.mrb[0].mxu0
        %6271 = vmatprep.mubr.bf16.mxu0 %v6200
        %6272 = vmatmul.mubr.bf16.gmra.mrb[0].mxu0 %v6199
        %v6273 = vpop.f32.mrb[0].mxu0
        %v6274 = vadd.f32 0.0, %v6273
        %v6275 = vpop.f32.mrb[0].mxu0
        %v6276 = vpop.f32.mrb[0].mxu0
        %v6277 = vadd.f32 0.0, %v6276
        %v6278 = vpop.f32.mrb[0].mxu0
        %6279 = vmatprep.mubr.bf16.mxu0 %v6202
        %6280 = vmatmul.mubr.bf16.gmra.mrb[0].mxu0 %v6201
        %v6281 = vpop.f32.mrb[0].mxu0
        %v6282 = vadd.f32 0.0, %v6281
        %v6283 = vpop.f32.mrb[0].mxu0
        %v6284 = vpop.f32.mrb[0].mxu0
        %v6285 = vadd.f32 0.0, %v6284
        %v6286 = vpop.f32.mrb[0].mxu0
        %6287 = vmatprep.mubr.bf16.mxu0 %v6204
        %6288 = vmatmul.mubr.bf16.gmra.mrb[0].mxu0 %v6203
        %v6289 = vpop.f32.mrb[0].mxu0
        %v6290 = vadd.f32 0.0, %v6289
        %v6291 = vpop.f32.mrb[0].mxu0
        %v6292 = vpop.f32.mrb[0].mxu0
        %v6293 = vadd.f32 0.0, %v6292
        %v6294 = vpop.f32.mrb[0].mxu0
        %6295 = vmatprep.mubr.bf16.mxu0 %v6206
        %6296 = vmatmul.mubr.bf16.gmra.mrb[0].mxu0 %v6205
        %v6297 = vpop.f32.mrb[0].mxu0
        %v6298 = vadd.f32 0.0, %v6297
        %v6299 = vpop.f32.mrb[0].mxu0
        %v6300 = vpop.f32.mrb[0].mxu0
        %v6301 = vadd.f32 0.0, %v6300
        %v6302 = vpop.f32.mrb[0].mxu0
        %6303 = vdwg.mxu0
        %v6304 = vpack.c.bf16 %v6245, %v6242
        %v6305 = vpack.c.bf16 %v6253, %v6250
        %v6306 = vpack.c.bf16 %v6261, %v6258
        %v6307 = vpack.c.bf16 %v6269, %v6266
        %v6308 = vpack.c.bf16 %v6277, %v6274
        %v6309 = vpack.c.bf16 %v6285, %v6282
        %v6310 = vpack.c.bf16 %v6293, %v6290
        %v6311 = vpack.c.bf16 %v6301, %v6298
        %6312 = vst.msk [vmem:[#allocation3 + $0x8] sm:$0xff] %vm4408, %v6304
        %6313 = vst.msk [vmem:[#allocation3 + $0x20] sm:$0xff] %vm4408, %v6305
        %6314 = vst.msk [vmem:[#allocation3 + $0x38] sm:$0xff] %vm4408, %v6306
        %6315 = vst.msk [vmem:[#allocation3 + $0x50] sm:$0xff] %vm4408, %v6307
        %6316 = vst.msk [vmem:[#allocation3 + $0x68] sm:$0xff] %vm4408, %v6308
        %6317 = vst.msk [vmem:[#allocation3 + $0x80] sm:$0xff] %vm4408, %v6309
        %6318 = vst.msk [vmem:[#allocation3 + $0x98] sm:$0xff] %vm4408, %v6310
        %6319 = vst.msk [vmem:[#allocation3 + $0xb0] sm:$0xff] %vm4408, %v6311
        %v6320 = vld [vmem:[%s4367 + $0x8] sm:$0xff]
        %v6321 = vld [vmem:[%s4367 + $0x50] sm:$0xff]
        %v6322 = vld [vmem:[%s4367 + $0x98] sm:$0xff]
        %v6323 = vld [vmem:[%s4367 + $0xe0] sm:$0xff]
        %v6324 = vld [vmem:[%s4367 + $0x128] sm:$0xff]
        %v6325 = vld [vmem:[%s4367 + $0x170] sm:$0xff]
        %v6326 = vld [vmem:[%s4367 + $0x1b8] sm:$0xff]
        %v6327 = vld [vmem:[%s4367 + $0x200] sm:$0xff]
        %v6328 = vld [vmem:[#allocation2 + $0x20] sm:$0xff]
        %v6329 = vld [vmem:[#allocation2 + $0x68] sm:$0xff]
        %v6330 = vld [vmem:[#allocation2 + $0xb0] sm:$0xff]
        %v6331 = vld [vmem:[#allocation2 + $0xf8] sm:$0xff]
        %v6332 = vld [vmem:[#allocation2 + $0x140] sm:$0xff]
        %v6333 = vld [vmem:[#allocation2 + $0x188] sm:$0xff]
        %v6334 = vld [vmem:[#allocation2 + $0x1d0] sm:$0xff]
        %v6335 = vld [vmem:[#allocation2 + $0x218] sm:$0xff]
        %v6336 = vld [vmem:[#allocation2 + $0x260] sm:$0xff]
        %v6337 = vld [vmem:[#allocation2 + $0x2a8] sm:$0xff]
        %v6338 = vld [vmem:[#allocation2 + $0x2f0] sm:$0xff]
        %v6339 = vld [vmem:[#allocation2 + $0x338] sm:$0xff]
        %v6340 = vld [vmem:[#allocation2 + $0x380] sm:$0xff]
        %v6341 = vld [vmem:[#allocation2 + $0x3c8] sm:$0xff]
        %v6342 = vld [vmem:[#allocation2 + $0x410] sm:$0xff]
        %v6343 = vld [vmem:[#allocation2 + $0x458] sm:$0xff]
        %v6344 = vld [vmem:[#allocation2 + $0x38] sm:$0xff]
        %v6345 = vld [vmem:[#allocation2 + $0x80] sm:$0xff]
        %v6346 = vld [vmem:[#allocation2 + $0xc8] sm:$0xff]
        %v6347 = vld [vmem:[#allocation2 + $0x110] sm:$0xff]
        %v6348 = vld [vmem:[#allocation2 + $0x158] sm:$0xff]
        %v6349 = vld [vmem:[#allocation2 + $0x1a0] sm:$0xff]
        %v6350 = vld [vmem:[#allocation2 + $0x1e8] sm:$0xff]
        %v6351 = vld [vmem:[#allocation2 + $0x230] sm:$0xff]
        %v6352 = vld [vmem:[#allocation2 + $0x278] sm:$0xff]
        %v6353 = vld [vmem:[#allocation2 + $0x2c0] sm:$0xff]
        %v6354 = vld [vmem:[#allocation2 + $0x308] sm:$0xff]
        %v6355 = vld [vmem:[#allocation2 + $0x350] sm:$0xff]
        %v6356 = vld [vmem:[#allocation2 + $0x398] sm:$0xff]
        %v6357 = vld [vmem:[#allocation2 + $0x3e0] sm:$0xff]
        %v6358 = vld [vmem:[#allocation2 + $0x428] sm:$0xff]
        %v6359 = vld [vmem:[#allocation2 + $0x470] sm:$0xff]
        %6368 = vrot.lane.b32.xlu0 %v6320, 64
        %v6369 = vpop.permute.xlu0 %6368
        %6370 = vrot.lane.b32.xlu0 %v6321, 64
        %v6371 = vpop.permute.xlu0 %6370
        %6372 = vrot.lane.b32.xlu0 %v6322, 64
        %v6373 = vpop.permute.xlu0 %6372
        %6374 = vrot.lane.b32.xlu0 %v6323, 64
        %v6375 = vpop.permute.xlu0 %6374
        %6376 = vrot.lane.b32.xlu0 %v6324, 64
        %v6377 = vpop.permute.xlu0 %6376
        %6378 = vrot.lane.b32.xlu0 %v6325, 64
        %v6379 = vpop.permute.xlu0 %6378
        %6380 = vrot.lane.b32.xlu0 %v6326, 64
        %v6381 = vpop.permute.xlu0 %6380
        %6382 = vrot.lane.b32.xlu0 %v6327, 64
        %v6383 = vpop.permute.xlu0 %6382
        %6400 = vrot.lane.b32.xlu0 %v6328, 64
        %v6401 = vpop.permute.xlu0 %6400
        %6402 = vrot.lane.b32.xlu0 %v6329, 64
        %v6403 = vpop.permute.xlu0 %6402
        %6404 = vrot.lane.b32.xlu0 %v6330, 64
        %v6405 = vpop.permute.xlu0 %6404
        %6406 = vrot.lane.b32.xlu0 %v6331, 64
        %v6407 = vpop.permute.xlu0 %6406
        %6408 = vrot.lane.b32.xlu0 %v6332, 64
        %v6409 = vpop.permute.xlu0 %6408
        %6410 = vrot.lane.b32.xlu0 %v6333, 64
        %v6411 = vpop.permute.xlu0 %6410
        %6412 = vrot.lane.b32.xlu0 %v6334, 64
        %v6413 = vpop.permute.xlu0 %6412
        %6414 = vrot.lane.b32.xlu0 %v6335, 64
        %v6415 = vpop.permute.xlu0 %6414
        %6416 = vrot.lane.b32.xlu0 %v6336, 64
        %v6417 = vpop.permute.xlu0 %6416
        %6418 = vrot.lane.b32.xlu0 %v6337, 64
        %v6419 = vpop.permute.xlu0 %6418
        %6420 = vrot.lane.b32.xlu0 %v6338, 64
        %v6421 = vpop.permute.xlu0 %6420
        %6422 = vrot.lane.b32.xlu0 %v6339, 64
        %v6423 = vpop.permute.xlu0 %6422
        %6424 = vrot.lane.b32.xlu0 %v6340, 64
        %v6425 = vpop.permute.xlu0 %6424
        %6426 = vrot.lane.b32.xlu0 %v6341, 64
        %v6427 = vpop.permute.xlu0 %6426
        %6428 = vrot.lane.b32.xlu0 %v6342, 64
        %v6429 = vpop.permute.xlu0 %6428
        %6430 = vrot.lane.b32.xlu0 %v6343, 64
        %v6431 = vpop.permute.xlu0 %6430
        %v6433 = vsel %vm4408, %v6369, 0
        %v6436 = vsel %vm4408, %v6371, 0
        %v6439 = vsel %vm4408, %v6373, 0
        %v6442 = vsel %vm4408, %v6375, 0
        %v6445 = vsel %vm4408, %v6377, 0
        %v6448 = vsel %vm4408, %v6379, 0
        %v6451 = vsel %vm4408, %v6381, 0
        %v6454 = vsel %vm4408, %v6383, 0
        %v6457 = vsel %vm4408, %v6401, 0
        %v6460 = vsel %vm4408, %v6403, 0
        %v6463 = vsel %vm4408, %v6405, 0
        %v6466 = vsel %vm4408, %v6407, 0
        %v6469 = vsel %vm4408, %v6409, 0
        %v6472 = vsel %vm4408, %v6411, 0
        %v6475 = vsel %vm4408, %v6413, 0
        %v6478 = vsel %vm4408, %v6415, 0
        %v6481 = vsel %vm4408, %v6417, 0
        %v6484 = vsel %vm4408, %v6419, 0
        %v6487 = vsel %vm4408, %v6421, 0
        %v6490 = vsel %vm4408, %v6423, 0
        %v6493 = vsel %vm4408, %v6425, 0
        %v6496 = vsel %vm4408, %v6427, 0
        %v6499 = vsel %vm4408, %v6429, 0
        %v6502 = vsel %vm4408, %v6431, 0
        %6504 = vmatprep.subr.bf16.mxu0 0
        %6505 = vmatpush1.bf16.xpose.msra.mxu0 %v6457
        %6506 = vmatprep.subr.bf16.mxu0 0
        %6507 = vmatpush1.bf16.xpose.msra.mxu0 %v6460
        %6508 = vmatprep.subr.bf16.mxu0 0
        %6509 = vmatpush1.bf16.xpose.msra.mxu0 %v6463
        %6510 = vmatprep.subr.bf16.mxu0 0
        %6511 = vmatpush1.bf16.xpose.msra.mxu0 %v6466
        %6512 = vmatprep.subr.bf16.mxu0 0
        %6513 = vmatpush1.bf16.xpose.msra.mxu0 %v6469
        %6514 = vmatprep.subr.bf16.mxu0 0
        %6515 = vmatpush1.bf16.xpose.msra.mxu0 %v6472
        %6516 = vmatprep.subr.bf16.mxu0 0
        %6517 = vmatpush1.bf16.xpose.msra.mxu0 %v6475
        %6518 = vmatprep.subr.bf16.mxu0 0
        %6519 = vmatpush1.bf16.xpose.msra.mxu0 %v6478
        %6520 = vmatprep.subr.bf16.mxu0 0
        %6521 = vmatpush1.bf16.xpose.msra.mxu0 %v6481
        %6522 = vmatprep.subr.bf16.mxu0 0
        %6523 = vmatpush1.bf16.xpose.msra.mxu0 %v6484
        %6524 = vmatprep.subr.bf16.mxu0 0
        %6525 = vmatpush1.bf16.xpose.msra.mxu0 %v6487
        %6526 = vmatprep.subr.bf16.mxu0 0
        %6527 = vmatpush1.bf16.xpose.msra.mxu0 %v6490
        %6528 = vmatprep.subr.bf16.mxu0 0
        %6529 = vmatpush1.bf16.xpose.msra.mxu0 %v6493
        %6530 = vmatprep.subr.bf16.mxu0 0
        %6531 = vmatpush1.bf16.xpose.msra.mxu0 %v6496
        %6532 = vmatprep.subr.bf16.mxu0 0
        %6533 = vmatpush1.bf16.xpose.msra.mxu0 %v6499
        %6534 = vmatprep.subr.bf16.mxu0 0
        %6535 = vmatpush1.bf16.xpose.msra.mxu0 %v6502
        %6536 = vmatprep.mubr.bf16.mxu0 0
        %6537 = vmatmul.mubr.bf16.gmra.mrb[0].mxu0 %v6433
        %v6538 = vpop.f32.mrb[0].mxu0
        %v6539 = vadd.f32 %v4331, %v6538
        %v6540 = vpop.f32.mrb[0].mxu0
        %v6541 = vadd.f32 %v4332, %v6540
        %v6542 = vpop.f32.mrb[0].mxu0
        %v6543 = vadd.f32 %v4333, %v6542
        %v6544 = vpop.f32.mrb[0].mxu0
        %v6545 = vadd.f32 %v4334, %v6544
        %6546 = vmatprep.mubr.bf16.mxu0 0
        %6547 = vmatmul.mubr.bf16.gmra.mrb[0].mxu0 %v6436
        %v6548 = vpop.f32.mrb[0].mxu0
        %v6549 = vadd.f32 %v4335, %v6548
        %v6550 = vpop.f32.mrb[0].mxu0
        %v6551 = vadd.f32 %v4336, %v6550
        %v6552 = vpop.f32.mrb[0].mxu0
        %v6553 = vadd.f32 %v4337, %v6552
        %v6554 = vpop.f32.mrb[0].mxu0
        %v6555 = vadd.f32 %v4338, %v6554
        %6556 = vmatprep.mubr.bf16.mxu0 0
        %6557 = vmatmul.mubr.bf16.gmra.mrb[0].mxu0 %v6439
        %v6558 = vpop.f32.mrb[0].mxu0
        %v6559 = vadd.f32 %v4339, %v6558
        %v6560 = vpop.f32.mrb[0].mxu0
        %v6561 = vadd.f32 %v4340, %v6560
        %v6562 = vpop.f32.mrb[0].mxu0
        %v6563 = vadd.f32 %v4341, %v6562
        %v6564 = vpop.f32.mrb[0].mxu0
        %v6565 = vadd.f32 %v4342, %v6564
        %6566 = vmatprep.mubr.bf16.mxu0 0
        %6567 = vmatmul.mubr.bf16.gmra.mrb[0].mxu0 %v6442
        %v6568 = vpop.f32.mrb[0].mxu0
        %v6569 = vadd.f32 %v4343, %v6568
        %v6570 = vpop.f32.mrb[0].mxu0
        %v6571 = vadd.f32 %v4344, %v6570
        %v6572 = vpop.f32.mrb[0].mxu0
        %v6573 = vadd.f32 %v4345, %v6572
        %v6574 = vpop.f32.mrb[0].mxu0
        %v6575 = vadd.f32 %v4346, %v6574
        %6576 = vmatprep.mubr.bf16.mxu0 0
        %6577 = vmatmul.mubr.bf16.gmra.mrb[0].mxu0 %v6445
        %v6578 = vpop.f32.mrb[0].mxu0
        %v6579 = vadd.f32 %v4347, %v6578
        %v6580 = vpop.f32.mrb[0].mxu0
        %v6581 = vadd.f32 %v4348, %v6580
        %v6582 = vpop.f32.mrb[0].mxu0
        %v6583 = vadd.f32 %v4349, %v6582
        %v6584 = vpop.f32.mrb[0].mxu0
        %v6585 = vadd.f32 %v4350, %v6584
        %6586 = vmatprep.mubr.bf16.mxu0 0
        %6587 = vmatmul.mubr.bf16.gmra.mrb[0].mxu0 %v6448
        %v6588 = vpop.f32.mrb[0].mxu0
        %v6589 = vadd.f32 %v4351, %v6588
        %v6590 = vpop.f32.mrb[0].mxu0
        %v6591 = vadd.f32 %v4352, %v6590
        %v6592 = vpop.f32.mrb[0].mxu0
        %v6593 = vadd.f32 %v4353, %v6592
        %v6594 = vpop.f32.mrb[0].mxu0
        %v6595 = vadd.f32 %v4354, %v6594
        %6596 = vmatprep.mubr.bf16.mxu0 0
        %6597 = vmatmul.mubr.bf16.gmra.mrb[0].mxu0 %v6451
        %v6598 = vpop.f32.mrb[0].mxu0
        %v6599 = vadd.f32 %v4355, %v6598
        %v6600 = vpop.f32.mrb[0].mxu0
        %v6601 = vadd.f32 %v4356, %v6600
        %v6602 = vpop.f32.mrb[0].mxu0
        %v6603 = vadd.f32 %v4357, %v6602
        %v6604 = vpop.f32.mrb[0].mxu0
        %v6605 = vadd.f32 %v4358, %v6604
        %6606 = vmatprep.mubr.bf16.mxu0 0
        %6607 = vmatmul.mubr.bf16.gmra.mrb[0].mxu0 %v6454
        %v6608 = vpop.f32.mrb[0].mxu0
        %v6609 = vadd.f32 %v4359, %v6608
        %v6610 = vpop.f32.mrb[0].mxu0
        %v6611 = vadd.f32 %v4360, %v6610
        %v6612 = vpop.f32.mrb[0].mxu0
        %v6613 = vadd.f32 %v4361, %v6612
        %v6614 = vpop.f32.mrb[0].mxu0
        %v6615 = vadd.f32 %v4362, %v6614
        %6616 = vdwg.mxu0
        %v6617 = vmax.f32 %v6539, %v6541
        %6618 = vmax.xlane.f32.xlu0 %v6617
        %v6619 = vpop.xlane.xlu0 %6618
        %v6620 = vmax.f32 %v6543, %v6545
        %6621 = vmax.xlane.f32.xlu0 %v6620
        %v6622 = vpop.xlane.xlu0 %6621
        %v6623 = vmax.f32 %v6549, %v6551
        %6624 = vmax.xlane.f32.xlu0 %v6623
        %v6625 = vpop.xlane.xlu0 %6624
        %v6626 = vmax.f32 %v6553, %v6555
        %6627 = vmax.xlane.f32.xlu0 %v6626
        %v6628 = vpop.xlane.xlu0 %6627
        %v6629 = vmax.f32 %v6559, %v6561
        %6630 = vmax.xlane.f32.xlu0 %v6629
        %v6631 = vpop.xlane.xlu0 %6630
        %v6632 = vmax.f32 %v6563, %v6565
        %6633 = vmax.xlane.f32.xlu0 %v6632
        %v6634 = vpop.xlane.xlu0 %6633
        %v6635 = vmax.f32 %v6569, %v6571
        %6636 = vmax.xlane.f32.xlu0 %v6635
        %v6637 = vpop.xlane.xlu0 %6636
        %v6638 = vmax.f32 %v6573, %v6575
        %6639 = vmax.xlane.f32.xlu0 %v6638
        %v6640 = vpop.xlane.xlu0 %6639
        %v6641 = vmax.f32 %v6579, %v6581
        %6642 = vmax.xlane.f32.xlu0 %v6641
        %v6643 = vpop.xlane.xlu0 %6642
        %v6644 = vmax.f32 %v6583, %v6585
        %6645 = vmax.xlane.f32.xlu0 %v6644
        %v6646 = vpop.xlane.xlu0 %6645
        %v6647 = vmax.f32 %v6589, %v6591
        %6648 = vmax.xlane.f32.xlu0 %v6647
        %v6649 = vpop.xlane.xlu0 %6648
        %v6650 = vmax.f32 %v6593, %v6595
        %6651 = vmax.xlane.f32.xlu0 %v6650
        %v6652 = vpop.xlane.xlu0 %6651
        %v6653 = vmax.f32 %v6599, %v6601
        %6654 = vmax.xlane.f32.xlu0 %v6653
        %v6655 = vpop.xlane.xlu0 %6654
        %v6656 = vmax.f32 %v6603, %v6605
        %6657 = vmax.xlane.f32.xlu0 %v6656
        %v6658 = vpop.xlane.xlu0 %6657
        %v6659 = vmax.f32 %v6609, %v6611
        %6660 = vmax.xlane.f32.xlu0 %v6659
        %v6661 = vpop.xlane.xlu0 %6660
        %v6662 = vmax.f32 %v6613, %v6615
        %6663 = vmax.xlane.f32.xlu0 %v6662
        %v6664 = vpop.xlane.xlu0 %6663
        %v6665 = vsub.f32 %v6539, %v6619
        %v6666 = vsub.f32 %v6541, %v6619
        %v6667 = vsub.f32 %v6543, %v6622
        %v6668 = vsub.f32 %v6545, %v6622
        %v6669 = vsub.f32 %v6549, %v6625
        %v6670 = vsub.f32 %v6551, %v6625
        %v6671 = vsub.f32 %v6553, %v6628
        %v6672 = vsub.f32 %v6555, %v6628
        %v6673 = vsub.f32 %v6559, %v6631
        %v6674 = vsub.f32 %v6561, %v6631
        %v6675 = vsub.f32 %v6563, %v6634
        %v6676 = vsub.f32 %v6565, %v6634
        %v6677 = vsub.f32 %v6569, %v6637
        %v6678 = vsub.f32 %v6571, %v6637
        %v6679 = vsub.f32 %v6573, %v6640
        %v6680 = vsub.f32 %v6575, %v6640
        %v6681 = vsub.f32 %v6579, %v6643
        %v6682 = vsub.f32 %v6581, %v6643
        %v6683 = vsub.f32 %v6583, %v6646
        %v6684 = vsub.f32 %v6585, %v6646
        %v6685 = vsub.f32 %v6589, %v6649
        %v6686 = vsub.f32 %v6591, %v6649
        %v6687 = vsub.f32 %v6593, %v6652
        %v6688 = vsub.f32 %v6595, %v6652
        %v6689 = vsub.f32 %v6599, %v6655
        %v6690 = vsub.f32 %v6601, %v6655
        %v6691 = vsub.f32 %v6603, %v6658
        %v6692 = vsub.f32 %v6605, %v6658
        %v6693 = vsub.f32 %v6609, %v6661
        %v6694 = vsub.f32 %v6611, %v6661
        %v6695 = vsub.f32 %v6613, %v6664
        %v6696 = vsub.f32 %v6615, %v6664
        %v6697 = vmul.f32 %v6665, 1.442695
        %v6698 = vpow.pop %v6697
        %v6699 = vmul.f32 %v6666, 1.442695
        %v6700 = vpow.pop %v6699
        %v6701 = vmul.f32 %v6667, 1.442695
        %v6702 = vpow.pop %v6701
        %v6703 = vmul.f32 %v6668, 1.442695
        %v6704 = vpow.pop %v6703
        %v6705 = vmul.f32 %v6669, 1.442695
        %v6706 = vpow.pop %v6705
        %v6707 = vmul.f32 %v6670, 1.442695
        %v6708 = vpow.pop %v6707
        %v6709 = vmul.f32 %v6671, 1.442695
        %v6710 = vpow.pop %v6709
        %v6711 = vmul.f32 %v6672, 1.442695
        %v6712 = vpow.pop %v6711
        %v6713 = vmul.f32 %v6673, 1.442695
        %v6714 = vpow.pop %v6713
        %v6715 = vmul.f32 %v6674, 1.442695
        %v6716 = vpow.pop %v6715
        %v6717 = vmul.f32 %v6675, 1.442695
        %v6718 = vpow.pop %v6717
        %v6719 = vmul.f32 %v6676, 1.442695
        %v6720 = vpow.pop %v6719
        %v6721 = vmul.f32 %v6677, 1.442695
        %v6722 = vpow.pop %v6721
        %v6723 = vmul.f32 %v6678, 1.442695
        %v6724 = vpow.pop %v6723
        %v6725 = vmul.f32 %v6679, 1.442695
        %v6726 = vpow.pop %v6725
        %v6727 = vmul.f32 %v6680, 1.442695
        %v6728 = vpow.pop %v6727
        %v6729 = vmul.f32 %v6681, 1.442695
        %v6730 = vpow.pop %v6729
        %v6731 = vmul.f32 %v6682, 1.442695
        %v6732 = vpow.pop %v6731
        %v6733 = vmul.f32 %v6683, 1.442695
        %v6734 = vpow.pop %v6733
        %v6735 = vmul.f32 %v6684, 1.442695
        %v6736 = vpow.pop %v6735
        %v6737 = vmul.f32 %v6685, 1.442695
        %v6738 = vpow.pop %v6737
        %v6739 = vmul.f32 %v6686, 1.442695
        %v6740 = vpow.pop %v6739
        %v6741 = vmul.f32 %v6687, 1.442695
        %v6742 = vpow.pop %v6741
        %v6743 = vmul.f32 %v6688, 1.442695
        %v6744 = vpow.pop %v6743
        %v6745 = vmul.f32 %v6689, 1.442695
        %v6746 = vpow.pop %v6745
        %v6747 = vmul.f32 %v6690, 1.442695
        %v6748 = vpow.pop %v6747
        %v6749 = vmul.f32 %v6691, 1.442695
        %v6750 = vpow.pop %v6749
        %v6751 = vmul.f32 %v6692, 1.442695
        %v6752 = vpow.pop %v6751
        %v6753 = vmul.f32 %v6693, 1.442695
        %v6754 = vpow.pop %v6753
        %v6755 = vmul.f32 %v6694, 1.442695
        %v6756 = vpow.pop %v6755
        %v6757 = vmul.f32 %v6695, 1.442695
        %v6758 = vpow.pop %v6757
        %v6759 = vmul.f32 %v6696, 1.442695
        %v6760 = vpow.pop %v6759
        %v6761 = vadd.f32 %v6698, %v6700
        %6762 = vadd.xlane.f32.xlu0 %v6761
        %v6763 = vpop.xlane.xlu0 %6762
        %v6764 = vadd.f32 %v6702, %v6704
        %6765 = vadd.xlane.f32.xlu0 %v6764
        %v6766 = vpop.xlane.xlu0 %6765
        %v6767 = vadd.f32 %v6706, %v6708
        %6768 = vadd.xlane.f32.xlu0 %v6767
        %v6769 = vpop.xlane.xlu0 %6768
        %v6770 = vadd.f32 %v6710, %v6712
        %6771 = vadd.xlane.f32.xlu0 %v6770
        %v6772 = vpop.xlane.xlu0 %6771
        %v6773 = vadd.f32 %v6714, %v6716
        %6774 = vadd.xlane.f32.xlu0 %v6773
        %v6775 = vpop.xlane.xlu0 %6774
        %v6776 = vadd.f32 %v6718, %v6720
        %6777 = vadd.xlane.f32.xlu0 %v6776
        %v6778 = vpop.xlane.xlu0 %6777
        %v6779 = vadd.f32 %v6722, %v6724
        %6780 = vadd.xlane.f32.xlu0 %v6779
        %v6781 = vpop.xlane.xlu0 %6780
        %v6782 = vadd.f32 %v6726, %v6728
        %6783 = vadd.xlane.f32.xlu0 %v6782
        %v6784 = vpop.xlane.xlu0 %6783
        %v6785 = vadd.f32 %v6730, %v6732
        %6786 = vadd.xlane.f32.xlu0 %v6785
        %v6787 = vpop.xlane.xlu0 %6786
        %v6788 = vadd.f32 %v6734, %v6736
        %6789 = vadd.xlane.f32.xlu0 %v6788
        %v6790 = vpop.xlane.xlu0 %6789
        %v6791 = vadd.f32 %v6738, %v6740
        %6792 = vadd.xlane.f32.xlu0 %v6791
        %v6793 = vpop.xlane.xlu0 %6792
        %v6794 = vadd.f32 %v6742, %v6744
        %6795 = vadd.xlane.f32.xlu0 %v6794
        %v6796 = vpop.xlane.xlu0 %6795
        %v6797 = vadd.f32 %v6746, %v6748
        %6798 = vadd.xlane.f32.xlu0 %v6797
        %v6799 = vpop.xlane.xlu0 %6798
        %v6800 = vadd.f32 %v6750, %v6752
        %6801 = vadd.xlane.f32.xlu0 %v6800
        %v6802 = vpop.xlane.xlu0 %6801
        %v6803 = vadd.f32 %v6754, %v6756
        %6804 = vadd.xlane.f32.xlu0 %v6803
        %v6805 = vpop.xlane.xlu0 %6804
        %v6806 = vadd.f32 %v6758, %v6760
        %6807 = vadd.xlane.f32.xlu0 %v6806
        %v6808 = vpop.xlane.xlu0 %6807
        %v6809 = vrcp.pop %v6763
        %v6810 = vrcp.pop %v6766
        %v6811 = vrcp.pop %v6769
        %v6812 = vrcp.pop %v6772
        %v6813 = vrcp.pop %v6775
        %v6814 = vrcp.pop %v6778
        %v6815 = vrcp.pop %v6781
        %v6816 = vrcp.pop %v6784
        %v6817 = vrcp.pop %v6787
        %v6818 = vrcp.pop %v6790
        %v6819 = vrcp.pop %v6793
        %v6820 = vrcp.pop %v6796
        %v6821 = vrcp.pop %v6799
        %v6822 = vrcp.pop %v6802
        %v6823 = vrcp.pop %v6805
        %v6824 = vrcp.pop %v6808
        %v6825 = vmul.f32 %v6698, %v6809
        %v6826 = vmul.f32 %v6700, %v6809
        %v6827 = vmul.f32 %v6702, %v6810
        %v6828 = vmul.f32 %v6704, %v6810
        %v6829 = vmul.f32 %v6706, %v6811
        %v6830 = vmul.f32 %v6708, %v6811
        %v6831 = vmul.f32 %v6710, %v6812
        %v6832 = vmul.f32 %v6712, %v6812
        %v6833 = vmul.f32 %v6714, %v6813
        %v6834 = vmul.f32 %v6716, %v6813
        %v6835 = vmul.f32 %v6718, %v6814
        %v6836 = vmul.f32 %v6720, %v6814
        %v6837 = vmul.f32 %v6722, %v6815
        %v6838 = vmul.f32 %v6724, %v6815
        %v6839 = vmul.f32 %v6726, %v6816
        %v6840 = vmul.f32 %v6728, %v6816
        %v6841 = vmul.f32 %v6730, %v6817
        %v6842 = vmul.f32 %v6732, %v6817
        %v6843 = vmul.f32 %v6734, %v6818
        %v6844 = vmul.f32 %v6736, %v6818
        %v6845 = vmul.f32 %v6738, %v6819
        %v6846 = vmul.f32 %v6740, %v6819
        %v6847 = vmul.f32 %v6742, %v6820
        %v6848 = vmul.f32 %v6744, %v6820
        %v6849 = vmul.f32 %v6746, %v6821
        %v6850 = vmul.f32 %v6748, %v6821
        %v6851 = vmul.f32 %v6750, %v6822
        %v6852 = vmul.f32 %v6752, %v6822
        %v6853 = vmul.f32 %v6754, %v6823
        %v6854 = vmul.f32 %v6756, %v6823
        %v6855 = vmul.f32 %v6758, %v6824
        %v6856 = vmul.f32 %v6760, %v6824
        %v6857 = vpack.c.bf16 %v6827, %v6825
        %v6858 = vpack.c.bf16 %v6828, %v6826
        %v6859 = vpack.c.bf16 %v6831, %v6829
        %v6860 = vpack.c.bf16 %v6832, %v6830
        %v6861 = vpack.c.bf16 %v6835, %v6833
        %v6862 = vpack.c.bf16 %v6836, %v6834
        %v6863 = vpack.c.bf16 %v6839, %v6837
        %v6864 = vpack.c.bf16 %v6840, %v6838
        %v6865 = vpack.c.bf16 %v6843, %v6841
        %v6866 = vpack.c.bf16 %v6844, %v6842
        %v6867 = vpack.c.bf16 %v6847, %v6845
        %v6868 = vpack.c.bf16 %v6848, %v6846
        %v6869 = vpack.c.bf16 %v6851, %v6849
        %v6870 = vpack.c.bf16 %v6852, %v6850
        %v6871 = vpack.c.bf16 %v6855, %v6853
        %v6872 = vpack.c.bf16 %v6856, %v6854
        %6889 = vrot.lane.b32.xlu0 %v6344, 64
        %v6890 = vpop.permute.xlu0 %6889
        %6891 = vrot.lane.b32.xlu0 %v6345, 64
        %v6892 = vpop.permute.xlu0 %6891
        %6893 = vrot.lane.b32.xlu0 %v6346, 64
        %v6894 = vpop.permute.xlu0 %6893
        %6895 = vrot.lane.b32.xlu0 %v6347, 64
        %v6896 = vpop.permute.xlu0 %6895
        %6897 = vrot.lane.b32.xlu0 %v6348, 64
        %v6898 = vpop.permute.xlu0 %6897
        %6899 = vrot.lane.b32.xlu0 %v6349, 64
        %v6900 = vpop.permute.xlu0 %6899
        %6901 = vrot.lane.b32.xlu0 %v6350, 64
        %v6902 = vpop.permute.xlu0 %6901
        %6903 = vrot.lane.b32.xlu0 %v6351, 64
        %v6904 = vpop.permute.xlu0 %6903
        %6905 = vrot.lane.b32.xlu0 %v6352, 64
        %v6906 = vpop.permute.xlu0 %6905
        %6907 = vrot.lane.b32.xlu0 %v6353, 64
        %v6908 = vpop.permute.xlu0 %6907
        %6909 = vrot.lane.b32.xlu0 %v6354, 64
        %v6910 = vpop.permute.xlu0 %6909
        %6911 = vrot.lane.b32.xlu0 %v6355, 64
        %v6912 = vpop.permute.xlu0 %6911
        %6913 = vrot.lane.b32.xlu0 %v6356, 64
        %v6914 = vpop.permute.xlu0 %6913
        %6915 = vrot.lane.b32.xlu0 %v6357, 64
        %v6916 = vpop.permute.xlu0 %6915
        %6917 = vrot.lane.b32.xlu0 %v6358, 64
        %v6918 = vpop.permute.xlu0 %6917
        %6919 = vrot.lane.b32.xlu0 %v6359, 64
        %v6920 = vpop.permute.xlu0 %6919
        %6937 = vmatprep.subr.bf16.mxu0 0
        %6938 = vmatpush1.bf16.msra.mxu0 %v6890
        %6939 = vmatprep.subr.bf16.mxu0 0
        %6940 = vmatpush1.bf16.msra.mxu0 %v6892
        %6941 = vmatprep.subr.bf16.mxu0 0
        %6942 = vmatpush1.bf16.msra.mxu0 %v6894
        %6943 = vmatprep.subr.bf16.mxu0 0
        %6944 = vmatpush1.bf16.msra.mxu0 %v6896
        %6945 = vmatprep.subr.bf16.mxu0 0
        %6946 = vmatpush1.bf16.msra.mxu0 %v6898
        %6947 = vmatprep.subr.bf16.mxu0 0
        %6948 = vmatpush1.bf16.msra.mxu0 %v6900
        %6949 = vmatprep.subr.bf16.mxu0 0
        %6950 = vmatpush1.bf16.msra.mxu0 %v6902
        %6951 = vmatprep.subr.bf16.mxu0 0
        %6952 = vmatpush1.bf16.msra.mxu0 %v6904
        %6953 = vmatprep.subr.bf16.mxu0 0
        %6954 = vmatpush1.bf16.msra.mxu0 %v6906
        %6955 = vmatprep.subr.bf16.mxu0 0
        %6956 = vmatpush1.bf16.msra.mxu0 %v6908
        %6957 = vmatprep.subr.bf16.mxu0 0
        %6958 = vmatpush1.bf16.msra.mxu0 %v6910
        %6959 = vmatprep.subr.bf16.mxu0 0
        %6960 = vmatpush1.bf16.msra.mxu0 %v6912
        %6961 = vmatprep.subr.bf16.mxu0 0
        %6962 = vmatpush1.bf16.msra.mxu0 %v6914
        %6963 = vmatprep.subr.bf16.mxu0 0
        %6964 = vmatpush1.bf16.msra.mxu0 %v6916
        %6965 = vmatprep.subr.bf16.mxu0 0
        %6966 = vmatpush1.bf16.msra.mxu0 %v6918
        %6967 = vmatprep.subr.bf16.mxu0 0
        %6968 = vmatpush1.bf16.msra.mxu0 %v6920
        %6969 = vmatprep.mubr.bf16.mxu0 %v6858
        %6970 = vmatmul.mubr.bf16.gmra.mrb[0].mxu0 %v6857
        %v6971 = vpop.f32.mrb[0].mxu0
        %v6972 = vadd.f32 0.0, %v6971
        %v6973 = vpop.f32.mrb[0].mxu0
        %v6974 = vpop.f32.mrb[0].mxu0
        %v6975 = vadd.f32 0.0, %v6974
        %v6976 = vpop.f32.mrb[0].mxu0
        %6977 = vmatprep.mubr.bf16.mxu0 %v6860
        %6978 = vmatmul.mubr.bf16.gmra.mrb[0].mxu0 %v6859
        %v6979 = vpop.f32.mrb[0].mxu0
        %v6980 = vadd.f32 0.0, %v6979
        %v6981 = vpop.f32.mrb[0].mxu0
        %v6982 = vpop.f32.mrb[0].mxu0
        %v6983 = vadd.f32 0.0, %v6982
        %v6984 = vpop.f32.mrb[0].mxu0
        %6985 = vmatprep.mubr.bf16.mxu0 %v6862
        %6986 = vmatmul.mubr.bf16.gmra.mrb[0].mxu0 %v6861
        %v6987 = vpop.f32.mrb[0].mxu0
        %v6988 = vadd.f32 0.0, %v6987
        %v6989 = vpop.f32.mrb[0].mxu0
        %v6990 = vpop.f32.mrb[0].mxu0
        %v6991 = vadd.f32 0.0, %v6990
        %v6992 = vpop.f32.mrb[0].mxu0
        %6993 = vmatprep.mubr.bf16.mxu0 %v6864
        %6994 = vmatmul.mubr.bf16.gmra.mrb[0].mxu0 %v6863
        %v6995 = vpop.f32.mrb[0].mxu0
        %v6996 = vadd.f32 0.0, %v6995
        %v6997 = vpop.f32.mrb[0].mxu0
        %v6998 = vpop.f32.mrb[0].mxu0
        %v6999 = vadd.f32 0.0, %v6998
        %v7000 = vpop.f32.mrb[0].mxu0
        %7001 = vmatprep.mubr.bf16.mxu0 %v6866
        %7002 = vmatmul.mubr.bf16.gmra.mrb[0].mxu0 %v6865
        %v7003 = vpop.f32.mrb[0].mxu0
        %v7004 = vadd.f32 0.0, %v7003
        %v7005 = vpop.f32.mrb[0].mxu0
        %v7006 = vpop.f32.mrb[0].mxu0
        %v7007 = vadd.f32 0.0, %v7006
        %v7008 = vpop.f32.mrb[0].mxu0
        %7009 = vmatprep.mubr.bf16.mxu0 %v6868
        %7010 = vmatmul.mubr.bf16.gmra.mrb[0].mxu0 %v6867
        %v7011 = vpop.f32.mrb[0].mxu0
        %v7012 = vadd.f32 0.0, %v7011
        %v7013 = vpop.f32.mrb[0].mxu0
        %v7014 = vpop.f32.mrb[0].mxu0
        %v7015 = vadd.f32 0.0, %v7014
        %v7016 = vpop.f32.mrb[0].mxu0
        %7017 = vmatprep.mubr.bf16.mxu0 %v6870
        %7018 = vmatmul.mubr.bf16.gmra.mrb[0].mxu0 %v6869
        %v7019 = vpop.f32.mrb[0].mxu0
        %v7020 = vadd.f32 0.0, %v7019
        %v7021 = vpop.f32.mrb[0].mxu0
        %v7022 = vpop.f32.mrb[0].mxu0
        %v7023 = vadd.f32 0.0, %v7022
        %v7024 = vpop.f32.mrb[0].mxu0
        %7025 = vmatprep.mubr.bf16.mxu0 %v6872
        %7026 = vmatmul.mubr.bf16.gmra.mrb[0].mxu0 %v6871
        %v7027 = vpop.f32.mrb[0].mxu0
        %v7028 = vadd.f32 0.0, %v7027
        %v7029 = vpop.f32.mrb[0].mxu0
        %v7030 = vpop.f32.mrb[0].mxu0
        %v7031 = vadd.f32 0.0, %v7030
        %v7032 = vpop.f32.mrb[0].mxu0
        %7033 = vdwg.mxu0
        %v7034 = vpack.c.bf16 %v6975, %v6972
        %v7035 = vpack.c.bf16 %v6983, %v6980
        %v7036 = vpack.c.bf16 %v6991, %v6988
        %v7037 = vpack.c.bf16 %v6999, %v6996
        %v7038 = vpack.c.bf16 %v7007, %v7004
        %v7039 = vpack.c.bf16 %v7015, %v7012
        %v7040 = vpack.c.bf16 %v7023, %v7020
        %v7041 = vpack.c.bf16 %v7031, %v7028
        %7050 = vrot.lane.b32.xlu0 %v7034, 64
        %v7051 = vpop.permute.xlu0 %7050
        %7052 = vrot.lane.b32.xlu0 %v7035, 64
        %v7053 = vpop.permute.xlu0 %7052
        %7054 = vrot.lane.b32.xlu0 %v7036, 64
        %v7055 = vpop.permute.xlu0 %7054
        %7056 = vrot.lane.b32.xlu0 %v7037, 64
        %v7057 = vpop.permute.xlu0 %7056
        %7058 = vrot.lane.b32.xlu0 %v7038, 64
        %v7059 = vpop.permute.xlu0 %7058
        %7060 = vrot.lane.b32.xlu0 %v7039, 64
        %v7061 = vpop.permute.xlu0 %7060
        %7062 = vrot.lane.b32.xlu0 %v7040, 64
        %v7063 = vpop.permute.xlu0 %7062
        %7064 = vrot.lane.b32.xlu0 %v7041, 64
        %v7065 = vpop.permute.xlu0 %7064
        %7074 = vst.msk [vmem:[#allocation3 + $0x8] sm:$0xff] %vm5717, %v7051
        %7075 = vst.msk [vmem:[#allocation3 + $0x20] sm:$0xff] %vm5717, %v7053
        %7076 = vst.msk [vmem:[#allocation3 + $0x38] sm:$0xff] %vm5717, %v7055
        %7077 = vst.msk [vmem:[#allocation3 + $0x50] sm:$0xff] %vm5717, %v7057
        %7078 = vst.msk [vmem:[#allocation3 + $0x68] sm:$0xff] %vm5717, %v7059
        %7079 = vst.msk [vmem:[#allocation3 + $0x80] sm:$0xff] %vm5717, %v7061
        %7080 = vst.msk [vmem:[#allocation3 + $0x98] sm:$0xff] %vm5717, %v7063
        %7081 = vst.msk [vmem:[#allocation3 + $0xb0] sm:$0xff] %vm5717, %v7065
        %v7082 = vld [vmem:[%s4367 + $0x10] sm:$0xff]
        %v7083 = vld [vmem:[%s4367 + $0x58] sm:$0xff]
        %v7084 = vld [vmem:[%s4367 + $0xa0] sm:$0xff]
        %v7085 = vld [vmem:[%s4367 + $0xe8] sm:$0xff]
        %v7086 = vld [vmem:[%s4367 + $0x130] sm:$0xff]
        %v7087 = vld [vmem:[%s4367 + $0x178] sm:$0xff]
        %v7088 = vld [vmem:[%s4367 + $0x1c0] sm:$0xff]
        %v7089 = vld [vmem:[%s4367 + $0x208] sm:$0xff]
        %v7090 = vld [vmem:[#allocation2 + $0x28] sm:$0xff]
        %v7091 = vld [vmem:[#allocation2 + $0x70] sm:$0xff]
        %v7092 = vld [vmem:[#allocation2 + $0xb8] sm:$0xff]
        %v7093 = vld [vmem:[#allocation2 + $0x100] sm:$0xff]
        %v7094 = vld [vmem:[#allocation2 + $0x148] sm:$0xff]
        %v7095 = vld [vmem:[#allocation2 + $0x190] sm:$0xff]
        %v7096 = vld [vmem:[#allocation2 + $0x1d8] sm:$0xff]
        %v7097 = vld [vmem:[#allocation2 + $0x220] sm:$0xff]
        %v7098 = vld [vmem:[#allocation2 + $0x268] sm:$0xff]
        %v7099 = vld [vmem:[#allocation2 + $0x2b0] sm:$0xff]
        %v7100 = vld [vmem:[#allocation2 + $0x2f8] sm:$0xff]
        %v7101 = vld [vmem:[#allocation2 + $0x340] sm:$0xff]
        %v7102 = vld [vmem:[#allocation2 + $0x388] sm:$0xff]
        %v7103 = vld [vmem:[#allocation2 + $0x3d0] sm:$0xff]
        %v7104 = vld [vmem:[#allocation2 + $0x418] sm:$0xff]
        %v7105 = vld [vmem:[#allocation2 + $0x460] sm:$0xff]
        %v7106 = vld [vmem:[#allocation2 + $0x40] sm:$0xff]
        %v7107 = vld [vmem:[#allocation2 + $0x88] sm:$0xff]
        %v7108 = vld [vmem:[#allocation2 + $0xd0] sm:$0xff]
        %v7109 = vld [vmem:[#allocation2 + $0x118] sm:$0xff]
        %v7110 = vld [vmem:[#allocation2 + $0x160] sm:$0xff]
        %v7111 = vld [vmem:[#allocation2 + $0x1a8] sm:$0xff]
        %v7112 = vld [vmem:[#allocation2 + $0x1f0] sm:$0xff]
        %v7113 = vld [vmem:[#allocation2 + $0x238] sm:$0xff]
        %v7114 = vld [vmem:[#allocation2 + $0x280] sm:$0xff]
        %v7115 = vld [vmem:[#allocation2 + $0x2c8] sm:$0xff]
        %v7116 = vld [vmem:[#allocation2 + $0x310] sm:$0xff]
        %v7117 = vld [vmem:[#allocation2 + $0x358] sm:$0xff]
        %v7118 = vld [vmem:[#allocation2 + $0x3a0] sm:$0xff]
        %v7119 = vld [vmem:[#allocation2 + $0x3e8] sm:$0xff]
        %v7120 = vld [vmem:[#allocation2 + $0x430] sm:$0xff]
        %v7121 = vld [vmem:[#allocation2 + $0x478] sm:$0xff]
        %v7123 = vsel %vm4408, %v7082, 0
        %v7126 = vsel %vm4408, %v7083, 0
        %v7129 = vsel %vm4408, %v7084, 0
        %v7132 = vsel %vm4408, %v7085, 0
        %v7135 = vsel %vm4408, %v7086, 0
        %v7138 = vsel %vm4408, %v7087, 0
        %v7141 = vsel %vm4408, %v7088, 0
        %v7144 = vsel %vm4408, %v7089, 0
        %v7147 = vsel %vm4408, %v7090, 0
        %v7150 = vsel %vm4408, %v7091, 0
        %v7153 = vsel %vm4408, %v7092, 0
        %v7156 = vsel %vm4408, %v7093, 0
        %v7159 = vsel %vm4408, %v7094, 0
        %v7162 = vsel %vm4408, %v7095, 0
        %v7165 = vsel %vm4408, %v7096, 0
        %v7168 = vsel %vm4408, %v7097, 0
        %v7171 = vsel %vm4408, %v7098, 0
        %v7174 = vsel %vm4408, %v7099, 0
        %v7177 = vsel %vm4408, %v7100, 0
        %v7180 = vsel %vm4408, %v7101, 0
        %v7183 = vsel %vm4408, %v7102, 0
        %v7186 = vsel %vm4408, %v7103, 0
        %v7189 = vsel %vm4408, %v7104, 0
        %v7192 = vsel %vm4408, %v7105, 0
        %7194 = vmatprep.subr.bf16.mxu0 0
        %7195 = vmatpush1.bf16.xpose.msra.mxu0 %v7147
        %7196 = vmatprep.subr.bf16.mxu0 0
        %7197 = vmatpush1.bf16.xpose.msra.mxu0 %v7150
        %7198 = vmatprep.subr.bf16.mxu0 0
        %7199 = vmatpush1.bf16.xpose.msra.mxu0 %v7153
        %7200 = vmatprep.subr.bf16.mxu0 0
        %7201 = vmatpush1.bf16.xpose.msra.mxu0 %v7156
        %7202 = vmatprep.subr.bf16.mxu0 0
        %7203 = vmatpush1.bf16.xpose.msra.mxu0 %v7159
        %7204 = vmatprep.subr.bf16.mxu0 0
        %7205 = vmatpush1.bf16.xpose.msra.mxu0 %v7162
        %7206 = vmatprep.subr.bf16.mxu0 0
        %7207 = vmatpush1.bf16.xpose.msra.mxu0 %v7165
        %7208 = vmatprep.subr.bf16.mxu0 0
        %7209 = vmatpush1.bf16.xpose.msra.mxu0 %v7168
        %7210 = vmatprep.subr.bf16.mxu0 0
        %7211 = vmatpush1.bf16.xpose.msra.mxu0 %v7171
        %7212 = vmatprep.subr.bf16.mxu0 0
        %7213 = vmatpush1.bf16.xpose.msra.mxu0 %v7174
        %7214 = vmatprep.subr.bf16.mxu0 0
        %7215 = vmatpush1.bf16.xpose.msra.mxu0 %v7177
        %7216 = vmatprep.subr.bf16.mxu0 0
        %7217 = vmatpush1.bf16.xpose.msra.mxu0 %v7180
        %7218 = vmatprep.subr.bf16.mxu0 0
        %7219 = vmatpush1.bf16.xpose.msra.mxu0 %v7183
        %7220 = vmatprep.subr.bf16.mxu0 0
        %7221 = vmatpush1.bf16.xpose.msra.mxu0 %v7186
        %7222 = vmatprep.subr.bf16.mxu0 0
        %7223 = vmatpush1.bf16.xpose.msra.mxu0 %v7189
        %7224 = vmatprep.subr.bf16.mxu0 0
        %7225 = vmatpush1.bf16.xpose.msra.mxu0 %v7192
        %7226 = vmatprep.mubr.bf16.mxu0 0
        %7227 = vmatmul.mubr.bf16.gmra.mrb[0].mxu0 %v7123
        %v7228 = vpop.f32.mrb[0].mxu0
        %v7229 = vadd.f32 %v4331, %v7228
        %v7230 = vpop.f32.mrb[0].mxu0
        %v7231 = vadd.f32 %v4332, %v7230
        %v7232 = vpop.f32.mrb[0].mxu0
        %v7233 = vadd.f32 %v4333, %v7232
        %v7234 = vpop.f32.mrb[0].mxu0
        %v7235 = vadd.f32 %v4334, %v7234
        %7236 = vmatprep.mubr.bf16.mxu0 0
        %7237 = vmatmul.mubr.bf16.gmra.mrb[0].mxu0 %v7126
        %v7238 = vpop.f32.mrb[0].mxu0
        %v7239 = vadd.f32 %v4335, %v7238
        %v7240 = vpop.f32.mrb[0].mxu0
        %v7241 = vadd.f32 %v4336, %v7240
        %v7242 = vpop.f32.mrb[0].mxu0
        %v7243 = vadd.f32 %v4337, %v7242
        %v7244 = vpop.f32.mrb[0].mxu0
        %v7245 = vadd.f32 %v4338, %v7244
        %7246 = vmatprep.mubr.bf16.mxu0 0
        %7247 = vmatmul.mubr.bf16.gmra.mrb[0].mxu0 %v7129
        %v7248 = vpop.f32.mrb[0].mxu0
        %v7249 = vadd.f32 %v4339, %v7248
        %v7250 = vpop.f32.mrb[0].mxu0
        %v7251 = vadd.f32 %v4340, %v7250
        %v7252 = vpop.f32.mrb[0].mxu0
        %v7253 = vadd.f32 %v4341, %v7252
        %v7254 = vpop.f32.mrb[0].mxu0
        %v7255 = vadd.f32 %v4342, %v7254
        %7256 = vmatprep.mubr.bf16.mxu0 0
        %7257 = vmatmul.mubr.bf16.gmra.mrb[0].mxu0 %v7132
        %v7258 = vpop.f32.mrb[0].mxu0
        %v7259 = vadd.f32 %v4343, %v7258
        %v7260 = vpop.f32.mrb[0].mxu0
        %v7261 = vadd.f32 %v4344, %v7260
        %v7262 = vpop.f32.mrb[0].mxu0
        %v7263 = vadd.f32 %v4345, %v7262
        %v7264 = vpop.f32.mrb[0].mxu0
        %v7265 = vadd.f32 %v4346, %v7264
        %7266 = vmatprep.mubr.bf16.mxu0 0
        %7267 = vmatmul.mubr.bf16.gmra.mrb[0].mxu0 %v7135
        %v7268 = vpop.f32.mrb[0].mxu0
        %v7269 = vadd.f32 %v4347, %v7268
        %v7270 = vpop.f32.mrb[0].mxu0
        %v7271 = vadd.f32 %v4348, %v7270
        %v7272 = vpop.f32.mrb[0].mxu0
        %v7273 = vadd.f32 %v4349, %v7272
        %v7274 = vpop.f32.mrb[0].mxu0
        %v7275 = vadd.f32 %v4350, %v7274
        %7276 = vmatprep.mubr.bf16.mxu0 0
        %7277 = vmatmul.mubr.bf16.gmra.mrb[0].mxu0 %v7138
        %v7278 = vpop.f32.mrb[0].mxu0
        %v7279 = vadd.f32 %v4351, %v7278
        %v7280 = vpop.f32.mrb[0].mxu0
        %v7281 = vadd.f32 %v4352, %v7280
        %v7282 = vpop.f32.mrb[0].mxu0
        %v7283 = vadd.f32 %v4353, %v7282
        %v7284 = vpop.f32.mrb[0].mxu0
        %v7285 = vadd.f32 %v4354, %v7284
        %7286 = vmatprep.mubr.bf16.mxu0 0
        %7287 = vmatmul.mubr.bf16.gmra.mrb[0].mxu0 %v7141
        %v7288 = vpop.f32.mrb[0].mxu0
        %v7289 = vadd.f32 %v4355, %v7288
        %v7290 = vpop.f32.mrb[0].mxu0
        %v7291 = vadd.f32 %v4356, %v7290
        %v7292 = vpop.f32.mrb[0].mxu0
        %v7293 = vadd.f32 %v4357, %v7292
        %v7294 = vpop.f32.mrb[0].mxu0
        %v7295 = vadd.f32 %v4358, %v7294
        %7296 = vmatprep.mubr.bf16.mxu0 0
        %7297 = vmatmul.mubr.bf16.gmra.mrb[0].mxu0 %v7144
        %v7298 = vpop.f32.mrb[0].mxu0
        %v7299 = vadd.f32 %v4359, %v7298
        %v7300 = vpop.f32.mrb[0].mxu0
        %v7301 = vadd.f32 %v4360, %v7300
        %v7302 = vpop.f32.mrb[0].mxu0
        %v7303 = vadd.f32 %v4361, %v7302
        %v7304 = vpop.f32.mrb[0].mxu0
        %v7305 = vadd.f32 %v4362, %v7304
        %7306 = vdwg.mxu0
        %v7307 = vmax.f32 %v7229, %v7231
        %7308 = vmax.xlane.f32.xlu0 %v7307
        %v7309 = vpop.xlane.xlu0 %7308
        %v7310 = vmax.f32 %v7233, %v7235
        %7311 = vmax.xlane.f32.xlu0 %v7310
        %v7312 = vpop.xlane.xlu0 %7311
        %v7313 = vmax.f32 %v7239, %v7241
        %7314 = vmax.xlane.f32.xlu0 %v7313
        %v7315 = vpop.xlane.xlu0 %7314
        %v7316 = vmax.f32 %v7243, %v7245
        %7317 = vmax.xlane.f32.xlu0 %v7316
        %v7318 = vpop.xlane.xlu0 %7317
        %v7319 = vmax.f32 %v7249, %v7251
        %7320 = vmax.xlane.f32.xlu0 %v7319
        %v7321 = vpop.xlane.xlu0 %7320
        %v7322 = vmax.f32 %v7253, %v7255
        %7323 = vmax.xlane.f32.xlu0 %v7322
        %v7324 = vpop.xlane.xlu0 %7323
        %v7325 = vmax.f32 %v7259, %v7261
        %7326 = vmax.xlane.f32.xlu0 %v7325
        %v7327 = vpop.xlane.xlu0 %7326
        %v7328 = vmax.f32 %v7263, %v7265
        %7329 = vmax.xlane.f32.xlu0 %v7328
        %v7330 = vpop.xlane.xlu0 %7329
        %v7331 = vmax.f32 %v7269, %v7271
        %7332 = vmax.xlane.f32.xlu0 %v7331
        %v7333 = vpop.xlane.xlu0 %7332
        %v7334 = vmax.f32 %v7273, %v7275
        %7335 = vmax.xlane.f32.xlu0 %v7334
        %v7336 = vpop.xlane.xlu0 %7335
        %v7337 = vmax.f32 %v7279, %v7281
        %7338 = vmax.xlane.f32.xlu0 %v7337
        %v7339 = vpop.xlane.xlu0 %7338
        %v7340 = vmax.f32 %v7283, %v7285
        %7341 = vmax.xlane.f32.xlu0 %v7340
        %v7342 = vpop.xlane.xlu0 %7341
        %v7343 = vmax.f32 %v7289, %v7291
        %7344 = vmax.xlane.f32.xlu0 %v7343
        %v7345 = vpop.xlane.xlu0 %7344
        %v7346 = vmax.f32 %v7293, %v7295
        %7347 = vmax.xlane.f32.xlu0 %v7346
        %v7348 = vpop.xlane.xlu0 %7347
        %v7349 = vmax.f32 %v7299, %v7301
        %7350 = vmax.xlane.f32.xlu0 %v7349
        %v7351 = vpop.xlane.xlu0 %7350
        %v7352 = vmax.f32 %v7303, %v7305
        %7353 = vmax.xlane.f32.xlu0 %v7352
        %v7354 = vpop.xlane.xlu0 %7353
        %v7355 = vsub.f32 %v7229, %v7309
        %v7356 = vsub.f32 %v7231, %v7309
        %v7357 = vsub.f32 %v7233, %v7312
        %v7358 = vsub.f32 %v7235, %v7312
        %v7359 = vsub.f32 %v7239, %v7315
        %v7360 = vsub.f32 %v7241, %v7315
        %v7361 = vsub.f32 %v7243, %v7318
        %v7362 = vsub.f32 %v7245, %v7318
        %v7363 = vsub.f32 %v7249, %v7321
        %v7364 = vsub.f32 %v7251, %v7321
        %v7365 = vsub.f32 %v7253, %v7324
        %v7366 = vsub.f32 %v7255, %v7324
        %v7367 = vsub.f32 %v7259, %v7327
        %v7368 = vsub.f32 %v7261, %v7327
        %v7369 = vsub.f32 %v7263, %v7330
        %v7370 = vsub.f32 %v7265, %v7330
        %v7371 = vsub.f32 %v7269, %v7333
        %v7372 = vsub.f32 %v7271, %v7333
        %v7373 = vsub.f32 %v7273, %v7336
        %v7374 = vsub.f32 %v7275, %v7336
        %v7375 = vsub.f32 %v7279, %v7339
        %v7376 = vsub.f32 %v7281, %v7339
        %v7377 = vsub.f32 %v7283, %v7342
        %v7378 = vsub.f32 %v7285, %v7342
        %v7379 = vsub.f32 %v7289, %v7345
        %v7380 = vsub.f32 %v7291, %v7345
        %v7381 = vsub.f32 %v7293, %v7348
        %v7382 = vsub.f32 %v7295, %v7348
        %v7383 = vsub.f32 %v7299, %v7351
        %v7384 = vsub.f32 %v7301, %v7351
        %v7385 = vsub.f32 %v7303, %v7354
        %v7386 = vsub.f32 %v7305, %v7354
        %v7387 = vmul.f32 %v7355, 1.442695
        %v7388 = vpow.pop %v7387
        %v7389 = vmul.f32 %v7356, 1.442695
        %v7390 = vpow.pop %v7389
        %v7391 = vmul.f32 %v7357, 1.442695
        %v7392 = vpow.pop %v7391
        %v7393 = vmul.f32 %v7358, 1.442695
        %v7394 = vpow.pop %v7393
        %v7395 = vmul.f32 %v7359, 1.442695
        %v7396 = vpow.pop %v7395
        %v7397 = vmul.f32 %v7360, 1.442695
        %v7398 = vpow.pop %v7397
        %v7399 = vmul.f32 %v7361, 1.442695
        %v7400 = vpow.pop %v7399
        %v7401 = vmul.f32 %v7362, 1.442695
        %v7402 = vpow.pop %v7401
        %v7403 = vmul.f32 %v7363, 1.442695
        %v7404 = vpow.pop %v7403
        %v7405 = vmul.f32 %v7364, 1.442695
        %v7406 = vpow.pop %v7405
        %v7407 = vmul.f32 %v7365, 1.442695
        %v7408 = vpow.pop %v7407
        %v7409 = vmul.f32 %v7366, 1.442695
        %v7410 = vpow.pop %v7409
        %v7411 = vmul.f32 %v7367, 1.442695
        %v7412 = vpow.pop %v7411
        %v7413 = vmul.f32 %v7368, 1.442695
        %v7414 = vpow.pop %v7413
        %v7415 = vmul.f32 %v7369, 1.442695
        %v7416 = vpow.pop %v7415
        %v7417 = vmul.f32 %v7370, 1.442695
        %v7418 = vpow.pop %v7417
        %v7419 = vmul.f32 %v7371, 1.442695
        %v7420 = vpow.pop %v7419
        %v7421 = vmul.f32 %v7372, 1.442695
        %v7422 = vpow.pop %v7421
        %v7423 = vmul.f32 %v7373, 1.442695
        %v7424 = vpow.pop %v7423
        %v7425 = vmul.f32 %v7374, 1.442695
        %v7426 = vpow.pop %v7425
        %v7427 = vmul.f32 %v7375, 1.442695
        %v7428 = vpow.pop %v7427
        %v7429 = vmul.f32 %v7376, 1.442695
        %v7430 = vpow.pop %v7429
        %v7431 = vmul.f32 %v7377, 1.442695
        %v7432 = vpow.pop %v7431
        %v7433 = vmul.f32 %v7378, 1.442695
        %v7434 = vpow.pop %v7433
        %v7435 = vmul.f32 %v7379, 1.442695
        %v7436 = vpow.pop %v7435
        %v7437 = vmul.f32 %v7380, 1.442695
        %v7438 = vpow.pop %v7437
        %v7439 = vmul.f32 %v7381, 1.442695
        %v7440 = vpow.pop %v7439
        %v7441 = vmul.f32 %v7382, 1.442695
        %v7442 = vpow.pop %v7441
        %v7443 = vmul.f32 %v7383, 1.442695
        %v7444 = vpow.pop %v7443
        %v7445 = vmul.f32 %v7384, 1.442695
        %v7446 = vpow.pop %v7445
        %v7447 = vmul.f32 %v7385, 1.442695
        %v7448 = vpow.pop %v7447
        %v7449 = vmul.f32 %v7386, 1.442695
        %v7450 = vpow.pop %v7449
        %v7451 = vadd.f32 %v7388, %v7390
        %7452 = vadd.xlane.f32.xlu0 %v7451
        %v7453 = vpop.xlane.xlu0 %7452
        %v7454 = vadd.f32 %v7392, %v7394
        %7455 = vadd.xlane.f32.xlu0 %v7454
        %v7456 = vpop.xlane.xlu0 %7455
        %v7457 = vadd.f32 %v7396, %v7398
        %7458 = vadd.xlane.f32.xlu0 %v7457
        %v7459 = vpop.xlane.xlu0 %7458
        %v7460 = vadd.f32 %v7400, %v7402
        %7461 = vadd.xlane.f32.xlu0 %v7460
        %v7462 = vpop.xlane.xlu0 %7461
        %v7463 = vadd.f32 %v7404, %v7406
        %7464 = vadd.xlane.f32.xlu0 %v7463
        %v7465 = vpop.xlane.xlu0 %7464
        %v7466 = vadd.f32 %v7408, %v7410
        %7467 = vadd.xlane.f32.xlu0 %v7466
        %v7468 = vpop.xlane.xlu0 %7467
        %v7469 = vadd.f32 %v7412, %v7414
        %7470 = vadd.xlane.f32.xlu0 %v7469
        %v7471 = vpop.xlane.xlu0 %7470
        %v7472 = vadd.f32 %v7416, %v7418
        %7473 = vadd.xlane.f32.xlu0 %v7472
        %v7474 = vpop.xlane.xlu0 %7473
        %v7475 = vadd.f32 %v7420, %v7422
        %7476 = vadd.xlane.f32.xlu0 %v7475
        %v7477 = vpop.xlane.xlu0 %7476
        %v7478 = vadd.f32 %v7424, %v7426
        %7479 = vadd.xlane.f32.xlu0 %v7478
        %v7480 = vpop.xlane.xlu0 %7479
        %v7481 = vadd.f32 %v7428, %v7430
        %7482 = vadd.xlane.f32.xlu0 %v7481
        %v7483 = vpop.xlane.xlu0 %7482
        %v7484 = vadd.f32 %v7432, %v7434
        %7485 = vadd.xlane.f32.xlu0 %v7484
        %v7486 = vpop.xlane.xlu0 %7485
        %v7487 = vadd.f32 %v7436, %v7438
        %7488 = vadd.xlane.f32.xlu0 %v7487
        %v7489 = vpop.xlane.xlu0 %7488
        %v7490 = vadd.f32 %v7440, %v7442
        %7491 = vadd.xlane.f32.xlu0 %v7490
        %v7492 = vpop.xlane.xlu0 %7491
        %v7493 = vadd.f32 %v7444, %v7446
        %7494 = vadd.xlane.f32.xlu0 %v7493
        %v7495 = vpop.xlane.xlu0 %7494
        %v7496 = vadd.f32 %v7448, %v7450
        %7497 = vadd.xlane.f32.xlu0 %v7496
        %v7498 = vpop.xlane.xlu0 %7497
        %v7499 = vrcp.pop %v7453
        %v7500 = vrcp.pop %v7456
        %v7501 = vrcp.pop %v7459
        %v7502 = vrcp.pop %v7462
        %v7503 = vrcp.pop %v7465
        %v7504 = vrcp.pop %v7468
        %v7505 = vrcp.pop %v7471
        %v7506 = vrcp.pop %v7474
        %v7507 = vrcp.pop %v7477
        %v7508 = vrcp.pop %v7480
        %v7509 = vrcp.pop %v7483
        %v7510 = vrcp.pop %v7486
        %v7511 = vrcp.pop %v7489
        %v7512 = vrcp.pop %v7492
        %v7513 = vrcp.pop %v7495
        %v7514 = vrcp.pop %v7498
        %v7515 = vmul.f32 %v7388, %v7499
        %v7516 = vmul.f32 %v7390, %v7499
        %v7517 = vmul.f32 %v7392, %v7500
        %v7518 = vmul.f32 %v7394, %v7500
        %v7519 = vmul.f32 %v7396, %v7501
        %v7520 = vmul.f32 %v7398, %v7501
        %v7521 = vmul.f32 %v7400, %v7502
        %v7522 = vmul.f32 %v7402, %v7502
        %v7523 = vmul.f32 %v7404, %v7503
        %v7524 = vmul.f32 %v7406, %v7503
        %v7525 = vmul.f32 %v7408, %v7504
        %v7526 = vmul.f32 %v7410, %v7504
        %v7527 = vmul.f32 %v7412, %v7505
        %v7528 = vmul.f32 %v7414, %v7505
        %v7529 = vmul.f32 %v7416, %v7506
        %v7530 = vmul.f32 %v7418, %v7506
        %v7531 = vmul.f32 %v7420, %v7507
        %v7532 = vmul.f32 %v7422, %v7507
        %v7533 = vmul.f32 %v7424, %v7508
        %v7534 = vmul.f32 %v7426, %v7508
        %v7535 = vmul.f32 %v7428, %v7509
        %v7536 = vmul.f32 %v7430, %v7509
        %v7537 = vmul.f32 %v7432, %v7510
        %v7538 = vmul.f32 %v7434, %v7510
        %v7539 = vmul.f32 %v7436, %v7511
        %v7540 = vmul.f32 %v7438, %v7511
        %v7541 = vmul.f32 %v7440, %v7512
        %v7542 = vmul.f32 %v7442, %v7512
        %v7543 = vmul.f32 %v7444, %v7513
        %v7544 = vmul.f32 %v7446, %v7513
        %v7545 = vmul.f32 %v7448, %v7514
        %v7546 = vmul.f32 %v7450, %v7514
        %v7547 = vpack.c.bf16 %v7517, %v7515
        %v7548 = vpack.c.bf16 %v7518, %v7516
        %v7549 = vpack.c.bf16 %v7521, %v7519
        %v7550 = vpack.c.bf16 %v7522, %v7520
        %v7551 = vpack.c.bf16 %v7525, %v7523
        %v7552 = vpack.c.bf16 %v7526, %v7524
        %v7553 = vpack.c.bf16 %v7529, %v7527
        %v7554 = vpack.c.bf16 %v7530, %v7528
        %v7555 = vpack.c.bf16 %v7533, %v7531
        %v7556 = vpack.c.bf16 %v7534, %v7532
        %v7557 = vpack.c.bf16 %v7537, %v7535
        %v7558 = vpack.c.bf16 %v7538, %v7536
        %v7559 = vpack.c.bf16 %v7541, %v7539
        %v7560 = vpack.c.bf16 %v7542, %v7540
        %v7561 = vpack.c.bf16 %v7545, %v7543
        %v7562 = vpack.c.bf16 %v7546, %v7544
        %7563 = vmatprep.subr.bf16.mxu0 0
        %7564 = vmatpush1.bf16.msra.mxu0 %v7106
        %7565 = vmatprep.subr.bf16.mxu0 0
        %7566 = vmatpush1.bf16.msra.mxu0 %v7107
        %7567 = vmatprep.subr.bf16.mxu0 0
        %7568 = vmatpush1.bf16.msra.mxu0 %v7108
        %7569 = vmatprep.subr.bf16.mxu0 0
        %7570 = vmatpush1.bf16.msra.mxu0 %v7109
        %7571 = vmatprep.subr.bf16.mxu0 0
        %7572 = vmatpush1.bf16.msra.mxu0 %v7110
        %7573 = vmatprep.subr.bf16.mxu0 0
        %7574 = vmatpush1.bf16.msra.mxu0 %v7111
        %7575 = vmatprep.subr.bf16.mxu0 0
        %7576 = vmatpush1.bf16.msra.mxu0 %v7112
        %7577 = vmatprep.subr.bf16.mxu0 0
        %7578 = vmatpush1.bf16.msra.mxu0 %v7113
        %7579 = vmatprep.subr.bf16.mxu0 0
        %7580 = vmatpush1.bf16.msra.mxu0 %v7114
        %7581 = vmatprep.subr.bf16.mxu0 0
        %7582 = vmatpush1.bf16.msra.mxu0 %v7115
        %7583 = vmatprep.subr.bf16.mxu0 0
        %7584 = vmatpush1.bf16.msra.mxu0 %v7116
        %7585 = vmatprep.subr.bf16.mxu0 0
        %7586 = vmatpush1.bf16.msra.mxu0 %v7117
        %7587 = vmatprep.subr.bf16.mxu0 0
        %7588 = vmatpush1.bf16.msra.mxu0 %v7118
        %7589 = vmatprep.subr.bf16.mxu0 0
        %7590 = vmatpush1.bf16.msra.mxu0 %v7119
        %7591 = vmatprep.subr.bf16.mxu0 0
        %7592 = vmatpush1.bf16.msra.mxu0 %v7120
        %7593 = vmatprep.subr.bf16.mxu0 0
        %7594 = vmatpush1.bf16.msra.mxu0 %v7121
        %7595 = vmatprep.mubr.bf16.mxu0 %v7548
        %7596 = vmatmul.mubr.bf16.gmra.mrb[0].mxu0 %v7547
        %v7597 = vpop.f32.mrb[0].mxu0
        %v7598 = vadd.f32 0.0, %v7597
        %v7599 = vpop.f32.mrb[0].mxu0
        %v7600 = vpop.f32.mrb[0].mxu0
        %v7601 = vadd.f32 0.0, %v7600
        %v7602 = vpop.f32.mrb[0].mxu0
        %7603 = vmatprep.mubr.bf16.mxu0 %v7550
        %7604 = vmatmul.mubr.bf16.gmra.mrb[0].mxu0 %v7549
        %v7605 = vpop.f32.mrb[0].mxu0
        %v7606 = vadd.f32 0.0, %v7605
        %v7607 = vpop.f32.mrb[0].mxu0
        %v7608 = vpop.f32.mrb[0].mxu0
        %v7609 = vadd.f32 0.0, %v7608
        %v7610 = vpop.f32.mrb[0].mxu0
        %7611 = vmatprep.mubr.bf16.mxu0 %v7552
        %7612 = vmatmul.mubr.bf16.gmra.mrb[0].mxu0 %v7551
        %v7613 = vpop.f32.mrb[0].mxu0
        %v7614 = vadd.f32 0.0, %v7613
        %v7615 = vpop.f32.mrb[0].mxu0
        %v7616 = vpop.f32.mrb[0].mxu0
        %v7617 = vadd.f32 0.0, %v7616
        %v7618 = vpop.f32.mrb[0].mxu0
        %7619 = vmatprep.mubr.bf16.mxu0 %v7554
        %7620 = vmatmul.mubr.bf16.gmra.mrb[0].mxu0 %v7553
        %v7621 = vpop.f32.mrb[0].mxu0
        %v7622 = vadd.f32 0.0, %v7621
        %v7623 = vpop.f32.mrb[0].mxu0
        %v7624 = vpop.f32.mrb[0].mxu0
        %v7625 = vadd.f32 0.0, %v7624
        %v7626 = vpop.f32.mrb[0].mxu0
        %7627 = vmatprep.mubr.bf16.mxu0 %v7556
        %7628 = vmatmul.mubr.bf16.gmra.mrb[0].mxu0 %v7555
        %v7629 = vpop.f32.mrb[0].mxu0
        %v7630 = vadd.f32 0.0, %v7629
        %v7631 = vpop.f32.mrb[0].mxu0
        %v7632 = vpop.f32.mrb[0].mxu0
        %v7633 = vadd.f32 0.0, %v7632
        %v7634 = vpop.f32.mrb[0].mxu0
        %7635 = vmatprep.mubr.bf16.mxu0 %v7558
        %7636 = vmatmul.mubr.bf16.gmra.mrb[0].mxu0 %v7557
        %v7637 = vpop.f32.mrb[0].mxu0
        %v7638 = vadd.f32 0.0, %v7637
        %v7639 = vpop.f32.mrb[0].mxu0
        %v7640 = vpop.f32.mrb[0].mxu0
        %v7641 = vadd.f32 0.0, %v7640
        %v7642 = vpop.f32.mrb[0].mxu0
        %7643 = vmatprep.mubr.bf16.mxu0 %v7560
        %7644 = vmatmul.mubr.bf16.gmra.mrb[0].mxu0 %v7559
        %v7645 = vpop.f32.mrb[0].mxu0
        %v7646 = vadd.f32 0.0, %v7645
        %v7647 = vpop.f32.mrb[0].mxu0
        %v7648 = vpop.f32.mrb[0].mxu0
        %v7649 = vadd.f32 0.0, %v7648
        %v7650 = vpop.f32.mrb[0].mxu0
        %7651 = vmatprep.mubr.bf16.mxu0 %v7562
        %7652 = vmatmul.mubr.bf16.gmra.mrb[0].mxu0 %v7561
        %v7653 = vpop.f32.mrb[0].mxu0
        %v7654 = vadd.f32 0.0, %v7653
        %v7655 = vpop.f32.mrb[0].mxu0
        %v7656 = vpop.f32.mrb[0].mxu0
        %v7657 = vadd.f32 0.0, %v7656
        %v7658 = vpop.f32.mrb[0].mxu0
        %7659 = vdwg.mxu0
        %v7660 = vpack.c.bf16 %v7601, %v7598
        %v7661 = vpack.c.bf16 %v7609, %v7606
        %v7662 = vpack.c.bf16 %v7617, %v7614
        %v7663 = vpack.c.bf16 %v7625, %v7622
        %v7664 = vpack.c.bf16 %v7633, %v7630
        %v7665 = vpack.c.bf16 %v7641, %v7638
        %v7666 = vpack.c.bf16 %v7649, %v7646
        %v7667 = vpack.c.bf16 %v7657, %v7654
        %7668 = vst.msk [vmem:[#allocation3 + $0x10] sm:$0xff] %vm4408, %v7660
        %7669 = vst.msk [vmem:[#allocation3 + $0x28] sm:$0xff] %vm4408, %v7661
        %7670 = vst.msk [vmem:[#allocation3 + $0x40] sm:$0xff] %vm4408, %v7662
        %7671 = vst.msk [vmem:[#allocation3 + $0x58] sm:$0xff] %vm4408, %v7663
        %7672 = vst.msk [vmem:[#allocation3 + $0x70] sm:$0xff] %vm4408, %v7664
        %7673 = vst.msk [vmem:[#allocation3 + $0x88] sm:$0xff] %vm4408, %v7665
        %7674 = vst.msk [vmem:[#allocation3 + $0xa0] sm:$0xff] %vm4408, %v7666
        %7675 = vst.msk [vmem:[#allocation3 + $0xb8] sm:$0xff] %vm4408, %v7667
        %v7676 = vld [vmem:[%s4367 + $0x10] sm:$0xff]
        %v7677 = vld [vmem:[%s4367 + $0x58] sm:$0xff]
        %v7678 = vld [vmem:[%s4367 + $0xa0] sm:$0xff]
        %v7679 = vld [vmem:[%s4367 + $0xe8] sm:$0xff]
        %v7680 = vld [vmem:[%s4367 + $0x130] sm:$0xff]
        %v7681 = vld [vmem:[%s4367 + $0x178] sm:$0xff]
        %v7682 = vld [vmem:[%s4367 + $0x1c0] sm:$0xff]
        %v7683 = vld [vmem:[%s4367 + $0x208] sm:$0xff]
        %v7684 = vld [vmem:[#allocation2 + $0x28] sm:$0xff]
        %v7685 = vld [vmem:[#allocation2 + $0x70] sm:$0xff]
        %v7686 = vld [vmem:[#allocation2 + $0xb8] sm:$0xff]
        %v7687 = vld [vmem:[#allocation2 + $0x100] sm:$0xff]
        %v7688 = vld [vmem:[#allocation2 + $0x148] sm:$0xff]
        %v7689 = vld [vmem:[#allocation2 + $0x190] sm:$0xff]
        %v7690 = vld [vmem:[#allocation2 + $0x1d8] sm:$0xff]
        %v7691 = vld [vmem:[#allocation2 + $0x220] sm:$0xff]
        %v7692 = vld [vmem:[#allocation2 + $0x268] sm:$0xff]
        %v7693 = vld [vmem:[#allocation2 + $0x2b0] sm:$0xff]
        %v7694 = vld [vmem:[#allocation2 + $0x2f8] sm:$0xff]
        %v7695 = vld [vmem:[#allocation2 + $0x340] sm:$0xff]
        %v7696 = vld [vmem:[#allocation2 + $0x388] sm:$0xff]
        %v7697 = vld [vmem:[#allocation2 + $0x3d0] sm:$0xff]
        %v7698 = vld [vmem:[#allocation2 + $0x418] sm:$0xff]
        %v7699 = vld [vmem:[#allocation2 + $0x460] sm:$0xff]
        %v7700 = vld [vmem:[#allocation2 + $0x40] sm:$0xff]
        %v7701 = vld [vmem:[#allocation2 + $0x88] sm:$0xff]
        %v7702 = vld [vmem:[#allocation2 + $0xd0] sm:$0xff]
        %v7703 = vld [vmem:[#allocation2 + $0x118] sm:$0xff]
        %v7704 = vld [vmem:[#allocation2 + $0x160] sm:$0xff]
        %v7705 = vld [vmem:[#allocation2 + $0x1a8] sm:$0xff]
        %v7706 = vld [vmem:[#allocation2 + $0x1f0] sm:$0xff]
        %v7707 = vld [vmem:[#allocation2 + $0x238] sm:$0xff]
        %v7708 = vld [vmem:[#allocation2 + $0x280] sm:$0xff]
        %v7709 = vld [vmem:[#allocation2 + $0x2c8] sm:$0xff]
        %v7710 = vld [vmem:[#allocation2 + $0x310] sm:$0xff]
        %v7711 = vld [vmem:[#allocation2 + $0x358] sm:$0xff]
        %v7712 = vld [vmem:[#allocation2 + $0x3a0] sm:$0xff]
        %v7713 = vld [vmem:[#allocation2 + $0x3e8] sm:$0xff]
        %v7714 = vld [vmem:[#allocation2 + $0x430] sm:$0xff]
        %v7715 = vld [vmem:[#allocation2 + $0x478] sm:$0xff]
        %7724 = vrot.lane.b32.xlu0 %v7676, 64
        %v7725 = vpop.permute.xlu0 %7724
        %7726 = vrot.lane.b32.xlu0 %v7677, 64
        %v7727 = vpop.permute.xlu0 %7726
        %7728 = vrot.lane.b32.xlu0 %v7678, 64
        %v7729 = vpop.permute.xlu0 %7728
        %7730 = vrot.lane.b32.xlu0 %v7679, 64
        %v7731 = vpop.permute.xlu0 %7730
        %7732 = vrot.lane.b32.xlu0 %v7680, 64
        %v7733 = vpop.permute.xlu0 %7732
        %7734 = vrot.lane.b32.xlu0 %v7681, 64
        %v7735 = vpop.permute.xlu0 %7734
        %7736 = vrot.lane.b32.xlu0 %v7682, 64
        %v7737 = vpop.permute.xlu0 %7736
        %7738 = vrot.lane.b32.xlu0 %v7683, 64
        %v7739 = vpop.permute.xlu0 %7738
        %7756 = vrot.lane.b32.xlu0 %v7684, 64
        %v7757 = vpop.permute.xlu0 %7756
        %7758 = vrot.lane.b32.xlu0 %v7685, 64
        %v7759 = vpop.permute.xlu0 %7758
        %7760 = vrot.lane.b32.xlu0 %v7686, 64
        %v7761 = vpop.permute.xlu0 %7760
        %7762 = vrot.lane.b32.xlu0 %v7687, 64
        %v7763 = vpop.permute.xlu0 %7762
        %7764 = vrot.lane.b32.xlu0 %v7688, 64
        %v7765 = vpop.permute.xlu0 %7764
        %7766 = vrot.lane.b32.xlu0 %v7689, 64
        %v7767 = vpop.permute.xlu0 %7766
        %7768 = vrot.lane.b32.xlu0 %v7690, 64
        %v7769 = vpop.permute.xlu0 %7768
        %7770 = vrot.lane.b32.xlu0 %v7691, 64
        %v7771 = vpop.permute.xlu0 %7770
        %7772 = vrot.lane.b32.xlu0 %v7692, 64
        %v7773 = vpop.permute.xlu0 %7772
        %7774 = vrot.lane.b32.xlu0 %v7693, 64
        %v7775 = vpop.permute.xlu0 %7774
        %7776 = vrot.lane.b32.xlu0 %v7694, 64
        %v7777 = vpop.permute.xlu0 %7776
        %7778 = vrot.lane.b32.xlu0 %v7695, 64
        %v7779 = vpop.permute.xlu0 %7778
        %7780 = vrot.lane.b32.xlu0 %v7696, 64
        %v7781 = vpop.permute.xlu0 %7780
        %7782 = vrot.lane.b32.xlu0 %v7697, 64
        %v7783 = vpop.permute.xlu0 %7782
        %7784 = vrot.lane.b32.xlu0 %v7698, 64
        %v7785 = vpop.permute.xlu0 %7784
        %7786 = vrot.lane.b32.xlu0 %v7699, 64
        %v7787 = vpop.permute.xlu0 %7786
        %v7789 = vsel %vm4408, %v7725, 0
        %v7792 = vsel %vm4408, %v7727, 0
        %v7795 = vsel %vm4408, %v7729, 0
        %v7798 = vsel %vm4408, %v7731, 0
        %v7801 = vsel %vm4408, %v7733, 0
        %v7804 = vsel %vm4408, %v7735, 0
        %v7807 = vsel %vm4408, %v7737, 0
        %v7810 = vsel %vm4408, %v7739, 0
        %v7813 = vsel %vm4408, %v7757, 0
        %v7816 = vsel %vm4408, %v7759, 0
        %v7819 = vsel %vm4408, %v7761, 0
        %v7822 = vsel %vm4408, %v7763, 0
        %v7825 = vsel %vm4408, %v7765, 0
        %v7828 = vsel %vm4408, %v7767, 0
        %v7831 = vsel %vm4408, %v7769, 0
        %v7834 = vsel %vm4408, %v7771, 0
        %v7837 = vsel %vm4408, %v7773, 0
        %v7840 = vsel %vm4408, %v7775, 0
        %v7843 = vsel %vm4408, %v7777, 0
        %v7846 = vsel %vm4408, %v7779, 0
        %v7849 = vsel %vm4408, %v7781, 0
        %v7852 = vsel %vm4408, %v7783, 0
        %v7855 = vsel %vm4408, %v7785, 0
        %v7858 = vsel %vm4408, %v7787, 0
        %7860 = vmatprep.subr.bf16.mxu0 0
        %7861 = vmatpush1.bf16.xpose.msra.mxu0 %v7813
        %7862 = vmatprep.subr.bf16.mxu0 0
        %7863 = vmatpush1.bf16.xpose.msra.mxu0 %v7816
        %7864 = vmatprep.subr.bf16.mxu0 0
        %7865 = vmatpush1.bf16.xpose.msra.mxu0 %v7819
        %7866 = vmatprep.subr.bf16.mxu0 0
        %7867 = vmatpush1.bf16.xpose.msra.mxu0 %v7822
        %7868 = vmatprep.subr.bf16.mxu0 0
        %7869 = vmatpush1.bf16.xpose.msra.mxu0 %v7825
        %7870 = vmatprep.subr.bf16.mxu0 0
        %7871 = vmatpush1.bf16.xpose.msra.mxu0 %v7828
        %7872 = vmatprep.subr.bf16.mxu0 0
        %7873 = vmatpush1.bf16.xpose.msra.mxu0 %v7831
        %7874 = vmatprep.subr.bf16.mxu0 0
        %7875 = vmatpush1.bf16.xpose.msra.mxu0 %v7834
        %7876 = vmatprep.subr.bf16.mxu0 0
        %7877 = vmatpush1.bf16.xpose.msra.mxu0 %v7837
        %7878 = vmatprep.subr.bf16.mxu0 0
        %7879 = vmatpush1.bf16.xpose.msra.mxu0 %v7840
        %7880 = vmatprep.subr.bf16.mxu0 0
        %7881 = vmatpush1.bf16.xpose.msra.mxu0 %v7843
        %7882 = vmatprep.subr.bf16.mxu0 0
        %7883 = vmatpush1.bf16.xpose.msra.mxu0 %v7846
        %7884 = vmatprep.subr.bf16.mxu0 0
        %7885 = vmatpush1.bf16.xpose.msra.mxu0 %v7849
        %7886 = vmatprep.subr.bf16.mxu0 0
        %7887 = vmatpush1.bf16.xpose.msra.mxu0 %v7852
        %7888 = vmatprep.subr.bf16.mxu0 0
        %7889 = vmatpush1.bf16.xpose.msra.mxu0 %v7855
        %7890 = vmatprep.subr.bf16.mxu0 0
        %7891 = vmatpush1.bf16.xpose.msra.mxu0 %v7858
        %7892 = vmatprep.mubr.bf16.mxu0 0
        %7893 = vmatmul.mubr.bf16.gmra.mrb[0].mxu0 %v7789
        %v7894 = vpop.f32.mrb[0].mxu0
        %v7895 = vadd.f32 %v4331, %v7894
        %v7896 = vpop.f32.mrb[0].mxu0
        %v7897 = vadd.f32 %v4332, %v7896
        %v7898 = vpop.f32.mrb[0].mxu0
        %v7899 = vadd.f32 %v4333, %v7898
        %v7900 = vpop.f32.mrb[0].mxu0
        %v7901 = vadd.f32 %v4334, %v7900
        %7902 = vmatprep.mubr.bf16.mxu0 0
        %7903 = vmatmul.mubr.bf16.gmra.mrb[0].mxu0 %v7792
        %v7904 = vpop.f32.mrb[0].mxu0
        %v7905 = vadd.f32 %v4335, %v7904
        %v7906 = vpop.f32.mrb[0].mxu0
        %v7907 = vadd.f32 %v4336, %v7906
        %v7908 = vpop.f32.mrb[0].mxu0
        %v7909 = vadd.f32 %v4337, %v7908
        %v7910 = vpop.f32.mrb[0].mxu0
        %v7911 = vadd.f32 %v4338, %v7910
        %7912 = vmatprep.mubr.bf16.mxu0 0
        %7913 = vmatmul.mubr.bf16.gmra.mrb[0].mxu0 %v7795
        %v7914 = vpop.f32.mrb[0].mxu0
        %v7915 = vadd.f32 %v4339, %v7914
        %v7916 = vpop.f32.mrb[0].mxu0
        %v7917 = vadd.f32 %v4340, %v7916
        %v7918 = vpop.f32.mrb[0].mxu0
        %v7919 = vadd.f32 %v4341, %v7918
        %v7920 = vpop.f32.mrb[0].mxu0
        %v7921 = vadd.f32 %v4342, %v7920
        %7922 = vmatprep.mubr.bf16.mxu0 0
        %7923 = vmatmul.mubr.bf16.gmra.mrb[0].mxu0 %v7798
        %v7924 = vpop.f32.mrb[0].mxu0
        %v7925 = vadd.f32 %v4343, %v7924
        %v7926 = vpop.f32.mrb[0].mxu0
        %v7927 = vadd.f32 %v4344, %v7926
        %v7928 = vpop.f32.mrb[0].mxu0
        %v7929 = vadd.f32 %v4345, %v7928
        %v7930 = vpop.f32.mrb[0].mxu0
        %v7931 = vadd.f32 %v4346, %v7930
        %7932 = vmatprep.mubr.bf16.mxu0 0
        %7933 = vmatmul.mubr.bf16.gmra.mrb[0].mxu0 %v7801
        %v7934 = vpop.f32.mrb[0].mxu0
        %v7935 = vadd.f32 %v4347, %v7934
        %v7936 = vpop.f32.mrb[0].mxu0
        %v7937 = vadd.f32 %v4348, %v7936
        %v7938 = vpop.f32.mrb[0].mxu0
        %v7939 = vadd.f32 %v4349, %v7938
        %v7940 = vpop.f32.mrb[0].mxu0
        %v7941 = vadd.f32 %v4350, %v7940
        %7942 = vmatprep.mubr.bf16.mxu0 0
        %7943 = vmatmul.mubr.bf16.gmra.mrb[0].mxu0 %v7804
        %v7944 = vpop.f32.mrb[0].mxu0
        %v7945 = vadd.f32 %v4351, %v7944
        %v7946 = vpop.f32.mrb[0].mxu0
        %v7947 = vadd.f32 %v4352, %v7946
        %v7948 = vpop.f32.mrb[0].mxu0
        %v7949 = vadd.f32 %v4353, %v7948
        %v7950 = vpop.f32.mrb[0].mxu0
        %v7951 = vadd.f32 %v4354, %v7950
        %7952 = vmatprep.mubr.bf16.mxu0 0
        %7953 = vmatmul.mubr.bf16.gmra.mrb[0].mxu0 %v7807
        %v7954 = vpop.f32.mrb[0].mxu0
        %v7955 = vadd.f32 %v4355, %v7954
        %v7956 = vpop.f32.mrb[0].mxu0
        %v7957 = vadd.f32 %v4356, %v7956
        %v7958 = vpop.f32.mrb[0].mxu0
        %v7959 = vadd.f32 %v4357, %v7958
        %v7960 = vpop.f32.mrb[0].mxu0
        %v7961 = vadd.f32 %v4358, %v7960
        %7962 = vmatprep.mubr.bf16.mxu0 0
        %7963 = vmatmul.mubr.bf16.gmra.mrb[0].mxu0 %v7810
        %v7964 = vpop.f32.mrb[0].mxu0
        %v7965 = vadd.f32 %v4359, %v7964
        %v7966 = vpop.f32.mrb[0].mxu0
        %v7967 = vadd.f32 %v4360, %v7966
        %v7968 = vpop.f32.mrb[0].mxu0
        %v7969 = vadd.f32 %v4361, %v7968
        %v7970 = vpop.f32.mrb[0].mxu0
        %v7971 = vadd.f32 %v4362, %v7970
        %7972 = vdwg.mxu0
        %v7973 = vmax.f32 %v7895, %v7897
        %7974 = vmax.xlane.f32.xlu0 %v7973
        %v7975 = vpop.xlane.xlu0 %7974
        %v7976 = vmax.f32 %v7899, %v7901
        %7977 = vmax.xlane.f32.xlu0 %v7976
        %v7978 = vpop.xlane.xlu0 %7977
        %v7979 = vmax.f32 %v7905, %v7907
        %7980 = vmax.xlane.f32.xlu0 %v7979
        %v7981 = vpop.xlane.xlu0 %7980
        %v7982 = vmax.f32 %v7909, %v7911
        %7983 = vmax.xlane.f32.xlu0 %v7982
        %v7984 = vpop.xlane.xlu0 %7983
        %v7985 = vmax.f32 %v7915, %v7917
        %7986 = vmax.xlane.f32.xlu0 %v7985
        %v7987 = vpop.xlane.xlu0 %7986
        %v7988 = vmax.f32 %v7919, %v7921
        %7989 = vmax.xlane.f32.xlu0 %v7988
        %v7990 = vpop.xlane.xlu0 %7989
        %v7991 = vmax.f32 %v7925, %v7927
        %7992 = vmax.xlane.f32.xlu0 %v7991
        %v7993 = vpop.xlane.xlu0 %7992
        %v7994 = vmax.f32 %v7929, %v7931
        %7995 = vmax.xlane.f32.xlu0 %v7994
        %v7996 = vpop.xlane.xlu0 %7995
        %v7997 = vmax.f32 %v7935, %v7937
        %7998 = vmax.xlane.f32.xlu0 %v7997
        %v7999 = vpop.xlane.xlu0 %7998
        %v8000 = vmax.f32 %v7939, %v7941
        %8001 = vmax.xlane.f32.xlu0 %v8000
        %v8002 = vpop.xlane.xlu0 %8001
        %v8003 = vmax.f32 %v7945, %v7947
        %8004 = vmax.xlane.f32.xlu0 %v8003
        %v8005 = vpop.xlane.xlu0 %8004
        %v8006 = vmax.f32 %v7949, %v7951
        %8007 = vmax.xlane.f32.xlu0 %v8006
        %v8008 = vpop.xlane.xlu0 %8007
        %v8009 = vmax.f32 %v7955, %v7957
        %8010 = vmax.xlane.f32.xlu0 %v8009
        %v8011 = vpop.xlane.xlu0 %8010
        %v8012 = vmax.f32 %v7959, %v7961
        %8013 = vmax.xlane.f32.xlu0 %v8012
        %v8014 = vpop.xlane.xlu0 %8013
        %v8015 = vmax.f32 %v7965, %v7967
        %8016 = vmax.xlane.f32.xlu0 %v8015
        %v8017 = vpop.xlane.xlu0 %8016
        %v8018 = vmax.f32 %v7969, %v7971
        %8019 = vmax.xlane.f32.xlu0 %v8018
        %v8020 = vpop.xlane.xlu0 %8019
        %v8021 = vsub.f32 %v7895, %v7975
        %v8022 = vsub.f32 %v7897, %v7975
        %v8023 = vsub.f32 %v7899, %v7978
        %v8024 = vsub.f32 %v7901, %v7978
        %v8025 = vsub.f32 %v7905, %v7981
        %v8026 = vsub.f32 %v7907, %v7981
        %v8027 = vsub.f32 %v7909, %v7984
        %v8028 = vsub.f32 %v7911, %v7984
        %v8029 = vsub.f32 %v7915, %v7987
        %v8030 = vsub.f32 %v7917, %v7987
        %v8031 = vsub.f32 %v7919, %v7990
        %v8032 = vsub.f32 %v7921, %v7990
        %v8033 = vsub.f32 %v7925, %v7993
        %v8034 = vsub.f32 %v7927, %v7993
        %v8035 = vsub.f32 %v7929, %v7996
        %v8036 = vsub.f32 %v7931, %v7996
        %v8037 = vsub.f32 %v7935, %v7999
        %v8038 = vsub.f32 %v7937, %v7999
        %v8039 = vsub.f32 %v7939, %v8002
        %v8040 = vsub.f32 %v7941, %v8002
        %v8041 = vsub.f32 %v7945, %v8005
        %v8042 = vsub.f32 %v7947, %v8005
        %v8043 = vsub.f32 %v7949, %v8008
        %v8044 = vsub.f32 %v7951, %v8008
        %v8045 = vsub.f32 %v7955, %v8011
        %v8046 = vsub.f32 %v7957, %v8011
        %v8047 = vsub.f32 %v7959, %v8014
        %v8048 = vsub.f32 %v7961, %v8014
        %v8049 = vsub.f32 %v7965, %v8017
        %v8050 = vsub.f32 %v7967, %v8017
        %v8051 = vsub.f32 %v7969, %v8020
        %v8052 = vsub.f32 %v7971, %v8020
        %v8053 = vmul.f32 %v8021, 1.442695
        %v8054 = vpow.pop %v8053
        %v8055 = vmul.f32 %v8022, 1.442695
        %v8056 = vpow.pop %v8055
        %v8057 = vmul.f32 %v8023, 1.442695
        %v8058 = vpow.pop %v8057
        %v8059 = vmul.f32 %v8024, 1.442695
        %v8060 = vpow.pop %v8059
        %v8061 = vmul.f32 %v8025, 1.442695
        %v8062 = vpow.pop %v8061
        %v8063 = vmul.f32 %v8026, 1.442695
        %v8064 = vpow.pop %v8063
        %v8065 = vmul.f32 %v8027, 1.442695
        %v8066 = vpow.pop %v8065
        %v8067 = vmul.f32 %v8028, 1.442695
        %v8068 = vpow.pop %v8067
        %v8069 = vmul.f32 %v8029, 1.442695
        %v8070 = vpow.pop %v8069
        %v8071 = vmul.f32 %v8030, 1.442695
        %v8072 = vpow.pop %v8071
        %v8073 = vmul.f32 %v8031, 1.442695
        %v8074 = vpow.pop %v8073
        %v8075 = vmul.f32 %v8032, 1.442695
        %v8076 = vpow.pop %v8075
        %v8077 = vmul.f32 %v8033, 1.442695
        %v8078 = vpow.pop %v8077
        %v8079 = vmul.f32 %v8034, 1.442695
        %v8080 = vpow.pop %v8079
        %v8081 = vmul.f32 %v8035, 1.442695
        %v8082 = vpow.pop %v8081
        %v8083 = vmul.f32 %v8036, 1.442695
        %v8084 = vpow.pop %v8083
        %v8085 = vmul.f32 %v8037, 1.442695
        %v8086 = vpow.pop %v8085
        %v8087 = vmul.f32 %v8038, 1.442695
        %v8088 = vpow.pop %v8087
        %v8089 = vmul.f32 %v8039, 1.442695
        %v8090 = vpow.pop %v8089
        %v8091 = vmul.f32 %v8040, 1.442695
        %v8092 = vpow.pop %v8091
        %v8093 = vmul.f32 %v8041, 1.442695
        %v8094 = vpow.pop %v8093
        %v8095 = vmul.f32 %v8042, 1.442695
        %v8096 = vpow.pop %v8095
        %v8097 = vmul.f32 %v8043, 1.442695
        %v8098 = vpow.pop %v8097
        %v8099 = vmul.f32 %v8044, 1.442695
        %v8100 = vpow.pop %v8099
        %v8101 = vmul.f32 %v8045, 1.442695
        %v8102 = vpow.pop %v8101
        %v8103 = vmul.f32 %v8046, 1.442695
        %v8104 = vpow.pop %v8103
        %v8105 = vmul.f32 %v8047, 1.442695
        %v8106 = vpow.pop %v8105
        %v8107 = vmul.f32 %v8048, 1.442695
        %v8108 = vpow.pop %v8107
        %v8109 = vmul.f32 %v8049, 1.442695
        %v8110 = vpow.pop %v8109
        %v8111 = vmul.f32 %v8050, 1.442695
        %v8112 = vpow.pop %v8111
        %v8113 = vmul.f32 %v8051, 1.442695
        %v8114 = vpow.pop %v8113
        %v8115 = vmul.f32 %v8052, 1.442695
        %v8116 = vpow.pop %v8115
        %v8117 = vadd.f32 %v8054, %v8056
        %8118 = vadd.xlane.f32.xlu0 %v8117
        %v8119 = vpop.xlane.xlu0 %8118
        %v8120 = vadd.f32 %v8058, %v8060
        %8121 = vadd.xlane.f32.xlu0 %v8120
        %v8122 = vpop.xlane.xlu0 %8121
        %v8123 = vadd.f32 %v8062, %v8064
        %8124 = vadd.xlane.f32.xlu0 %v8123
        %v8125 = vpop.xlane.xlu0 %8124
        %v8126 = vadd.f32 %v8066, %v8068
        %8127 = vadd.xlane.f32.xlu0 %v8126
        %v8128 = vpop.xlane.xlu0 %8127
        %v8129 = vadd.f32 %v8070, %v8072
        %8130 = vadd.xlane.f32.xlu0 %v8129
        %v8131 = vpop.xlane.xlu0 %8130
        %v8132 = vadd.f32 %v8074, %v8076
        %8133 = vadd.xlane.f32.xlu0 %v8132
        %v8134 = vpop.xlane.xlu0 %8133
        %v8135 = vadd.f32 %v8078, %v8080
        %8136 = vadd.xlane.f32.xlu0 %v8135
        %v8137 = vpop.xlane.xlu0 %8136
        %v8138 = vadd.f32 %v8082, %v8084
        %8139 = vadd.xlane.f32.xlu0 %v8138
        %v8140 = vpop.xlane.xlu0 %8139
        %v8141 = vadd.f32 %v8086, %v8088
        %8142 = vadd.xlane.f32.xlu0 %v8141
        %v8143 = vpop.xlane.xlu0 %8142
        %v8144 = vadd.f32 %v8090, %v8092
        %8145 = vadd.xlane.f32.xlu0 %v8144
        %v8146 = vpop.xlane.xlu0 %8145
        %v8147 = vadd.f32 %v8094, %v8096
        %8148 = vadd.xlane.f32.xlu0 %v8147
        %v8149 = vpop.xlane.xlu0 %8148
        %v8150 = vadd.f32 %v8098, %v8100
        %8151 = vadd.xlane.f32.xlu0 %v8150
        %v8152 = vpop.xlane.xlu0 %8151
        %v8153 = vadd.f32 %v8102, %v8104
        %8154 = vadd.xlane.f32.xlu0 %v8153
        %v8155 = vpop.xlane.xlu0 %8154
        %v8156 = vadd.f32 %v8106, %v8108
        %8157 = vadd.xlane.f32.xlu0 %v8156
        %v8158 = vpop.xlane.xlu0 %8157
        %v8159 = vadd.f32 %v8110, %v8112
        %8160 = vadd.xlane.f32.xlu0 %v8159
        %v8161 = vpop.xlane.xlu0 %8160
        %v8162 = vadd.f32 %v8114, %v8116
        %8163 = vadd.xlane.f32.xlu0 %v8162
        %v8164 = vpop.xlane.xlu0 %8163
        %v8165 = vrcp.pop %v8119
        %v8166 = vrcp.pop %v8122
        %v8167 = vrcp.pop %v8125
        %v8168 = vrcp.pop %v8128
        %v8169 = vrcp.pop %v8131
        %v8170 = vrcp.pop %v8134
        %v8171 = vrcp.pop %v8137
        %v8172 = vrcp.pop %v8140
        %v8173 = vrcp.pop %v8143
        %v8174 = vrcp.pop %v8146
        %v8175 = vrcp.pop %v8149
        %v8176 = vrcp.pop %v8152
        %v8177 = vrcp.pop %v8155
        %v8178 = vrcp.pop %v8158
        %v8179 = vrcp.pop %v8161
        %v8180 = vrcp.pop %v8164
        %v8181 = vmul.f32 %v8054, %v8165
        %v8182 = vmul.f32 %v8056, %v8165
        %v8183 = vmul.f32 %v8058, %v8166
        %v8184 = vmul.f32 %v8060, %v8166
        %v8185 = vmul.f32 %v8062, %v8167
        %v8186 = vmul.f32 %v8064, %v8167
        %v8187 = vmul.f32 %v8066, %v8168
        %v8188 = vmul.f32 %v8068, %v8168
        %v8189 = vmul.f32 %v8070, %v8169
        %v8190 = vmul.f32 %v8072, %v8169
        %v8191 = vmul.f32 %v8074, %v8170
        %v8192 = vmul.f32 %v8076, %v8170
        %v8193 = vmul.f32 %v8078, %v8171
        %v8194 = vmul.f32 %v8080, %v8171
        %v8195 = vmul.f32 %v8082, %v8172
        %v8196 = vmul.f32 %v8084, %v8172
        %v8197 = vmul.f32 %v8086, %v8173
        %v8198 = vmul.f32 %v8088, %v8173
        %v8199 = vmul.f32 %v8090, %v8174
        %v8200 = vmul.f32 %v8092, %v8174
        %v8201 = vmul.f32 %v8094, %v8175
        %v8202 = vmul.f32 %v8096, %v8175
        %v8203 = vmul.f32 %v8098, %v8176
        %v8204 = vmul.f32 %v8100, %v8176
        %v8205 = vmul.f32 %v8102, %v8177
        %v8206 = vmul.f32 %v8104, %v8177
        %v8207 = vmul.f32 %v8106, %v8178
        %v8208 = vmul.f32 %v8108, %v8178
        %v8209 = vmul.f32 %v8110, %v8179
        %v8210 = vmul.f32 %v8112, %v8179
        %v8211 = vmul.f32 %v8114, %v8180
        %v8212 = vmul.f32 %v8116, %v8180
        %v8213 = vpack.c.bf16 %v8183, %v8181
        %v8214 = vpack.c.bf16 %v8184, %v8182
        %v8215 = vpack.c.bf16 %v8187, %v8185
        %v8216 = vpack.c.bf16 %v8188, %v8186
        %v8217 = vpack.c.bf16 %v8191, %v8189
        %v8218 = vpack.c.bf16 %v8192, %v8190
        %v8219 = vpack.c.bf16 %v8195, %v8193
        %v8220 = vpack.c.bf16 %v8196, %v8194
        %v8221 = vpack.c.bf16 %v8199, %v8197
        %v8222 = vpack.c.bf16 %v8200, %v8198
        %v8223 = vpack.c.bf16 %v8203, %v8201
        %v8224 = vpack.c.bf16 %v8204, %v8202
        %v8225 = vpack.c.bf16 %v8207, %v8205
        %v8226 = vpack.c.bf16 %v8208, %v8206
        %v8227 = vpack.c.bf16 %v8211, %v8209
        %v8228 = vpack.c.bf16 %v8212, %v8210
        %8245 = vrot.lane.b32.xlu0 %v7700, 64
        %v8246 = vpop.permute.xlu0 %8245
        %8247 = vrot.lane.b32.xlu0 %v7701, 64
        %v8248 = vpop.permute.xlu0 %8247
        %8249 = vrot.lane.b32.xlu0 %v7702, 64
        %v8250 = vpop.permute.xlu0 %8249
        %8251 = vrot.lane.b32.xlu0 %v7703, 64
        %v8252 = vpop.permute.xlu0 %8251
        %8253 = vrot.lane.b32.xlu0 %v7704, 64
        %v8254 = vpop.permute.xlu0 %8253
        %8255 = vrot.lane.b32.xlu0 %v7705, 64
        %v8256 = vpop.permute.xlu0 %8255
        %8257 = vrot.lane.b32.xlu0 %v7706, 64
        %v8258 = vpop.permute.xlu0 %8257
        %8259 = vrot.lane.b32.xlu0 %v7707, 64
        %v8260 = vpop.permute.xlu0 %8259
        %8261 = vrot.lane.b32.xlu0 %v7708, 64
        %v8262 = vpop.permute.xlu0 %8261
        %8263 = vrot.lane.b32.xlu0 %v7709, 64
        %v8264 = vpop.permute.xlu0 %8263
        %8265 = vrot.lane.b32.xlu0 %v7710, 64
        %v8266 = vpop.permute.xlu0 %8265
        %8267 = vrot.lane.b32.xlu0 %v7711, 64
        %v8268 = vpop.permute.xlu0 %8267
        %8269 = vrot.lane.b32.xlu0 %v7712, 64
        %v8270 = vpop.permute.xlu0 %8269
        %8271 = vrot.lane.b32.xlu0 %v7713, 64
        %v8272 = vpop.permute.xlu0 %8271
        %8273 = vrot.lane.b32.xlu0 %v7714, 64
        %v8274 = vpop.permute.xlu0 %8273
        %8275 = vrot.lane.b32.xlu0 %v7715, 64
        %v8276 = vpop.permute.xlu0 %8275
        %8293 = vmatprep.subr.bf16.mxu0 0
        %8294 = vmatpush1.bf16.msra.mxu0 %v8246
        %8295 = vmatprep.subr.bf16.mxu0 0
        %8296 = vmatpush1.bf16.msra.mxu0 %v8248
        %8297 = vmatprep.subr.bf16.mxu0 0
        %8298 = vmatpush1.bf16.msra.mxu0 %v8250
        %8299 = vmatprep.subr.bf16.mxu0 0
        %8300 = vmatpush1.bf16.msra.mxu0 %v8252
        %8301 = vmatprep.subr.bf16.mxu0 0
        %8302 = vmatpush1.bf16.msra.mxu0 %v8254
        %8303 = vmatprep.subr.bf16.mxu0 0
        %8304 = vmatpush1.bf16.msra.mxu0 %v8256
        %8305 = vmatprep.subr.bf16.mxu0 0
        %8306 = vmatpush1.bf16.msra.mxu0 %v8258
        %8307 = vmatprep.subr.bf16.mxu0 0
        %8308 = vmatpush1.bf16.msra.mxu0 %v8260
        %8309 = vmatprep.subr.bf16.mxu0 0
        %8310 = vmatpush1.bf16.msra.mxu0 %v8262
        %8311 = vmatprep.subr.bf16.mxu0 0
        %8312 = vmatpush1.bf16.msra.mxu0 %v8264
        %8313 = vmatprep.subr.bf16.mxu0 0
        %8314 = vmatpush1.bf16.msra.mxu0 %v8266
        %8315 = vmatprep.subr.bf16.mxu0 0
        %8316 = vmatpush1.bf16.msra.mxu0 %v8268
        %8317 = vmatprep.subr.bf16.mxu0 0
        %8318 = vmatpush1.bf16.msra.mxu0 %v8270
        %8319 = vmatprep.subr.bf16.mxu0 0
        %8320 = vmatpush1.bf16.msra.mxu0 %v8272
        %8321 = vmatprep.subr.bf16.mxu0 0
        %8322 = vmatpush1.bf16.msra.mxu0 %v8274
        %8323 = vmatprep.subr.bf16.mxu0 0
        %8324 = vmatpush1.bf16.msra.mxu0 %v8276
        %8325 = vmatprep.mubr.bf16.mxu0 %v8214
        %8326 = vmatmul.mubr.bf16.gmra.mrb[0].mxu0 %v8213
        %v8327 = vpop.f32.mrb[0].mxu0
        %v8328 = vadd.f32 0.0, %v8327
        %v8329 = vpop.f32.mrb[0].mxu0
        %v8330 = vpop.f32.mrb[0].mxu0
        %v8331 = vadd.f32 0.0, %v8330
        %v8332 = vpop.f32.mrb[0].mxu0
        %8333 = vmatprep.mubr.bf16.mxu0 %v8216
        %8334 = vmatmul.mubr.bf16.gmra.mrb[0].mxu0 %v8215
        %v8335 = vpop.f32.mrb[0].mxu0
        %v8336 = vadd.f32 0.0, %v8335
        %v8337 = vpop.f32.mrb[0].mxu0
        %v8338 = vpop.f32.mrb[0].mxu0
        %v8339 = vadd.f32 0.0, %v8338
        %v8340 = vpop.f32.mrb[0].mxu0
        %8341 = vmatprep.mubr.bf16.mxu0 %v8218
        %8342 = vmatmul.mubr.bf16.gmra.mrb[0].mxu0 %v8217
        %v8343 = vpop.f32.mrb[0].mxu0
        %v8344 = vadd.f32 0.0, %v8343
        %v8345 = vpop.f32.mrb[0].mxu0
        %v8346 = vpop.f32.mrb[0].mxu0
        %v8347 = vadd.f32 0.0, %v8346
        %v8348 = vpop.f32.mrb[0].mxu0
        %8349 = vmatprep.mubr.bf16.mxu0 %v8220
        %8350 = vmatmul.mubr.bf16.gmra.mrb[0].mxu0 %v8219
        %v8351 = vpop.f32.mrb[0].mxu0
        %v8352 = vadd.f32 0.0, %v8351
        %v8353 = vpop.f32.mrb[0].mxu0
        %v8354 = vpop.f32.mrb[0].mxu0
        %v8355 = vadd.f32 0.0, %v8354
        %v8356 = vpop.f32.mrb[0].mxu0
        %8357 = vmatprep.mubr.bf16.mxu0 %v8222
        %8358 = vmatmul.mubr.bf16.gmra.mrb[0].mxu0 %v8221
        %v8359 = vpop.f32.mrb[0].mxu0
        %v8360 = vadd.f32 0.0, %v8359
        %v8361 = vpop.f32.mrb[0].mxu0
        %v8362 = vpop.f32.mrb[0].mxu0
        %v8363 = vadd.f32 0.0, %v8362
        %v8364 = vpop.f32.mrb[0].mxu0
        %8365 = vmatprep.mubr.bf16.mxu0 %v8224
        %8366 = vmatmul.mubr.bf16.gmra.mrb[0].mxu0 %v8223
        %v8367 = vpop.f32.mrb[0].mxu0
        %v8368 = vadd.f32 0.0, %v8367
        %v8369 = vpop.f32.mrb[0].mxu0
        %v8370 = vpop.f32.mrb[0].mxu0
        %v8371 = vadd.f32 0.0, %v8370
        %v8372 = vpop.f32.mrb[0].mxu0
        %8373 = vmatprep.mubr.bf16.mxu0 %v8226
        %8374 = vmatmul.mubr.bf16.gmra.mrb[0].mxu0 %v8225
        %v8375 = vpop.f32.mrb[0].mxu0
        %v8376 = vadd.f32 0.0, %v8375
        %v8377 = vpop.f32.mrb[0].mxu0
        %v8378 = vpop.f32.mrb[0].mxu0
        %v8379 = vadd.f32 0.0, %v8378
        %v8380 = vpop.f32.mrb[0].mxu0
        %8381 = vmatprep.mubr.bf16.mxu0 %v8228
        %8382 = vmatmul.mubr.bf16.gmra.mrb[0].mxu0 %v8227
        %v8383 = vpop.f32.mrb[0].mxu0
        %v8384 = vadd.f32 0.0, %v8383
        %v8385 = vpop.f32.mrb[0].mxu0
        %v8386 = vpop.f32.mrb[0].mxu0
        %v8387 = vadd.f32 0.0, %v8386
        %v8388 = vpop.f32.mrb[0].mxu0
        %8389 = vdwg.mxu0
        %v8390 = vpack.c.bf16 %v8331, %v8328
        %v8391 = vpack.c.bf16 %v8339, %v8336
        %v8392 = vpack.c.bf16 %v8347, %v8344
        %v8393 = vpack.c.bf16 %v8355, %v8352
        %v8394 = vpack.c.bf16 %v8363, %v8360
        %v8395 = vpack.c.bf16 %v8371, %v8368
        %v8396 = vpack.c.bf16 %v8379, %v8376
        %v8397 = vpack.c.bf16 %v8387, %v8384
        %8406 = vrot.lane.b32.xlu0 %v8390, 64
        %v8407 = vpop.permute.xlu0 %8406
        %8408 = vrot.lane.b32.xlu0 %v8391, 64
        %v8409 = vpop.permute.xlu0 %8408
        %8410 = vrot.lane.b32.xlu0 %v8392, 64
        %v8411 = vpop.permute.xlu0 %8410
        %8412 = vrot.lane.b32.xlu0 %v8393, 64
        %v8413 = vpop.permute.xlu0 %8412
        %8414 = vrot.lane.b32.xlu0 %v8394, 64
        %v8415 = vpop.permute.xlu0 %8414
        %8416 = vrot.lane.b32.xlu0 %v8395, 64
        %v8417 = vpop.permute.xlu0 %8416
        %8418 = vrot.lane.b32.xlu0 %v8396, 64
        %v8419 = vpop.permute.xlu0 %8418
        %8420 = vrot.lane.b32.xlu0 %v8397, 64
        %v8421 = vpop.permute.xlu0 %8420
        %8430 = vst.msk [vmem:[#allocation3 + $0x10] sm:$0xff] %vm5717, %v8407
        %8431 = vst.msk [vmem:[#allocation3 + $0x28] sm:$0xff] %vm5717, %v8409
        %8432 = vst.msk [vmem:[#allocation3 + $0x40] sm:$0xff] %vm5717, %v8411
        %8433 = vst.msk [vmem:[#allocation3 + $0x58] sm:$0xff] %vm5717, %v8413
        %8434 = vst.msk [vmem:[#allocation3 + $0x70] sm:$0xff] %vm5717, %v8415
        %8435 = vst.msk [vmem:[#allocation3 + $0x88] sm:$0xff] %vm5717, %v8417
        %8436 = vst.msk [vmem:[#allocation3 + $0xa0] sm:$0xff] %vm5717, %v8419
        %8437 = vst.msk [vmem:[#allocation3 + $0xb8] sm:$0xff] %vm5717, %v8421
        %v8438 = vld [vmem:[#allocation3] sm:$0xff]
        %v8439 = vld [vmem:[#allocation3 + $0x8] sm:$0xff]
        %v8440 = vld [vmem:[#allocation3 + $0x10] sm:$0xff]
        %v8441 = vld [vmem:[#allocation3 + $0x18] sm:$0xff]
        %v8442 = vld [vmem:[#allocation3 + $0x20] sm:$0xff]
        %v8443 = vld [vmem:[#allocation3 + $0x28] sm:$0xff]
        %v8444 = vld [vmem:[#allocation3 + $0x30] sm:$0xff]
        %v8445 = vld [vmem:[#allocation3 + $0x38] sm:$0xff]
        %v8446 = vld [vmem:[#allocation3 + $0x40] sm:$0xff]
        %v8447 = vld [vmem:[#allocation3 + $0x48] sm:$0xff]
        %v8448 = vld [vmem:[#allocation3 + $0x50] sm:$0xff]
        %v8449 = vld [vmem:[#allocation3 + $0x58] sm:$0xff]
        %v8450 = vld [vmem:[#allocation3 + $0x60] sm:$0xff]
        %v8451 = vld [vmem:[#allocation3 + $0x68] sm:$0xff]
        %v8452 = vld [vmem:[#allocation3 + $0x70] sm:$0xff]
        %v8453 = vld [vmem:[#allocation3 + $0x78] sm:$0xff]
        %v8454 = vld [vmem:[#allocation3 + $0x80] sm:$0xff]
        %v8455 = vld [vmem:[#allocation3 + $0x88] sm:$0xff]
        %v8456 = vld [vmem:[#allocation3 + $0x90] sm:$0xff]
        %v8457 = vld [vmem:[#allocation3 + $0x98] sm:$0xff]
        %v8458 = vld [vmem:[#allocation3 + $0xa0] sm:$0xff]
        %v8459 = vld [vmem:[#allocation3 + $0xa8] sm:$0xff]
        %v8460 = vld [vmem:[#allocation3 + $0xb0] sm:$0xff]
        %v8461 = vld [vmem:[#allocation3 + $0xb8] sm:$0xff]
        %v8462 = vld [vmem:[#allocation9] sm:$0xff]
        %v8463 = vld [vmem:[#allocation9 + $0x8] sm:$0xf]
        %v8464 = vld [vmem:[#allocation9 + $0xc] sm:$0xff]
        %v8465 = vld [vmem:[#allocation9 + $0x14] sm:$0xf]
        %v8466 = vld [vmem:[#allocation9 + $0x18] sm:$0xff]
        %v8467 = vld [vmem:[#allocation9 + $0x20] sm:$0xf]
        %v8468 = vld [vmem:[#allocation9 + $0x24] sm:$0xff]
        %v8469 = vld [vmem:[#allocation9 + $0x2c] sm:$0xf]
        %v8470 = vld [vmem:[#allocation9 + $0x30] sm:$0xff]
        %v8471 = vld [vmem:[#allocation9 + $0x38] sm:$0xf]
        %v8472 = vld [vmem:[#allocation9 + $0x3c] sm:$0xff]
        %v8473 = vld [vmem:[#allocation9 + $0x44] sm:$0xf]
        %v8474 = vld [vmem:[#allocation9 + $0x48] sm:$0xff]
        %v8475 = vld [vmem:[#allocation9 + $0x50] sm:$0xf]
        %v8476 = vld [vmem:[#allocation9 + $0x54] sm:$0xff]
        %v8477 = vld [vmem:[#allocation9 + $0x5c] sm:$0xf]
        %v8478 = vld [vmem:[#allocation9 + $0x60] sm:$0xff]
        %v8479 = vld [vmem:[#allocation9 + $0x68] sm:$0xf]
        %v8480 = vld [vmem:[#allocation9 + $0x6c] sm:$0xff]
        %v8481 = vld [vmem:[#allocation9 + $0x74] sm:$0xf]
        %v8482 = vld [vmem:[#allocation9 + $0x78] sm:$0xff]
        %v8483 = vld [vmem:[#allocation9 + $0x80] sm:$0xf]
        %v8484 = vld [vmem:[#allocation9 + $0x84] sm:$0xff]
        %v8485 = vld [vmem:[#allocation9 + $0x8c] sm:$0xf]
        %v8486 = vld [vmem:[#allocation9 + $0x90] sm:$0xff]
        %v8487 = vld [vmem:[#allocation9 + $0x98] sm:$0xf]
        %v8488 = vld [vmem:[#allocation9 + $0x9c] sm:$0xff]
        %v8489 = vld [vmem:[#allocation9 + $0xa4] sm:$0xf]
        %v8490 = vld [vmem:[#allocation9 + $0xa8] sm:$0xff]
        %v8491 = vld [vmem:[#allocation9 + $0xb0] sm:$0xf]
        %v8492 = vld [vmem:[#allocation9 + $0xb4] sm:$0xff]
        %v8493 = vld [vmem:[#allocation9 + $0xbc] sm:$0xf]
        %v8494 = vld [vmem:[#allocation9 + $0xc0] sm:$0xff]
        %v8495 = vld [vmem:[#allocation9 + $0xc8] sm:$0xf]
        %v8496 = vld [vmem:[#allocation9 + $0xcc] sm:$0xff]
        %v8497 = vld [vmem:[#allocation9 + $0xd4] sm:$0xf]
        %v8498 = vld [vmem:[#allocation9 + $0xd8] sm:$0xff]
        %v8499 = vld [vmem:[#allocation9 + $0xe0] sm:$0xf]
        %v8500 = vld [vmem:[#allocation9 + $0xe4] sm:$0xff]
        %v8501 = vld [vmem:[#allocation9 + $0xec] sm:$0xf]
        %v8502 = vld [vmem:[#allocation9 + $0xf0] sm:$0xff]
        %v8503 = vld [vmem:[#allocation9 + $0xf8] sm:$0xf]
        %v8504 = vld [vmem:[#allocation9 + $0xfc] sm:$0xff]
        %v8505 = vld [vmem:[#allocation9 + $0x104] sm:$0xf]
        %v8506 = vld [vmem:[#allocation9 + $0x108] sm:$0xff]
        %v8507 = vld [vmem:[#allocation9 + $0x110] sm:$0xf]
        %v8508 = vld [vmem:[#allocation9 + $0x114] sm:$0xff]
        %v8509 = vld [vmem:[#allocation9 + $0x11c] sm:$0xf]
        %v8510 = vld [vmem:[#allocation9 + $0x120] sm:$0xff]
        %v8511 = vld [vmem:[#allocation9 + $0x128] sm:$0xf]
        %v8512 = vld [vmem:[#allocation9 + $0x12c] sm:$0xff]
        %v8513 = vld [vmem:[#allocation9 + $0x134] sm:$0xf]
        %v8514 = vld [vmem:[#allocation9 + $0x138] sm:$0xff]
        %v8515 = vld [vmem:[#allocation9 + $0x140] sm:$0xf]
        %v8516 = vld [vmem:[#allocation9 + $0x144] sm:$0xff]
        %v8517 = vld [vmem:[#allocation9 + $0x14c] sm:$0xf]
        %v8518 = vld [vmem:[#allocation9 + $0x150] sm:$0xff]
        %v8519 = vld [vmem:[#allocation9 + $0x158] sm:$0xf]
        %v8520 = vld [vmem:[#allocation9 + $0x15c] sm:$0xff]
        %v8521 = vld [vmem:[#allocation9 + $0x164] sm:$0xf]
        %v8522 = vld [vmem:[#allocation9 + $0x168] sm:$0xff]
        %v8523 = vld [vmem:[#allocation9 + $0x170] sm:$0xf]
        %v8524 = vld [vmem:[#allocation9 + $0x174] sm:$0xff]
        %v8525 = vld [vmem:[#allocation9 + $0x17c] sm:$0xf]
        %v8526 = vld [vmem:[#allocation9 + $0x180] sm:$0xff]
        %v8527 = vld [vmem:[#allocation9 + $0x188] sm:$0xf]
        %v8528 = vld [vmem:[#allocation9 + $0x18c] sm:$0xff]
        %v8529 = vld [vmem:[#allocation9 + $0x194] sm:$0xf]
        %v8530 = vld [vmem:[#allocation9 + $0x198] sm:$0xff]
        %v8531 = vld [vmem:[#allocation9 + $0x1a0] sm:$0xf]
        %v8532 = vld [vmem:[#allocation9 + $0x1a4] sm:$0xff]
        %v8533 = vld [vmem:[#allocation9 + $0x1ac] sm:$0xf]
        %v8534 = vld [vmem:[#allocation9 + $0x1b0] sm:$0xff]
        %v8535 = vld [vmem:[#allocation9 + $0x1b8] sm:$0xf]
        %v8536 = vld [vmem:[#allocation9 + $0x1bc] sm:$0xff]
        %v8537 = vld [vmem:[#allocation9 + $0x1c4] sm:$0xf]
        %v8538 = vld [vmem:[#allocation9 + $0x1c8] sm:$0xff]
        %v8539 = vld [vmem:[#allocation9 + $0x1d0] sm:$0xf]
        %v8540 = vld [vmem:[#allocation9 + $0x1d4] sm:$0xff]
        %v8541 = vld [vmem:[#allocation9 + $0x1dc] sm:$0xf]
        %v8542 = vld [vmem:[#allocation9 + $0x1e0] sm:$0xff]
        %v8543 = vld [vmem:[#allocation9 + $0x1e8] sm:$0xf]
        %v8544 = vld [vmem:[#allocation9 + $0x1ec] sm:$0xff]
        %v8545 = vld [vmem:[#allocation9 + $0x1f4] sm:$0xf]
        %v8546 = vld [vmem:[#allocation9 + $0x1f8] sm:$0xff]
        %v8547 = vld [vmem:[#allocation9 + $0x200] sm:$0xf]
        %v8548 = vld [vmem:[#allocation9 + $0x204] sm:$0xff]
        %v8549 = vld [vmem:[#allocation9 + $0x20c] sm:$0xf]
        %v8550 = vld [vmem:[#allocation9 + $0x210] sm:$0xff]
        %v8551 = vld [vmem:[#allocation9 + $0x218] sm:$0xf]
        %v8552 = vld [vmem:[#allocation9 + $0x21c] sm:$0xff]
        %v8553 = vld [vmem:[#allocation9 + $0x224] sm:$0xf]
        %v8554 = vld [vmem:[#allocation9 + $0x228] sm:$0xff]
        %v8555 = vld [vmem:[#allocation9 + $0x230] sm:$0xf]
        %v8556 = vld [vmem:[#allocation9 + $0x234] sm:$0xff]
        %v8557 = vld [vmem:[#allocation9 + $0x23c] sm:$0xf]
        %v8558 = vld [vmem:[%s3] sm:$0x7]
        %v8560 = vlaneseq
        %v8561 = vshrl.u32 %v8560, 7
        %v8562 = vsub.s32 0, %v8561
        %v8563 = vrot.slane %v8558, %v8562
        %v8564 = vlaneseq
        %v8565 = vshrl.u32 %v8564, 7
        %v8566 = vsub.s32 1, %v8565
        %v8567 = vrot.slane %v8558, %v8566
        %v8568 = vlaneseq
        %v8569 = vshrl.u32 %v8568, 7
        %v8570 = vsub.s32 2, %v8569
        %v8571 = vrot.slane %v8558, %v8570
        %v8671 = vunpack.c.l.b16 %v8462
        %v8672 = vunpack.c.h.b16 %v8462
        %v8673 = vunpack.c.l.b16 %v8463
        %v8674 = vunpack.c.l.b16 %v8464
        %v8675 = vunpack.c.h.b16 %v8464
        %v8676 = vunpack.c.l.b16 %v8465
        %v8677 = vunpack.c.l.b16 %v8466
        %v8678 = vunpack.c.h.b16 %v8466
        %v8679 = vunpack.c.l.b16 %v8467
        %v8680 = vunpack.c.l.b16 %v8468
        %v8681 = vunpack.c.h.b16 %v8468
        %v8682 = vunpack.c.l.b16 %v8469
        %v8683 = vunpack.c.l.b16 %v8470
        %v8684 = vunpack.c.h.b16 %v8470
        %v8685 = vunpack.c.l.b16 %v8471
        %v8686 = vunpack.c.l.b16 %v8472
        %v8687 = vunpack.c.h.b16 %v8472
        %v8688 = vunpack.c.l.b16 %v8473
        %v8689 = vunpack.c.l.b16 %v8474
        %v8690 = vunpack.c.h.b16 %v8474
        %v8691 = vunpack.c.l.b16 %v8475
        %v8692 = vunpack.c.l.b16 %v8476
        %v8693 = vunpack.c.h.b16 %v8476
        %v8694 = vunpack.c.l.b16 %v8477
        %v8695 = vunpack.c.l.b16 %v8478
        %v8696 = vunpack.c.h.b16 %v8478
        %v8697 = vunpack.c.l.b16 %v8479
        %v8698 = vunpack.c.l.b16 %v8480
        %v8699 = vunpack.c.h.b16 %v8480
        %v8700 = vunpack.c.l.b16 %v8481
        %v8701 = vunpack.c.l.b16 %v8482
        %v8702 = vunpack.c.h.b16 %v8482
        %v8703 = vunpack.c.l.b16 %v8483
        %v8704 = vunpack.c.l.b16 %v8484
        %v8705 = vunpack.c.h.b16 %v8484
        %v8706 = vunpack.c.l.b16 %v8485
        %v8707 = vunpack.c.l.b16 %v8486
        %v8708 = vunpack.c.h.b16 %v8486
        %v8709 = vunpack.c.l.b16 %v8487
        %v8710 = vunpack.c.l.b16 %v8488
        %v8711 = vunpack.c.h.b16 %v8488
        %v8712 = vunpack.c.l.b16 %v8489
        %v8713 = vunpack.c.l.b16 %v8490
        %v8714 = vunpack.c.h.b16 %v8490
        %v8715 = vunpack.c.l.b16 %v8491
        %v8716 = vunpack.c.l.b16 %v8492
        %v8717 = vunpack.c.h.b16 %v8492
        %v8718 = vunpack.c.l.b16 %v8493
        %v8719 = vunpack.c.l.b16 %v8494
        %v8720 = vunpack.c.h.b16 %v8494
        %v8721 = vunpack.c.l.b16 %v8495
        %v8722 = vunpack.c.l.b16 %v8496
        %v8723 = vunpack.c.h.b16 %v8496
        %v8724 = vunpack.c.l.b16 %v8497
        %v8725 = vunpack.c.l.b16 %v8498
        %v8726 = vunpack.c.h.b16 %v8498
        %v8727 = vunpack.c.l.b16 %v8499
        %v8728 = vunpack.c.l.b16 %v8500
        %v8729 = vunpack.c.h.b16 %v8500
        %v8730 = vunpack.c.l.b16 %v8501
        %v8731 = vunpack.c.l.b16 %v8502
        %v8732 = vunpack.c.h.b16 %v8502
        %v8733 = vunpack.c.l.b16 %v8503
        %v8734 = vunpack.c.l.b16 %v8504
        %v8735 = vunpack.c.h.b16 %v8504
        %v8736 = vunpack.c.l.b16 %v8505
        %v8737 = vunpack.c.l.b16 %v8506
        %v8738 = vunpack.c.h.b16 %v8506
        %v8739 = vunpack.c.l.b16 %v8507
        %v8740 = vunpack.c.l.b16 %v8508
        %v8741 = vunpack.c.h.b16 %v8508
        %v8742 = vunpack.c.l.b16 %v8509
        %v8743 = vunpack.c.l.b16 %v8510
        %v8744 = vunpack.c.h.b16 %v8510
        %v8745 = vunpack.c.l.b16 %v8511
        %v8746 = vunpack.c.l.b16 %v8512
        %v8747 = vunpack.c.h.b16 %v8512
        %v8748 = vunpack.c.l.b16 %v8513
        %v8749 = vunpack.c.l.b16 %v8514
        %v8750 = vunpack.c.h.b16 %v8514
        %v8751 = vunpack.c.l.b16 %v8515
        %v8752 = vunpack.c.l.b16 %v8516
        %v8753 = vunpack.c.h.b16 %v8516
        %v8754 = vunpack.c.l.b16 %v8517
        %v8755 = vunpack.c.l.b16 %v8518
        %v8756 = vunpack.c.h.b16 %v8518
        %v8757 = vunpack.c.l.b16 %v8519
        %v8758 = vunpack.c.l.b16 %v8520
        %v8759 = vunpack.c.h.b16 %v8520
        %v8760 = vunpack.c.l.b16 %v8521
        %v8761 = vunpack.c.l.b16 %v8522
        %v8762 = vunpack.c.h.b16 %v8522
        %v8763 = vunpack.c.l.b16 %v8523
        %v8764 = vunpack.c.l.b16 %v8524
        %v8765 = vunpack.c.h.b16 %v8524
        %v8766 = vunpack.c.l.b16 %v8525
        %v8767 = vunpack.c.l.b16 %v8526
        %v8768 = vunpack.c.h.b16 %v8526
        %v8769 = vunpack.c.l.b16 %v8527
        %v8770 = vunpack.c.l.b16 %v8528
        %v8771 = vunpack.c.h.b16 %v8528
        %v8772 = vunpack.c.l.b16 %v8529
        %v8773 = vunpack.c.l.b16 %v8530
        %v8774 = vunpack.c.h.b16 %v8530
        %v8775 = vunpack.c.l.b16 %v8531
        %v8776 = vunpack.c.l.b16 %v8532
        %v8777 = vunpack.c.h.b16 %v8532
        %v8778 = vunpack.c.l.b16 %v8533
        %v8779 = vunpack.c.l.b16 %v8534
        %v8780 = vunpack.c.h.b16 %v8534
        %v8781 = vunpack.c.l.b16 %v8535
        %v8782 = vunpack.c.l.b16 %v8536
        %v8783 = vunpack.c.h.b16 %v8536
        %v8784 = vunpack.c.l.b16 %v8537
        %v8785 = vunpack.c.l.b16 %v8538
        %v8786 = vunpack.c.h.b16 %v8538
        %v8787 = vunpack.c.l.b16 %v8539
        %v8788 = vunpack.c.l.b16 %v8540
        %v8789 = vunpack.c.h.b16 %v8540
        %v8790 = vunpack.c.l.b16 %v8541
        %v8791 = vunpack.c.l.b16 %v8542
        %v8792 = vunpack.c.h.b16 %v8542
        %v8793 = vunpack.c.l.b16 %v8543
        %v8794 = vunpack.c.l.b16 %v8544
        %v8795 = vunpack.c.h.b16 %v8544
        %v8796 = vunpack.c.l.b16 %v8545
        %v8797 = vunpack.c.l.b16 %v8546
        %v8798 = vunpack.c.h.b16 %v8546
        %v8799 = vunpack.c.l.b16 %v8547
        %v8800 = vunpack.c.l.b16 %v8548
        %v8801 = vunpack.c.h.b16 %v8548
        %v8802 = vunpack.c.l.b16 %v8549
        %v8803 = vunpack.c.l.b16 %v8550
        %v8804 = vunpack.c.h.b16 %v8550
        %v8805 = vunpack.c.l.b16 %v8551
        %v8806 = vunpack.c.l.b16 %v8552
        %v8807 = vunpack.c.h.b16 %v8552
        %v8808 = vunpack.c.l.b16 %v8553
        %v8809 = vunpack.c.l.b16 %v8554
        %v8810 = vunpack.c.h.b16 %v8554
        %v8811 = vunpack.c.l.b16 %v8555
        %v8812 = vunpack.c.l.b16 %v8556
        %v8813 = vunpack.c.h.b16 %v8556
        %v8814 = vunpack.c.l.b16 %v8557
        %v8815 = vpack.c.b16 %v8674, %v8671
        %v8816 = vpack.c.b16 %v8675, %v8672
        %v8817 = vpack.c.b16 %v8676, %v8673
        %v8818 = vpack.c.b16 %v8680, %v8677
        %v8819 = vpack.c.b16 %v8681, %v8678
        %v8820 = vpack.c.b16 %v8682, %v8679
        %v8821 = vpack.c.b16 %v8686, %v8683
        %v8822 = vpack.c.b16 %v8687, %v8684
        %v8823 = vpack.c.b16 %v8688, %v8685
        %v8824 = vpack.c.b16 %v8692, %v8689
        %v8825 = vpack.c.b16 %v8693, %v8690
        %v8826 = vpack.c.b16 %v8694, %v8691
        %v8827 = vpack.c.b16 %v8698, %v8695
        %v8828 = vpack.c.b16 %v8699, %v8696
        %v8829 = vpack.c.b16 %v8700, %v8697
        %v8830 = vpack.c.b16 %v8704, %v8701
        %v8831 = vpack.c.b16 %v8705, %v8702
        %v8832 = vpack.c.b16 %v8706, %v8703
        %v8833 = vpack.c.b16 %v8710, %v8707
        %v8834 = vpack.c.b16 %v8711, %v8708
        %v8835 = vpack.c.b16 %v8712, %v8709
        %v8836 = vpack.c.b16 %v8716, %v8713
        %v8837 = vpack.c.b16 %v8717, %v8714
        %v8838 = vpack.c.b16 %v8718, %v8715
        %v8839 = vpack.c.b16 %v8722, %v8719
        %v8840 = vpack.c.b16 %v8723, %v8720
        %v8841 = vpack.c.b16 %v8724, %v8721
        %v8842 = vpack.c.b16 %v8728, %v8725
        %v8843 = vpack.c.b16 %v8729, %v8726
        %v8844 = vpack.c.b16 %v8730, %v8727
        %v8845 = vpack.c.b16 %v8734, %v8731
        %v8846 = vpack.c.b16 %v8735, %v8732
        %v8847 = vpack.c.b16 %v8736, %v8733
        %v8848 = vpack.c.b16 %v8740, %v8737
        %v8849 = vpack.c.b16 %v8741, %v8738
        %v8850 = vpack.c.b16 %v8742, %v8739
        %v8851 = vpack.c.b16 %v8746, %v8743
        %v8852 = vpack.c.b16 %v8747, %v8744
        %v8853 = vpack.c.b16 %v8748, %v8745
        %v8854 = vpack.c.b16 %v8752, %v8749
        %v8855 = vpack.c.b16 %v8753, %v8750
        %v8856 = vpack.c.b16 %v8754, %v8751
        %v8857 = vpack.c.b16 %v8758, %v8755
        %v8858 = vpack.c.b16 %v8759, %v8756
        %v8859 = vpack.c.b16 %v8760, %v8757
        %v8860 = vpack.c.b16 %v8764, %v8761
        %v8861 = vpack.c.b16 %v8765, %v8762
        %v8862 = vpack.c.b16 %v8766, %v8763
        %v8863 = vpack.c.b16 %v8770, %v8767
        %v8864 = vpack.c.b16 %v8771, %v8768
        %v8865 = vpack.c.b16 %v8772, %v8769
        %v8866 = vpack.c.b16 %v8776, %v8773
        %v8867 = vpack.c.b16 %v8777, %v8774
        %v8868 = vpack.c.b16 %v8778, %v8775
        %v8869 = vpack.c.b16 %v8782, %v8779
        %v8870 = vpack.c.b16 %v8783, %v8780
        %v8871 = vpack.c.b16 %v8784, %v8781
        %v8872 = vpack.c.b16 %v8788, %v8785
        %v8873 = vpack.c.b16 %v8789, %v8786
        %v8874 = vpack.c.b16 %v8790, %v8787
        %v8875 = vpack.c.b16 %v8794, %v8791
        %v8876 = vpack.c.b16 %v8795, %v8792
        %v8877 = vpack.c.b16 %v8796, %v8793
        %v8878 = vpack.c.b16 %v8800, %v8797
        %v8879 = vpack.c.b16 %v8801, %v8798
        %v8880 = vpack.c.b16 %v8802, %v8799
        %v8881 = vpack.c.b16 %v8806, %v8803
        %v8882 = vpack.c.b16 %v8807, %v8804
        %v8883 = vpack.c.b16 %v8808, %v8805
        %v8884 = vpack.c.b16 %v8812, %v8809
        %v8885 = vpack.c.b16 %v8813, %v8810
        %v8886 = vpack.c.b16 %v8814, %v8811
        %8959 = vmatprep.subr.bf16.mxu0 %v8816
        %8960 = vmatpush1.bf16.msra.mxu0 %v8815
        %8961 = vmatprep.subr.bf16.mxu0 %v8819
        %8962 = vmatpush1.bf16.msra.mxu0 %v8818
        %8963 = vmatprep.subr.bf16.mxu0 %v8822
        %8964 = vmatpush1.bf16.msra.mxu0 %v8821
        %8965 = vmatprep.subr.bf16.mxu0 %v8825
        %8966 = vmatpush1.bf16.msra.mxu0 %v8824
        %8967 = vmatprep.subr.bf16.mxu0 %v8828
        %8968 = vmatpush1.bf16.msra.mxu0 %v8827
        %8969 = vmatprep.subr.bf16.mxu0 %v8831
        %8970 = vmatpush1.bf16.msra.mxu0 %v8830
        %8971 = vmatprep.subr.bf16.mxu0 %v8834
        %8972 = vmatpush1.bf16.msra.mxu0 %v8833
        %8973 = vmatprep.subr.bf16.mxu0 %v8837
        %8974 = vmatpush1.bf16.msra.mxu0 %v8836
        %8975 = vmatprep.subr.bf16.mxu0 %v8840
        %8976 = vmatpush1.bf16.msra.mxu0 %v8839
        %8977 = vmatprep.subr.bf16.mxu0 %v8843
        %8978 = vmatpush1.bf16.msra.mxu0 %v8842
        %8979 = vmatprep.subr.bf16.mxu0 %v8846
        %8980 = vmatpush1.bf16.msra.mxu0 %v8845
        %8981 = vmatprep.subr.bf16.mxu0 %v8849
        %8982 = vmatpush1.bf16.msra.mxu0 %v8848
        %8983 = vmatprep.subr.bf16.mxu0 %v8852
        %8984 = vmatpush1.bf16.msra.mxu0 %v8851
        %8985 = vmatprep.subr.bf16.mxu0 %v8855
        %8986 = vmatpush1.bf16.msra.mxu0 %v8854
        %8987 = vmatprep.subr.bf16.mxu0 %v8858
        %8988 = vmatpush1.bf16.msra.mxu0 %v8857
        %8989 = vmatprep.subr.bf16.mxu0 %v8861
        %8990 = vmatpush1.bf16.msra.mxu0 %v8860
        %8991 = vmatprep.mubr.bf16.mxu0 %v8439
        %8992 = vmatmul.mubr.bf16.gmra.mrb[0].mxu0 %v8438
        %v8993 = vpop.f32.mrb[0].mxu0
        %v8994 = vadd.f32 %v8563, %v8993
        %v8995 = vpop.f32.mrb[0].mxu0
        %v8996 = vadd.f32 %v8567, %v8995
        %v8997 = vpop.f32.mrb[0].mxu0
        %v8998 = vadd.f32 %v8563, %v8997
        %v8999 = vpop.f32.mrb[0].mxu0
        %v9000 = vadd.f32 %v8567, %v8999
        %9001 = vmatprep.mubr.bf16.mxu0 %v8442
        %9002 = vmatmul.mubr.bf16.gmra.mrb[0].mxu0 %v8441
        %v9003 = vpop.f32.mrb[0].mxu0
        %v9004 = vadd.f32 %v8563, %v9003
        %v9005 = vpop.f32.mrb[0].mxu0
        %v9006 = vadd.f32 %v8567, %v9005
        %v9007 = vpop.f32.mrb[0].mxu0
        %v9008 = vadd.f32 %v8563, %v9007
        %v9009 = vpop.f32.mrb[0].mxu0
        %v9010 = vadd.f32 %v8567, %v9009
        %9011 = vmatprep.mubr.bf16.mxu0 %v8445
        %9012 = vmatmul.mubr.bf16.gmra.mrb[0].mxu0 %v8444
        %v9013 = vpop.f32.mrb[0].mxu0
        %v9014 = vadd.f32 %v8563, %v9013
        %v9015 = vpop.f32.mrb[0].mxu0
        %v9016 = vadd.f32 %v8567, %v9015
        %v9017 = vpop.f32.mrb[0].mxu0
        %v9018 = vadd.f32 %v8563, %v9017
        %v9019 = vpop.f32.mrb[0].mxu0
        %v9020 = vadd.f32 %v8567, %v9019
        %9021 = vmatprep.mubr.bf16.mxu0 %v8448
        %9022 = vmatmul.mubr.bf16.gmra.mrb[0].mxu0 %v8447
        %v9023 = vpop.f32.mrb[0].mxu0
        %v9024 = vadd.f32 %v8563, %v9023
        %v9025 = vpop.f32.mrb[0].mxu0
        %v9026 = vadd.f32 %v8567, %v9025
        %v9027 = vpop.f32.mrb[0].mxu0
        %v9028 = vadd.f32 %v8563, %v9027
        %v9029 = vpop.f32.mrb[0].mxu0
        %v9030 = vadd.f32 %v8567, %v9029
        %9031 = vmatprep.mubr.bf16.mxu0 %v8451
        %9032 = vmatmul.mubr.bf16.gmra.mrb[0].mxu0 %v8450
        %v9033 = vpop.f32.mrb[0].mxu0
        %v9034 = vadd.f32 %v8563, %v9033
        %v9035 = vpop.f32.mrb[0].mxu0
        %v9036 = vadd.f32 %v8567, %v9035
        %v9037 = vpop.f32.mrb[0].mxu0
        %v9038 = vadd.f32 %v8563, %v9037
        %v9039 = vpop.f32.mrb[0].mxu0
        %v9040 = vadd.f32 %v8567, %v9039
        %9041 = vmatprep.mubr.bf16.mxu0 %v8454
        %9042 = vmatmul.mubr.bf16.gmra.mrb[0].mxu0 %v8453
        %v9043 = vpop.f32.mrb[0].mxu0
        %v9044 = vadd.f32 %v8563, %v9043
        %v9045 = vpop.f32.mrb[0].mxu0
        %v9046 = vadd.f32 %v8567, %v9045
        %v9047 = vpop.f32.mrb[0].mxu0
        %v9048 = vadd.f32 %v8563, %v9047
        %v9049 = vpop.f32.mrb[0].mxu0
        %v9050 = vadd.f32 %v8567, %v9049
        %9051 = vmatprep.mubr.bf16.mxu0 %v8457
        %9052 = vmatmul.mubr.bf16.gmra.mrb[0].mxu0 %v8456
        %v9053 = vpop.f32.mrb[0].mxu0
        %v9054 = vadd.f32 %v8563, %v9053
        %v9055 = vpop.f32.mrb[0].mxu0
        %v9056 = vadd.f32 %v8567, %v9055
        %v9057 = vpop.f32.mrb[0].mxu0
        %v9058 = vadd.f32 %v8563, %v9057
        %v9059 = vpop.f32.mrb[0].mxu0
        %v9060 = vadd.f32 %v8567, %v9059
        %9061 = vmatprep.mubr.bf16.mxu0 %v8460
        %9062 = vmatmul.mubr.bf16.gmra.mrb[0].mxu0 %v8459
        %v9063 = vpop.f32.mrb[0].mxu0
        %v9064 = vadd.f32 %v8563, %v9063
        %v9065 = vpop.f32.mrb[0].mxu0
        %v9066 = vadd.f32 %v8567, %v9065
        %v9067 = vpop.f32.mrb[0].mxu0
        %v9068 = vadd.f32 %v8563, %v9067
        %v9069 = vpop.f32.mrb[0].mxu0
        %v9070 = vadd.f32 %v8567, %v9069
        %9071 = vdwg.mxu0
        %9072 = vmatprep.subr.bf16.mxu0 %v8864
        %9073 = vmatpush1.bf16.msra.mxu0 %v8863
        %9074 = vmatprep.subr.bf16.mxu0 %v8867
        %9075 = vmatpush1.bf16.msra.mxu0 %v8866
        %9076 = vmatprep.subr.bf16.mxu0 %v8870
        %9077 = vmatpush1.bf16.msra.mxu0 %v8869
        %9078 = vmatprep.subr.bf16.mxu0 %v8873
        %9079 = vmatpush1.bf16.msra.mxu0 %v8872
        %9080 = vmatprep.subr.bf16.mxu0 %v8876
        %9081 = vmatpush1.bf16.msra.mxu0 %v8875
        %9082 = vmatprep.subr.bf16.mxu0 %v8879
        %9083 = vmatpush1.bf16.msra.mxu0 %v8878
        %9084 = vmatprep.subr.bf16.mxu0 %v8882
        %9085 = vmatpush1.bf16.msra.mxu0 %v8881
        %9086 = vmatprep.subr.bf16.mxu0 %v8885
        %9087 = vmatpush1.bf16.msra.mxu0 %v8884
        %9088 = vmatprep.subr.bf16.mxu0 0
        %9089 = vmatpush1.bf16.msra.mxu0 0
        %9090 = vmatprep.subr.bf16.mxu0 0
        %9091 = vmatpush1.bf16.msra.mxu0 0
        %9092 = vmatprep.subr.bf16.mxu0 0
        %9093 = vmatpush1.bf16.msra.mxu0 0
        %9094 = vmatprep.subr.bf16.mxu0 0
        %9095 = vmatpush1.bf16.msra.mxu0 0
        %9096 = vmatprep.subr.bf16.mxu0 0
        %9097 = vmatpush1.bf16.msra.mxu0 0
        %9098 = vmatprep.subr.bf16.mxu0 0
        %9099 = vmatpush1.bf16.msra.mxu0 0
        %9100 = vmatprep.subr.bf16.mxu0 0
        %9101 = vmatpush1.bf16.msra.mxu0 0
        %9102 = vmatprep.subr.bf16.mxu0 0
        %9103 = vmatpush1.bf16.msra.mxu0 0
        %9104 = vmatprep.mubr.bf16.mxu0 0
        %9105 = vmatmul.mubr.bf16.gmra.mrb[0].mxu0 %v8440
        %v9106 = vpop.f32.mrb[0].mxu0
        %v9107 = vadd.f32 %v8994, %v9106
        %v9108 = vpop.f32.mrb[0].mxu0
        %v9109 = vadd.f32 %v8996, %v9108
        %v9110 = vpop.f32.mrb[0].mxu0
        %v9111 = vadd.f32 %v8998, %v9110
        %v9112 = vpop.f32.mrb[0].mxu0
        %v9113 = vadd.f32 %v9000, %v9112
        %9114 = vmatprep.mubr.bf16.mxu0 0
        %9115 = vmatmul.mubr.bf16.gmra.mrb[0].mxu0 %v8443
        %v9116 = vpop.f32.mrb[0].mxu0
        %v9117 = vadd.f32 %v9004, %v9116
        %v9118 = vpop.f32.mrb[0].mxu0
        %v9119 = vadd.f32 %v9006, %v9118
        %v9120 = vpop.f32.mrb[0].mxu0
        %v9121 = vadd.f32 %v9008, %v9120
        %v9122 = vpop.f32.mrb[0].mxu0
        %v9123 = vadd.f32 %v9010, %v9122
        %9124 = vmatprep.mubr.bf16.mxu0 0
        %9125 = vmatmul.mubr.bf16.gmra.mrb[0].mxu0 %v8446
        %v9126 = vpop.f32.mrb[0].mxu0
        %v9127 = vadd.f32 %v9014, %v9126
        %v9128 = vpop.f32.mrb[0].mxu0
        %v9129 = vadd.f32 %v9016, %v9128
        %v9130 = vpop.f32.mrb[0].mxu0
        %v9131 = vadd.f32 %v9018, %v9130
        %v9132 = vpop.f32.mrb[0].mxu0
        %v9133 = vadd.f32 %v9020, %v9132
        %9134 = vmatprep.mubr.bf16.mxu0 0
        %9135 = vmatmul.mubr.bf16.gmra.mrb[0].mxu0 %v8449
        %v9136 = vpop.f32.mrb[0].mxu0
        %v9137 = vadd.f32 %v9024, %v9136
        %v9138 = vpop.f32.mrb[0].mxu0
        %v9139 = vadd.f32 %v9026, %v9138
        %v9140 = vpop.f32.mrb[0].mxu0
        %v9141 = vadd.f32 %v9028, %v9140
        %v9142 = vpop.f32.mrb[0].mxu0
        %v9143 = vadd.f32 %v9030, %v9142
        %9144 = vmatprep.mubr.bf16.mxu0 0
        %9145 = vmatmul.mubr.bf16.gmra.mrb[0].mxu0 %v8452
        %v9146 = vpop.f32.mrb[0].mxu0
        %v9147 = vadd.f32 %v9034, %v9146
        %v9148 = vpop.f32.mrb[0].mxu0
        %v9149 = vadd.f32 %v9036, %v9148
        %v9150 = vpop.f32.mrb[0].mxu0
        %v9151 = vadd.f32 %v9038, %v9150
        %v9152 = vpop.f32.mrb[0].mxu0
        %v9153 = vadd.f32 %v9040, %v9152
        %9154 = vmatprep.mubr.bf16.mxu0 0
        %9155 = vmatmul.mubr.bf16.gmra.mrb[0].mxu0 %v8455
        %v9156 = vpop.f32.mrb[0].mxu0
        %v9157 = vadd.f32 %v9044, %v9156
        %v9158 = vpop.f32.mrb[0].mxu0
        %v9159 = vadd.f32 %v9046, %v9158
        %v9160 = vpop.f32.mrb[0].mxu0
        %v9161 = vadd.f32 %v9048, %v9160
        %v9162 = vpop.f32.mrb[0].mxu0
        %v9163 = vadd.f32 %v9050, %v9162
        %9164 = vmatprep.mubr.bf16.mxu0 0
        %9165 = vmatmul.mubr.bf16.gmra.mrb[0].mxu0 %v8458
        %v9166 = vpop.f32.mrb[0].mxu0
        %v9167 = vadd.f32 %v9054, %v9166
        %v9168 = vpop.f32.mrb[0].mxu0
        %v9169 = vadd.f32 %v9056, %v9168
        %v9170 = vpop.f32.mrb[0].mxu0
        %v9171 = vadd.f32 %v9058, %v9170
        %v9172 = vpop.f32.mrb[0].mxu0
        %v9173 = vadd.f32 %v9060, %v9172
        %9174 = vmatprep.mubr.bf16.mxu0 0
        %9175 = vmatmul.mubr.bf16.gmra.mrb[0].mxu0 %v8461
        %v9176 = vpop.f32.mrb[0].mxu0
        %v9177 = vadd.f32 %v9064, %v9176
        %v9178 = vpop.f32.mrb[0].mxu0
        %v9179 = vadd.f32 %v9066, %v9178
        %v9180 = vpop.f32.mrb[0].mxu0
        %v9181 = vadd.f32 %v9068, %v9180
        %v9182 = vpop.f32.mrb[0].mxu0
        %v9183 = vadd.f32 %v9070, %v9182
        %9184 = vdwg.mxu0
        %9185 = vmatprep.subr.bf16.mxu0 0
        %9186 = vmatpush1.bf16.msra.mxu0 %v8817
        %9187 = vmatprep.subr.bf16.mxu0 0
        %9188 = vmatpush1.bf16.msra.mxu0 %v8820
        %9189 = vmatprep.subr.bf16.mxu0 0
        %9190 = vmatpush1.bf16.msra.mxu0 %v8823
        %9191 = vmatprep.subr.bf16.mxu0 0
        %9192 = vmatpush1.bf16.msra.mxu0 %v8826
        %9193 = vmatprep.subr.bf16.mxu0 0
        %9194 = vmatpush1.bf16.msra.mxu0 %v8829
        %9195 = vmatprep.subr.bf16.mxu0 0
        %9196 = vmatpush1.bf16.msra.mxu0 %v8832
        %9197 = vmatprep.subr.bf16.mxu0 0
        %9198 = vmatpush1.bf16.msra.mxu0 %v8835
        %9199 = vmatprep.subr.bf16.mxu0 0
        %9200 = vmatpush1.bf16.msra.mxu0 %v8838
        %9201 = vmatprep.subr.bf16.mxu0 0
        %9202 = vmatpush1.bf16.msra.mxu0 %v8841
        %9203 = vmatprep.subr.bf16.mxu0 0
        %9204 = vmatpush1.bf16.msra.mxu0 %v8844
        %9205 = vmatprep.subr.bf16.mxu0 0
        %9206 = vmatpush1.bf16.msra.mxu0 %v8847
        %9207 = vmatprep.subr.bf16.mxu0 0
        %9208 = vmatpush1.bf16.msra.mxu0 %v8850
        %9209 = vmatprep.subr.bf16.mxu0 0
        %9210 = vmatpush1.bf16.msra.mxu0 %v8853
        %9211 = vmatprep.subr.bf16.mxu0 0
        %9212 = vmatpush1.bf16.msra.mxu0 %v8856
        %9213 = vmatprep.subr.bf16.mxu0 0
        %9214 = vmatpush1.bf16.msra.mxu0 %v8859
        %9215 = vmatprep.subr.bf16.mxu0 0
        %9216 = vmatpush1.bf16.msra.mxu0 %v8862
        %9217 = vmatprep.mubr.bf16.mxu0 %v8439
        %9218 = vmatmul.mubr.bf16.gmra.mrb[0].mxu0 %v8438
        %v9219 = vpop.f32.mrb[0].mxu0
        %v9220 = vadd.f32 %v8571, %v9219
        %v9221 = vpop.f32.mrb[0].mxu0
        %v9222 = vpop.f32.mrb[0].mxu0
        %v9223 = vadd.f32 %v8571, %v9222
        %v9224 = vpop.f32.mrb[0].mxu0
        %9225 = vmatprep.mubr.bf16.mxu0 %v8442
        %9226 = vmatmul.mubr.bf16.gmra.mrb[0].mxu0 %v8441
        %v9227 = vpop.f32.mrb[0].mxu0
        %v9228 = vadd.f32 %v8571, %v9227
        %v9229 = vpop.f32.mrb[0].mxu0
        %v9230 = vpop.f32.mrb[0].mxu0
        %v9231 = vadd.f32 %v8571, %v9230
        %v9232 = vpop.f32.mrb[0].mxu0
        %9233 = vmatprep.mubr.bf16.mxu0 %v8445
        %9234 = vmatmul.mubr.bf16.gmra.mrb[0].mxu0 %v8444
        %v9235 = vpop.f32.mrb[0].mxu0
        %v9236 = vadd.f32 %v8571, %v9235
        %v9237 = vpop.f32.mrb[0].mxu0
        %v9238 = vpop.f32.mrb[0].mxu0
        %v9239 = vadd.f32 %v8571, %v9238
        %v9240 = vpop.f32.mrb[0].mxu0
        %9241 = vmatprep.mubr.bf16.mxu0 %v8448
        %9242 = vmatmul.mubr.bf16.gmra.mrb[0].mxu0 %v8447
        %v9243 = vpop.f32.mrb[0].mxu0
        %v9244 = vadd.f32 %v8571, %v9243
        %v9245 = vpop.f32.mrb[0].mxu0
        %v9246 = vpop.f32.mrb[0].mxu0
        %v9247 = vadd.f32 %v8571, %v9246
        %v9248 = vpop.f32.mrb[0].mxu0
        %9249 = vmatprep.mubr.bf16.mxu0 %v8451
        %9250 = vmatmul.mubr.bf16.gmra.mrb[0].mxu0 %v8450
        %v9251 = vpop.f32.mrb[0].mxu0
        %v9252 = vadd.f32 %v8571, %v9251
        %v9253 = vpop.f32.mrb[0].mxu0
        %v9254 = vpop.f32.mrb[0].mxu0
        %v9255 = vadd.f32 %v8571, %v9254
        %v9256 = vpop.f32.mrb[0].mxu0
        %9257 = vmatprep.mubr.bf16.mxu0 %v8454
        %9258 = vmatmul.mubr.bf16.gmra.mrb[0].mxu0 %v8453
        %v9259 = vpop.f32.mrb[0].mxu0
        %v9260 = vadd.f32 %v8571, %v9259
        %v9261 = vpop.f32.mrb[0].mxu0
        %v9262 = vpop.f32.mrb[0].mxu0
        %v9263 = vadd.f32 %v8571, %v9262
        %v9264 = vpop.f32.mrb[0].mxu0
        %9265 = vmatprep.mubr.bf16.mxu0 %v8457
        %9266 = vmatmul.mubr.bf16.gmra.mrb[0].mxu0 %v8456
        %v9267 = vpop.f32.mrb[0].mxu0
        %v9268 = vadd.f32 %v8571, %v9267
        %v9269 = vpop.f32.mrb[0].mxu0
        %v9270 = vpop.f32.mrb[0].mxu0
        %v9271 = vadd.f32 %v8571, %v9270
        %v9272 = vpop.f32.mrb[0].mxu0
        %9273 = vmatprep.mubr.bf16.mxu0 %v8460
        %9274 = vmatmul.mubr.bf16.gmra.mrb[0].mxu0 %v8459
        %v9275 = vpop.f32.mrb[0].mxu0
        %v9276 = vadd.f32 %v8571, %v9275
        %v9277 = vpop.f32.mrb[0].mxu0
        %v9278 = vpop.f32.mrb[0].mxu0
        %v9279 = vadd.f32 %v8571, %v9278
        %v9280 = vpop.f32.mrb[0].mxu0
        %9281 = vdwg.mxu0
        %9282 = vmatprep.subr.bf16.mxu0 0
        %9283 = vmatpush1.bf16.msra.mxu0 %v8865
        %9284 = vmatprep.subr.bf16.mxu0 0
        %9285 = vmatpush1.bf16.msra.mxu0 %v8868
        %9286 = vmatprep.subr.bf16.mxu0 0
        %9287 = vmatpush1.bf16.msra.mxu0 %v8871
        %9288 = vmatprep.subr.bf16.mxu0 0
        %9289 = vmatpush1.bf16.msra.mxu0 %v8874
        %9290 = vmatprep.subr.bf16.mxu0 0
        %9291 = vmatpush1.bf16.msra.mxu0 %v8877
        %9292 = vmatprep.subr.bf16.mxu0 0
        %9293 = vmatpush1.bf16.msra.mxu0 %v8880
        %9294 = vmatprep.subr.bf16.mxu0 0
        %9295 = vmatpush1.bf16.msra.mxu0 %v8883
        %9296 = vmatprep.subr.bf16.mxu0 0
        %9297 = vmatpush1.bf16.msra.mxu0 %v8886
        %9298 = vmatprep.subr.bf16.mxu0 0
        %9299 = vmatpush1.bf16.msra.mxu0 0
        %9300 = vmatprep.subr.bf16.mxu0 0
        %9301 = vmatpush1.bf16.msra.mxu0 0
        %9302 = vmatprep.subr.bf16.mxu0 0
        %9303 = vmatpush1.bf16.msra.mxu0 0
        %9304 = vmatprep.subr.bf16.mxu0 0
        %9305 = vmatpush1.bf16.msra.mxu0 0
        %9306 = vmatprep.subr.bf16.mxu0 0
        %9307 = vmatpush1.bf16.msra.mxu0 0
        %9308 = vmatprep.subr.bf16.mxu0 0
        %9309 = vmatpush1.bf16.msra.mxu0 0
        %9310 = vmatprep.subr.bf16.mxu0 0
        %9311 = vmatpush1.bf16.msra.mxu0 0
        %9312 = vmatprep.subr.bf16.mxu0 0
        %9313 = vmatpush1.bf16.msra.mxu0 0
        %9314 = vmatprep.mubr.bf16.mxu0 0
        %9315 = vmatmul.mubr.bf16.gmra.mrb[0].mxu0 %v8440
        %v9316 = vpop.f32.mrb[0].mxu0
        %v9317 = vadd.f32 %v9220, %v9316
        %v9318 = vpop.f32.mrb[0].mxu0
        %v9319 = vpop.f32.mrb[0].mxu0
        %v9320 = vadd.f32 %v9223, %v9319
        %v9321 = vpop.f32.mrb[0].mxu0
        %9322 = vmatprep.mubr.bf16.mxu0 0
        %9323 = vmatmul.mubr.bf16.gmra.mrb[0].mxu0 %v8443
        %v9324 = vpop.f32.mrb[0].mxu0
        %v9325 = vadd.f32 %v9228, %v9324
        %v9326 = vpop.f32.mrb[0].mxu0
        %v9327 = vpop.f32.mrb[0].mxu0
        %v9328 = vadd.f32 %v9231, %v9327
        %v9329 = vpop.f32.mrb[0].mxu0
        %9330 = vmatprep.mubr.bf16.mxu0 0
        %9331 = vmatmul.mubr.bf16.gmra.mrb[0].mxu0 %v8446
        %v9332 = vpop.f32.mrb[0].mxu0
        %v9333 = vadd.f32 %v9236, %v9332
        %v9334 = vpop.f32.mrb[0].mxu0
        %v9335 = vpop.f32.mrb[0].mxu0
        %v9336 = vadd.f32 %v9239, %v9335
        %v9337 = vpop.f32.mrb[0].mxu0
        %9338 = vmatprep.mubr.bf16.mxu0 0
        %9339 = vmatmul.mubr.bf16.gmra.mrb[0].mxu0 %v8449
        %v9340 = vpop.f32.mrb[0].mxu0
        %v9341 = vadd.f32 %v9244, %v9340
        %v9342 = vpop.f32.mrb[0].mxu0
        %v9343 = vpop.f32.mrb[0].mxu0
        %v9344 = vadd.f32 %v9247, %v9343
        %v9345 = vpop.f32.mrb[0].mxu0
        %9346 = vmatprep.mubr.bf16.mxu0 0
        %9347 = vmatmul.mubr.bf16.gmra.mrb[0].mxu0 %v8452
        %v9348 = vpop.f32.mrb[0].mxu0
        %v9349 = vadd.f32 %v9252, %v9348
        %v9350 = vpop.f32.mrb[0].mxu0
        %v9351 = vpop.f32.mrb[0].mxu0
        %v9352 = vadd.f32 %v9255, %v9351
        %v9353 = vpop.f32.mrb[0].mxu0
        %9354 = vmatprep.mubr.bf16.mxu0 0
        %9355 = vmatmul.mubr.bf16.gmra.mrb[0].mxu0 %v8455
        %v9356 = vpop.f32.mrb[0].mxu0
        %v9357 = vadd.f32 %v9260, %v9356
        %v9358 = vpop.f32.mrb[0].mxu0
        %v9359 = vpop.f32.mrb[0].mxu0
        %v9360 = vadd.f32 %v9263, %v9359
        %v9361 = vpop.f32.mrb[0].mxu0
        %9362 = vmatprep.mubr.bf16.mxu0 0
        %9363 = vmatmul.mubr.bf16.gmra.mrb[0].mxu0 %v8458
        %v9364 = vpop.f32.mrb[0].mxu0
        %v9365 = vadd.f32 %v9268, %v9364
        %v9366 = vpop.f32.mrb[0].mxu0
        %v9367 = vpop.f32.mrb[0].mxu0
        %v9368 = vadd.f32 %v9271, %v9367
        %v9369 = vpop.f32.mrb[0].mxu0
        %9370 = vmatprep.mubr.bf16.mxu0 0
        %9371 = vmatmul.mubr.bf16.gmra.mrb[0].mxu0 %v8461
        %v9372 = vpop.f32.mrb[0].mxu0
        %v9373 = vadd.f32 %v9276, %v9372
        %v9374 = vpop.f32.mrb[0].mxu0
        %v9375 = vpop.f32.mrb[0].mxu0
        %v9376 = vadd.f32 %v9279, %v9375
        %v9377 = vpop.f32.mrb[0].mxu0
        %9378 = vdwg.mxu0
        %9379 = vst [vmem:[%s258] sm:$0xff] %v9107
        %9380 = vst [vmem:[%s258 + $0x8] sm:$0xff] %v9109
        %9381 = vst [vmem:[%s258 + $0x10] sm:$0xff] %v9317
        %9382 = vst [vmem:[%s258 + $0x18] sm:$0xff] %v9111
        %9383 = vst [vmem:[%s258 + $0x20] sm:$0xff] %v9113
        %9384 = vst [vmem:[%s258 + $0x28] sm:$0xff] %v9320
        %9385 = vst [vmem:[%s258 + $0x30] sm:$0xff] %v9117
        %9386 = vst [vmem:[%s258 + $0x38] sm:$0xff] %v9119
        %9387 = vst [vmem:[%s258 + $0x40] sm:$0xff] %v9325
        %9388 = vst [vmem:[%s258 + $0x48] sm:$0xff] %v9121
        %9389 = vst [vmem:[%s258 + $0x50] sm:$0xff] %v9123
        %9390 = vst [vmem:[%s258 + $0x58] sm:$0xff] %v9328
        %9391 = vst [vmem:[%s258 + $0x60] sm:$0xff] %v9127
        %9392 = vst [vmem:[%s258 + $0x68] sm:$0xff] %v9129
        %9393 = vst [vmem:[%s258 + $0x70] sm:$0xff] %v9333
        %9394 = vst [vmem:[%s258 + $0x78] sm:$0xff] %v9131
        %9395 = vst [vmem:[%s258 + $0x80] sm:$0xff] %v9133
        %9396 = vst [vmem:[%s258 + $0x88] sm:$0xff] %v9336
        %9397 = vst [vmem:[%s258 + $0x90] sm:$0xff] %v9137
        %9398 = vst [vmem:[%s258 + $0x98] sm:$0xff] %v9139
        %9399 = vst [vmem:[%s258 + $0xa0] sm:$0xff] %v9341
        %9400 = vst [vmem:[%s258 + $0xa8] sm:$0xff] %v9141
        %9401 = vst [vmem:[%s258 + $0xb0] sm:$0xff] %v9143
        %9402 = vst [vmem:[%s258 + $0xb8] sm:$0xff] %v9344
        %9403 = vst [vmem:[%s258 + $0xc0] sm:$0xff] %v9147
        %9404 = vst [vmem:[%s258 + $0xc8] sm:$0xff] %v9149
        %9405 = vst [vmem:[%s258 + $0xd0] sm:$0xff] %v9349
        %9406 = vst [vmem:[%s258 + $0xd8] sm:$0xff] %v9151
        %9407 = vst [vmem:[%s258 + $0xe0] sm:$0xff] %v9153
        %9408 = vst [vmem:[%s258 + $0xe8] sm:$0xff] %v9352
        %9409 = vst [vmem:[%s258 + $0xf0] sm:$0xff] %v9157
        %9410 = vst [vmem:[%s258 + $0xf8] sm:$0xff] %v9159
        %9411 = vst [vmem:[%s258 + $0x100] sm:$0xff] %v9357
        %9412 = vst [vmem:[%s258 + $0x108] sm:$0xff] %v9161
        %9413 = vst [vmem:[%s258 + $0x110] sm:$0xff] %v9163
        %9414 = vst [vmem:[%s258 + $0x118] sm:$0xff] %v9360
        %9415 = vst [vmem:[%s258 + $0x120] sm:$0xff] %v9167
        %9416 = vst [vmem:[%s258 + $0x128] sm:$0xff] %v9169
        %9417 = vst [vmem:[%s258 + $0x130] sm:$0xff] %v9365
        %9418 = vst [vmem:[%s258 + $0x138] sm:$0xff] %v9171
        %9419 = vst [vmem:[%s258 + $0x140] sm:$0xff] %v9173
        %9420 = vst [vmem:[%s258 + $0x148] sm:$0xff] %v9368
        %9421 = vst [vmem:[%s258 + $0x150] sm:$0xff] %v9177
        %9422 = vst [vmem:[%s258 + $0x158] sm:$0xff] %v9179
        %9423 = vst [vmem:[%s258 + $0x160] sm:$0xff] %v9373
        %9424 = vst [vmem:[%s258 + $0x168] sm:$0xff] %v9181
        %9425 = vst [vmem:[%s258 + $0x170] sm:$0xff] %v9183
        %9426 = vst [vmem:[%s258 + $0x178] sm:$0xff] %v9376
        %s9427 = sand.u32 %s133, 1
        %s9428 = scalar_lea.sflag [#allocation6], %s9427
        %s9429 = sand.u32 %s133, 1
        %s9430 = smul.addr %s9429, 384
        %s9431 = scalar_lea.vmem [#allocation10], %s9430
        // Predicated region
        $region53: #{tpu_custom_call.1} parent=35 // pred_check
          %p9432 = pneg %p143
        $region54: #{tpu_custom_call.1} parent=35 // pred_check_branch
          %9434 = sbr.rel (%p9432) target = $region56
        $region55: #{tpu_custom_call.1} parent=35 // pred_region
          %s9435 = smul.u32 16, %s27
          %s9437 = ssub.s32 6144, 6144
          %9438 = vsyncadd %s9428, %s9437
          %s9439 = smul.addr %s9435, 3
          %s9440 = smul.addr %s26, 96
          %s9441 = sadd.s32 %s9439, %s9440
          %s9442 = smul.addr %s9441, 128
          %s9443 = scalar_lea.hbm %s4, %s9442
          %s9444 = sshll.u32 %s9431, 4
          %s9445 = int_to_ptr.vmem [resolvable:$true] %s9444
          %9450 = dma.vmem_to_hbm [thread:$0]  %s9445, 6144, %s9443, %s9428, 384, 384, 24
        $region56: #{tpu_custom_call.1} parent=35 // pred_fallthru
          _
      $region36: #{tpu_custom_call.1} parent=5 // pred_fallthru
        _
      %p9451 = scmp.le.s32.totalorder 2, %s17
      // Predicated region
      $region57: #{tpu_custom_call.1} parent=5 // pred_check
        %p9452 = pneg %p9451
      $region58: #{tpu_custom_call.1} parent=5 // pred_check_branch
        %9454 = sbr.rel (%p9452) target = $region60
      $region59: #{tpu_custom_call.1} parent=5 // pred_region
        %s9455 = ssub.s32 %s17, 2
        // Predicated region
        $region61: #{tpu_custom_call.1} parent=59 // pred_check
          %p9456 = pneg %p149
        $region62: #{tpu_custom_call.1} parent=59 // pred_check_branch
          %9458 = sbr.rel (%p9456) target = $region64
        $region63: #{tpu_custom_call.1} parent=59 // pred_region
          %s9459 = sand.u32 %s134, 1
          %s9460 = scalar_lea.sflag [#allocation6], %s9459
          %s9461 = sand.u32 %s134, 1
          %s9462 = smul.addr %s9461, 384
          %s9463 = scalar_lea.vmem [#allocation10], %s9462
          %9464 = dma.done %s9460, 6144
        $region64: #{tpu_custom_call.1} parent=59 // pred_fallthru
          _
      $region60: #{tpu_custom_call.1} parent=5 // pred_fallthru
        _
    $region6: #{tpu_custom_call.1} parent=1 // loop_footer
      %s21 = sadd.s32 1, %s17
    $region7: #{tpu_custom_call.1} parent=1 // loop_footer_branch
      %16 = sbr.rel target = $region3
    $region8: #{tpu_custom_call.1} parent=1 // loop_exit
      _
    %9465 = vsyncpa [#allocation5], 1
    %s9466 = scalar_lea.sflag [#allocation5], 1
    %9467 = vsyncpa %s9466, 1
    %9468 = vsyncpa [#allocation8], 1
    %9469 = vsyncpa [#allocation6], 1
    %s9470 = scalar_lea.sflag [#allocation6], 1
    %9471 = vsyncpa %s9470, 1

</llo_original>
